<compile_context>
chip_gen: v7x
topology: tpu7x:2x2x1
jax: 0.10.0
libtpu: 0.0.40
codegen_flags: <defaults>
</compile_context>

<pallas_src>
import functools

import jax
import jax.numpy as jnp
from jax.experimental import pallas as pl
from jax.experimental.pallas import tpu as pltpu

N_FEATURES = 1024 * 14                    # 14336, hard-coded by the module
TM = 256                                  # output-row tile of W (14336 % 256 == 0)
NUM_CORES = 2                             # leading 'parallel' grid axis (v7x megacore)
ROW_BLOCKS = N_FEATURES // TM             # 56
BLOCKS_PER_CORE = ROW_BLOCKS // NUM_CORES  # 28
LANES = 128


def _linear_mse_kernel(w_ref, x_ref, c_ref, out_ref, acc_ref, *, tm):
    """Grid = (core, row-block). The row-block axis is a reduction: the (8,128)
    VMEM scratch holds per-lane partial sums of squares for this core and is
    flushed to the core's output block on the last step."""
    i = pl.program_id(1)

    @pl.when(i == 0)
    def _():
        acc_ref[...] = jnp.zeros_like(acc_ref)

    # (1, N) x (TM, N) -> (1, TM): contract the last (feature) dim of both
    # operands (q·k^T pattern, MXU-friendly, no transpose of the W block).
    y = jax.lax.dot_general(
        x_ref[...], w_ref[...],
        dimension_numbers=(((1,), (1,)), ((), ())),
        preferred_element_type=jnp.float32)            # (1, TM) f32

    # c = (b - x) precomputed in the wrapper, sliced per output-row block.
    diff = y + c_ref[...]                              # (1, TM)
    sq = diff * diff

    # Fold the (1, TM) row into the (8, 128) per-lane accumulator
    # (vreg-aligned lane slices; static Python unroll, TM // 128 chunks).
    for off in range(0, tm, LANES):
        row = (off // LANES) % 8
        acc_ref[row:row + 1, :] = acc_ref[row:row + 1, :] + sq[:, off:off + LANES]

    @pl.when(i == pl.num_programs(1) - 1)
    def _():
        out_ref[...] = acc_ref[...]                    # unmasked (8,128) store


@jax.jit
def linear_mse_loss(weight, bias, x):
    """weight: (N, N) PyTorch-convention Linear weight, bias: (N,), x: any
    shape with N total elements.  Returns scalar MSE(W @ x_flat + b, x_flat)."""
    n = N_FEATURES
    x_flat = x.reshape(1, -1)
    assert x_flat.shape[1] == n, "input must have 1024*14 elements"
    if x_flat.dtype != jnp.float32:
        x_flat = x_flat.astype(jnp.float32)
    w = weight if weight.dtype == jnp.float32 else weight.astype(jnp.float32)
    # Fold bias and the MSE target together: diff = (W x + b) - x = W x + (b - x).
    c = bias.reshape(1, n).astype(jnp.float32) - x_flat

    grid = (NUM_CORES, BLOCKS_PER_CORE)
    partials = pl.pallas_call(
        functools.partial(_linear_mse_kernel, tm=TM),
        out_shape=jax.ShapeDtypeStruct((NUM_CORES * 8, LANES), jnp.float32),
        grid_spec=pltpu.PrefetchScalarGridSpec(
            num_scalar_prefetch=0,
            grid=grid,
            in_specs=[
                # W row-block: rows [ (core*BLOCKS_PER_CORE + i)*TM , +TM )
                pl.BlockSpec((TM, n),
                             lambda c_, i: (c_ * BLOCKS_PER_CORE + i, 0)),
                # full x row vector, lane-dense, resident across the grid
                pl.BlockSpec((1, n), lambda c_, i: (0, 0)),
                # (b - x) slice matching the current output-row block
                pl.BlockSpec((1, TM),
                             lambda c_, i: (0, c_ * BLOCKS_PER_CORE + i)),
            ],
            # one aligned (8,128) per-lane partial block per core
            out_specs=pl.BlockSpec((8, LANES), lambda c_, i: (c_, 0)),
            scratch_shapes=[pltpu.VMEM((8, LANES), jnp.float32)],
        ),
        compiler_params=pltpu.CompilerParams(
            # core axis parallel (v7x megacore), row-block axis is the reduction
            dimension_semantics=("parallel", "arbitrary"),
            # ~48 MiB: big enough for 2x (256,14336) f32 W buffers, leaves
            # headroom under v7x's 64 MiB physical VMEM.
            vmem_limit_bytes=48 << 20,
        ),
    )(w, x_flat, c)

    return jnp.sum(partials) / jnp.float32(n)


def model_example_forward(params, x):
    """Mirrors model_example.forward: returns a loss dict."""
    loss1 = linear_mse_loss(params["weight"], params["bias"], x)
    return {"loss1": loss1}


def init_params(key):
    """Deterministic init matching nn.Linear's default: U(-1/sqrt(in), 1/sqrt(in))."""
    kw, kb = jax.random.split(key)
    bound = 1.0 / jnp.sqrt(jnp.float32(N_FEATURES))
    weight = jax.random.uniform(
        kw, (N_FEATURES, N_FEATURES), jnp.float32, minval=-bound, maxval=bound)
    bias = jax.random.uniform(
        kb, (N_FEATURES,), jnp.float32, minval=-bound, maxval=bound)
    return {"weight": weight, "bias": bias}


if __name__ == "__main__":
    key = jax.random.PRNGKey(0)
    k_params, k_x = jax.random.split(key)

    params = init_params(k_params)
    # Any shape with 1024*14 total elements works; the module reshape(-1)'s it.
    x = jax.random.normal(k_x, (1024, 14), dtype=jnp.float32)

    loss_dict = model_example_forward(params, x)
    jax.block_until_ready(loss_dict["loss1"])
    print("KERNEL_OK")
</pallas_src>

<mosaic_0001>
module attributes {stable_mosaic.version = 11 : i64} {
  func.func @_linear_mse_kernel(%arg0: i32, %arg1: i32, %arg2: memref<256x14336xf32, #tpu.memory_space<vmem>>, %arg3: memref<1x14336xf32, #tpu.memory_space<vmem>>, %arg4: memref<1x256xf32, #tpu.memory_space<vmem>>, %arg5: memref<8x128xf32, #tpu.memory_space<vmem>>, %arg6: memref<8x128xf32, #tpu.memory_space<vmem>>) attributes {dimension_semantics = [#tpu.dimension_semantics<parallel>, #tpu.dimension_semantics<arbitrary>], iteration_bounds = array<i64: 2, 28>, scalar_prefetch = 0 : i64, scratch_operands = 1 : i64, tpu.core_type = #tpu.core_type<tc>, window_params = [{transform_indices = @transform_0, window_bounds = array<i64: 256, 14336>}, {pipeline_mode = #tpu.pipeline_mode<synchronous>, transform_indices = @transform_1, window_bounds = array<i64: 1, 14336>}, {transform_indices = @transform_2, window_bounds = array<i64: 1, 256>}, {transform_indices = @transform_3, window_bounds = array<i64: 8, 128>}]} {
    %c0_i32 = arith.constant 0 : i32
    %0 = arith.cmpi eq, %arg1, %c0_i32 : i32
    %1 = arith.extui %0 : i1 to i32
    %c0_i32_0 = arith.constant 0 : i32
    %2 = arith.cmpi ne, %1, %c0_i32_0 : i32
    scf.if %2 {
      %cst_14 = arith.constant 0.000000e+00 : f32
      %20 = vector.broadcast %cst_14 : f32 to vector<8x128xf32>
      %c0_15 = arith.constant 0 : index
      %c0_16 = arith.constant 0 : index
      %21 = vector.load %arg6[%c0_15, %c0_16] : memref<8x128xf32, #tpu.memory_space<vmem>>, vector<8x128xf32>
      tpu.vector_store %arg6[%c0_15, %c0_16], %20 {strides = array<i32>} : memref<8x128xf32, #tpu.memory_space<vmem>>, vector<8x128xf32>,
    } else {
    }
    %c0 = arith.constant 0 : index
    %c0_1 = arith.constant 0 : index
    %3 = vector.load %arg3[%c0, %c0_1] : memref<1x14336xf32, #tpu.memory_space<vmem>>, vector<1x14336xf32>
    %c0_2 = arith.constant 0 : index
    %c0_3 = arith.constant 0 : index
    %4 = vector.load %arg2[%c0_2, %c0_3] : memref<256x14336xf32, #tpu.memory_space<vmem>>, vector<256x14336xf32>
    %cst = arith.constant dense<0.000000e+00> : vector<1x256xf32>
    %5 = tpu.matmul %3, %4, %cst {dimension_numbers = #tpu.dot_dimension_numbers<[1], [1], [0], [0], [0, 0, 1, 0], [], []>} : vector<1x14336xf32>, vector<256x14336xf32>, vector<1x256xf32> -> vector<1x256xf32>
    %c0_4 = arith.constant 0 : index
    %c0_5 = arith.constant 0 : index
    %6 = vector.load %arg4[%c0_4, %c0_5] : memref<1x256xf32, #tpu.memory_space<vmem>>, vector<1x256xf32>
    %7 = arith.addf %5, %6 : vector<1x256xf32>
    %8 = arith.mulf %7, %7 : vector<1x256xf32>
    %c0_6 = arith.constant 0 : index
    %c0_7 = arith.constant 0 : index
    %9 = vector.load %arg6[%c0_6, %c0_7] : memref<8x128xf32, #tpu.memory_space<vmem>>, vector<1x128xf32>
    %10 = vector.extract_strided_slice %8 {offsets = [0, 0], sizes = [1, 128], strides = [1, 1]} : vector<1x256xf32> to vector<1x128xf32>
    %11 = arith.addf %9, %10 : vector<1x128xf32>
    %c0_8 = arith.constant 0 : index
    %c0_9 = arith.constant 0 : index
    %12 = vector.load %arg6[%c0_8, %c0_9] : memref<8x128xf32, #tpu.memory_space<vmem>>, vector<1x128xf32>
    tpu.vector_store %arg6[%c0_8, %c0_9], %11 {strides = array<i32>} : memref<8x128xf32, #tpu.memory_space<vmem>>, vector<1x128xf32>,
    %c1 = arith.constant 1 : index
    %c0_10 = arith.constant 0 : index
    %13 = vector.load %arg6[%c1, %c0_10] : memref<8x128xf32, #tpu.memory_space<vmem>>, vector<1x128xf32>
    %14 = vector.extract_strided_slice %8 {offsets = [0, 128], sizes = [1, 128], strides = [1, 1]} : vector<1x256xf32> to vector<1x128xf32>
    %15 = arith.addf %13, %14 : vector<1x128xf32>
    %c1_11 = arith.constant 1 : index
    %c0_12 = arith.constant 0 : index
    %16 = vector.load %arg6[%c1_11, %c0_12] : memref<8x128xf32, #tpu.memory_space<vmem>>, vector<1x128xf32>
    tpu.vector_store %arg6[%c1_11, %c0_12], %15 {strides = array<i32>} : memref<8x128xf32, #tpu.memory_space<vmem>>, vector<1x128xf32>,
    %c27_i32 = arith.constant 27 : i32
    %17 = arith.cmpi eq, %arg1, %c27_i32 : i32
    %18 = arith.extui %17 : i1 to i32
    %c0_i32_13 = arith.constant 0 : i32
    %19 = arith.cmpi ne, %18, %c0_i32_13 : i32
    scf.if %19 {
      %c0_14 = arith.constant 0 : index
      %c0_15 = arith.constant 0 : index
      %20 = vector.load %arg6[%c0_14, %c0_15] : memref<8x128xf32, #tpu.memory_space<vmem>>, vector<8x128xf32>
      %c0_16 = arith.constant 0 : index
      %c0_17 = arith.constant 0 : index
      %21 = vector.load %arg5[%c0_16, %c0_17] : memref<8x128xf32, #tpu.memory_space<vmem>>, vector<8x128xf32>
      tpu.vector_store %arg5[%c0_16, %c0_17], %20 {strides = array<i32>} : memref<8x128xf32, #tpu.memory_space<vmem>>, vector<8x128xf32>,
    } else {
    }
    return
  }
  func.func @transform_0(%arg0: i32, %arg1: i32) -> (i32, i32) {
    %c28_i32 = arith.constant 28 : i32
    %0 = arith.muli %arg0, %c28_i32 : i32
    %1 = arith.addi %0, %arg1 : i32
    %c0_i32 = arith.constant 0 : i32
    %c0_i32_0 = arith.constant 0 : i32
    return %1, %c0_i32 : i32, i32
  }
  func.func @transform_1(%arg0: i32, %arg1: i32) -> (i32, i32) {
    %c0_i32 = arith.constant 0 : i32
    %c0_i32_0 = arith.constant 0 : i32
    %c0_i32_1 = arith.constant 0 : i32
    return %c0_i32, %c0_i32_0 : i32, i32
  }
  func.func @transform_2(%arg0: i32, %arg1: i32) -> (i32, i32) {
    %c28_i32 = arith.constant 28 : i32
    %0 = arith.muli %arg0, %c28_i32 : i32
    %1 = arith.addi %0, %arg1 : i32
    %c0_i32 = arith.constant 0 : i32
    %c0_i32_0 = arith.constant 0 : i32
    return %c0_i32, %1 : i32, i32
  }
  func.func @transform_3(%arg0: i32, %arg1: i32) -> (i32, i32) {
    %c0_i32 = arith.constant 0 : i32
    %c0_i32_0 = arith.constant 0 : i32
    return %arg0, %c0_i32 : i32, i32
  }
}

</mosaic_0001>

<llo_original>
// kernel: sub.0
$region0: #{sub.0}
  #allocation2 [shape = 's32[1]{0}', space=sflag, size = 0x4, scoped, tag = 'scoped memory for sub.0']
  %s0 = inlined_call_operand.hbm [shape: f32[14336], index: 0, kind: input, shape index: {}]
  %s1 = inlined_call_operand.vmem [shape: f32[14336], index: 1, kind: input, shape index: {}]
  %s2 = inlined_call_operand.vmem [shape: f32[14336], index: 2, kind: output, shape index: {}]
  $region1: #{sub.0} parent=0
    #allocation0 [shape = 'u8[57344]{0}', space=vmem, size = 0xe000, scoped, tag = 'operand span for operand 0']
    #allocation1 [shape = 's32[1]{0}', space=sflag, size = 0x4, scoped, tag = 'scoped memory for sub.0']
    %3 = vsyncpa [#allocation1], 0
    %s5 = ssub.s32 1792, 1792
    %6 = vsyncadd [#allocation1], %s5
    %s8 = sshll.u32 [#allocation0], 4
    %s9 = int_to_ptr.vmem [resolvable:$true] %s8
    %11 = dma.hbm_to_vmem [thread:$0]  %s0, 1792, %s9, [#allocation1]
    %12 = dma.done [#allocation1], 1792
    %v13 = vld [vmem:[#allocation0] sm:$0xff]
    %v14 = vld [vmem:[%s1] sm:$0xff]
    %15 = xla_tuple %v13, %v14
    %16 = xla_tuple %15
    %v17 = vsub.f32 %v13, %v14
    %18 = xla_tuple %v17
    %19 = vst [vmem:[%s2] sm:$0xff] %v17
    %s20 = scalar_lea.vmem [#allocation0], 8
    %v21 = vld [vmem:[%s20] sm:$0xff]
    %s22 = scalar_lea.vmem %s1, 8
    %v23 = vld [vmem:[%s22] sm:$0xff]
    %24 = xla_tuple %v21, %v23
    %25 = xla_tuple %24
    %v26 = vsub.f32 %v21, %v23
    %27 = xla_tuple %v26
    %s28 = scalar_lea.vmem %s2, 8
    %29 = vst [vmem:[%s28] sm:$0xff] %v26
    %s30 = scalar_lea.vmem [#allocation0], 16
    %v31 = vld [vmem:[%s30] sm:$0xff]
    %s32 = scalar_lea.vmem %s1, 16
    %v33 = vld [vmem:[%s32] sm:$0xff]
    %34 = xla_tuple %v31, %v33
    %35 = xla_tuple %34
    %v36 = vsub.f32 %v31, %v33
    %37 = xla_tuple %v36
    %s38 = scalar_lea.vmem %s2, 16
    %39 = vst [vmem:[%s38] sm:$0xff] %v36
    %s40 = scalar_lea.vmem [#allocation0], 24
    %v41 = vld [vmem:[%s40] sm:$0xff]
    %s42 = scalar_lea.vmem %s1, 24
    %v43 = vld [vmem:[%s42] sm:$0xff]
    %44 = xla_tuple %v41, %v43
    %45 = xla_tuple %44
    %v46 = vsub.f32 %v41, %v43
    %47 = xla_tuple %v46
    %s48 = scalar_lea.vmem %s2, 24
    %49 = vst [vmem:[%s48] sm:$0xff] %v46
    %s50 = scalar_lea.vmem [#allocation0], 32
    %v51 = vld [vmem:[%s50] sm:$0xff]
    %s52 = scalar_lea.vmem %s1, 32
    %v53 = vld [vmem:[%s52] sm:$0xff]
    %54 = xla_tuple %v51, %v53
    %55 = xla_tuple %54
    %v56 = vsub.f32 %v51, %v53
    %57 = xla_tuple %v56
    %s58 = scalar_lea.vmem %s2, 32
    %59 = vst [vmem:[%s58] sm:$0xff] %v56
    %s60 = scalar_lea.vmem [#allocation0], 40
    %v61 = vld [vmem:[%s60] sm:$0xff]
    %s62 = scalar_lea.vmem %s1, 40
    %v63 = vld [vmem:[%s62] sm:$0xff]
    %64 = xla_tuple %v61, %v63
    %65 = xla_tuple %64
    %v66 = vsub.f32 %v61, %v63
    %67 = xla_tuple %v66
    %s68 = scalar_lea.vmem %s2, 40
    %69 = vst [vmem:[%s68] sm:$0xff] %v66
    %s70 = scalar_lea.vmem [#allocation0], 48
    %v71 = vld [vmem:[%s70] sm:$0xff]
    %s72 = scalar_lea.vmem %s1, 48
    %v73 = vld [vmem:[%s72] sm:$0xff]
    %74 = xla_tuple %v71, %v73
    %75 = xla_tuple %74
    %v76 = vsub.f32 %v71, %v73
    %77 = xla_tuple %v76
    %s78 = scalar_lea.vmem %s2, 48
    %79 = vst [vmem:[%s78] sm:$0xff] %v76
    %s80 = scalar_lea.vmem [#allocation0], 56
    %v81 = vld [vmem:[%s80] sm:$0xff]
    %s82 = scalar_lea.vmem %s1, 56
    %v83 = vld [vmem:[%s82] sm:$0xff]
    %84 = xla_tuple %v81, %v83
    %85 = xla_tuple %84
    %v86 = vsub.f32 %v81, %v83
    %87 = xla_tuple %v86
    %s88 = scalar_lea.vmem %s2, 56
    %89 = vst [vmem:[%s88] sm:$0xff] %v86
    %s90 = scalar_lea.vmem [#allocation0], 64
    %v91 = vld [vmem:[%s90] sm:$0xff]
    %s92 = scalar_lea.vmem %s1, 64
    %v93 = vld [vmem:[%s92] sm:$0xff]
    %94 = xla_tuple %v91, %v93
    %95 = xla_tuple %94
    %v96 = vsub.f32 %v91, %v93
    %97 = xla_tuple %v96
    %s98 = scalar_lea.vmem %s2, 64
    %99 = vst [vmem:[%s98] sm:$0xff] %v96
    %s100 = scalar_lea.vmem [#allocation0], 72
    %v101 = vld [vmem:[%s100] sm:$0xff]
    %s102 = scalar_lea.vmem %s1, 72
    %v103 = vld [vmem:[%s102] sm:$0xff]
    %104 = xla_tuple %v101, %v103
    %105 = xla_tuple %104
    %v106 = vsub.f32 %v101, %v103
    %107 = xla_tuple %v106
    %s108 = scalar_lea.vmem %s2, 72
    %109 = vst [vmem:[%s108] sm:$0xff] %v106
    %s110 = scalar_lea.vmem [#allocation0], 80
    %v111 = vld [vmem:[%s110] sm:$0xff]
    %s112 = scalar_lea.vmem %s1, 80
    %v113 = vld [vmem:[%s112] sm:$0xff]
    %114 = xla_tuple %v111, %v113
    %115 = xla_tuple %114
    %v116 = vsub.f32 %v111, %v113
    %117 = xla_tuple %v116
    %s118 = scalar_lea.vmem %s2, 80
    %119 = vst [vmem:[%s118] sm:$0xff] %v116
    %s120 = scalar_lea.vmem [#allocation0], 88
    %v121 = vld [vmem:[%s120] sm:$0xff]
    %s122 = scalar_lea.vmem %s1, 88
    %v123 = vld [vmem:[%s122] sm:$0xff]
    %124 = xla_tuple %v121, %v123
    %125 = xla_tuple %124
    %v126 = vsub.f32 %v121, %v123
    %127 = xla_tuple %v126
    %s128 = scalar_lea.vmem %s2, 88
    %129 = vst [vmem:[%s128] sm:$0xff] %v126
    %s130 = scalar_lea.vmem [#allocation0], 96
    %v131 = vld [vmem:[%s130] sm:$0xff]
    %s132 = scalar_lea.vmem %s1, 96
    %v133 = vld [vmem:[%s132] sm:$0xff]
    %134 = xla_tuple %v131, %v133
    %135 = xla_tuple %134
    %v136 = vsub.f32 %v131, %v133
    %137 = xla_tuple %v136
    %s138 = scalar_lea.vmem %s2, 96
    %139 = vst [vmem:[%s138] sm:$0xff] %v136
    %s140 = scalar_lea.vmem [#allocation0], 104
    %v141 = vld [vmem:[%s140] sm:$0xff]
    %s142 = scalar_lea.vmem %s1, 104
    %v143 = vld [vmem:[%s142] sm:$0xff]
    %144 = xla_tuple %v141, %v143
    %145 = xla_tuple %144
    %v146 = vsub.f32 %v141, %v143
    %147 = xla_tuple %v146
    %s148 = scalar_lea.vmem %s2, 104
    %149 = vst [vmem:[%s148] sm:$0xff] %v146
    %150 = vsyncpa [#allocation1], 1

// kernel: linear_mse_loss.1
$region0: #{linear_mse_loss.1}
  #allocation0 [shape = 'u32[]', space=smem, size = 0x4, offset = 0x4, fixed_abs, tag = 'smem constant byte address 0x4 - core index']
  #allocation1 [shape = 'u32[144,128]{1,0:T(1,128)}', space=vmem, size = 0x12000, scoped, tag = 'internal scratch']
  #allocation2 [shape = 'f32[8,128]{1,0:T(8,128)}', space=vmem, size = 0x1000, scoped, tag = 'scratch operand']
  %s0 = inlined_call_operand.hbm [shape: f32[14336,14336], index: 0, kind: input, shape index: {}]
  %s1 = inlined_call_operand.vmem [shape: f32[1,14336], index: 1, kind: input, shape index: {}]
  %s2 = inlined_call_operand.vmem [shape: f32[1,14336], index: 2, kind: input, shape index: {}]
  %s3 = inlined_call_operand.vmem [shape: f32[16,128], index: 3, kind: output, shape index: {}]
  %s4 = sld [smem:[#allocation0]]
  $region57: #{linear_mse_loss.1} parent=0
    _
  %s6 = ssub.s32 1, %s4
  %s7 = scalar_select 0, %s6, %s4
  $region1: #{linear_mse_loss.1} parent=0
    #allocation3 [shape = 'u8[29360128]{0}', space=vmem, size = 0x1c00000, scoped, tag = 'input window, operand 0']
    #allocation4 [shape = 's32[2]{0}', space=sflag, size = 0x8, scoped, tag = 'scoped memory for linear_mse_loss.1']
    %8 = vsyncpa [#allocation4], 0
    %s9 = scalar_lea.sflag [#allocation4], 1
    %10 = vsyncpa %s9, 0
    loop: start=0, step=1, limit=58
    $region2: #{linear_mse_loss.1} parent=1 // loop_pre_header
      _
    $region3: #{linear_mse_loss.1} parent=1 // loop_header
      %s12 = sphi 0, %s16
      %p13 = scmp.ge.s32.totalorder %s12, 58
      %s19 = sphi 0, %s31
      %s20 = sphi 0, %s27
      %s21 = sphi 0, %s19
      %s22 = sphi 0, %s20
      %s23 = sphi 0, %s21
      %s24 = sphi 0, %s22
      %s38 = sphi 0, %s40
      %s41 = sphi 0, %s38
      %s42 = sphi 0, %s41
      %s58 = sphi 0, %s42
      %s62 = sphi 0, %s62
      %s64 = sphi 0, %s62
      %s65 = sphi 0, %s64
      %s79 = sphi 0, %s65
      %s89 = sphi 0, %s91
      %s92 = sphi 0, %s89
      %s93 = sphi 0, %s92
      %s109 = sphi 0, %s93
      %s115 = sphi 0, %s117
      %s118 = sphi 0, %s115
      %s119 = sphi 0, %s118
      %s135 = sphi 0, %s119
    $region4: #{linear_mse_loss.1} parent=1 // loop_header_branch
      %15 = sbr.rel (%p13) target = $region8
    $region5: #{linear_mse_loss.1} parent=1 // loop_body
      %s17 = ssub.s32 %s12, 1
      %s18 = ssub.s32 %s12, 2
      %s25 = sadd.s32 1, %s20
      %p26 = scmp.ge.s32.totalorder %s25, 28
      %s27 = scalar_select %p26, 0, %s25
      %s28 = sadd.s32 1, %s19
      %s29 = scalar_select %p26, %s28, %s19
      %p30 = scmp.ge.s32.totalorder %s29, 2
      %s31 = scalar_select %p30, 0, %s29
      %s32 = smul.u32 %s19, 28
      %s33 = sadd.s32 %s32, %s20
      %s34 = smul.u32 %s31, 28
      %s35 = sadd.s32 %s34, %s27
      %s36 = ssub.s32 %s33, %s35
      %p37 = scmp.eq.s32.totalorder %s36, 0
      %s39 = sadd.s32 %s38, 1
      %s40 = scalar_select %p37, %s38, %s39
      %p43 = pneg %p37
      %p44 = scmp.eq.s32.totalorder %s12, 55
      %p45 = por %p43, %p44
      %p46 = scmp.ne.s32.totalorder %s38, %s41
      %p47 = scmp.eq.s32.totalorder %s12, 0
      %p48 = por %p46, %p47
      %p49 = scmp.ne.s32.totalorder %s38, %s41
      %p50 = scmp.eq.s32.totalorder %s17, 55
      %p51 = por %p49, %p50
      %p52 = scmp.ne.s32.totalorder %s41, %s42
      %p53 = scmp.eq.s32.totalorder %s17, 0
      %p54 = por %p52, %p53
      %p55 = scmp.ne.s32.totalorder %s41, %s42
      %p56 = scmp.eq.s32.totalorder %s18, 55
      %p57 = por %p55, %p56
      %p59 = scmp.ne.s32.totalorder %s42, %s58
      %p60 = scmp.eq.s32.totalorder %s18, 0
      %p61 = por %p59, %p60
      %s63 = sadd.s32 %s62, 1
      %p66 = scmp.eq.s32.totalorder %s12, 55
      %p67 = scmp.ne.s32.totalorder %s62, %s64
      %p68 = scmp.eq.s32.totalorder %s12, 0
      %p69 = por %p67, %p68
      %p70 = scmp.ne.s32.totalorder %s62, %s64
      %p71 = scmp.eq.s32.totalorder %s17, 55
      %p72 = por %p70, %p71
      %p73 = scmp.ne.s32.totalorder %s64, %s65
      %p74 = scmp.eq.s32.totalorder %s17, 0
      %p75 = por %p73, %p74
      %p76 = scmp.ne.s32.totalorder %s64, %s65
      %p77 = scmp.eq.s32.totalorder %s18, 55
      %p78 = por %p76, %p77
      %p80 = scmp.ne.s32.totalorder %s65, %s79
      %p81 = scmp.eq.s32.totalorder %s18, 0
      %p82 = por %p80, %p81
      %s83 = smul.u32 %s19, 28
      %s84 = sadd.s32 %s83, %s20
      %s85 = smul.u32 %s31, 28
      %s86 = sadd.s32 %s85, %s27
      %s87 = ssub.s32 %s84, %s86
      %p88 = scmp.eq.s32.totalorder %s87, 0
      %s90 = sadd.s32 %s89, 1
      %s91 = scalar_select %p88, %s89, %s90
      %p94 = pneg %p88
      %p95 = scmp.eq.s32.totalorder %s12, 55
      %p96 = por %p94, %p95
      %p97 = scmp.ne.s32.totalorder %s89, %s92
      %p98 = scmp.eq.s32.totalorder %s12, 0
      %p99 = por %p97, %p98
      %p100 = scmp.ne.s32.totalorder %s89, %s92
      %p101 = scmp.eq.s32.totalorder %s17, 55
      %p102 = por %p100, %p101
      %p103 = scmp.ne.s32.totalorder %s92, %s93
      %p104 = scmp.eq.s32.totalorder %s17, 0
      %p105 = por %p103, %p104
      %p106 = scmp.ne.s32.totalorder %s92, %s93
      %p107 = scmp.eq.s32.totalorder %s18, 55
      %p108 = por %p106, %p107
      %p110 = scmp.ne.s32.totalorder %s93, %s109
      %p111 = scmp.eq.s32.totalorder %s18, 0
      %p112 = por %p110, %p111
      %s113 = ssub.s32 %s19, %s31
      %p114 = scmp.eq.s32.totalorder %s113, 0
      %s116 = sadd.s32 %s115, 1
      %s117 = scalar_select %p114, %s115, %s116
      %p120 = pneg %p114
      %p121 = scmp.eq.s32.totalorder %s12, 55
      %p122 = por %p120, %p121
      %p123 = scmp.ne.s32.totalorder %s115, %s118
      %p124 = scmp.eq.s32.totalorder %s12, 0
      %p125 = por %p123, %p124
      %p126 = scmp.ne.s32.totalorder %s115, %s118
      %p127 = scmp.eq.s32.totalorder %s17, 55
      %p128 = por %p126, %p127
      %p129 = scmp.ne.s32.totalorder %s118, %s119
      %p130 = scmp.eq.s32.totalorder %s17, 0
      %p131 = por %p129, %p130
      %p132 = scmp.ne.s32.totalorder %s118, %s119
      %p133 = scmp.eq.s32.totalorder %s18, 55
      %p134 = por %p132, %p133
      %p136 = scmp.ne.s32.totalorder %s119, %s135
      %p137 = scmp.eq.s32.totalorder %s18, 0
      %p138 = por %p136, %p137
      %p139 = scmp.le.s32.totalorder 1, %s12
      %p140 = scmp.lt.s32.totalorder %s12, 57
      %p141 = pnand %p139, %p140
      %p142 = pneg %p141
      // Predicated region
      $region9: #{linear_mse_loss.1} parent=5 // pred_check
        _
      $region10: #{linear_mse_loss.1} parent=5 // pred_check_branch
        %144 = sbr.rel (%p141) target = $region12
      $region11: #{linear_mse_loss.1} parent=5 // pred_region
        %s145 = ssub.s32 %s12, 1
        // Predicated region
        $region13: #{linear_mse_loss.1} parent=11 // pred_check
          %p146 = pneg %p75
        $region14: #{linear_mse_loss.1} parent=11 // pred_check_branch
          %148 = sbr.rel (%p146) target = $region16
        $region15: #{linear_mse_loss.1} parent=11 // pred_region
          _
        $region16: #{linear_mse_loss.1} parent=11 // pred_fallthru
          _
      $region12: #{linear_mse_loss.1} parent=5 // pred_fallthru
        _
      %p149 = scmp.lt.s32.totalorder %s12, 56
      // Predicated region
      $region17: #{linear_mse_loss.1} parent=5 // pred_check
        %p150 = pneg %p149
      $region18: #{linear_mse_loss.1} parent=5 // pred_check_branch
        %152 = sbr.rel (%p150) target = $region20
      $region19: #{linear_mse_loss.1} parent=5 // pred_region
        // Predicated region
        $region21: #{linear_mse_loss.1} parent=19 // pred_check
          %p153 = pneg %p48
        $region22: #{linear_mse_loss.1} parent=19 // pred_check_branch
          %155 = sbr.rel (%p153) target = $region24
        $region23: #{linear_mse_loss.1} parent=19 // pred_region
          %s156 = sand.u32 %s38, 1
          %s157 = scalar_lea.sflag [#allocation4], %s156
          %s158 = sand.u32 %s38, 1
          %s159 = smul.addr %s158, 28672
          %s160 = scalar_lea.vmem [#allocation3], %s159
          %s161 = smul.u32 %s19, 28
          %s162 = sadd.s32 %s161, %s20
          %s163 = smul.u32 32, %s162
          %s165 = ssub.s32 458752, 458752
          %166 = vsyncadd %s157, %s165
          %s167 = smul.addr %s163, 112
          %s168 = smul.addr %s167, 128
          %s169 = scalar_lea.hbm %s0, %s168
          %s170 = sshll.u32 %s160, 4
          %s171 = int_to_ptr.vmem [resolvable:$true] %s170
          %176 = dma.hbm_to_vmem [thread:$0]  %s169, 458752, %s171, %s157, 14336, 14336, 896
        $region24: #{linear_mse_loss.1} parent=19 // pred_fallthru
          _
        // Predicated region
        $region25: #{linear_mse_loss.1} parent=19 // pred_check
          %p177 = pneg %p99
        $region26: #{linear_mse_loss.1} parent=19 // pred_check_branch
          %179 = sbr.rel (%p177) target = $region28
        $region27: #{linear_mse_loss.1} parent=19 // pred_region
          %s180 = smul.u32 %s19, 28
          %s181 = sadd.s32 %s180, %s20
          %s182 = smul.u32 2, %s181
          %p183 = scmp.lt.s32.totalorder %s182, 111
          %s184 = scalar_select %p183, %s182, 111
          %s185 = scalar_lea.vmem %s2, %s184
          %s186 = smul.u32 %s19, 28
          %s187 = sadd.s32 %s186, %s20
          %s188 = smul.u32 2, %s187
        $region28: #{linear_mse_loss.1} parent=19 // pred_fallthru
          _
      $region20: #{linear_mse_loss.1} parent=5 // pred_fallthru
        _
      %p189 = scmp.le.s32.totalorder 1, %s12
      %p190 = scmp.lt.s32.totalorder %s12, 57
      %p191 = pnand %p189, %p190
      %p192 = pneg %p191
      // Predicated region
      $region29: #{linear_mse_loss.1} parent=5 // pred_check
        _
      $region30: #{linear_mse_loss.1} parent=5 // pred_check_branch
        %194 = sbr.rel (%p191) target = $region32
      $region31: #{linear_mse_loss.1} parent=5 // pred_region
        %s195 = ssub.s32 %s12, 1
        %s196 = sand.u32 %s41, 1
        %s197 = scalar_lea.sflag [#allocation4], %s196
        %s198 = sand.u32 %s41, 1
        %s199 = smul.addr %s198, 28672
        %s200 = scalar_lea.vmem [#allocation3], %s199
        // Predicated region
        $region33: #{linear_mse_loss.1} parent=31 // pred_check
          %p201 = pneg %p54
        $region34: #{linear_mse_loss.1} parent=31 // pred_check_branch
          %203 = sbr.rel (%p201) target = $region36
        $region35: #{linear_mse_loss.1} parent=31 // pred_region
          %204 = dma.done %s197, 458752
        $region36: #{linear_mse_loss.1} parent=31 // pred_fallthru
          _
        %s205 = sand.u32 %s41, 1
        %s206 = scalar_lea.sflag [#allocation4], %s205
        %s207 = sand.u32 %s41, 1
        %s208 = smul.addr %s207, 28672
        %s209 = scalar_lea.vmem [#allocation3], %s208
        %p210 = pneg %p54
        %p211 = pneg %p51
        %p212 = pneg %p75
        %p213 = pneg %p72
        %s214 = smul.u32 %s21, 28
        %s215 = sadd.s32 %s214, %s22
        %s216 = smul.u32 2, %s215
        %p217 = scmp.lt.s32.totalorder %s216, 111
        %s218 = scalar_select %p217, %s216, 111
        %s219 = scalar_lea.vmem %s2, %s218
        %p220 = pneg %p105
        %p221 = pneg %p102
        %p222 = pneg %p131
        %p223 = pneg %p128
        %p224 = scmp.lt.s32.totalorder %s21, 1
        %s225 = scalar_select %p224, %s21, 1
        %s226 = smul.addr %s225, 8
        %s227 = scalar_lea.vmem %s3, %s226
        %s228 = smul.u32 %s21, 28
        %s229 = sadd.s32 %s228, %s22
        %s230 = smul.u32 32, %s229
        %s231 = smul.u32 %s21, 28
        %s232 = sadd.s32 %s231, %s22
        %s233 = smul.u32 2, %s232
        %p234 = scmp.lt.s32.totalorder %s233, 111
        %s235 = scalar_select %p234, %s233, 111
        %s236 = scalar_lea.vmem %s2, %s235
        %s237 = smul.u32 %s21, 28
        %s238 = sadd.s32 %s237, %s22
        %s239 = smul.u32 2, %s238
        %p240 = scmp.lt.s32.totalorder %s21, 1
        %s241 = scalar_select %p240, %s21, 1
        %s242 = smul.addr %s241, 8
        %s243 = scalar_lea.vmem %s3, %s242
        %p244 = scmp.eq.s32.totalorder %s22, 0
        // Predicated region
        $region37: #{linear_mse_loss.1} parent=31 // pred_check
          %p245 = pneg %p244
        $region38: #{linear_mse_loss.1} parent=31 // pred_check_branch
          %247 = sbr.rel (%p245) target = $region40
        $region39: #{linear_mse_loss.1} parent=31 // pred_region
          %248 = vst [vmem:[#allocation2] sm:$0xff] 0.0
        $region40: #{linear_mse_loss.1} parent=31 // pred_fallthru
          _
        %v249 = vld [vmem:[%s1] sm:$0xff]
        %v250 = vld [vmem:[%s1 + $0x8] sm:$0xff]
        %v251 = vld [vmem:[%s1 + $0x10] sm:$0xff]
        %v252 = vld [vmem:[%s1 + $0x18] sm:$0xff]
        %v253 = vld [vmem:[%s1 + $0x20] sm:$0xff]
        %v254 = vld [vmem:[%s1 + $0x28] sm:$0xff]
        %v255 = vld [vmem:[%s1 + $0x30] sm:$0xff]
        %v256 = vld [vmem:[%s1 + $0x38] sm:$0xff]
        %v257 = vld [vmem:[%s1 + $0x40] sm:$0xff]
        %v258 = vld [vmem:[%s1 + $0x48] sm:$0xff]
        %v259 = vld [vmem:[%s1 + $0x50] sm:$0xff]
        %v260 = vld [vmem:[%s1 + $0x58] sm:$0xff]
        %v261 = vld [vmem:[%s1 + $0x60] sm:$0xff]
        %v262 = vld [vmem:[%s1 + $0x68] sm:$0xff]
        %v263 = vld [vmem:[%s200] sm:$0xff]
        %v264 = vld [vmem:[%s200 + $0x8] sm:$0xff]
        %v265 = vld [vmem:[%s200 + $0x10] sm:$0xff]
        %v266 = vld [vmem:[%s200 + $0x18] sm:$0xff]
        %v267 = vld [vmem:[%s200 + $0x20] sm:$0xff]
        %v268 = vld [vmem:[%s200 + $0x28] sm:$0xff]
        %v269 = vld [vmem:[%s200 + $0x30] sm:$0xff]
        %v270 = vld [vmem:[%s200 + $0x38] sm:$0xff]
        %v271 = vld [vmem:[%s200 + $0x40] sm:$0xff]
        %v272 = vld [vmem:[%s200 + $0x48] sm:$0xff]
        %v273 = vld [vmem:[%s200 + $0x50] sm:$0xff]
        %v274 = vld [vmem:[%s200 + $0x58] sm:$0xff]
        %v275 = vld [vmem:[%s200 + $0x60] sm:$0xff]
        %v276 = vld [vmem:[%s200 + $0x68] sm:$0xff]
        %v277 = vld [vmem:[%s200 + $0x70] sm:$0xff]
        %v278 = vld [vmem:[%s200 + $0x78] sm:$0xff]
        %v279 = vld [vmem:[%s200 + $0x80] sm:$0xff]
        %v280 = vld [vmem:[%s200 + $0x88] sm:$0xff]
        %v281 = vld [vmem:[%s200 + $0x90] sm:$0xff]
        %v282 = vld [vmem:[%s200 + $0x98] sm:$0xff]
        %v283 = vld [vmem:[%s200 + $0xa0] sm:$0xff]
        %v284 = vld [vmem:[%s200 + $0xa8] sm:$0xff]
        %v285 = vld [vmem:[%s200 + $0xb0] sm:$0xff]
        %v286 = vld [vmem:[%s200 + $0xb8] sm:$0xff]
        %v287 = vld [vmem:[%s200 + $0xc0] sm:$0xff]
        %v288 = vld [vmem:[%s200 + $0xc8] sm:$0xff]
        %v289 = vld [vmem:[%s200 + $0xd0] sm:$0xff]
        %v290 = vld [vmem:[%s200 + $0xd8] sm:$0xff]
        %v291 = vld [vmem:[%s200 + $0xe0] sm:$0xff]
        %v292 = vld [vmem:[%s200 + $0xe8] sm:$0xff]
        %v293 = vld [vmem:[%s200 + $0xf0] sm:$0xff]
        %v294 = vld [vmem:[%s200 + $0xf8] sm:$0xff]
        %v295 = vld [vmem:[%s200 + $0x100] sm:$0xff]
        %v296 = vld [vmem:[%s200 + $0x108] sm:$0xff]
        %v297 = vld [vmem:[%s200 + $0x110] sm:$0xff]
        %v298 = vld [vmem:[%s200 + $0x118] sm:$0xff]
        %v299 = vld [vmem:[%s200 + $0x120] sm:$0xff]
        %v300 = vld [vmem:[%s200 + $0x128] sm:$0xff]
        %v301 = vld [vmem:[%s200 + $0x130] sm:$0xff]
        %v302 = vld [vmem:[%s200 + $0x138] sm:$0xff]
        %v303 = vld [vmem:[%s200 + $0x140] sm:$0xff]
        %v304 = vld [vmem:[%s200 + $0x148] sm:$0xff]
        %v305 = vld [vmem:[%s200 + $0x150] sm:$0xff]
        %v306 = vld [vmem:[%s200 + $0x158] sm:$0xff]
        %v307 = vld [vmem:[%s200 + $0x160] sm:$0xff]
        %v308 = vld [vmem:[%s200 + $0x168] sm:$0xff]
        %v309 = vld [vmem:[%s200 + $0x170] sm:$0xff]
        %v310 = vld [vmem:[%s200 + $0x178] sm:$0xff]
        %v311 = vld [vmem:[%s200 + $0x180] sm:$0xff]
        %v312 = vld [vmem:[%s200 + $0x188] sm:$0xff]
        %v313 = vld [vmem:[%s200 + $0x190] sm:$0xff]
        %v314 = vld [vmem:[%s200 + $0x198] sm:$0xff]
        %v315 = vld [vmem:[%s200 + $0x1a0] sm:$0xff]
        %v316 = vld [vmem:[%s200 + $0x1a8] sm:$0xff]
        %v317 = vld [vmem:[%s200 + $0x1b0] sm:$0xff]
        %v318 = vld [vmem:[%s200 + $0x1b8] sm:$0xff]
        %v319 = vld [vmem:[%s200 + $0x1c0] sm:$0xff]
        %v320 = vld [vmem:[%s200 + $0x1c8] sm:$0xff]
        %v321 = vld [vmem:[%s200 + $0x1d0] sm:$0xff]
        %v322 = vld [vmem:[%s200 + $0x1d8] sm:$0xff]
        %v323 = vld [vmem:[%s200 + $0x1e0] sm:$0xff]
        %v324 = vld [vmem:[%s200 + $0x1e8] sm:$0xff]
        %v325 = vld [vmem:[%s200 + $0x1f0] sm:$0xff]
        %v326 = vld [vmem:[%s200 + $0x1f8] sm:$0xff]
        %v327 = vld [vmem:[%s200 + $0x200] sm:$0xff]
        %v328 = vld [vmem:[%s200 + $0x208] sm:$0xff]
        %v329 = vld [vmem:[%s200 + $0x210] sm:$0xff]
        %v330 = vld [vmem:[%s200 + $0x218] sm:$0xff]
        %v331 = vld [vmem:[%s200 + $0x220] sm:$0xff]
        %v332 = vld [vmem:[%s200 + $0x228] sm:$0xff]
        %v333 = vld [vmem:[%s200 + $0x230] sm:$0xff]
        %v334 = vld [vmem:[%s200 + $0x238] sm:$0xff]
        %v335 = vld [vmem:[%s200 + $0x240] sm:$0xff]
        %v336 = vld [vmem:[%s200 + $0x248] sm:$0xff]
        %v337 = vld [vmem:[%s200 + $0x250] sm:$0xff]
        %v338 = vld [vmem:[%s200 + $0x258] sm:$0xff]
        %v339 = vld [vmem:[%s200 + $0x260] sm:$0xff]
        %v340 = vld [vmem:[%s200 + $0x268] sm:$0xff]
        %v341 = vld [vmem:[%s200 + $0x270] sm:$0xff]
        %v342 = vld [vmem:[%s200 + $0x278] sm:$0xff]
        %v343 = vld [vmem:[%s200 + $0x280] sm:$0xff]
        %v344 = vld [vmem:[%s200 + $0x288] sm:$0xff]
        %v345 = vld [vmem:[%s200 + $0x290] sm:$0xff]
        %v346 = vld [vmem:[%s200 + $0x298] sm:$0xff]
        %v347 = vld [vmem:[%s200 + $0x2a0] sm:$0xff]
        %v348 = vld [vmem:[%s200 + $0x2a8] sm:$0xff]
        %v349 = vld [vmem:[%s200 + $0x2b0] sm:$0xff]
        %v350 = vld [vmem:[%s200 + $0x2b8] sm:$0xff]
        %v351 = vld [vmem:[%s200 + $0x2c0] sm:$0xff]
        %v352 = vld [vmem:[%s200 + $0x2c8] sm:$0xff]
        %v353 = vld [vmem:[%s200 + $0x2d0] sm:$0xff]
        %v354 = vld [vmem:[%s200 + $0x2d8] sm:$0xff]
        %v355 = vld [vmem:[%s200 + $0x2e0] sm:$0xff]
        %v356 = vld [vmem:[%s200 + $0x2e8] sm:$0xff]
        %v357 = vld [vmem:[%s200 + $0x2f0] sm:$0xff]
        %v358 = vld [vmem:[%s200 + $0x2f8] sm:$0xff]
        %v359 = vld [vmem:[%s200 + $0x300] sm:$0xff]
        %v360 = vld [vmem:[%s200 + $0x308] sm:$0xff]
        %v361 = vld [vmem:[%s200 + $0x310] sm:$0xff]
        %v362 = vld [vmem:[%s200 + $0x318] sm:$0xff]
        %v363 = vld [vmem:[%s200 + $0x320] sm:$0xff]
        %v364 = vld [vmem:[%s200 + $0x328] sm:$0xff]
        %v365 = vld [vmem:[%s200 + $0x330] sm:$0xff]
        %v366 = vld [vmem:[%s200 + $0x338] sm:$0xff]
        %v367 = vld [vmem:[%s200 + $0x340] sm:$0xff]
        %v368 = vld [vmem:[%s200 + $0x348] sm:$0xff]
        %v369 = vld [vmem:[%s200 + $0x350] sm:$0xff]
        %v370 = vld [vmem:[%s200 + $0x358] sm:$0xff]
        %v371 = vld [vmem:[%s200 + $0x360] sm:$0xff]
        %v372 = vld [vmem:[%s200 + $0x368] sm:$0xff]
        %v373 = vld [vmem:[%s200 + $0x370] sm:$0xff]
        %v374 = vld [vmem:[%s200 + $0x378] sm:$0xff]
        %v375 = vld [vmem:[%s200 + $0x380] sm:$0xff]
        %v376 = vld [vmem:[%s200 + $0x388] sm:$0xff]
        %v377 = vld [vmem:[%s200 + $0x390] sm:$0xff]
        %v378 = vld [vmem:[%s200 + $0x398] sm:$0xff]
        %v379 = vld [vmem:[%s200 + $0x3a0] sm:$0xff]
        %v380 = vld [vmem:[%s200 + $0x3a8] sm:$0xff]
        %v381 = vld [vmem:[%s200 + $0x3b0] sm:$0xff]
        %v382 = vld [vmem:[%s200 + $0x3b8] sm:$0xff]
        %v383 = vld [vmem:[%s200 + $0x3c0] sm:$0xff]
        %v384 = vld [vmem:[%s200 + $0x3c8] sm:$0xff]
        %v385 = vld [vmem:[%s200 + $0x3d0] sm:$0xff]
        %v386 = vld [vmem:[%s200 + $0x3d8] sm:$0xff]
        %v387 = vld [vmem:[%s200 + $0x3e0] sm:$0xff]
        %v388 = vld [vmem:[%s200 + $0x3e8] sm:$0xff]
        %v389 = vld [vmem:[%s200 + $0x3f0] sm:$0xff]
        %v390 = vld [vmem:[%s200 + $0x3f8] sm:$0xff]
        %v391 = vld [vmem:[%s200 + $0x400] sm:$0xff]
        %v392 = vld [vmem:[%s200 + $0x408] sm:$0xff]
        %v393 = vld [vmem:[%s200 + $0x410] sm:$0xff]
        %v394 = vld [vmem:[%s200 + $0x418] sm:$0xff]
        %v395 = vld [vmem:[%s200 + $0x420] sm:$0xff]
        %v396 = vld [vmem:[%s200 + $0x428] sm:$0xff]
        %v397 = vld [vmem:[%s200 + $0x430] sm:$0xff]
        %v398 = vld [vmem:[%s200 + $0x438] sm:$0xff]
        %v399 = vld [vmem:[%s200 + $0x440] sm:$0xff]
        %v400 = vld [vmem:[%s200 + $0x448] sm:$0xff]
        %v401 = vld [vmem:[%s200 + $0x450] sm:$0xff]
        %v402 = vld [vmem:[%s200 + $0x458] sm:$0xff]
        %v403 = vld [vmem:[%s200 + $0x460] sm:$0xff]
        %v404 = vld [vmem:[%s200 + $0x468] sm:$0xff]
        %v405 = vld [vmem:[%s200 + $0x470] sm:$0xff]
        %v406 = vld [vmem:[%s200 + $0x478] sm:$0xff]
        %v407 = vld [vmem:[%s200 + $0x480] sm:$0xff]
        %v408 = vld [vmem:[%s200 + $0x488] sm:$0xff]
        %v409 = vld [vmem:[%s200 + $0x490] sm:$0xff]
        %v410 = vld [vmem:[%s200 + $0x498] sm:$0xff]
        %v411 = vld [vmem:[%s200 + $0x4a0] sm:$0xff]
        %v412 = vld [vmem:[%s200 + $0x4a8] sm:$0xff]
        %v413 = vld [vmem:[%s200 + $0x4b0] sm:$0xff]
        %v414 = vld [vmem:[%s200 + $0x4b8] sm:$0xff]
        %v415 = vld [vmem:[%s200 + $0x4c0] sm:$0xff]
        %v416 = vld [vmem:[%s200 + $0x4c8] sm:$0xff]
        %v417 = vld [vmem:[%s200 + $0x4d0] sm:$0xff]
        %v418 = vld [vmem:[%s200 + $0x4d8] sm:$0xff]
        %v419 = vld [vmem:[%s200 + $0x4e0] sm:$0xff]
        %v420 = vld [vmem:[%s200 + $0x4e8] sm:$0xff]
        %v421 = vld [vmem:[%s200 + $0x4f0] sm:$0xff]
        %v422 = vld [vmem:[%s200 + $0x4f8] sm:$0xff]
        %v423 = vld [vmem:[%s200 + $0x500] sm:$0xff]
        %v424 = vld [vmem:[%s200 + $0x508] sm:$0xff]
        %v425 = vld [vmem:[%s200 + $0x510] sm:$0xff]
        %v426 = vld [vmem:[%s200 + $0x518] sm:$0xff]
        %v427 = vld [vmem:[%s200 + $0x520] sm:$0xff]
        %v428 = vld [vmem:[%s200 + $0x528] sm:$0xff]
        %v429 = vld [vmem:[%s200 + $0x530] sm:$0xff]
        %v430 = vld [vmem:[%s200 + $0x538] sm:$0xff]
        %v431 = vld [vmem:[%s200 + $0x540] sm:$0xff]
        %v432 = vld [vmem:[%s200 + $0x548] sm:$0xff]
        %v433 = vld [vmem:[%s200 + $0x550] sm:$0xff]
        %v434 = vld [vmem:[%s200 + $0x558] sm:$0xff]
        %v435 = vld [vmem:[%s200 + $0x560] sm:$0xff]
        %v436 = vld [vmem:[%s200 + $0x568] sm:$0xff]
        %v437 = vld [vmem:[%s200 + $0x570] sm:$0xff]
        %v438 = vld [vmem:[%s200 + $0x578] sm:$0xff]
        %v439 = vld [vmem:[%s200 + $0x580] sm:$0xff]
        %v440 = vld [vmem:[%s200 + $0x588] sm:$0xff]
        %v441 = vld [vmem:[%s200 + $0x590] sm:$0xff]
        %v442 = vld [vmem:[%s200 + $0x598] sm:$0xff]
        %v443 = vld [vmem:[%s200 + $0x5a0] sm:$0xff]
        %v444 = vld [vmem:[%s200 + $0x5a8] sm:$0xff]
        %v445 = vld [vmem:[%s200 + $0x5b0] sm:$0xff]
        %v446 = vld [vmem:[%s200 + $0x5b8] sm:$0xff]
        %v447 = vld [vmem:[%s200 + $0x5c0] sm:$0xff]
        %v448 = vld [vmem:[%s200 + $0x5c8] sm:$0xff]
        %v449 = vld [vmem:[%s200 + $0x5d0] sm:$0xff]
        %v450 = vld [vmem:[%s200 + $0x5d8] sm:$0xff]
        %v451 = vld [vmem:[%s200 + $0x5e0] sm:$0xff]
        %v452 = vld [vmem:[%s200 + $0x5e8] sm:$0xff]
        %v453 = vld [vmem:[%s200 + $0x5f0] sm:$0xff]
        %v454 = vld [vmem:[%s200 + $0x5f8] sm:$0xff]
        %v455 = vld [vmem:[%s200 + $0x600] sm:$0xff]
        %v456 = vld [vmem:[%s200 + $0x608] sm:$0xff]
        %v457 = vld [vmem:[%s200 + $0x610] sm:$0xff]
        %v458 = vld [vmem:[%s200 + $0x618] sm:$0xff]
        %v459 = vld [vmem:[%s200 + $0x620] sm:$0xff]
        %v460 = vld [vmem:[%s200 + $0x628] sm:$0xff]
        %v461 = vld [vmem:[%s200 + $0x630] sm:$0xff]
        %v462 = vld [vmem:[%s200 + $0x638] sm:$0xff]
        %v463 = vld [vmem:[%s200 + $0x640] sm:$0xff]
        %v464 = vld [vmem:[%s200 + $0x648] sm:$0xff]
        %v465 = vld [vmem:[%s200 + $0x650] sm:$0xff]
        %v466 = vld [vmem:[%s200 + $0x658] sm:$0xff]
        %v467 = vld [vmem:[%s200 + $0x660] sm:$0xff]
        %v468 = vld [vmem:[%s200 + $0x668] sm:$0xff]
        %v469 = vld [vmem:[%s200 + $0x670] sm:$0xff]
        %v470 = vld [vmem:[%s200 + $0x678] sm:$0xff]
        %v471 = vld [vmem:[%s200 + $0x680] sm:$0xff]
        %v472 = vld [vmem:[%s200 + $0x688] sm:$0xff]
        %v473 = vld [vmem:[%s200 + $0x690] sm:$0xff]
        %v474 = vld [vmem:[%s200 + $0x698] sm:$0xff]
        %v475 = vld [vmem:[%s200 + $0x6a0] sm:$0xff]
        %v476 = vld [vmem:[%s200 + $0x6a8] sm:$0xff]
        %v477 = vld [vmem:[%s200 + $0x6b0] sm:$0xff]
        %v478 = vld [vmem:[%s200 + $0x6b8] sm:$0xff]
        %v479 = vld [vmem:[%s200 + $0x6c0] sm:$0xff]
        %v480 = vld [vmem:[%s200 + $0x6c8] sm:$0xff]
        %v481 = vld [vmem:[%s200 + $0x6d0] sm:$0xff]
        %v482 = vld [vmem:[%s200 + $0x6d8] sm:$0xff]
        %v483 = vld [vmem:[%s200 + $0x6e0] sm:$0xff]
        %v484 = vld [vmem:[%s200 + $0x6e8] sm:$0xff]
        %v485 = vld [vmem:[%s200 + $0x6f0] sm:$0xff]
        %v486 = vld [vmem:[%s200 + $0x6f8] sm:$0xff]
        %v487 = vld [vmem:[%s200 + $0x700] sm:$0xff]
        %v488 = vld [vmem:[%s200 + $0x708] sm:$0xff]
        %v489 = vld [vmem:[%s200 + $0x710] sm:$0xff]
        %v490 = vld [vmem:[%s200 + $0x718] sm:$0xff]
        %v491 = vld [vmem:[%s200 + $0x720] sm:$0xff]
        %v492 = vld [vmem:[%s200 + $0x728] sm:$0xff]
        %v493 = vld [vmem:[%s200 + $0x730] sm:$0xff]
        %v494 = vld [vmem:[%s200 + $0x738] sm:$0xff]
        %v495 = vld [vmem:[%s200 + $0x740] sm:$0xff]
        %v496 = vld [vmem:[%s200 + $0x748] sm:$0xff]
        %v497 = vld [vmem:[%s200 + $0x750] sm:$0xff]
        %v498 = vld [vmem:[%s200 + $0x758] sm:$0xff]
        %v499 = vld [vmem:[%s200 + $0x760] sm:$0xff]
        %v500 = vld [vmem:[%s200 + $0x768] sm:$0xff]
        %v501 = vld [vmem:[%s200 + $0x770] sm:$0xff]
        %v502 = vld [vmem:[%s200 + $0x778] sm:$0xff]
        %v503 = vld [vmem:[%s200 + $0x780] sm:$0xff]
        %v504 = vld [vmem:[%s200 + $0x788] sm:$0xff]
        %v505 = vld [vmem:[%s200 + $0x790] sm:$0xff]
        %v506 = vld [vmem:[%s200 + $0x798] sm:$0xff]
        %v507 = vld [vmem:[%s200 + $0x7a0] sm:$0xff]
        %v508 = vld [vmem:[%s200 + $0x7a8] sm:$0xff]
        %v509 = vld [vmem:[%s200 + $0x7b0] sm:$0xff]
        %v510 = vld [vmem:[%s200 + $0x7b8] sm:$0xff]
        %v511 = vld [vmem:[%s200 + $0x7c0] sm:$0xff]
        %v512 = vld [vmem:[%s200 + $0x7c8] sm:$0xff]
        %v513 = vld [vmem:[%s200 + $0x7d0] sm:$0xff]
        %v514 = vld [vmem:[%s200 + $0x7d8] sm:$0xff]
        %v515 = vld [vmem:[%s200 + $0x7e0] sm:$0xff]
        %v516 = vld [vmem:[%s200 + $0x7e8] sm:$0xff]
        %v517 = vld [vmem:[%s200 + $0x7f0] sm:$0xff]
        %v518 = vld [vmem:[%s200 + $0x7f8] sm:$0xff]
        %v519 = vld [vmem:[%s200 + $0x800] sm:$0xff]
        %v520 = vld [vmem:[%s200 + $0x808] sm:$0xff]
        %v521 = vld [vmem:[%s200 + $0x810] sm:$0xff]
        %v522 = vld [vmem:[%s200 + $0x818] sm:$0xff]
        %v523 = vld [vmem:[%s200 + $0x820] sm:$0xff]
        %v524 = vld [vmem:[%s200 + $0x828] sm:$0xff]
        %v525 = vld [vmem:[%s200 + $0x830] sm:$0xff]
        %v526 = vld [vmem:[%s200 + $0x838] sm:$0xff]
        %v527 = vld [vmem:[%s200 + $0x840] sm:$0xff]
        %v528 = vld [vmem:[%s200 + $0x848] sm:$0xff]
        %v529 = vld [vmem:[%s200 + $0x850] sm:$0xff]
        %v530 = vld [vmem:[%s200 + $0x858] sm:$0xff]
        %v531 = vld [vmem:[%s200 + $0x860] sm:$0xff]
        %v532 = vld [vmem:[%s200 + $0x868] sm:$0xff]
        %v533 = vld [vmem:[%s200 + $0x870] sm:$0xff]
        %v534 = vld [vmem:[%s200 + $0x878] sm:$0xff]
        %v535 = vld [vmem:[%s200 + $0x880] sm:$0xff]
        %v536 = vld [vmem:[%s200 + $0x888] sm:$0xff]
        %v537 = vld [vmem:[%s200 + $0x890] sm:$0xff]
        %v538 = vld [vmem:[%s200 + $0x898] sm:$0xff]
        %v539 = vld [vmem:[%s200 + $0x8a0] sm:$0xff]
        %v540 = vld [vmem:[%s200 + $0x8a8] sm:$0xff]
        %v541 = vld [vmem:[%s200 + $0x8b0] sm:$0xff]
        %v542 = vld [vmem:[%s200 + $0x8b8] sm:$0xff]
        %v543 = vld [vmem:[%s200 + $0x8c0] sm:$0xff]
        %v544 = vld [vmem:[%s200 + $0x8c8] sm:$0xff]
        %v545 = vld [vmem:[%s200 + $0x8d0] sm:$0xff]
        %v546 = vld [vmem:[%s200 + $0x8d8] sm:$0xff]
        %v547 = vld [vmem:[%s200 + $0x8e0] sm:$0xff]
        %v548 = vld [vmem:[%s200 + $0x8e8] sm:$0xff]
        %v549 = vld [vmem:[%s200 + $0x8f0] sm:$0xff]
        %v550 = vld [vmem:[%s200 + $0x8f8] sm:$0xff]
        %v551 = vld [vmem:[%s200 + $0x900] sm:$0xff]
        %v552 = vld [vmem:[%s200 + $0x908] sm:$0xff]
        %v553 = vld [vmem:[%s200 + $0x910] sm:$0xff]
        %v554 = vld [vmem:[%s200 + $0x918] sm:$0xff]
        %v555 = vld [vmem:[%s200 + $0x920] sm:$0xff]
        %v556 = vld [vmem:[%s200 + $0x928] sm:$0xff]
        %v557 = vld [vmem:[%s200 + $0x930] sm:$0xff]
        %v558 = vld [vmem:[%s200 + $0x938] sm:$0xff]
        %v559 = vld [vmem:[%s200 + $0x940] sm:$0xff]
        %v560 = vld [vmem:[%s200 + $0x948] sm:$0xff]
        %v561 = vld [vmem:[%s200 + $0x950] sm:$0xff]
        %v562 = vld [vmem:[%s200 + $0x958] sm:$0xff]
        %v563 = vld [vmem:[%s200 + $0x960] sm:$0xff]
        %v564 = vld [vmem:[%s200 + $0x968] sm:$0xff]
        %v565 = vld [vmem:[%s200 + $0x970] sm:$0xff]
        %v566 = vld [vmem:[%s200 + $0x978] sm:$0xff]
        %v567 = vld [vmem:[%s200 + $0x980] sm:$0xff]
        %v568 = vld [vmem:[%s200 + $0x988] sm:$0xff]
        %v569 = vld [vmem:[%s200 + $0x990] sm:$0xff]
        %v570 = vld [vmem:[%s200 + $0x998] sm:$0xff]
        %v571 = vld [vmem:[%s200 + $0x9a0] sm:$0xff]
        %v572 = vld [vmem:[%s200 + $0x9a8] sm:$0xff]
        %v573 = vld [vmem:[%s200 + $0x9b0] sm:$0xff]
        %v574 = vld [vmem:[%s200 + $0x9b8] sm:$0xff]
        %v575 = vld [vmem:[%s200 + $0x9c0] sm:$0xff]
        %v576 = vld [vmem:[%s200 + $0x9c8] sm:$0xff]
        %v577 = vld [vmem:[%s200 + $0x9d0] sm:$0xff]
        %v578 = vld [vmem:[%s200 + $0x9d8] sm:$0xff]
        %v579 = vld [vmem:[%s200 + $0x9e0] sm:$0xff]
        %v580 = vld [vmem:[%s200 + $0x9e8] sm:$0xff]
        %v581 = vld [vmem:[%s200 + $0x9f0] sm:$0xff]
        %v582 = vld [vmem:[%s200 + $0x9f8] sm:$0xff]
        %v583 = vld [vmem:[%s200 + $0xa00] sm:$0xff]
        %v584 = vld [vmem:[%s200 + $0xa08] sm:$0xff]
        %v585 = vld [vmem:[%s200 + $0xa10] sm:$0xff]
        %v586 = vld [vmem:[%s200 + $0xa18] sm:$0xff]
        %v587 = vld [vmem:[%s200 + $0xa20] sm:$0xff]
        %v588 = vld [vmem:[%s200 + $0xa28] sm:$0xff]
        %v589 = vld [vmem:[%s200 + $0xa30] sm:$0xff]
        %v590 = vld [vmem:[%s200 + $0xa38] sm:$0xff]
        %v591 = vld [vmem:[%s200 + $0xa40] sm:$0xff]
        %v592 = vld [vmem:[%s200 + $0xa48] sm:$0xff]
        %v593 = vld [vmem:[%s200 + $0xa50] sm:$0xff]
        %v594 = vld [vmem:[%s200 + $0xa58] sm:$0xff]
        %v595 = vld [vmem:[%s200 + $0xa60] sm:$0xff]
        %v596 = vld [vmem:[%s200 + $0xa68] sm:$0xff]
        %v597 = vld [vmem:[%s200 + $0xa70] sm:$0xff]
        %v598 = vld [vmem:[%s200 + $0xa78] sm:$0xff]
        %v599 = vld [vmem:[%s200 + $0xa80] sm:$0xff]
        %v600 = vld [vmem:[%s200 + $0xa88] sm:$0xff]
        %v601 = vld [vmem:[%s200 + $0xa90] sm:$0xff]
        %v602 = vld [vmem:[%s200 + $0xa98] sm:$0xff]
        %v603 = vld [vmem:[%s200 + $0xaa0] sm:$0xff]
        %v604 = vld [vmem:[%s200 + $0xaa8] sm:$0xff]
        %v605 = vld [vmem:[%s200 + $0xab0] sm:$0xff]
        %v606 = vld [vmem:[%s200 + $0xab8] sm:$0xff]
        %v607 = vld [vmem:[%s200 + $0xac0] sm:$0xff]
        %v608 = vld [vmem:[%s200 + $0xac8] sm:$0xff]
        %v609 = vld [vmem:[%s200 + $0xad0] sm:$0xff]
        %v610 = vld [vmem:[%s200 + $0xad8] sm:$0xff]
        %v611 = vld [vmem:[%s200 + $0xae0] sm:$0xff]
        %v612 = vld [vmem:[%s200 + $0xae8] sm:$0xff]
        %v613 = vld [vmem:[%s200 + $0xaf0] sm:$0xff]
        %v614 = vld [vmem:[%s200 + $0xaf8] sm:$0xff]
        %v615 = vld [vmem:[%s200 + $0xb00] sm:$0xff]
        %v616 = vld [vmem:[%s200 + $0xb08] sm:$0xff]
        %v617 = vld [vmem:[%s200 + $0xb10] sm:$0xff]
        %v618 = vld [vmem:[%s200 + $0xb18] sm:$0xff]
        %v619 = vld [vmem:[%s200 + $0xb20] sm:$0xff]
        %v620 = vld [vmem:[%s200 + $0xb28] sm:$0xff]
        %v621 = vld [vmem:[%s200 + $0xb30] sm:$0xff]
        %v622 = vld [vmem:[%s200 + $0xb38] sm:$0xff]
        %v623 = vld [vmem:[%s200 + $0xb40] sm:$0xff]
        %v624 = vld [vmem:[%s200 + $0xb48] sm:$0xff]
        %v625 = vld [vmem:[%s200 + $0xb50] sm:$0xff]
        %v626 = vld [vmem:[%s200 + $0xb58] sm:$0xff]
        %v627 = vld [vmem:[%s200 + $0xb60] sm:$0xff]
        %v628 = vld [vmem:[%s200 + $0xb68] sm:$0xff]
        %v629 = vld [vmem:[%s200 + $0xb70] sm:$0xff]
        %v630 = vld [vmem:[%s200 + $0xb78] sm:$0xff]
        %v631 = vld [vmem:[%s200 + $0xb80] sm:$0xff]
        %v632 = vld [vmem:[%s200 + $0xb88] sm:$0xff]
        %v633 = vld [vmem:[%s200 + $0xb90] sm:$0xff]
        %v634 = vld [vmem:[%s200 + $0xb98] sm:$0xff]
        %v635 = vld [vmem:[%s200 + $0xba0] sm:$0xff]
        %v636 = vld [vmem:[%s200 + $0xba8] sm:$0xff]
        %v637 = vld [vmem:[%s200 + $0xbb0] sm:$0xff]
        %v638 = vld [vmem:[%s200 + $0xbb8] sm:$0xff]
        %v639 = vld [vmem:[%s200 + $0xbc0] sm:$0xff]
        %v640 = vld [vmem:[%s200 + $0xbc8] sm:$0xff]
        %v641 = vld [vmem:[%s200 + $0xbd0] sm:$0xff]
        %v642 = vld [vmem:[%s200 + $0xbd8] sm:$0xff]
        %v643 = vld [vmem:[%s200 + $0xbe0] sm:$0xff]
        %v644 = vld [vmem:[%s200 + $0xbe8] sm:$0xff]
        %v645 = vld [vmem:[%s200 + $0xbf0] sm:$0xff]
        %v646 = vld [vmem:[%s200 + $0xbf8] sm:$0xff]
        %v647 = vld [vmem:[%s200 + $0xc00] sm:$0xff]
        %v648 = vld [vmem:[%s200 + $0xc08] sm:$0xff]
        %v649 = vld [vmem:[%s200 + $0xc10] sm:$0xff]
        %v650 = vld [vmem:[%s200 + $0xc18] sm:$0xff]
        %v651 = vld [vmem:[%s200 + $0xc20] sm:$0xff]
        %v652 = vld [vmem:[%s200 + $0xc28] sm:$0xff]
        %v653 = vld [vmem:[%s200 + $0xc30] sm:$0xff]
        %v654 = vld [vmem:[%s200 + $0xc38] sm:$0xff]
        %v655 = vld [vmem:[%s200 + $0xc40] sm:$0xff]
        %v656 = vld [vmem:[%s200 + $0xc48] sm:$0xff]
        %v657 = vld [vmem:[%s200 + $0xc50] sm:$0xff]
        %v658 = vld [vmem:[%s200 + $0xc58] sm:$0xff]
        %v659 = vld [vmem:[%s200 + $0xc60] sm:$0xff]
        %v660 = vld [vmem:[%s200 + $0xc68] sm:$0xff]
        %v661 = vld [vmem:[%s200 + $0xc70] sm:$0xff]
        %v662 = vld [vmem:[%s200 + $0xc78] sm:$0xff]
        %v663 = vld [vmem:[%s200 + $0xc80] sm:$0xff]
        %v664 = vld [vmem:[%s200 + $0xc88] sm:$0xff]
        %v665 = vld [vmem:[%s200 + $0xc90] sm:$0xff]
        %v666 = vld [vmem:[%s200 + $0xc98] sm:$0xff]
        %v667 = vld [vmem:[%s200 + $0xca0] sm:$0xff]
        %v668 = vld [vmem:[%s200 + $0xca8] sm:$0xff]
        %v669 = vld [vmem:[%s200 + $0xcb0] sm:$0xff]
        %v670 = vld [vmem:[%s200 + $0xcb8] sm:$0xff]
        %v671 = vld [vmem:[%s200 + $0xcc0] sm:$0xff]
        %v672 = vld [vmem:[%s200 + $0xcc8] sm:$0xff]
        %v673 = vld [vmem:[%s200 + $0xcd0] sm:$0xff]
        %v674 = vld [vmem:[%s200 + $0xcd8] sm:$0xff]
        %v675 = vld [vmem:[%s200 + $0xce0] sm:$0xff]
        %v676 = vld [vmem:[%s200 + $0xce8] sm:$0xff]
        %v677 = vld [vmem:[%s200 + $0xcf0] sm:$0xff]
        %v678 = vld [vmem:[%s200 + $0xcf8] sm:$0xff]
        %v679 = vld [vmem:[%s200 + $0xd00] sm:$0xff]
        %v680 = vld [vmem:[%s200 + $0xd08] sm:$0xff]
        %v681 = vld [vmem:[%s200 + $0xd10] sm:$0xff]
        %v682 = vld [vmem:[%s200 + $0xd18] sm:$0xff]
        %v683 = vld [vmem:[%s200 + $0xd20] sm:$0xff]
        %v684 = vld [vmem:[%s200 + $0xd28] sm:$0xff]
        %v685 = vld [vmem:[%s200 + $0xd30] sm:$0xff]
        %v686 = vld [vmem:[%s200 + $0xd38] sm:$0xff]
        %v687 = vld [vmem:[%s200 + $0xd40] sm:$0xff]
        %v688 = vld [vmem:[%s200 + $0xd48] sm:$0xff]
        %v689 = vld [vmem:[%s200 + $0xd50] sm:$0xff]
        %v690 = vld [vmem:[%s200 + $0xd58] sm:$0xff]
        %v691 = vld [vmem:[%s200 + $0xd60] sm:$0xff]
        %v692 = vld [vmem:[%s200 + $0xd68] sm:$0xff]
        %v693 = vld [vmem:[%s200 + $0xd70] sm:$0xff]
        %v694 = vld [vmem:[%s200 + $0xd78] sm:$0xff]
        %v695 = vld [vmem:[%s200 + $0xd80] sm:$0xff]
        %v696 = vld [vmem:[%s200 + $0xd88] sm:$0xff]
        %v697 = vld [vmem:[%s200 + $0xd90] sm:$0xff]
        %v698 = vld [vmem:[%s200 + $0xd98] sm:$0xff]
        %v699 = vld [vmem:[%s200 + $0xda0] sm:$0xff]
        %v700 = vld [vmem:[%s200 + $0xda8] sm:$0xff]
        %v701 = vld [vmem:[%s200 + $0xdb0] sm:$0xff]
        %v702 = vld [vmem:[%s200 + $0xdb8] sm:$0xff]
        %v703 = vld [vmem:[%s200 + $0xdc0] sm:$0xff]
        %v704 = vld [vmem:[%s200 + $0xdc8] sm:$0xff]
        %v705 = vld [vmem:[%s200 + $0xdd0] sm:$0xff]
        %v706 = vld [vmem:[%s200 + $0xdd8] sm:$0xff]
        %v707 = vld [vmem:[%s200 + $0xde0] sm:$0xff]
        %v708 = vld [vmem:[%s200 + $0xde8] sm:$0xff]
        %v709 = vld [vmem:[%s200 + $0xdf0] sm:$0xff]
        %v710 = vld [vmem:[%s200 + $0xdf8] sm:$0xff]
        %v711 = vld [vmem:[%s200 + $0xe00] sm:$0xff]
        %v712 = vld [vmem:[%s200 + $0xe08] sm:$0xff]
        %v713 = vld [vmem:[%s200 + $0xe10] sm:$0xff]
        %v714 = vld [vmem:[%s200 + $0xe18] sm:$0xff]
        %v715 = vld [vmem:[%s200 + $0xe20] sm:$0xff]
        %v716 = vld [vmem:[%s200 + $0xe28] sm:$0xff]
        %v717 = vld [vmem:[%s200 + $0xe30] sm:$0xff]
        %v718 = vld [vmem:[%s200 + $0xe38] sm:$0xff]
        %v719 = vld [vmem:[%s200 + $0xe40] sm:$0xff]
        %v720 = vld [vmem:[%s200 + $0xe48] sm:$0xff]
        %v721 = vld [vmem:[%s200 + $0xe50] sm:$0xff]
        %v722 = vld [vmem:[%s200 + $0xe58] sm:$0xff]
        %v723 = vld [vmem:[%s200 + $0xe60] sm:$0xff]
        %v724 = vld [vmem:[%s200 + $0xe68] sm:$0xff]
        %v725 = vld [vmem:[%s200 + $0xe70] sm:$0xff]
        %v726 = vld [vmem:[%s200 + $0xe78] sm:$0xff]
        %v727 = vld [vmem:[%s200 + $0xe80] sm:$0xff]
        %v728 = vld [vmem:[%s200 + $0xe88] sm:$0xff]
        %v729 = vld [vmem:[%s200 + $0xe90] sm:$0xff]
        %v730 = vld [vmem:[%s200 + $0xe98] sm:$0xff]
        %v731 = vld [vmem:[%s200 + $0xea0] sm:$0xff]
        %v732 = vld [vmem:[%s200 + $0xea8] sm:$0xff]
        %v733 = vld [vmem:[%s200 + $0xeb0] sm:$0xff]
        %v734 = vld [vmem:[%s200 + $0xeb8] sm:$0xff]
        %v735 = vld [vmem:[%s200 + $0xec0] sm:$0xff]
        %v736 = vld [vmem:[%s200 + $0xec8] sm:$0xff]
        %v737 = vld [vmem:[%s200 + $0xed0] sm:$0xff]
        %v738 = vld [vmem:[%s200 + $0xed8] sm:$0xff]
        %v739 = vld [vmem:[%s200 + $0xee0] sm:$0xff]
        %v740 = vld [vmem:[%s200 + $0xee8] sm:$0xff]
        %v741 = vld [vmem:[%s200 + $0xef0] sm:$0xff]
        %v742 = vld [vmem:[%s200 + $0xef8] sm:$0xff]
        %v743 = vld [vmem:[%s200 + $0xf00] sm:$0xff]
        %v744 = vld [vmem:[%s200 + $0xf08] sm:$0xff]
        %v745 = vld [vmem:[%s200 + $0xf10] sm:$0xff]
        %v746 = vld [vmem:[%s200 + $0xf18] sm:$0xff]
        %v747 = vld [vmem:[%s200 + $0xf20] sm:$0xff]
        %v748 = vld [vmem:[%s200 + $0xf28] sm:$0xff]
        %v749 = vld [vmem:[%s200 + $0xf30] sm:$0xff]
        %v750 = vld [vmem:[%s200 + $0xf38] sm:$0xff]
        %v751 = vld [vmem:[%s200 + $0xf40] sm:$0xff]
        %v752 = vld [vmem:[%s200 + $0xf48] sm:$0xff]
        %v753 = vld [vmem:[%s200 + $0xf50] sm:$0xff]
        %v754 = vld [vmem:[%s200 + $0xf58] sm:$0xff]
        %v755 = vld [vmem:[%s200 + $0xf60] sm:$0xff]
        %v756 = vld [vmem:[%s200 + $0xf68] sm:$0xff]
        %v757 = vld [vmem:[%s200 + $0xf70] sm:$0xff]
        %v758 = vld [vmem:[%s200 + $0xf78] sm:$0xff]
        %v759 = vld [vmem:[%s200 + $0xf80] sm:$0xff]
        %v760 = vld [vmem:[%s200 + $0xf88] sm:$0xff]
        %v761 = vld [vmem:[%s200 + $0xf90] sm:$0xff]
        %v762 = vld [vmem:[%s200 + $0xf98] sm:$0xff]
        %v763 = vld [vmem:[%s200 + $0xfa0] sm:$0xff]
        %v764 = vld [vmem:[%s200 + $0xfa8] sm:$0xff]
        %v765 = vld [vmem:[%s200 + $0xfb0] sm:$0xff]
        %v766 = vld [vmem:[%s200 + $0xfb8] sm:$0xff]
        %v767 = vld [vmem:[%s200 + $0xfc0] sm:$0xff]
        %v768 = vld [vmem:[%s200 + $0xfc8] sm:$0xff]
        %v769 = vld [vmem:[%s200 + $0xfd0] sm:$0xff]
        %v770 = vld [vmem:[%s200 + $0xfd8] sm:$0xff]
        %v771 = vld [vmem:[%s200 + $0xfe0] sm:$0xff]
        %v772 = vld [vmem:[%s200 + $0xfe8] sm:$0xff]
        %v773 = vld [vmem:[%s200 + $0xff0] sm:$0xff]
        %v774 = vld [vmem:[%s200 + $0xff8] sm:$0xff]
        %v775 = vld [vmem:[%s200 + $0x1000] sm:$0xff]
        %v776 = vld [vmem:[%s200 + $0x1008] sm:$0xff]
        %v777 = vld [vmem:[%s200 + $0x1010] sm:$0xff]
        %v778 = vld [vmem:[%s200 + $0x1018] sm:$0xff]
        %v779 = vld [vmem:[%s200 + $0x1020] sm:$0xff]
        %v780 = vld [vmem:[%s200 + $0x1028] sm:$0xff]
        %v781 = vld [vmem:[%s200 + $0x1030] sm:$0xff]
        %v782 = vld [vmem:[%s200 + $0x1038] sm:$0xff]
        %v783 = vld [vmem:[%s200 + $0x1040] sm:$0xff]
        %v784 = vld [vmem:[%s200 + $0x1048] sm:$0xff]
        %v785 = vld [vmem:[%s200 + $0x1050] sm:$0xff]
        %v786 = vld [vmem:[%s200 + $0x1058] sm:$0xff]
        %v787 = vld [vmem:[%s200 + $0x1060] sm:$0xff]
        %v788 = vld [vmem:[%s200 + $0x1068] sm:$0xff]
        %v789 = vld [vmem:[%s200 + $0x1070] sm:$0xff]
        %v790 = vld [vmem:[%s200 + $0x1078] sm:$0xff]
        %v791 = vld [vmem:[%s200 + $0x1080] sm:$0xff]
        %v792 = vld [vmem:[%s200 + $0x1088] sm:$0xff]
        %v793 = vld [vmem:[%s200 + $0x1090] sm:$0xff]
        %v794 = vld [vmem:[%s200 + $0x1098] sm:$0xff]
        %v795 = vld [vmem:[%s200 + $0x10a0] sm:$0xff]
        %v796 = vld [vmem:[%s200 + $0x10a8] sm:$0xff]
        %v797 = vld [vmem:[%s200 + $0x10b0] sm:$0xff]
        %v798 = vld [vmem:[%s200 + $0x10b8] sm:$0xff]
        %v799 = vld [vmem:[%s200 + $0x10c0] sm:$0xff]
        %v800 = vld [vmem:[%s200 + $0x10c8] sm:$0xff]
        %v801 = vld [vmem:[%s200 + $0x10d0] sm:$0xff]
        %v802 = vld [vmem:[%s200 + $0x10d8] sm:$0xff]
        %v803 = vld [vmem:[%s200 + $0x10e0] sm:$0xff]
        %v804 = vld [vmem:[%s200 + $0x10e8] sm:$0xff]
        %v805 = vld [vmem:[%s200 + $0x10f0] sm:$0xff]
        %v806 = vld [vmem:[%s200 + $0x10f8] sm:$0xff]
        %v807 = vld [vmem:[%s200 + $0x1100] sm:$0xff]
        %v808 = vld [vmem:[%s200 + $0x1108] sm:$0xff]
        %v809 = vld [vmem:[%s200 + $0x1110] sm:$0xff]
        %v810 = vld [vmem:[%s200 + $0x1118] sm:$0xff]
        %v811 = vld [vmem:[%s200 + $0x1120] sm:$0xff]
        %v812 = vld [vmem:[%s200 + $0x1128] sm:$0xff]
        %v813 = vld [vmem:[%s200 + $0x1130] sm:$0xff]
        %v814 = vld [vmem:[%s200 + $0x1138] sm:$0xff]
        %v815 = vld [vmem:[%s200 + $0x1140] sm:$0xff]
        %v816 = vld [vmem:[%s200 + $0x1148] sm:$0xff]
        %v817 = vld [vmem:[%s200 + $0x1150] sm:$0xff]
        %v818 = vld [vmem:[%s200 + $0x1158] sm:$0xff]
        %v819 = vld [vmem:[%s200 + $0x1160] sm:$0xff]
        %v820 = vld [vmem:[%s200 + $0x1168] sm:$0xff]
        %v821 = vld [vmem:[%s200 + $0x1170] sm:$0xff]
        %v822 = vld [vmem:[%s200 + $0x1178] sm:$0xff]
        %v823 = vld [vmem:[%s200 + $0x1180] sm:$0xff]
        %v824 = vld [vmem:[%s200 + $0x1188] sm:$0xff]
        %v825 = vld [vmem:[%s200 + $0x1190] sm:$0xff]
        %v826 = vld [vmem:[%s200 + $0x1198] sm:$0xff]
        %v827 = vld [vmem:[%s200 + $0x11a0] sm:$0xff]
        %v828 = vld [vmem:[%s200 + $0x11a8] sm:$0xff]
        %v829 = vld [vmem:[%s200 + $0x11b0] sm:$0xff]
        %v830 = vld [vmem:[%s200 + $0x11b8] sm:$0xff]
        %v831 = vld [vmem:[%s200 + $0x11c0] sm:$0xff]
        %v832 = vld [vmem:[%s200 + $0x11c8] sm:$0xff]
        %v833 = vld [vmem:[%s200 + $0x11d0] sm:$0xff]
        %v834 = vld [vmem:[%s200 + $0x11d8] sm:$0xff]
        %v835 = vld [vmem:[%s200 + $0x11e0] sm:$0xff]
        %v836 = vld [vmem:[%s200 + $0x11e8] sm:$0xff]
        %v837 = vld [vmem:[%s200 + $0x11f0] sm:$0xff]
        %v838 = vld [vmem:[%s200 + $0x11f8] sm:$0xff]
        %v839 = vld [vmem:[%s200 + $0x1200] sm:$0xff]
        %v840 = vld [vmem:[%s200 + $0x1208] sm:$0xff]
        %v841 = vld [vmem:[%s200 + $0x1210] sm:$0xff]
        %v842 = vld [vmem:[%s200 + $0x1218] sm:$0xff]
        %v843 = vld [vmem:[%s200 + $0x1220] sm:$0xff]
        %v844 = vld [vmem:[%s200 + $0x1228] sm:$0xff]
        %v845 = vld [vmem:[%s200 + $0x1230] sm:$0xff]
        %v846 = vld [vmem:[%s200 + $0x1238] sm:$0xff]
        %v847 = vld [vmem:[%s200 + $0x1240] sm:$0xff]
        %v848 = vld [vmem:[%s200 + $0x1248] sm:$0xff]
        %v849 = vld [vmem:[%s200 + $0x1250] sm:$0xff]
        %v850 = vld [vmem:[%s200 + $0x1258] sm:$0xff]
        %v851 = vld [vmem:[%s200 + $0x1260] sm:$0xff]
        %v852 = vld [vmem:[%s200 + $0x1268] sm:$0xff]
        %v853 = vld [vmem:[%s200 + $0x1270] sm:$0xff]
        %v854 = vld [vmem:[%s200 + $0x1278] sm:$0xff]
        %v855 = vld [vmem:[%s200 + $0x1280] sm:$0xff]
        %v856 = vld [vmem:[%s200 + $0x1288] sm:$0xff]
        %v857 = vld [vmem:[%s200 + $0x1290] sm:$0xff]
        %v858 = vld [vmem:[%s200 + $0x1298] sm:$0xff]
        %v859 = vld [vmem:[%s200 + $0x12a0] sm:$0xff]
        %v860 = vld [vmem:[%s200 + $0x12a8] sm:$0xff]
        %v861 = vld [vmem:[%s200 + $0x12b0] sm:$0xff]
        %v862 = vld [vmem:[%s200 + $0x12b8] sm:$0xff]
        %v863 = vld [vmem:[%s200 + $0x12c0] sm:$0xff]
        %v864 = vld [vmem:[%s200 + $0x12c8] sm:$0xff]
        %v865 = vld [vmem:[%s200 + $0x12d0] sm:$0xff]
        %v866 = vld [vmem:[%s200 + $0x12d8] sm:$0xff]
        %v867 = vld [vmem:[%s200 + $0x12e0] sm:$0xff]
        %v868 = vld [vmem:[%s200 + $0x12e8] sm:$0xff]
        %v869 = vld [vmem:[%s200 + $0x12f0] sm:$0xff]
        %v870 = vld [vmem:[%s200 + $0x12f8] sm:$0xff]
        %v871 = vld [vmem:[%s200 + $0x1300] sm:$0xff]
        %v872 = vld [vmem:[%s200 + $0x1308] sm:$0xff]
        %v873 = vld [vmem:[%s200 + $0x1310] sm:$0xff]
        %v874 = vld [vmem:[%s200 + $0x1318] sm:$0xff]
        %v875 = vld [vmem:[%s200 + $0x1320] sm:$0xff]
        %v876 = vld [vmem:[%s200 + $0x1328] sm:$0xff]
        %v877 = vld [vmem:[%s200 + $0x1330] sm:$0xff]
        %v878 = vld [vmem:[%s200 + $0x1338] sm:$0xff]
        %v879 = vld [vmem:[%s200 + $0x1340] sm:$0xff]
        %v880 = vld [vmem:[%s200 + $0x1348] sm:$0xff]
        %v881 = vld [vmem:[%s200 + $0x1350] sm:$0xff]
        %v882 = vld [vmem:[%s200 + $0x1358] sm:$0xff]
        %v883 = vld [vmem:[%s200 + $0x1360] sm:$0xff]
        %v884 = vld [vmem:[%s200 + $0x1368] sm:$0xff]
        %v885 = vld [vmem:[%s200 + $0x1370] sm:$0xff]
        %v886 = vld [vmem:[%s200 + $0x1378] sm:$0xff]
        %v887 = vld [vmem:[%s200 + $0x1380] sm:$0xff]
        %v888 = vld [vmem:[%s200 + $0x1388] sm:$0xff]
        %v889 = vld [vmem:[%s200 + $0x1390] sm:$0xff]
        %v890 = vld [vmem:[%s200 + $0x1398] sm:$0xff]
        %v891 = vld [vmem:[%s200 + $0x13a0] sm:$0xff]
        %v892 = vld [vmem:[%s200 + $0x13a8] sm:$0xff]
        %v893 = vld [vmem:[%s200 + $0x13b0] sm:$0xff]
        %v894 = vld [vmem:[%s200 + $0x13b8] sm:$0xff]
        %v895 = vld [vmem:[%s200 + $0x13c0] sm:$0xff]
        %v896 = vld [vmem:[%s200 + $0x13c8] sm:$0xff]
        %v897 = vld [vmem:[%s200 + $0x13d0] sm:$0xff]
        %v898 = vld [vmem:[%s200 + $0x13d8] sm:$0xff]
        %v899 = vld [vmem:[%s200 + $0x13e0] sm:$0xff]
        %v900 = vld [vmem:[%s200 + $0x13e8] sm:$0xff]
        %v901 = vld [vmem:[%s200 + $0x13f0] sm:$0xff]
        %v902 = vld [vmem:[%s200 + $0x13f8] sm:$0xff]
        %v903 = vld [vmem:[%s200 + $0x1400] sm:$0xff]
        %v904 = vld [vmem:[%s200 + $0x1408] sm:$0xff]
        %v905 = vld [vmem:[%s200 + $0x1410] sm:$0xff]
        %v906 = vld [vmem:[%s200 + $0x1418] sm:$0xff]
        %v907 = vld [vmem:[%s200 + $0x1420] sm:$0xff]
        %v908 = vld [vmem:[%s200 + $0x1428] sm:$0xff]
        %v909 = vld [vmem:[%s200 + $0x1430] sm:$0xff]
        %v910 = vld [vmem:[%s200 + $0x1438] sm:$0xff]
        %v911 = vld [vmem:[%s200 + $0x1440] sm:$0xff]
        %v912 = vld [vmem:[%s200 + $0x1448] sm:$0xff]
        %v913 = vld [vmem:[%s200 + $0x1450] sm:$0xff]
        %v914 = vld [vmem:[%s200 + $0x1458] sm:$0xff]
        %v915 = vld [vmem:[%s200 + $0x1460] sm:$0xff]
        %v916 = vld [vmem:[%s200 + $0x1468] sm:$0xff]
        %v917 = vld [vmem:[%s200 + $0x1470] sm:$0xff]
        %v918 = vld [vmem:[%s200 + $0x1478] sm:$0xff]
        %v919 = vld [vmem:[%s200 + $0x1480] sm:$0xff]
        %v920 = vld [vmem:[%s200 + $0x1488] sm:$0xff]
        %v921 = vld [vmem:[%s200 + $0x1490] sm:$0xff]
        %v922 = vld [vmem:[%s200 + $0x1498] sm:$0xff]
        %v923 = vld [vmem:[%s200 + $0x14a0] sm:$0xff]
        %v924 = vld [vmem:[%s200 + $0x14a8] sm:$0xff]
        %v925 = vld [vmem:[%s200 + $0x14b0] sm:$0xff]
        %v926 = vld [vmem:[%s200 + $0x14b8] sm:$0xff]
        %v927 = vld [vmem:[%s200 + $0x14c0] sm:$0xff]
        %v928 = vld [vmem:[%s200 + $0x14c8] sm:$0xff]
        %v929 = vld [vmem:[%s200 + $0x14d0] sm:$0xff]
        %v930 = vld [vmem:[%s200 + $0x14d8] sm:$0xff]
        %v931 = vld [vmem:[%s200 + $0x14e0] sm:$0xff]
        %v932 = vld [vmem:[%s200 + $0x14e8] sm:$0xff]
        %v933 = vld [vmem:[%s200 + $0x14f0] sm:$0xff]
        %v934 = vld [vmem:[%s200 + $0x14f8] sm:$0xff]
        %v935 = vld [vmem:[%s200 + $0x1500] sm:$0xff]
        %v936 = vld [vmem:[%s200 + $0x1508] sm:$0xff]
        %v937 = vld [vmem:[%s200 + $0x1510] sm:$0xff]
        %v938 = vld [vmem:[%s200 + $0x1518] sm:$0xff]
        %v939 = vld [vmem:[%s200 + $0x1520] sm:$0xff]
        %v940 = vld [vmem:[%s200 + $0x1528] sm:$0xff]
        %v941 = vld [vmem:[%s200 + $0x1530] sm:$0xff]
        %v942 = vld [vmem:[%s200 + $0x1538] sm:$0xff]
        %v943 = vld [vmem:[%s200 + $0x1540] sm:$0xff]
        %v944 = vld [vmem:[%s200 + $0x1548] sm:$0xff]
        %v945 = vld [vmem:[%s200 + $0x1550] sm:$0xff]
        %v946 = vld [vmem:[%s200 + $0x1558] sm:$0xff]
        %v947 = vld [vmem:[%s200 + $0x1560] sm:$0xff]
        %v948 = vld [vmem:[%s200 + $0x1568] sm:$0xff]
        %v949 = vld [vmem:[%s200 + $0x1570] sm:$0xff]
        %v950 = vld [vmem:[%s200 + $0x1578] sm:$0xff]
        %v951 = vld [vmem:[%s200 + $0x1580] sm:$0xff]
        %v952 = vld [vmem:[%s200 + $0x1588] sm:$0xff]
        %v953 = vld [vmem:[%s200 + $0x1590] sm:$0xff]
        %v954 = vld [vmem:[%s200 + $0x1598] sm:$0xff]
        %v955 = vld [vmem:[%s200 + $0x15a0] sm:$0xff]
        %v956 = vld [vmem:[%s200 + $0x15a8] sm:$0xff]
        %v957 = vld [vmem:[%s200 + $0x15b0] sm:$0xff]
        %v958 = vld [vmem:[%s200 + $0x15b8] sm:$0xff]
        %v959 = vld [vmem:[%s200 + $0x15c0] sm:$0xff]
        %v960 = vld [vmem:[%s200 + $0x15c8] sm:$0xff]
        %v961 = vld [vmem:[%s200 + $0x15d0] sm:$0xff]
        %v962 = vld [vmem:[%s200 + $0x15d8] sm:$0xff]
        %v963 = vld [vmem:[%s200 + $0x15e0] sm:$0xff]
        %v964 = vld [vmem:[%s200 + $0x15e8] sm:$0xff]
        %v965 = vld [vmem:[%s200 + $0x15f0] sm:$0xff]
        %v966 = vld [vmem:[%s200 + $0x15f8] sm:$0xff]
        %v967 = vld [vmem:[%s200 + $0x1600] sm:$0xff]
        %v968 = vld [vmem:[%s200 + $0x1608] sm:$0xff]
        %v969 = vld [vmem:[%s200 + $0x1610] sm:$0xff]
        %v970 = vld [vmem:[%s200 + $0x1618] sm:$0xff]
        %v971 = vld [vmem:[%s200 + $0x1620] sm:$0xff]
        %v972 = vld [vmem:[%s200 + $0x1628] sm:$0xff]
        %v973 = vld [vmem:[%s200 + $0x1630] sm:$0xff]
        %v974 = vld [vmem:[%s200 + $0x1638] sm:$0xff]
        %v975 = vld [vmem:[%s200 + $0x1640] sm:$0xff]
        %v976 = vld [vmem:[%s200 + $0x1648] sm:$0xff]
        %v977 = vld [vmem:[%s200 + $0x1650] sm:$0xff]
        %v978 = vld [vmem:[%s200 + $0x1658] sm:$0xff]
        %v979 = vld [vmem:[%s200 + $0x1660] sm:$0xff]
        %v980 = vld [vmem:[%s200 + $0x1668] sm:$0xff]
        %v981 = vld [vmem:[%s200 + $0x1670] sm:$0xff]
        %v982 = vld [vmem:[%s200 + $0x1678] sm:$0xff]
        %v983 = vld [vmem:[%s200 + $0x1680] sm:$0xff]
        %v984 = vld [vmem:[%s200 + $0x1688] sm:$0xff]
        %v985 = vld [vmem:[%s200 + $0x1690] sm:$0xff]
        %v986 = vld [vmem:[%s200 + $0x1698] sm:$0xff]
        %v987 = vld [vmem:[%s200 + $0x16a0] sm:$0xff]
        %v988 = vld [vmem:[%s200 + $0x16a8] sm:$0xff]
        %v989 = vld [vmem:[%s200 + $0x16b0] sm:$0xff]
        %v990 = vld [vmem:[%s200 + $0x16b8] sm:$0xff]
        %v991 = vld [vmem:[%s200 + $0x16c0] sm:$0xff]
        %v992 = vld [vmem:[%s200 + $0x16c8] sm:$0xff]
        %v993 = vld [vmem:[%s200 + $0x16d0] sm:$0xff]
        %v994 = vld [vmem:[%s200 + $0x16d8] sm:$0xff]
        %v995 = vld [vmem:[%s200 + $0x16e0] sm:$0xff]
        %v996 = vld [vmem:[%s200 + $0x16e8] sm:$0xff]
        %v997 = vld [vmem:[%s200 + $0x16f0] sm:$0xff]
        %v998 = vld [vmem:[%s200 + $0x16f8] sm:$0xff]
        %v999 = vld [vmem:[%s200 + $0x1700] sm:$0xff]
        %v1000 = vld [vmem:[%s200 + $0x1708] sm:$0xff]
        %v1001 = vld [vmem:[%s200 + $0x1710] sm:$0xff]
        %v1002 = vld [vmem:[%s200 + $0x1718] sm:$0xff]
        %v1003 = vld [vmem:[%s200 + $0x1720] sm:$0xff]
        %v1004 = vld [vmem:[%s200 + $0x1728] sm:$0xff]
        %v1005 = vld [vmem:[%s200 + $0x1730] sm:$0xff]
        %v1006 = vld [vmem:[%s200 + $0x1738] sm:$0xff]
        %v1007 = vld [vmem:[%s200 + $0x1740] sm:$0xff]
        %v1008 = vld [vmem:[%s200 + $0x1748] sm:$0xff]
        %v1009 = vld [vmem:[%s200 + $0x1750] sm:$0xff]
        %v1010 = vld [vmem:[%s200 + $0x1758] sm:$0xff]
        %v1011 = vld [vmem:[%s200 + $0x1760] sm:$0xff]
        %v1012 = vld [vmem:[%s200 + $0x1768] sm:$0xff]
        %v1013 = vld [vmem:[%s200 + $0x1770] sm:$0xff]
        %v1014 = vld [vmem:[%s200 + $0x1778] sm:$0xff]
        %v1015 = vld [vmem:[%s200 + $0x1780] sm:$0xff]
        %v1016 = vld [vmem:[%s200 + $0x1788] sm:$0xff]
        %v1017 = vld [vmem:[%s200 + $0x1790] sm:$0xff]
        %v1018 = vld [vmem:[%s200 + $0x1798] sm:$0xff]
        %v1019 = vld [vmem:[%s200 + $0x17a0] sm:$0xff]
        %v1020 = vld [vmem:[%s200 + $0x17a8] sm:$0xff]
        %v1021 = vld [vmem:[%s200 + $0x17b0] sm:$0xff]
        %v1022 = vld [vmem:[%s200 + $0x17b8] sm:$0xff]
        %v1023 = vld [vmem:[%s200 + $0x17c0] sm:$0xff]
        %v1024 = vld [vmem:[%s200 + $0x17c8] sm:$0xff]
        %v1025 = vld [vmem:[%s200 + $0x17d0] sm:$0xff]
        %v1026 = vld [vmem:[%s200 + $0x17d8] sm:$0xff]
        %v1027 = vld [vmem:[%s200 + $0x17e0] sm:$0xff]
        %v1028 = vld [vmem:[%s200 + $0x17e8] sm:$0xff]
        %v1029 = vld [vmem:[%s200 + $0x17f0] sm:$0xff]
        %v1030 = vld [vmem:[%s200 + $0x17f8] sm:$0xff]
        %v1031 = vld [vmem:[%s200 + $0x1800] sm:$0xff]
        %v1032 = vld [vmem:[%s200 + $0x1808] sm:$0xff]
        %v1033 = vld [vmem:[%s200 + $0x1810] sm:$0xff]
        %v1034 = vld [vmem:[%s200 + $0x1818] sm:$0xff]
        %v1035 = vld [vmem:[%s200 + $0x1820] sm:$0xff]
        %v1036 = vld [vmem:[%s200 + $0x1828] sm:$0xff]
        %v1037 = vld [vmem:[%s200 + $0x1830] sm:$0xff]
        %v1038 = vld [vmem:[%s200 + $0x1838] sm:$0xff]
        %v1039 = vld [vmem:[%s200 + $0x1840] sm:$0xff]
        %v1040 = vld [vmem:[%s200 + $0x1848] sm:$0xff]
        %v1041 = vld [vmem:[%s200 + $0x1850] sm:$0xff]
        %v1042 = vld [vmem:[%s200 + $0x1858] sm:$0xff]
        %v1043 = vld [vmem:[%s200 + $0x1860] sm:$0xff]
        %v1044 = vld [vmem:[%s200 + $0x1868] sm:$0xff]
        %v1045 = vld [vmem:[%s200 + $0x1870] sm:$0xff]
        %v1046 = vld [vmem:[%s200 + $0x1878] sm:$0xff]
        %v1047 = vld [vmem:[%s200 + $0x1880] sm:$0xff]
        %v1048 = vld [vmem:[%s200 + $0x1888] sm:$0xff]
        %v1049 = vld [vmem:[%s200 + $0x1890] sm:$0xff]
        %v1050 = vld [vmem:[%s200 + $0x1898] sm:$0xff]
        %v1051 = vld [vmem:[%s200 + $0x18a0] sm:$0xff]
        %v1052 = vld [vmem:[%s200 + $0x18a8] sm:$0xff]
        %v1053 = vld [vmem:[%s200 + $0x18b0] sm:$0xff]
        %v1054 = vld [vmem:[%s200 + $0x18b8] sm:$0xff]
        %v1055 = vld [vmem:[%s200 + $0x18c0] sm:$0xff]
        %v1056 = vld [vmem:[%s200 + $0x18c8] sm:$0xff]
        %v1057 = vld [vmem:[%s200 + $0x18d0] sm:$0xff]
        %v1058 = vld [vmem:[%s200 + $0x18d8] sm:$0xff]
        %v1059 = vld [vmem:[%s200 + $0x18e0] sm:$0xff]
        %v1060 = vld [vmem:[%s200 + $0x18e8] sm:$0xff]
        %v1061 = vld [vmem:[%s200 + $0x18f0] sm:$0xff]
        %v1062 = vld [vmem:[%s200 + $0x18f8] sm:$0xff]
        %v1063 = vld [vmem:[%s200 + $0x1900] sm:$0xff]
        %v1064 = vld [vmem:[%s200 + $0x1908] sm:$0xff]
        %v1065 = vld [vmem:[%s200 + $0x1910] sm:$0xff]
        %v1066 = vld [vmem:[%s200 + $0x1918] sm:$0xff]
        %v1067 = vld [vmem:[%s200 + $0x1920] sm:$0xff]
        %v1068 = vld [vmem:[%s200 + $0x1928] sm:$0xff]
        %v1069 = vld [vmem:[%s200 + $0x1930] sm:$0xff]
        %v1070 = vld [vmem:[%s200 + $0x1938] sm:$0xff]
        %v1071 = vld [vmem:[%s200 + $0x1940] sm:$0xff]
        %v1072 = vld [vmem:[%s200 + $0x1948] sm:$0xff]
        %v1073 = vld [vmem:[%s200 + $0x1950] sm:$0xff]
        %v1074 = vld [vmem:[%s200 + $0x1958] sm:$0xff]
        %v1075 = vld [vmem:[%s200 + $0x1960] sm:$0xff]
        %v1076 = vld [vmem:[%s200 + $0x1968] sm:$0xff]
        %v1077 = vld [vmem:[%s200 + $0x1970] sm:$0xff]
        %v1078 = vld [vmem:[%s200 + $0x1978] sm:$0xff]
        %v1079 = vld [vmem:[%s200 + $0x1980] sm:$0xff]
        %v1080 = vld [vmem:[%s200 + $0x1988] sm:$0xff]
        %v1081 = vld [vmem:[%s200 + $0x1990] sm:$0xff]
        %v1082 = vld [vmem:[%s200 + $0x1998] sm:$0xff]
        %v1083 = vld [vmem:[%s200 + $0x19a0] sm:$0xff]
        %v1084 = vld [vmem:[%s200 + $0x19a8] sm:$0xff]
        %v1085 = vld [vmem:[%s200 + $0x19b0] sm:$0xff]
        %v1086 = vld [vmem:[%s200 + $0x19b8] sm:$0xff]
        %v1087 = vld [vmem:[%s200 + $0x19c0] sm:$0xff]
        %v1088 = vld [vmem:[%s200 + $0x19c8] sm:$0xff]
        %v1089 = vld [vmem:[%s200 + $0x19d0] sm:$0xff]
        %v1090 = vld [vmem:[%s200 + $0x19d8] sm:$0xff]
        %v1091 = vld [vmem:[%s200 + $0x19e0] sm:$0xff]
        %v1092 = vld [vmem:[%s200 + $0x19e8] sm:$0xff]
        %v1093 = vld [vmem:[%s200 + $0x19f0] sm:$0xff]
        %v1094 = vld [vmem:[%s200 + $0x19f8] sm:$0xff]
        %v1095 = vld [vmem:[%s200 + $0x1a00] sm:$0xff]
        %v1096 = vld [vmem:[%s200 + $0x1a08] sm:$0xff]
        %v1097 = vld [vmem:[%s200 + $0x1a10] sm:$0xff]
        %v1098 = vld [vmem:[%s200 + $0x1a18] sm:$0xff]
        %v1099 = vld [vmem:[%s200 + $0x1a20] sm:$0xff]
        %v1100 = vld [vmem:[%s200 + $0x1a28] sm:$0xff]
        %v1101 = vld [vmem:[%s200 + $0x1a30] sm:$0xff]
        %v1102 = vld [vmem:[%s200 + $0x1a38] sm:$0xff]
        %v1103 = vld [vmem:[%s200 + $0x1a40] sm:$0xff]
        %v1104 = vld [vmem:[%s200 + $0x1a48] sm:$0xff]
        %v1105 = vld [vmem:[%s200 + $0x1a50] sm:$0xff]
        %v1106 = vld [vmem:[%s200 + $0x1a58] sm:$0xff]
        %v1107 = vld [vmem:[%s200 + $0x1a60] sm:$0xff]
        %v1108 = vld [vmem:[%s200 + $0x1a68] sm:$0xff]
        %v1109 = vld [vmem:[%s200 + $0x1a70] sm:$0xff]
        %v1110 = vld [vmem:[%s200 + $0x1a78] sm:$0xff]
        %v1111 = vld [vmem:[%s200 + $0x1a80] sm:$0xff]
        %v1112 = vld [vmem:[%s200 + $0x1a88] sm:$0xff]
        %v1113 = vld [vmem:[%s200 + $0x1a90] sm:$0xff]
        %v1114 = vld [vmem:[%s200 + $0x1a98] sm:$0xff]
        %v1115 = vld [vmem:[%s200 + $0x1aa0] sm:$0xff]
        %v1116 = vld [vmem:[%s200 + $0x1aa8] sm:$0xff]
        %v1117 = vld [vmem:[%s200 + $0x1ab0] sm:$0xff]
        %v1118 = vld [vmem:[%s200 + $0x1ab8] sm:$0xff]
        %v1119 = vld [vmem:[%s200 + $0x1ac0] sm:$0xff]
        %v1120 = vld [vmem:[%s200 + $0x1ac8] sm:$0xff]
        %v1121 = vld [vmem:[%s200 + $0x1ad0] sm:$0xff]
        %v1122 = vld [vmem:[%s200 + $0x1ad8] sm:$0xff]
        %v1123 = vld [vmem:[%s200 + $0x1ae0] sm:$0xff]
        %v1124 = vld [vmem:[%s200 + $0x1ae8] sm:$0xff]
        %v1125 = vld [vmem:[%s200 + $0x1af0] sm:$0xff]
        %v1126 = vld [vmem:[%s200 + $0x1af8] sm:$0xff]
        %v1127 = vld [vmem:[%s200 + $0x1b00] sm:$0xff]
        %v1128 = vld [vmem:[%s200 + $0x1b08] sm:$0xff]
        %v1129 = vld [vmem:[%s200 + $0x1b10] sm:$0xff]
        %v1130 = vld [vmem:[%s200 + $0x1b18] sm:$0xff]
        %v1131 = vld [vmem:[%s200 + $0x1b20] sm:$0xff]
        %v1132 = vld [vmem:[%s200 + $0x1b28] sm:$0xff]
        %v1133 = vld [vmem:[%s200 + $0x1b30] sm:$0xff]
        %v1134 = vld [vmem:[%s200 + $0x1b38] sm:$0xff]
        %v1135 = vld [vmem:[%s200 + $0x1b40] sm:$0xff]
        %v1136 = vld [vmem:[%s200 + $0x1b48] sm:$0xff]
        %v1137 = vld [vmem:[%s200 + $0x1b50] sm:$0xff]
        %v1138 = vld [vmem:[%s200 + $0x1b58] sm:$0xff]
        %v1139 = vld [vmem:[%s200 + $0x1b60] sm:$0xff]
        %v1140 = vld [vmem:[%s200 + $0x1b68] sm:$0xff]
        %v1141 = vld [vmem:[%s200 + $0x1b70] sm:$0xff]
        %v1142 = vld [vmem:[%s200 + $0x1b78] sm:$0xff]
        %v1143 = vld [vmem:[%s200 + $0x1b80] sm:$0xff]
        %v1144 = vld [vmem:[%s200 + $0x1b88] sm:$0xff]
        %v1145 = vld [vmem:[%s200 + $0x1b90] sm:$0xff]
        %v1146 = vld [vmem:[%s200 + $0x1b98] sm:$0xff]
        %v1147 = vld [vmem:[%s200 + $0x1ba0] sm:$0xff]
        %v1148 = vld [vmem:[%s200 + $0x1ba8] sm:$0xff]
        %v1149 = vld [vmem:[%s200 + $0x1bb0] sm:$0xff]
        %v1150 = vld [vmem:[%s200 + $0x1bb8] sm:$0xff]
        %v1151 = vld [vmem:[%s200 + $0x1bc0] sm:$0xff]
        %v1152 = vld [vmem:[%s200 + $0x1bc8] sm:$0xff]
        %v1153 = vld [vmem:[%s200 + $0x1bd0] sm:$0xff]
        %v1154 = vld [vmem:[%s200 + $0x1bd8] sm:$0xff]
        %v1155 = vld [vmem:[%s200 + $0x1be0] sm:$0xff]
        %v1156 = vld [vmem:[%s200 + $0x1be8] sm:$0xff]
        %v1157 = vld [vmem:[%s200 + $0x1bf0] sm:$0xff]
        %v1158 = vld [vmem:[%s200 + $0x1bf8] sm:$0xff]
        %v1159 = vld [vmem:[%s200 + $0x1c00] sm:$0xff]
        %v1160 = vld [vmem:[%s200 + $0x1c08] sm:$0xff]
        %v1161 = vld [vmem:[%s200 + $0x1c10] sm:$0xff]
        %v1162 = vld [vmem:[%s200 + $0x1c18] sm:$0xff]
        %v1163 = vld [vmem:[%s200 + $0x1c20] sm:$0xff]
        %v1164 = vld [vmem:[%s200 + $0x1c28] sm:$0xff]
        %v1165 = vld [vmem:[%s200 + $0x1c30] sm:$0xff]
        %v1166 = vld [vmem:[%s200 + $0x1c38] sm:$0xff]
        %v1167 = vld [vmem:[%s200 + $0x1c40] sm:$0xff]
        %v1168 = vld [vmem:[%s200 + $0x1c48] sm:$0xff]
        %v1169 = vld [vmem:[%s200 + $0x1c50] sm:$0xff]
        %v1170 = vld [vmem:[%s200 + $0x1c58] sm:$0xff]
        %v1171 = vld [vmem:[%s200 + $0x1c60] sm:$0xff]
        %v1172 = vld [vmem:[%s200 + $0x1c68] sm:$0xff]
        %v1173 = vld [vmem:[%s200 + $0x1c70] sm:$0xff]
        %v1174 = vld [vmem:[%s200 + $0x1c78] sm:$0xff]
        %v1175 = vld [vmem:[%s200 + $0x1c80] sm:$0xff]
        %v1176 = vld [vmem:[%s200 + $0x1c88] sm:$0xff]
        %v1177 = vld [vmem:[%s200 + $0x1c90] sm:$0xff]
        %v1178 = vld [vmem:[%s200 + $0x1c98] sm:$0xff]
        %v1179 = vld [vmem:[%s200 + $0x1ca0] sm:$0xff]
        %v1180 = vld [vmem:[%s200 + $0x1ca8] sm:$0xff]
        %v1181 = vld [vmem:[%s200 + $0x1cb0] sm:$0xff]
        %v1182 = vld [vmem:[%s200 + $0x1cb8] sm:$0xff]
        %v1183 = vld [vmem:[%s200 + $0x1cc0] sm:$0xff]
        %v1184 = vld [vmem:[%s200 + $0x1cc8] sm:$0xff]
        %v1185 = vld [vmem:[%s200 + $0x1cd0] sm:$0xff]
        %v1186 = vld [vmem:[%s200 + $0x1cd8] sm:$0xff]
        %v1187 = vld [vmem:[%s200 + $0x1ce0] sm:$0xff]
        %v1188 = vld [vmem:[%s200 + $0x1ce8] sm:$0xff]
        %v1189 = vld [vmem:[%s200 + $0x1cf0] sm:$0xff]
        %v1190 = vld [vmem:[%s200 + $0x1cf8] sm:$0xff]
        %v1191 = vld [vmem:[%s200 + $0x1d00] sm:$0xff]
        %v1192 = vld [vmem:[%s200 + $0x1d08] sm:$0xff]
        %v1193 = vld [vmem:[%s200 + $0x1d10] sm:$0xff]
        %v1194 = vld [vmem:[%s200 + $0x1d18] sm:$0xff]
        %v1195 = vld [vmem:[%s200 + $0x1d20] sm:$0xff]
        %v1196 = vld [vmem:[%s200 + $0x1d28] sm:$0xff]
        %v1197 = vld [vmem:[%s200 + $0x1d30] sm:$0xff]
        %v1198 = vld [vmem:[%s200 + $0x1d38] sm:$0xff]
        %v1199 = vld [vmem:[%s200 + $0x1d40] sm:$0xff]
        %v1200 = vld [vmem:[%s200 + $0x1d48] sm:$0xff]
        %v1201 = vld [vmem:[%s200 + $0x1d50] sm:$0xff]
        %v1202 = vld [vmem:[%s200 + $0x1d58] sm:$0xff]
        %v1203 = vld [vmem:[%s200 + $0x1d60] sm:$0xff]
        %v1204 = vld [vmem:[%s200 + $0x1d68] sm:$0xff]
        %v1205 = vld [vmem:[%s200 + $0x1d70] sm:$0xff]
        %v1206 = vld [vmem:[%s200 + $0x1d78] sm:$0xff]
        %v1207 = vld [vmem:[%s200 + $0x1d80] sm:$0xff]
        %v1208 = vld [vmem:[%s200 + $0x1d88] sm:$0xff]
        %v1209 = vld [vmem:[%s200 + $0x1d90] sm:$0xff]
        %v1210 = vld [vmem:[%s200 + $0x1d98] sm:$0xff]
        %v1211 = vld [vmem:[%s200 + $0x1da0] sm:$0xff]
        %v1212 = vld [vmem:[%s200 + $0x1da8] sm:$0xff]
        %v1213 = vld [vmem:[%s200 + $0x1db0] sm:$0xff]
        %v1214 = vld [vmem:[%s200 + $0x1db8] sm:$0xff]
        %v1215 = vld [vmem:[%s200 + $0x1dc0] sm:$0xff]
        %v1216 = vld [vmem:[%s200 + $0x1dc8] sm:$0xff]
        %v1217 = vld [vmem:[%s200 + $0x1dd0] sm:$0xff]
        %v1218 = vld [vmem:[%s200 + $0x1dd8] sm:$0xff]
        %v1219 = vld [vmem:[%s200 + $0x1de0] sm:$0xff]
        %v1220 = vld [vmem:[%s200 + $0x1de8] sm:$0xff]
        %v1221 = vld [vmem:[%s200 + $0x1df0] sm:$0xff]
        %v1222 = vld [vmem:[%s200 + $0x1df8] sm:$0xff]
        %v1223 = vld [vmem:[%s200 + $0x1e00] sm:$0xff]
        %v1224 = vld [vmem:[%s200 + $0x1e08] sm:$0xff]
        %v1225 = vld [vmem:[%s200 + $0x1e10] sm:$0xff]
        %v1226 = vld [vmem:[%s200 + $0x1e18] sm:$0xff]
        %v1227 = vld [vmem:[%s200 + $0x1e20] sm:$0xff]
        %v1228 = vld [vmem:[%s200 + $0x1e28] sm:$0xff]
        %v1229 = vld [vmem:[%s200 + $0x1e30] sm:$0xff]
        %v1230 = vld [vmem:[%s200 + $0x1e38] sm:$0xff]
        %v1231 = vld [vmem:[%s200 + $0x1e40] sm:$0xff]
        %v1232 = vld [vmem:[%s200 + $0x1e48] sm:$0xff]
        %v1233 = vld [vmem:[%s200 + $0x1e50] sm:$0xff]
        %v1234 = vld [vmem:[%s200 + $0x1e58] sm:$0xff]
        %v1235 = vld [vmem:[%s200 + $0x1e60] sm:$0xff]
        %v1236 = vld [vmem:[%s200 + $0x1e68] sm:$0xff]
        %v1237 = vld [vmem:[%s200 + $0x1e70] sm:$0xff]
        %v1238 = vld [vmem:[%s200 + $0x1e78] sm:$0xff]
        %v1239 = vld [vmem:[%s200 + $0x1e80] sm:$0xff]
        %v1240 = vld [vmem:[%s200 + $0x1e88] sm:$0xff]
        %v1241 = vld [vmem:[%s200 + $0x1e90] sm:$0xff]
        %v1242 = vld [vmem:[%s200 + $0x1e98] sm:$0xff]
        %v1243 = vld [vmem:[%s200 + $0x1ea0] sm:$0xff]
        %v1244 = vld [vmem:[%s200 + $0x1ea8] sm:$0xff]
        %v1245 = vld [vmem:[%s200 + $0x1eb0] sm:$0xff]
        %v1246 = vld [vmem:[%s200 + $0x1eb8] sm:$0xff]
        %v1247 = vld [vmem:[%s200 + $0x1ec0] sm:$0xff]
        %v1248 = vld [vmem:[%s200 + $0x1ec8] sm:$0xff]
        %v1249 = vld [vmem:[%s200 + $0x1ed0] sm:$0xff]
        %v1250 = vld [vmem:[%s200 + $0x1ed8] sm:$0xff]
        %v1251 = vld [vmem:[%s200 + $0x1ee0] sm:$0xff]
        %v1252 = vld [vmem:[%s200 + $0x1ee8] sm:$0xff]
        %v1253 = vld [vmem:[%s200 + $0x1ef0] sm:$0xff]
        %v1254 = vld [vmem:[%s200 + $0x1ef8] sm:$0xff]
        %v1255 = vld [vmem:[%s200 + $0x1f00] sm:$0xff]
        %v1256 = vld [vmem:[%s200 + $0x1f08] sm:$0xff]
        %v1257 = vld [vmem:[%s200 + $0x1f10] sm:$0xff]
        %v1258 = vld [vmem:[%s200 + $0x1f18] sm:$0xff]
        %v1259 = vld [vmem:[%s200 + $0x1f20] sm:$0xff]
        %v1260 = vld [vmem:[%s200 + $0x1f28] sm:$0xff]
        %v1261 = vld [vmem:[%s200 + $0x1f30] sm:$0xff]
        %v1262 = vld [vmem:[%s200 + $0x1f38] sm:$0xff]
        %v1263 = vld [vmem:[%s200 + $0x1f40] sm:$0xff]
        %v1264 = vld [vmem:[%s200 + $0x1f48] sm:$0xff]
        %v1265 = vld [vmem:[%s200 + $0x1f50] sm:$0xff]
        %v1266 = vld [vmem:[%s200 + $0x1f58] sm:$0xff]
        %v1267 = vld [vmem:[%s200 + $0x1f60] sm:$0xff]
        %v1268 = vld [vmem:[%s200 + $0x1f68] sm:$0xff]
        %v1269 = vld [vmem:[%s200 + $0x1f70] sm:$0xff]
        %v1270 = vld [vmem:[%s200 + $0x1f78] sm:$0xff]
        %v1271 = vld [vmem:[%s200 + $0x1f80] sm:$0xff]
        %v1272 = vld [vmem:[%s200 + $0x1f88] sm:$0xff]
        %v1273 = vld [vmem:[%s200 + $0x1f90] sm:$0xff]
        %v1274 = vld [vmem:[%s200 + $0x1f98] sm:$0xff]
        %v1275 = vld [vmem:[%s200 + $0x1fa0] sm:$0xff]
        %v1276 = vld [vmem:[%s200 + $0x1fa8] sm:$0xff]
        %v1277 = vld [vmem:[%s200 + $0x1fb0] sm:$0xff]
        %v1278 = vld [vmem:[%s200 + $0x1fb8] sm:$0xff]
        %v1279 = vld [vmem:[%s200 + $0x1fc0] sm:$0xff]
        %v1280 = vld [vmem:[%s200 + $0x1fc8] sm:$0xff]
        %v1281 = vld [vmem:[%s200 + $0x1fd0] sm:$0xff]
        %v1282 = vld [vmem:[%s200 + $0x1fd8] sm:$0xff]
        %v1283 = vld [vmem:[%s200 + $0x1fe0] sm:$0xff]
        %v1284 = vld [vmem:[%s200 + $0x1fe8] sm:$0xff]
        %v1285 = vld [vmem:[%s200 + $0x1ff0] sm:$0xff]
        %v1286 = vld [vmem:[%s200 + $0x1ff8] sm:$0xff]
        %v1287 = vld [vmem:[%s200 + $0x2000] sm:$0xff]
        %v1288 = vld [vmem:[%s200 + $0x2008] sm:$0xff]
        %v1289 = vld [vmem:[%s200 + $0x2010] sm:$0xff]
        %v1290 = vld [vmem:[%s200 + $0x2018] sm:$0xff]
        %v1291 = vld [vmem:[%s200 + $0x2020] sm:$0xff]
        %v1292 = vld [vmem:[%s200 + $0x2028] sm:$0xff]
        %v1293 = vld [vmem:[%s200 + $0x2030] sm:$0xff]
        %v1294 = vld [vmem:[%s200 + $0x2038] sm:$0xff]
        %v1295 = vld [vmem:[%s200 + $0x2040] sm:$0xff]
        %v1296 = vld [vmem:[%s200 + $0x2048] sm:$0xff]
        %v1297 = vld [vmem:[%s200 + $0x2050] sm:$0xff]
        %v1298 = vld [vmem:[%s200 + $0x2058] sm:$0xff]
        %v1299 = vld [vmem:[%s200 + $0x2060] sm:$0xff]
        %v1300 = vld [vmem:[%s200 + $0x2068] sm:$0xff]
        %v1301 = vld [vmem:[%s200 + $0x2070] sm:$0xff]
        %v1302 = vld [vmem:[%s200 + $0x2078] sm:$0xff]
        %v1303 = vld [vmem:[%s200 + $0x2080] sm:$0xff]
        %v1304 = vld [vmem:[%s200 + $0x2088] sm:$0xff]
        %v1305 = vld [vmem:[%s200 + $0x2090] sm:$0xff]
        %v1306 = vld [vmem:[%s200 + $0x2098] sm:$0xff]
        %v1307 = vld [vmem:[%s200 + $0x20a0] sm:$0xff]
        %v1308 = vld [vmem:[%s200 + $0x20a8] sm:$0xff]
        %v1309 = vld [vmem:[%s200 + $0x20b0] sm:$0xff]
        %v1310 = vld [vmem:[%s200 + $0x20b8] sm:$0xff]
        %v1311 = vld [vmem:[%s200 + $0x20c0] sm:$0xff]
        %v1312 = vld [vmem:[%s200 + $0x20c8] sm:$0xff]
        %v1313 = vld [vmem:[%s200 + $0x20d0] sm:$0xff]
        %v1314 = vld [vmem:[%s200 + $0x20d8] sm:$0xff]
        %v1315 = vld [vmem:[%s200 + $0x20e0] sm:$0xff]
        %v1316 = vld [vmem:[%s200 + $0x20e8] sm:$0xff]
        %v1317 = vld [vmem:[%s200 + $0x20f0] sm:$0xff]
        %v1318 = vld [vmem:[%s200 + $0x20f8] sm:$0xff]
        %v1319 = vld [vmem:[%s200 + $0x2100] sm:$0xff]
        %v1320 = vld [vmem:[%s200 + $0x2108] sm:$0xff]
        %v1321 = vld [vmem:[%s200 + $0x2110] sm:$0xff]
        %v1322 = vld [vmem:[%s200 + $0x2118] sm:$0xff]
        %v1323 = vld [vmem:[%s200 + $0x2120] sm:$0xff]
        %v1324 = vld [vmem:[%s200 + $0x2128] sm:$0xff]
        %v1325 = vld [vmem:[%s200 + $0x2130] sm:$0xff]
        %v1326 = vld [vmem:[%s200 + $0x2138] sm:$0xff]
        %v1327 = vld [vmem:[%s200 + $0x2140] sm:$0xff]
        %v1328 = vld [vmem:[%s200 + $0x2148] sm:$0xff]
        %v1329 = vld [vmem:[%s200 + $0x2150] sm:$0xff]
        %v1330 = vld [vmem:[%s200 + $0x2158] sm:$0xff]
        %v1331 = vld [vmem:[%s200 + $0x2160] sm:$0xff]
        %v1332 = vld [vmem:[%s200 + $0x2168] sm:$0xff]
        %v1333 = vld [vmem:[%s200 + $0x2170] sm:$0xff]
        %v1334 = vld [vmem:[%s200 + $0x2178] sm:$0xff]
        %v1335 = vld [vmem:[%s200 + $0x2180] sm:$0xff]
        %v1336 = vld [vmem:[%s200 + $0x2188] sm:$0xff]
        %v1337 = vld [vmem:[%s200 + $0x2190] sm:$0xff]
        %v1338 = vld [vmem:[%s200 + $0x2198] sm:$0xff]
        %v1339 = vld [vmem:[%s200 + $0x21a0] sm:$0xff]
        %v1340 = vld [vmem:[%s200 + $0x21a8] sm:$0xff]
        %v1341 = vld [vmem:[%s200 + $0x21b0] sm:$0xff]
        %v1342 = vld [vmem:[%s200 + $0x21b8] sm:$0xff]
        %v1343 = vld [vmem:[%s200 + $0x21c0] sm:$0xff]
        %v1344 = vld [vmem:[%s200 + $0x21c8] sm:$0xff]
        %v1345 = vld [vmem:[%s200 + $0x21d0] sm:$0xff]
        %v1346 = vld [vmem:[%s200 + $0x21d8] sm:$0xff]
        %v1347 = vld [vmem:[%s200 + $0x21e0] sm:$0xff]
        %v1348 = vld [vmem:[%s200 + $0x21e8] sm:$0xff]
        %v1349 = vld [vmem:[%s200 + $0x21f0] sm:$0xff]
        %v1350 = vld [vmem:[%s200 + $0x21f8] sm:$0xff]
        %v1351 = vld [vmem:[%s200 + $0x2200] sm:$0xff]
        %v1352 = vld [vmem:[%s200 + $0x2208] sm:$0xff]
        %v1353 = vld [vmem:[%s200 + $0x2210] sm:$0xff]
        %v1354 = vld [vmem:[%s200 + $0x2218] sm:$0xff]
        %v1355 = vld [vmem:[%s200 + $0x2220] sm:$0xff]
        %v1356 = vld [vmem:[%s200 + $0x2228] sm:$0xff]
        %v1357 = vld [vmem:[%s200 + $0x2230] sm:$0xff]
        %v1358 = vld [vmem:[%s200 + $0x2238] sm:$0xff]
        %v1359 = vld [vmem:[%s200 + $0x2240] sm:$0xff]
        %v1360 = vld [vmem:[%s200 + $0x2248] sm:$0xff]
        %v1361 = vld [vmem:[%s200 + $0x2250] sm:$0xff]
        %v1362 = vld [vmem:[%s200 + $0x2258] sm:$0xff]
        %v1363 = vld [vmem:[%s200 + $0x2260] sm:$0xff]
        %v1364 = vld [vmem:[%s200 + $0x2268] sm:$0xff]
        %v1365 = vld [vmem:[%s200 + $0x2270] sm:$0xff]
        %v1366 = vld [vmem:[%s200 + $0x2278] sm:$0xff]
        %v1367 = vld [vmem:[%s200 + $0x2280] sm:$0xff]
        %v1368 = vld [vmem:[%s200 + $0x2288] sm:$0xff]
        %v1369 = vld [vmem:[%s200 + $0x2290] sm:$0xff]
        %v1370 = vld [vmem:[%s200 + $0x2298] sm:$0xff]
        %v1371 = vld [vmem:[%s200 + $0x22a0] sm:$0xff]
        %v1372 = vld [vmem:[%s200 + $0x22a8] sm:$0xff]
        %v1373 = vld [vmem:[%s200 + $0x22b0] sm:$0xff]
        %v1374 = vld [vmem:[%s200 + $0x22b8] sm:$0xff]
        %v1375 = vld [vmem:[%s200 + $0x22c0] sm:$0xff]
        %v1376 = vld [vmem:[%s200 + $0x22c8] sm:$0xff]
        %v1377 = vld [vmem:[%s200 + $0x22d0] sm:$0xff]
        %v1378 = vld [vmem:[%s200 + $0x22d8] sm:$0xff]
        %v1379 = vld [vmem:[%s200 + $0x22e0] sm:$0xff]
        %v1380 = vld [vmem:[%s200 + $0x22e8] sm:$0xff]
        %v1381 = vld [vmem:[%s200 + $0x22f0] sm:$0xff]
        %v1382 = vld [vmem:[%s200 + $0x22f8] sm:$0xff]
        %v1383 = vld [vmem:[%s200 + $0x2300] sm:$0xff]
        %v1384 = vld [vmem:[%s200 + $0x2308] sm:$0xff]
        %v1385 = vld [vmem:[%s200 + $0x2310] sm:$0xff]
        %v1386 = vld [vmem:[%s200 + $0x2318] sm:$0xff]
        %v1387 = vld [vmem:[%s200 + $0x2320] sm:$0xff]
        %v1388 = vld [vmem:[%s200 + $0x2328] sm:$0xff]
        %v1389 = vld [vmem:[%s200 + $0x2330] sm:$0xff]
        %v1390 = vld [vmem:[%s200 + $0x2338] sm:$0xff]
        %v1391 = vld [vmem:[%s200 + $0x2340] sm:$0xff]
        %v1392 = vld [vmem:[%s200 + $0x2348] sm:$0xff]
        %v1393 = vld [vmem:[%s200 + $0x2350] sm:$0xff]
        %v1394 = vld [vmem:[%s200 + $0x2358] sm:$0xff]
        %v1395 = vld [vmem:[%s200 + $0x2360] sm:$0xff]
        %v1396 = vld [vmem:[%s200 + $0x2368] sm:$0xff]
        %v1397 = vld [vmem:[%s200 + $0x2370] sm:$0xff]
        %v1398 = vld [vmem:[%s200 + $0x2378] sm:$0xff]
        %v1399 = vld [vmem:[%s200 + $0x2380] sm:$0xff]
        %v1400 = vld [vmem:[%s200 + $0x2388] sm:$0xff]
        %v1401 = vld [vmem:[%s200 + $0x2390] sm:$0xff]
        %v1402 = vld [vmem:[%s200 + $0x2398] sm:$0xff]
        %v1403 = vld [vmem:[%s200 + $0x23a0] sm:$0xff]
        %v1404 = vld [vmem:[%s200 + $0x23a8] sm:$0xff]
        %v1405 = vld [vmem:[%s200 + $0x23b0] sm:$0xff]
        %v1406 = vld [vmem:[%s200 + $0x23b8] sm:$0xff]
        %v1407 = vld [vmem:[%s200 + $0x23c0] sm:$0xff]
        %v1408 = vld [vmem:[%s200 + $0x23c8] sm:$0xff]
        %v1409 = vld [vmem:[%s200 + $0x23d0] sm:$0xff]
        %v1410 = vld [vmem:[%s200 + $0x23d8] sm:$0xff]
        %v1411 = vld [vmem:[%s200 + $0x23e0] sm:$0xff]
        %v1412 = vld [vmem:[%s200 + $0x23e8] sm:$0xff]
        %v1413 = vld [vmem:[%s200 + $0x23f0] sm:$0xff]
        %v1414 = vld [vmem:[%s200 + $0x23f8] sm:$0xff]
        %v1415 = vld [vmem:[%s200 + $0x2400] sm:$0xff]
        %v1416 = vld [vmem:[%s200 + $0x2408] sm:$0xff]
        %v1417 = vld [vmem:[%s200 + $0x2410] sm:$0xff]
        %v1418 = vld [vmem:[%s200 + $0x2418] sm:$0xff]
        %v1419 = vld [vmem:[%s200 + $0x2420] sm:$0xff]
        %v1420 = vld [vmem:[%s200 + $0x2428] sm:$0xff]
        %v1421 = vld [vmem:[%s200 + $0x2430] sm:$0xff]
        %v1422 = vld [vmem:[%s200 + $0x2438] sm:$0xff]
        %v1423 = vld [vmem:[%s200 + $0x2440] sm:$0xff]
        %v1424 = vld [vmem:[%s200 + $0x2448] sm:$0xff]
        %v1425 = vld [vmem:[%s200 + $0x2450] sm:$0xff]
        %v1426 = vld [vmem:[%s200 + $0x2458] sm:$0xff]
        %v1427 = vld [vmem:[%s200 + $0x2460] sm:$0xff]
        %v1428 = vld [vmem:[%s200 + $0x2468] sm:$0xff]
        %v1429 = vld [vmem:[%s200 + $0x2470] sm:$0xff]
        %v1430 = vld [vmem:[%s200 + $0x2478] sm:$0xff]
        %v1431 = vld [vmem:[%s200 + $0x2480] sm:$0xff]
        %v1432 = vld [vmem:[%s200 + $0x2488] sm:$0xff]
        %v1433 = vld [vmem:[%s200 + $0x2490] sm:$0xff]
        %v1434 = vld [vmem:[%s200 + $0x2498] sm:$0xff]
        %v1435 = vld [vmem:[%s200 + $0x24a0] sm:$0xff]
        %v1436 = vld [vmem:[%s200 + $0x24a8] sm:$0xff]
        %v1437 = vld [vmem:[%s200 + $0x24b0] sm:$0xff]
        %v1438 = vld [vmem:[%s200 + $0x24b8] sm:$0xff]
        %v1439 = vld [vmem:[%s200 + $0x24c0] sm:$0xff]
        %v1440 = vld [vmem:[%s200 + $0x24c8] sm:$0xff]
        %v1441 = vld [vmem:[%s200 + $0x24d0] sm:$0xff]
        %v1442 = vld [vmem:[%s200 + $0x24d8] sm:$0xff]
        %v1443 = vld [vmem:[%s200 + $0x24e0] sm:$0xff]
        %v1444 = vld [vmem:[%s200 + $0x24e8] sm:$0xff]
        %v1445 = vld [vmem:[%s200 + $0x24f0] sm:$0xff]
        %v1446 = vld [vmem:[%s200 + $0x24f8] sm:$0xff]
        %v1447 = vld [vmem:[%s200 + $0x2500] sm:$0xff]
        %v1448 = vld [vmem:[%s200 + $0x2508] sm:$0xff]
        %v1449 = vld [vmem:[%s200 + $0x2510] sm:$0xff]
        %v1450 = vld [vmem:[%s200 + $0x2518] sm:$0xff]
        %v1451 = vld [vmem:[%s200 + $0x2520] sm:$0xff]
        %v1452 = vld [vmem:[%s200 + $0x2528] sm:$0xff]
        %v1453 = vld [vmem:[%s200 + $0x2530] sm:$0xff]
        %v1454 = vld [vmem:[%s200 + $0x2538] sm:$0xff]
        %v1455 = vld [vmem:[%s200 + $0x2540] sm:$0xff]
        %v1456 = vld [vmem:[%s200 + $0x2548] sm:$0xff]
        %v1457 = vld [vmem:[%s200 + $0x2550] sm:$0xff]
        %v1458 = vld [vmem:[%s200 + $0x2558] sm:$0xff]
        %v1459 = vld [vmem:[%s200 + $0x2560] sm:$0xff]
        %v1460 = vld [vmem:[%s200 + $0x2568] sm:$0xff]
        %v1461 = vld [vmem:[%s200 + $0x2570] sm:$0xff]
        %v1462 = vld [vmem:[%s200 + $0x2578] sm:$0xff]
        %v1463 = vld [vmem:[%s200 + $0x2580] sm:$0xff]
        %v1464 = vld [vmem:[%s200 + $0x2588] sm:$0xff]
        %v1465 = vld [vmem:[%s200 + $0x2590] sm:$0xff]
        %v1466 = vld [vmem:[%s200 + $0x2598] sm:$0xff]
        %v1467 = vld [vmem:[%s200 + $0x25a0] sm:$0xff]
        %v1468 = vld [vmem:[%s200 + $0x25a8] sm:$0xff]
        %v1469 = vld [vmem:[%s200 + $0x25b0] sm:$0xff]
        %v1470 = vld [vmem:[%s200 + $0x25b8] sm:$0xff]
        %v1471 = vld [vmem:[%s200 + $0x25c0] sm:$0xff]
        %v1472 = vld [vmem:[%s200 + $0x25c8] sm:$0xff]
        %v1473 = vld [vmem:[%s200 + $0x25d0] sm:$0xff]
        %v1474 = vld [vmem:[%s200 + $0x25d8] sm:$0xff]
        %v1475 = vld [vmem:[%s200 + $0x25e0] sm:$0xff]
        %v1476 = vld [vmem:[%s200 + $0x25e8] sm:$0xff]
        %v1477 = vld [vmem:[%s200 + $0x25f0] sm:$0xff]
        %v1478 = vld [vmem:[%s200 + $0x25f8] sm:$0xff]
        %v1479 = vld [vmem:[%s200 + $0x2600] sm:$0xff]
        %v1480 = vld [vmem:[%s200 + $0x2608] sm:$0xff]
        %v1481 = vld [vmem:[%s200 + $0x2610] sm:$0xff]
        %v1482 = vld [vmem:[%s200 + $0x2618] sm:$0xff]
        %v1483 = vld [vmem:[%s200 + $0x2620] sm:$0xff]
        %v1484 = vld [vmem:[%s200 + $0x2628] sm:$0xff]
        %v1485 = vld [vmem:[%s200 + $0x2630] sm:$0xff]
        %v1486 = vld [vmem:[%s200 + $0x2638] sm:$0xff]
        %v1487 = vld [vmem:[%s200 + $0x2640] sm:$0xff]
        %v1488 = vld [vmem:[%s200 + $0x2648] sm:$0xff]
        %v1489 = vld [vmem:[%s200 + $0x2650] sm:$0xff]
        %v1490 = vld [vmem:[%s200 + $0x2658] sm:$0xff]
        %v1491 = vld [vmem:[%s200 + $0x2660] sm:$0xff]
        %v1492 = vld [vmem:[%s200 + $0x2668] sm:$0xff]
        %v1493 = vld [vmem:[%s200 + $0x2670] sm:$0xff]
        %v1494 = vld [vmem:[%s200 + $0x2678] sm:$0xff]
        %v1495 = vld [vmem:[%s200 + $0x2680] sm:$0xff]
        %v1496 = vld [vmem:[%s200 + $0x2688] sm:$0xff]
        %v1497 = vld [vmem:[%s200 + $0x2690] sm:$0xff]
        %v1498 = vld [vmem:[%s200 + $0x2698] sm:$0xff]
        %v1499 = vld [vmem:[%s200 + $0x26a0] sm:$0xff]
        %v1500 = vld [vmem:[%s200 + $0x26a8] sm:$0xff]
        %v1501 = vld [vmem:[%s200 + $0x26b0] sm:$0xff]
        %v1502 = vld [vmem:[%s200 + $0x26b8] sm:$0xff]
        %v1503 = vld [vmem:[%s200 + $0x26c0] sm:$0xff]
        %v1504 = vld [vmem:[%s200 + $0x26c8] sm:$0xff]
        %v1505 = vld [vmem:[%s200 + $0x26d0] sm:$0xff]
        %v1506 = vld [vmem:[%s200 + $0x26d8] sm:$0xff]
        %v1507 = vld [vmem:[%s200 + $0x26e0] sm:$0xff]
        %v1508 = vld [vmem:[%s200 + $0x26e8] sm:$0xff]
        %v1509 = vld [vmem:[%s200 + $0x26f0] sm:$0xff]
        %v1510 = vld [vmem:[%s200 + $0x26f8] sm:$0xff]
        %v1511 = vld [vmem:[%s200 + $0x2700] sm:$0xff]
        %v1512 = vld [vmem:[%s200 + $0x2708] sm:$0xff]
        %v1513 = vld [vmem:[%s200 + $0x2710] sm:$0xff]
        %v1514 = vld [vmem:[%s200 + $0x2718] sm:$0xff]
        %v1515 = vld [vmem:[%s200 + $0x2720] sm:$0xff]
        %v1516 = vld [vmem:[%s200 + $0x2728] sm:$0xff]
        %v1517 = vld [vmem:[%s200 + $0x2730] sm:$0xff]
        %v1518 = vld [vmem:[%s200 + $0x2738] sm:$0xff]
        %v1519 = vld [vmem:[%s200 + $0x2740] sm:$0xff]
        %v1520 = vld [vmem:[%s200 + $0x2748] sm:$0xff]
        %v1521 = vld [vmem:[%s200 + $0x2750] sm:$0xff]
        %v1522 = vld [vmem:[%s200 + $0x2758] sm:$0xff]
        %v1523 = vld [vmem:[%s200 + $0x2760] sm:$0xff]
        %v1524 = vld [vmem:[%s200 + $0x2768] sm:$0xff]
        %v1525 = vld [vmem:[%s200 + $0x2770] sm:$0xff]
        %v1526 = vld [vmem:[%s200 + $0x2778] sm:$0xff]
        %v1527 = vld [vmem:[%s200 + $0x2780] sm:$0xff]
        %v1528 = vld [vmem:[%s200 + $0x2788] sm:$0xff]
        %v1529 = vld [vmem:[%s200 + $0x2790] sm:$0xff]
        %v1530 = vld [vmem:[%s200 + $0x2798] sm:$0xff]
        %v1531 = vld [vmem:[%s200 + $0x27a0] sm:$0xff]
        %v1532 = vld [vmem:[%s200 + $0x27a8] sm:$0xff]
        %v1533 = vld [vmem:[%s200 + $0x27b0] sm:$0xff]
        %v1534 = vld [vmem:[%s200 + $0x27b8] sm:$0xff]
        %v1535 = vld [vmem:[%s200 + $0x27c0] sm:$0xff]
        %v1536 = vld [vmem:[%s200 + $0x27c8] sm:$0xff]
        %v1537 = vld [vmem:[%s200 + $0x27d0] sm:$0xff]
        %v1538 = vld [vmem:[%s200 + $0x27d8] sm:$0xff]
        %v1539 = vld [vmem:[%s200 + $0x27e0] sm:$0xff]
        %v1540 = vld [vmem:[%s200 + $0x27e8] sm:$0xff]
        %v1541 = vld [vmem:[%s200 + $0x27f0] sm:$0xff]
        %v1542 = vld [vmem:[%s200 + $0x27f8] sm:$0xff]
        %v1543 = vld [vmem:[%s200 + $0x2800] sm:$0xff]
        %v1544 = vld [vmem:[%s200 + $0x2808] sm:$0xff]
        %v1545 = vld [vmem:[%s200 + $0x2810] sm:$0xff]
        %v1546 = vld [vmem:[%s200 + $0x2818] sm:$0xff]
        %v1547 = vld [vmem:[%s200 + $0x2820] sm:$0xff]
        %v1548 = vld [vmem:[%s200 + $0x2828] sm:$0xff]
        %v1549 = vld [vmem:[%s200 + $0x2830] sm:$0xff]
        %v1550 = vld [vmem:[%s200 + $0x2838] sm:$0xff]
        %v1551 = vld [vmem:[%s200 + $0x2840] sm:$0xff]
        %v1552 = vld [vmem:[%s200 + $0x2848] sm:$0xff]
        %v1553 = vld [vmem:[%s200 + $0x2850] sm:$0xff]
        %v1554 = vld [vmem:[%s200 + $0x2858] sm:$0xff]
        %v1555 = vld [vmem:[%s200 + $0x2860] sm:$0xff]
        %v1556 = vld [vmem:[%s200 + $0x2868] sm:$0xff]
        %v1557 = vld [vmem:[%s200 + $0x2870] sm:$0xff]
        %v1558 = vld [vmem:[%s200 + $0x2878] sm:$0xff]
        %v1559 = vld [vmem:[%s200 + $0x2880] sm:$0xff]
        %v1560 = vld [vmem:[%s200 + $0x2888] sm:$0xff]
        %v1561 = vld [vmem:[%s200 + $0x2890] sm:$0xff]
        %v1562 = vld [vmem:[%s200 + $0x2898] sm:$0xff]
        %v1563 = vld [vmem:[%s200 + $0x28a0] sm:$0xff]
        %v1564 = vld [vmem:[%s200 + $0x28a8] sm:$0xff]
        %v1565 = vld [vmem:[%s200 + $0x28b0] sm:$0xff]
        %v1566 = vld [vmem:[%s200 + $0x28b8] sm:$0xff]
        %v1567 = vld [vmem:[%s200 + $0x28c0] sm:$0xff]
        %v1568 = vld [vmem:[%s200 + $0x28c8] sm:$0xff]
        %v1569 = vld [vmem:[%s200 + $0x28d0] sm:$0xff]
        %v1570 = vld [vmem:[%s200 + $0x28d8] sm:$0xff]
        %v1571 = vld [vmem:[%s200 + $0x28e0] sm:$0xff]
        %v1572 = vld [vmem:[%s200 + $0x28e8] sm:$0xff]
        %v1573 = vld [vmem:[%s200 + $0x28f0] sm:$0xff]
        %v1574 = vld [vmem:[%s200 + $0x28f8] sm:$0xff]
        %v1575 = vld [vmem:[%s200 + $0x2900] sm:$0xff]
        %v1576 = vld [vmem:[%s200 + $0x2908] sm:$0xff]
        %v1577 = vld [vmem:[%s200 + $0x2910] sm:$0xff]
        %v1578 = vld [vmem:[%s200 + $0x2918] sm:$0xff]
        %v1579 = vld [vmem:[%s200 + $0x2920] sm:$0xff]
        %v1580 = vld [vmem:[%s200 + $0x2928] sm:$0xff]
        %v1581 = vld [vmem:[%s200 + $0x2930] sm:$0xff]
        %v1582 = vld [vmem:[%s200 + $0x2938] sm:$0xff]
        %v1583 = vld [vmem:[%s200 + $0x2940] sm:$0xff]
        %v1584 = vld [vmem:[%s200 + $0x2948] sm:$0xff]
        %v1585 = vld [vmem:[%s200 + $0x2950] sm:$0xff]
        %v1586 = vld [vmem:[%s200 + $0x2958] sm:$0xff]
        %v1587 = vld [vmem:[%s200 + $0x2960] sm:$0xff]
        %v1588 = vld [vmem:[%s200 + $0x2968] sm:$0xff]
        %v1589 = vld [vmem:[%s200 + $0x2970] sm:$0xff]
        %v1590 = vld [vmem:[%s200 + $0x2978] sm:$0xff]
        %v1591 = vld [vmem:[%s200 + $0x2980] sm:$0xff]
        %v1592 = vld [vmem:[%s200 + $0x2988] sm:$0xff]
        %v1593 = vld [vmem:[%s200 + $0x2990] sm:$0xff]
        %v1594 = vld [vmem:[%s200 + $0x2998] sm:$0xff]
        %v1595 = vld [vmem:[%s200 + $0x29a0] sm:$0xff]
        %v1596 = vld [vmem:[%s200 + $0x29a8] sm:$0xff]
        %v1597 = vld [vmem:[%s200 + $0x29b0] sm:$0xff]
        %v1598 = vld [vmem:[%s200 + $0x29b8] sm:$0xff]
        %v1599 = vld [vmem:[%s200 + $0x29c0] sm:$0xff]
        %v1600 = vld [vmem:[%s200 + $0x29c8] sm:$0xff]
        %v1601 = vld [vmem:[%s200 + $0x29d0] sm:$0xff]
        %v1602 = vld [vmem:[%s200 + $0x29d8] sm:$0xff]
        %v1603 = vld [vmem:[%s200 + $0x29e0] sm:$0xff]
        %v1604 = vld [vmem:[%s200 + $0x29e8] sm:$0xff]
        %v1605 = vld [vmem:[%s200 + $0x29f0] sm:$0xff]
        %v1606 = vld [vmem:[%s200 + $0x29f8] sm:$0xff]
        %v1607 = vld [vmem:[%s200 + $0x2a00] sm:$0xff]
        %v1608 = vld [vmem:[%s200 + $0x2a08] sm:$0xff]
        %v1609 = vld [vmem:[%s200 + $0x2a10] sm:$0xff]
        %v1610 = vld [vmem:[%s200 + $0x2a18] sm:$0xff]
        %v1611 = vld [vmem:[%s200 + $0x2a20] sm:$0xff]
        %v1612 = vld [vmem:[%s200 + $0x2a28] sm:$0xff]
        %v1613 = vld [vmem:[%s200 + $0x2a30] sm:$0xff]
        %v1614 = vld [vmem:[%s200 + $0x2a38] sm:$0xff]
        %v1615 = vld [vmem:[%s200 + $0x2a40] sm:$0xff]
        %v1616 = vld [vmem:[%s200 + $0x2a48] sm:$0xff]
        %v1617 = vld [vmem:[%s200 + $0x2a50] sm:$0xff]
        %v1618 = vld [vmem:[%s200 + $0x2a58] sm:$0xff]
        %v1619 = vld [vmem:[%s200 + $0x2a60] sm:$0xff]
        %v1620 = vld [vmem:[%s200 + $0x2a68] sm:$0xff]
        %v1621 = vld [vmem:[%s200 + $0x2a70] sm:$0xff]
        %v1622 = vld [vmem:[%s200 + $0x2a78] sm:$0xff]
        %v1623 = vld [vmem:[%s200 + $0x2a80] sm:$0xff]
        %v1624 = vld [vmem:[%s200 + $0x2a88] sm:$0xff]
        %v1625 = vld [vmem:[%s200 + $0x2a90] sm:$0xff]
        %v1626 = vld [vmem:[%s200 + $0x2a98] sm:$0xff]
        %v1627 = vld [vmem:[%s200 + $0x2aa0] sm:$0xff]
        %v1628 = vld [vmem:[%s200 + $0x2aa8] sm:$0xff]
        %v1629 = vld [vmem:[%s200 + $0x2ab0] sm:$0xff]
        %v1630 = vld [vmem:[%s200 + $0x2ab8] sm:$0xff]
        %v1631 = vld [vmem:[%s200 + $0x2ac0] sm:$0xff]
        %v1632 = vld [vmem:[%s200 + $0x2ac8] sm:$0xff]
        %v1633 = vld [vmem:[%s200 + $0x2ad0] sm:$0xff]
        %v1634 = vld [vmem:[%s200 + $0x2ad8] sm:$0xff]
        %v1635 = vld [vmem:[%s200 + $0x2ae0] sm:$0xff]
        %v1636 = vld [vmem:[%s200 + $0x2ae8] sm:$0xff]
        %v1637 = vld [vmem:[%s200 + $0x2af0] sm:$0xff]
        %v1638 = vld [vmem:[%s200 + $0x2af8] sm:$0xff]
        %v1639 = vld [vmem:[%s200 + $0x2b00] sm:$0xff]
        %v1640 = vld [vmem:[%s200 + $0x2b08] sm:$0xff]
        %v1641 = vld [vmem:[%s200 + $0x2b10] sm:$0xff]
        %v1642 = vld [vmem:[%s200 + $0x2b18] sm:$0xff]
        %v1643 = vld [vmem:[%s200 + $0x2b20] sm:$0xff]
        %v1644 = vld [vmem:[%s200 + $0x2b28] sm:$0xff]
        %v1645 = vld [vmem:[%s200 + $0x2b30] sm:$0xff]
        %v1646 = vld [vmem:[%s200 + $0x2b38] sm:$0xff]
        %v1647 = vld [vmem:[%s200 + $0x2b40] sm:$0xff]
        %v1648 = vld [vmem:[%s200 + $0x2b48] sm:$0xff]
        %v1649 = vld [vmem:[%s200 + $0x2b50] sm:$0xff]
        %v1650 = vld [vmem:[%s200 + $0x2b58] sm:$0xff]
        %v1651 = vld [vmem:[%s200 + $0x2b60] sm:$0xff]
        %v1652 = vld [vmem:[%s200 + $0x2b68] sm:$0xff]
        %v1653 = vld [vmem:[%s200 + $0x2b70] sm:$0xff]
        %v1654 = vld [vmem:[%s200 + $0x2b78] sm:$0xff]
        %v1655 = vld [vmem:[%s200 + $0x2b80] sm:$0xff]
        %v1656 = vld [vmem:[%s200 + $0x2b88] sm:$0xff]
        %v1657 = vld [vmem:[%s200 + $0x2b90] sm:$0xff]
        %v1658 = vld [vmem:[%s200 + $0x2b98] sm:$0xff]
        %v1659 = vld [vmem:[%s200 + $0x2ba0] sm:$0xff]
        %v1660 = vld [vmem:[%s200 + $0x2ba8] sm:$0xff]
        %v1661 = vld [vmem:[%s200 + $0x2bb0] sm:$0xff]
        %v1662 = vld [vmem:[%s200 + $0x2bb8] sm:$0xff]
        %v1663 = vld [vmem:[%s200 + $0x2bc0] sm:$0xff]
        %v1664 = vld [vmem:[%s200 + $0x2bc8] sm:$0xff]
        %v1665 = vld [vmem:[%s200 + $0x2bd0] sm:$0xff]
        %v1666 = vld [vmem:[%s200 + $0x2bd8] sm:$0xff]
        %v1667 = vld [vmem:[%s200 + $0x2be0] sm:$0xff]
        %v1668 = vld [vmem:[%s200 + $0x2be8] sm:$0xff]
        %v1669 = vld [vmem:[%s200 + $0x2bf0] sm:$0xff]
        %v1670 = vld [vmem:[%s200 + $0x2bf8] sm:$0xff]
        %v1671 = vld [vmem:[%s200 + $0x2c00] sm:$0xff]
        %v1672 = vld [vmem:[%s200 + $0x2c08] sm:$0xff]
        %v1673 = vld [vmem:[%s200 + $0x2c10] sm:$0xff]
        %v1674 = vld [vmem:[%s200 + $0x2c18] sm:$0xff]
        %v1675 = vld [vmem:[%s200 + $0x2c20] sm:$0xff]
        %v1676 = vld [vmem:[%s200 + $0x2c28] sm:$0xff]
        %v1677 = vld [vmem:[%s200 + $0x2c30] sm:$0xff]
        %v1678 = vld [vmem:[%s200 + $0x2c38] sm:$0xff]
        %v1679 = vld [vmem:[%s200 + $0x2c40] sm:$0xff]
        %v1680 = vld [vmem:[%s200 + $0x2c48] sm:$0xff]
        %v1681 = vld [vmem:[%s200 + $0x2c50] sm:$0xff]
        %v1682 = vld [vmem:[%s200 + $0x2c58] sm:$0xff]
        %v1683 = vld [vmem:[%s200 + $0x2c60] sm:$0xff]
        %v1684 = vld [vmem:[%s200 + $0x2c68] sm:$0xff]
        %v1685 = vld [vmem:[%s200 + $0x2c70] sm:$0xff]
        %v1686 = vld [vmem:[%s200 + $0x2c78] sm:$0xff]
        %v1687 = vld [vmem:[%s200 + $0x2c80] sm:$0xff]
        %v1688 = vld [vmem:[%s200 + $0x2c88] sm:$0xff]
        %v1689 = vld [vmem:[%s200 + $0x2c90] sm:$0xff]
        %v1690 = vld [vmem:[%s200 + $0x2c98] sm:$0xff]
        %v1691 = vld [vmem:[%s200 + $0x2ca0] sm:$0xff]
        %v1692 = vld [vmem:[%s200 + $0x2ca8] sm:$0xff]
        %v1693 = vld [vmem:[%s200 + $0x2cb0] sm:$0xff]
        %v1694 = vld [vmem:[%s200 + $0x2cb8] sm:$0xff]
        %v1695 = vld [vmem:[%s200 + $0x2cc0] sm:$0xff]
        %v1696 = vld [vmem:[%s200 + $0x2cc8] sm:$0xff]
        %v1697 = vld [vmem:[%s200 + $0x2cd0] sm:$0xff]
        %v1698 = vld [vmem:[%s200 + $0x2cd8] sm:$0xff]
        %v1699 = vld [vmem:[%s200 + $0x2ce0] sm:$0xff]
        %v1700 = vld [vmem:[%s200 + $0x2ce8] sm:$0xff]
        %v1701 = vld [vmem:[%s200 + $0x2cf0] sm:$0xff]
        %v1702 = vld [vmem:[%s200 + $0x2cf8] sm:$0xff]
        %v1703 = vld [vmem:[%s200 + $0x2d00] sm:$0xff]
        %v1704 = vld [vmem:[%s200 + $0x2d08] sm:$0xff]
        %v1705 = vld [vmem:[%s200 + $0x2d10] sm:$0xff]
        %v1706 = vld [vmem:[%s200 + $0x2d18] sm:$0xff]
        %v1707 = vld [vmem:[%s200 + $0x2d20] sm:$0xff]
        %v1708 = vld [vmem:[%s200 + $0x2d28] sm:$0xff]
        %v1709 = vld [vmem:[%s200 + $0x2d30] sm:$0xff]
        %v1710 = vld [vmem:[%s200 + $0x2d38] sm:$0xff]
        %v1711 = vld [vmem:[%s200 + $0x2d40] sm:$0xff]
        %v1712 = vld [vmem:[%s200 + $0x2d48] sm:$0xff]
        %v1713 = vld [vmem:[%s200 + $0x2d50] sm:$0xff]
        %v1714 = vld [vmem:[%s200 + $0x2d58] sm:$0xff]
        %v1715 = vld [vmem:[%s200 + $0x2d60] sm:$0xff]
        %v1716 = vld [vmem:[%s200 + $0x2d68] sm:$0xff]
        %v1717 = vld [vmem:[%s200 + $0x2d70] sm:$0xff]
        %v1718 = vld [vmem:[%s200 + $0x2d78] sm:$0xff]
        %v1719 = vld [vmem:[%s200 + $0x2d80] sm:$0xff]
        %v1720 = vld [vmem:[%s200 + $0x2d88] sm:$0xff]
        %v1721 = vld [vmem:[%s200 + $0x2d90] sm:$0xff]
        %v1722 = vld [vmem:[%s200 + $0x2d98] sm:$0xff]
        %v1723 = vld [vmem:[%s200 + $0x2da0] sm:$0xff]
        %v1724 = vld [vmem:[%s200 + $0x2da8] sm:$0xff]
        %v1725 = vld [vmem:[%s200 + $0x2db0] sm:$0xff]
        %v1726 = vld [vmem:[%s200 + $0x2db8] sm:$0xff]
        %v1727 = vld [vmem:[%s200 + $0x2dc0] sm:$0xff]
        %v1728 = vld [vmem:[%s200 + $0x2dc8] sm:$0xff]
        %v1729 = vld [vmem:[%s200 + $0x2dd0] sm:$0xff]
        %v1730 = vld [vmem:[%s200 + $0x2dd8] sm:$0xff]
        %v1731 = vld [vmem:[%s200 + $0x2de0] sm:$0xff]
        %v1732 = vld [vmem:[%s200 + $0x2de8] sm:$0xff]
        %v1733 = vld [vmem:[%s200 + $0x2df0] sm:$0xff]
        %v1734 = vld [vmem:[%s200 + $0x2df8] sm:$0xff]
        %v1735 = vld [vmem:[%s200 + $0x2e00] sm:$0xff]
        %v1736 = vld [vmem:[%s200 + $0x2e08] sm:$0xff]
        %v1737 = vld [vmem:[%s200 + $0x2e10] sm:$0xff]
        %v1738 = vld [vmem:[%s200 + $0x2e18] sm:$0xff]
        %v1739 = vld [vmem:[%s200 + $0x2e20] sm:$0xff]
        %v1740 = vld [vmem:[%s200 + $0x2e28] sm:$0xff]
        %v1741 = vld [vmem:[%s200 + $0x2e30] sm:$0xff]
        %v1742 = vld [vmem:[%s200 + $0x2e38] sm:$0xff]
        %v1743 = vld [vmem:[%s200 + $0x2e40] sm:$0xff]
        %v1744 = vld [vmem:[%s200 + $0x2e48] sm:$0xff]
        %v1745 = vld [vmem:[%s200 + $0x2e50] sm:$0xff]
        %v1746 = vld [vmem:[%s200 + $0x2e58] sm:$0xff]
        %v1747 = vld [vmem:[%s200 + $0x2e60] sm:$0xff]
        %v1748 = vld [vmem:[%s200 + $0x2e68] sm:$0xff]
        %v1749 = vld [vmem:[%s200 + $0x2e70] sm:$0xff]
        %v1750 = vld [vmem:[%s200 + $0x2e78] sm:$0xff]
        %v1751 = vld [vmem:[%s200 + $0x2e80] sm:$0xff]
        %v1752 = vld [vmem:[%s200 + $0x2e88] sm:$0xff]
        %v1753 = vld [vmem:[%s200 + $0x2e90] sm:$0xff]
        %v1754 = vld [vmem:[%s200 + $0x2e98] sm:$0xff]
        %v1755 = vld [vmem:[%s200 + $0x2ea0] sm:$0xff]
        %v1756 = vld [vmem:[%s200 + $0x2ea8] sm:$0xff]
        %v1757 = vld [vmem:[%s200 + $0x2eb0] sm:$0xff]
        %v1758 = vld [vmem:[%s200 + $0x2eb8] sm:$0xff]
        %v1759 = vld [vmem:[%s200 + $0x2ec0] sm:$0xff]
        %v1760 = vld [vmem:[%s200 + $0x2ec8] sm:$0xff]
        %v1761 = vld [vmem:[%s200 + $0x2ed0] sm:$0xff]
        %v1762 = vld [vmem:[%s200 + $0x2ed8] sm:$0xff]
        %v1763 = vld [vmem:[%s200 + $0x2ee0] sm:$0xff]
        %v1764 = vld [vmem:[%s200 + $0x2ee8] sm:$0xff]
        %v1765 = vld [vmem:[%s200 + $0x2ef0] sm:$0xff]
        %v1766 = vld [vmem:[%s200 + $0x2ef8] sm:$0xff]
        %v1767 = vld [vmem:[%s200 + $0x2f00] sm:$0xff]
        %v1768 = vld [vmem:[%s200 + $0x2f08] sm:$0xff]
        %v1769 = vld [vmem:[%s200 + $0x2f10] sm:$0xff]
        %v1770 = vld [vmem:[%s200 + $0x2f18] sm:$0xff]
        %v1771 = vld [vmem:[%s200 + $0x2f20] sm:$0xff]
        %v1772 = vld [vmem:[%s200 + $0x2f28] sm:$0xff]
        %v1773 = vld [vmem:[%s200 + $0x2f30] sm:$0xff]
        %v1774 = vld [vmem:[%s200 + $0x2f38] sm:$0xff]
        %v1775 = vld [vmem:[%s200 + $0x2f40] sm:$0xff]
        %v1776 = vld [vmem:[%s200 + $0x2f48] sm:$0xff]
        %v1777 = vld [vmem:[%s200 + $0x2f50] sm:$0xff]
        %v1778 = vld [vmem:[%s200 + $0x2f58] sm:$0xff]
        %v1779 = vld [vmem:[%s200 + $0x2f60] sm:$0xff]
        %v1780 = vld [vmem:[%s200 + $0x2f68] sm:$0xff]
        %v1781 = vld [vmem:[%s200 + $0x2f70] sm:$0xff]
        %v1782 = vld [vmem:[%s200 + $0x2f78] sm:$0xff]
        %v1783 = vld [vmem:[%s200 + $0x2f80] sm:$0xff]
        %v1784 = vld [vmem:[%s200 + $0x2f88] sm:$0xff]
        %v1785 = vld [vmem:[%s200 + $0x2f90] sm:$0xff]
        %v1786 = vld [vmem:[%s200 + $0x2f98] sm:$0xff]
        %v1787 = vld [vmem:[%s200 + $0x2fa0] sm:$0xff]
        %v1788 = vld [vmem:[%s200 + $0x2fa8] sm:$0xff]
        %v1789 = vld [vmem:[%s200 + $0x2fb0] sm:$0xff]
        %v1790 = vld [vmem:[%s200 + $0x2fb8] sm:$0xff]
        %v1791 = vld [vmem:[%s200 + $0x2fc0] sm:$0xff]
        %v1792 = vld [vmem:[%s200 + $0x2fc8] sm:$0xff]
        %v1793 = vld [vmem:[%s200 + $0x2fd0] sm:$0xff]
        %v1794 = vld [vmem:[%s200 + $0x2fd8] sm:$0xff]
        %v1795 = vld [vmem:[%s200 + $0x2fe0] sm:$0xff]
        %v1796 = vld [vmem:[%s200 + $0x2fe8] sm:$0xff]
        %v1797 = vld [vmem:[%s200 + $0x2ff0] sm:$0xff]
        %v1798 = vld [vmem:[%s200 + $0x2ff8] sm:$0xff]
        %v1799 = vld [vmem:[%s200 + $0x3000] sm:$0xff]
        %v1800 = vld [vmem:[%s200 + $0x3008] sm:$0xff]
        %v1801 = vld [vmem:[%s200 + $0x3010] sm:$0xff]
        %v1802 = vld [vmem:[%s200 + $0x3018] sm:$0xff]
        %v1803 = vld [vmem:[%s200 + $0x3020] sm:$0xff]
        %v1804 = vld [vmem:[%s200 + $0x3028] sm:$0xff]
        %v1805 = vld [vmem:[%s200 + $0x3030] sm:$0xff]
        %v1806 = vld [vmem:[%s200 + $0x3038] sm:$0xff]
        %v1807 = vld [vmem:[%s200 + $0x3040] sm:$0xff]
        %v1808 = vld [vmem:[%s200 + $0x3048] sm:$0xff]
        %v1809 = vld [vmem:[%s200 + $0x3050] sm:$0xff]
        %v1810 = vld [vmem:[%s200 + $0x3058] sm:$0xff]
        %v1811 = vld [vmem:[%s200 + $0x3060] sm:$0xff]
        %v1812 = vld [vmem:[%s200 + $0x3068] sm:$0xff]
        %v1813 = vld [vmem:[%s200 + $0x3070] sm:$0xff]
        %v1814 = vld [vmem:[%s200 + $0x3078] sm:$0xff]
        %v1815 = vld [vmem:[%s200 + $0x3080] sm:$0xff]
        %v1816 = vld [vmem:[%s200 + $0x3088] sm:$0xff]
        %v1817 = vld [vmem:[%s200 + $0x3090] sm:$0xff]
        %v1818 = vld [vmem:[%s200 + $0x3098] sm:$0xff]
        %v1819 = vld [vmem:[%s200 + $0x30a0] sm:$0xff]
        %v1820 = vld [vmem:[%s200 + $0x30a8] sm:$0xff]
        %v1821 = vld [vmem:[%s200 + $0x30b0] sm:$0xff]
        %v1822 = vld [vmem:[%s200 + $0x30b8] sm:$0xff]
        %v1823 = vld [vmem:[%s200 + $0x30c0] sm:$0xff]
        %v1824 = vld [vmem:[%s200 + $0x30c8] sm:$0xff]
        %v1825 = vld [vmem:[%s200 + $0x30d0] sm:$0xff]
        %v1826 = vld [vmem:[%s200 + $0x30d8] sm:$0xff]
        %v1827 = vld [vmem:[%s200 + $0x30e0] sm:$0xff]
        %v1828 = vld [vmem:[%s200 + $0x30e8] sm:$0xff]
        %v1829 = vld [vmem:[%s200 + $0x30f0] sm:$0xff]
        %v1830 = vld [vmem:[%s200 + $0x30f8] sm:$0xff]
        %v1831 = vld [vmem:[%s200 + $0x3100] sm:$0xff]
        %v1832 = vld [vmem:[%s200 + $0x3108] sm:$0xff]
        %v1833 = vld [vmem:[%s200 + $0x3110] sm:$0xff]
        %v1834 = vld [vmem:[%s200 + $0x3118] sm:$0xff]
        %v1835 = vld [vmem:[%s200 + $0x3120] sm:$0xff]
        %v1836 = vld [vmem:[%s200 + $0x3128] sm:$0xff]
        %v1837 = vld [vmem:[%s200 + $0x3130] sm:$0xff]
        %v1838 = vld [vmem:[%s200 + $0x3138] sm:$0xff]
        %v1839 = vld [vmem:[%s200 + $0x3140] sm:$0xff]
        %v1840 = vld [vmem:[%s200 + $0x3148] sm:$0xff]
        %v1841 = vld [vmem:[%s200 + $0x3150] sm:$0xff]
        %v1842 = vld [vmem:[%s200 + $0x3158] sm:$0xff]
        %v1843 = vld [vmem:[%s200 + $0x3160] sm:$0xff]
        %v1844 = vld [vmem:[%s200 + $0x3168] sm:$0xff]
        %v1845 = vld [vmem:[%s200 + $0x3170] sm:$0xff]
        %v1846 = vld [vmem:[%s200 + $0x3178] sm:$0xff]
        %v1847 = vld [vmem:[%s200 + $0x3180] sm:$0xff]
        %v1848 = vld [vmem:[%s200 + $0x3188] sm:$0xff]
        %v1849 = vld [vmem:[%s200 + $0x3190] sm:$0xff]
        %v1850 = vld [vmem:[%s200 + $0x3198] sm:$0xff]
        %v1851 = vld [vmem:[%s200 + $0x31a0] sm:$0xff]
        %v1852 = vld [vmem:[%s200 + $0x31a8] sm:$0xff]
        %v1853 = vld [vmem:[%s200 + $0x31b0] sm:$0xff]
        %v1854 = vld [vmem:[%s200 + $0x31b8] sm:$0xff]
        %v1855 = vld [vmem:[%s200 + $0x31c0] sm:$0xff]
        %v1856 = vld [vmem:[%s200 + $0x31c8] sm:$0xff]
        %v1857 = vld [vmem:[%s200 + $0x31d0] sm:$0xff]
        %v1858 = vld [vmem:[%s200 + $0x31d8] sm:$0xff]
        %v1859 = vld [vmem:[%s200 + $0x31e0] sm:$0xff]
        %v1860 = vld [vmem:[%s200 + $0x31e8] sm:$0xff]
        %v1861 = vld [vmem:[%s200 + $0x31f0] sm:$0xff]
        %v1862 = vld [vmem:[%s200 + $0x31f8] sm:$0xff]
        %v1863 = vld [vmem:[%s200 + $0x3200] sm:$0xff]
        %v1864 = vld [vmem:[%s200 + $0x3208] sm:$0xff]
        %v1865 = vld [vmem:[%s200 + $0x3210] sm:$0xff]
        %v1866 = vld [vmem:[%s200 + $0x3218] sm:$0xff]
        %v1867 = vld [vmem:[%s200 + $0x3220] sm:$0xff]
        %v1868 = vld [vmem:[%s200 + $0x3228] sm:$0xff]
        %v1869 = vld [vmem:[%s200 + $0x3230] sm:$0xff]
        %v1870 = vld [vmem:[%s200 + $0x3238] sm:$0xff]
        %v1871 = vld [vmem:[%s200 + $0x3240] sm:$0xff]
        %v1872 = vld [vmem:[%s200 + $0x3248] sm:$0xff]
        %v1873 = vld [vmem:[%s200 + $0x3250] sm:$0xff]
        %v1874 = vld [vmem:[%s200 + $0x3258] sm:$0xff]
        %v1875 = vld [vmem:[%s200 + $0x3260] sm:$0xff]
        %v1876 = vld [vmem:[%s200 + $0x3268] sm:$0xff]
        %v1877 = vld [vmem:[%s200 + $0x3270] sm:$0xff]
        %v1878 = vld [vmem:[%s200 + $0x3278] sm:$0xff]
        %v1879 = vld [vmem:[%s200 + $0x3280] sm:$0xff]
        %v1880 = vld [vmem:[%s200 + $0x3288] sm:$0xff]
        %v1881 = vld [vmem:[%s200 + $0x3290] sm:$0xff]
        %v1882 = vld [vmem:[%s200 + $0x3298] sm:$0xff]
        %v1883 = vld [vmem:[%s200 + $0x32a0] sm:$0xff]
        %v1884 = vld [vmem:[%s200 + $0x32a8] sm:$0xff]
        %v1885 = vld [vmem:[%s200 + $0x32b0] sm:$0xff]
        %v1886 = vld [vmem:[%s200 + $0x32b8] sm:$0xff]
        %v1887 = vld [vmem:[%s200 + $0x32c0] sm:$0xff]
        %v1888 = vld [vmem:[%s200 + $0x32c8] sm:$0xff]
        %v1889 = vld [vmem:[%s200 + $0x32d0] sm:$0xff]
        %v1890 = vld [vmem:[%s200 + $0x32d8] sm:$0xff]
        %v1891 = vld [vmem:[%s200 + $0x32e0] sm:$0xff]
        %v1892 = vld [vmem:[%s200 + $0x32e8] sm:$0xff]
        %v1893 = vld [vmem:[%s200 + $0x32f0] sm:$0xff]
        %v1894 = vld [vmem:[%s200 + $0x32f8] sm:$0xff]
        %v1895 = vld [vmem:[%s200 + $0x3300] sm:$0xff]
        %v1896 = vld [vmem:[%s200 + $0x3308] sm:$0xff]
        %v1897 = vld [vmem:[%s200 + $0x3310] sm:$0xff]
        %v1898 = vld [vmem:[%s200 + $0x3318] sm:$0xff]
        %v1899 = vld [vmem:[%s200 + $0x3320] sm:$0xff]
        %v1900 = vld [vmem:[%s200 + $0x3328] sm:$0xff]
        %v1901 = vld [vmem:[%s200 + $0x3330] sm:$0xff]
        %v1902 = vld [vmem:[%s200 + $0x3338] sm:$0xff]
        %v1903 = vld [vmem:[%s200 + $0x3340] sm:$0xff]
        %v1904 = vld [vmem:[%s200 + $0x3348] sm:$0xff]
        %v1905 = vld [vmem:[%s200 + $0x3350] sm:$0xff]
        %v1906 = vld [vmem:[%s200 + $0x3358] sm:$0xff]
        %v1907 = vld [vmem:[%s200 + $0x3360] sm:$0xff]
        %v1908 = vld [vmem:[%s200 + $0x3368] sm:$0xff]
        %v1909 = vld [vmem:[%s200 + $0x3370] sm:$0xff]
        %v1910 = vld [vmem:[%s200 + $0x3378] sm:$0xff]
        %v1911 = vld [vmem:[%s200 + $0x3380] sm:$0xff]
        %v1912 = vld [vmem:[%s200 + $0x3388] sm:$0xff]
        %v1913 = vld [vmem:[%s200 + $0x3390] sm:$0xff]
        %v1914 = vld [vmem:[%s200 + $0x3398] sm:$0xff]
        %v1915 = vld [vmem:[%s200 + $0x33a0] sm:$0xff]
        %v1916 = vld [vmem:[%s200 + $0x33a8] sm:$0xff]
        %v1917 = vld [vmem:[%s200 + $0x33b0] sm:$0xff]
        %v1918 = vld [vmem:[%s200 + $0x33b8] sm:$0xff]
        %v1919 = vld [vmem:[%s200 + $0x33c0] sm:$0xff]
        %v1920 = vld [vmem:[%s200 + $0x33c8] sm:$0xff]
        %v1921 = vld [vmem:[%s200 + $0x33d0] sm:$0xff]
        %v1922 = vld [vmem:[%s200 + $0x33d8] sm:$0xff]
        %v1923 = vld [vmem:[%s200 + $0x33e0] sm:$0xff]
        %v1924 = vld [vmem:[%s200 + $0x33e8] sm:$0xff]
        %v1925 = vld [vmem:[%s200 + $0x33f0] sm:$0xff]
        %v1926 = vld [vmem:[%s200 + $0x33f8] sm:$0xff]
        %v1927 = vld [vmem:[%s200 + $0x3400] sm:$0xff]
        %v1928 = vld [vmem:[%s200 + $0x3408] sm:$0xff]
        %v1929 = vld [vmem:[%s200 + $0x3410] sm:$0xff]
        %v1930 = vld [vmem:[%s200 + $0x3418] sm:$0xff]
        %v1931 = vld [vmem:[%s200 + $0x3420] sm:$0xff]
        %v1932 = vld [vmem:[%s200 + $0x3428] sm:$0xff]
        %v1933 = vld [vmem:[%s200 + $0x3430] sm:$0xff]
        %v1934 = vld [vmem:[%s200 + $0x3438] sm:$0xff]
        %v1935 = vld [vmem:[%s200 + $0x3440] sm:$0xff]
        %v1936 = vld [vmem:[%s200 + $0x3448] sm:$0xff]
        %v1937 = vld [vmem:[%s200 + $0x3450] sm:$0xff]
        %v1938 = vld [vmem:[%s200 + $0x3458] sm:$0xff]
        %v1939 = vld [vmem:[%s200 + $0x3460] sm:$0xff]
        %v1940 = vld [vmem:[%s200 + $0x3468] sm:$0xff]
        %v1941 = vld [vmem:[%s200 + $0x3470] sm:$0xff]
        %v1942 = vld [vmem:[%s200 + $0x3478] sm:$0xff]
        %v1943 = vld [vmem:[%s200 + $0x3480] sm:$0xff]
        %v1944 = vld [vmem:[%s200 + $0x3488] sm:$0xff]
        %v1945 = vld [vmem:[%s200 + $0x3490] sm:$0xff]
        %v1946 = vld [vmem:[%s200 + $0x3498] sm:$0xff]
        %v1947 = vld [vmem:[%s200 + $0x34a0] sm:$0xff]
        %v1948 = vld [vmem:[%s200 + $0x34a8] sm:$0xff]
        %v1949 = vld [vmem:[%s200 + $0x34b0] sm:$0xff]
        %v1950 = vld [vmem:[%s200 + $0x34b8] sm:$0xff]
        %v1951 = vld [vmem:[%s200 + $0x34c0] sm:$0xff]
        %v1952 = vld [vmem:[%s200 + $0x34c8] sm:$0xff]
        %v1953 = vld [vmem:[%s200 + $0x34d0] sm:$0xff]
        %v1954 = vld [vmem:[%s200 + $0x34d8] sm:$0xff]
        %v1955 = vld [vmem:[%s200 + $0x34e0] sm:$0xff]
        %v1956 = vld [vmem:[%s200 + $0x34e8] sm:$0xff]
        %v1957 = vld [vmem:[%s200 + $0x34f0] sm:$0xff]
        %v1958 = vld [vmem:[%s200 + $0x34f8] sm:$0xff]
        %v1959 = vld [vmem:[%s200 + $0x3500] sm:$0xff]
        %v1960 = vld [vmem:[%s200 + $0x3508] sm:$0xff]
        %v1961 = vld [vmem:[%s200 + $0x3510] sm:$0xff]
        %v1962 = vld [vmem:[%s200 + $0x3518] sm:$0xff]
        %v1963 = vld [vmem:[%s200 + $0x3520] sm:$0xff]
        %v1964 = vld [vmem:[%s200 + $0x3528] sm:$0xff]
        %v1965 = vld [vmem:[%s200 + $0x3530] sm:$0xff]
        %v1966 = vld [vmem:[%s200 + $0x3538] sm:$0xff]
        %v1967 = vld [vmem:[%s200 + $0x3540] sm:$0xff]
        %v1968 = vld [vmem:[%s200 + $0x3548] sm:$0xff]
        %v1969 = vld [vmem:[%s200 + $0x3550] sm:$0xff]
        %v1970 = vld [vmem:[%s200 + $0x3558] sm:$0xff]
        %v1971 = vld [vmem:[%s200 + $0x3560] sm:$0xff]
        %v1972 = vld [vmem:[%s200 + $0x3568] sm:$0xff]
        %v1973 = vld [vmem:[%s200 + $0x3570] sm:$0xff]
        %v1974 = vld [vmem:[%s200 + $0x3578] sm:$0xff]
        %v1975 = vld [vmem:[%s200 + $0x3580] sm:$0xff]
        %v1976 = vld [vmem:[%s200 + $0x3588] sm:$0xff]
        %v1977 = vld [vmem:[%s200 + $0x3590] sm:$0xff]
        %v1978 = vld [vmem:[%s200 + $0x3598] sm:$0xff]
        %v1979 = vld [vmem:[%s200 + $0x35a0] sm:$0xff]
        %v1980 = vld [vmem:[%s200 + $0x35a8] sm:$0xff]
        %v1981 = vld [vmem:[%s200 + $0x35b0] sm:$0xff]
        %v1982 = vld [vmem:[%s200 + $0x35b8] sm:$0xff]
        %v1983 = vld [vmem:[%s200 + $0x35c0] sm:$0xff]
        %v1984 = vld [vmem:[%s200 + $0x35c8] sm:$0xff]
        %v1985 = vld [vmem:[%s200 + $0x35d0] sm:$0xff]
        %v1986 = vld [vmem:[%s200 + $0x35d8] sm:$0xff]
        %v1987 = vld [vmem:[%s200 + $0x35e0] sm:$0xff]
        %v1988 = vld [vmem:[%s200 + $0x35e8] sm:$0xff]
        %v1989 = vld [vmem:[%s200 + $0x35f0] sm:$0xff]
        %v1990 = vld [vmem:[%s200 + $0x35f8] sm:$0xff]
        %v1991 = vld [vmem:[%s200 + $0x3600] sm:$0xff]
        %v1992 = vld [vmem:[%s200 + $0x3608] sm:$0xff]
        %v1993 = vld [vmem:[%s200 + $0x3610] sm:$0xff]
        %v1994 = vld [vmem:[%s200 + $0x3618] sm:$0xff]
        %v1995 = vld [vmem:[%s200 + $0x3620] sm:$0xff]
        %v1996 = vld [vmem:[%s200 + $0x3628] sm:$0xff]
        %v1997 = vld [vmem:[%s200 + $0x3630] sm:$0xff]
        %v1998 = vld [vmem:[%s200 + $0x3638] sm:$0xff]
        %v1999 = vld [vmem:[%s200 + $0x3640] sm:$0xff]
        %v2000 = vld [vmem:[%s200 + $0x3648] sm:$0xff]
        %v2001 = vld [vmem:[%s200 + $0x3650] sm:$0xff]
        %v2002 = vld [vmem:[%s200 + $0x3658] sm:$0xff]
        %v2003 = vld [vmem:[%s200 + $0x3660] sm:$0xff]
        %v2004 = vld [vmem:[%s200 + $0x3668] sm:$0xff]
        %v2005 = vld [vmem:[%s200 + $0x3670] sm:$0xff]
        %v2006 = vld [vmem:[%s200 + $0x3678] sm:$0xff]
        %v2007 = vld [vmem:[%s200 + $0x3680] sm:$0xff]
        %v2008 = vld [vmem:[%s200 + $0x3688] sm:$0xff]
        %v2009 = vld [vmem:[%s200 + $0x3690] sm:$0xff]
        %v2010 = vld [vmem:[%s200 + $0x3698] sm:$0xff]
        %v2011 = vld [vmem:[%s200 + $0x36a0] sm:$0xff]
        %v2012 = vld [vmem:[%s200 + $0x36a8] sm:$0xff]
        %v2013 = vld [vmem:[%s200 + $0x36b0] sm:$0xff]
        %v2014 = vld [vmem:[%s200 + $0x36b8] sm:$0xff]
        %v2015 = vld [vmem:[%s200 + $0x36c0] sm:$0xff]
        %v2016 = vld [vmem:[%s200 + $0x36c8] sm:$0xff]
        %v2017 = vld [vmem:[%s200 + $0x36d0] sm:$0xff]
        %v2018 = vld [vmem:[%s200 + $0x36d8] sm:$0xff]
        %v2019 = vld [vmem:[%s200 + $0x36e0] sm:$0xff]
        %v2020 = vld [vmem:[%s200 + $0x36e8] sm:$0xff]
        %v2021 = vld [vmem:[%s200 + $0x36f0] sm:$0xff]
        %v2022 = vld [vmem:[%s200 + $0x36f8] sm:$0xff]
        %v2023 = vld [vmem:[%s200 + $0x3700] sm:$0xff]
        %v2024 = vld [vmem:[%s200 + $0x3708] sm:$0xff]
        %v2025 = vld [vmem:[%s200 + $0x3710] sm:$0xff]
        %v2026 = vld [vmem:[%s200 + $0x3718] sm:$0xff]
        %v2027 = vld [vmem:[%s200 + $0x3720] sm:$0xff]
        %v2028 = vld [vmem:[%s200 + $0x3728] sm:$0xff]
        %v2029 = vld [vmem:[%s200 + $0x3730] sm:$0xff]
        %v2030 = vld [vmem:[%s200 + $0x3738] sm:$0xff]
        %v2031 = vld [vmem:[%s200 + $0x3740] sm:$0xff]
        %v2032 = vld [vmem:[%s200 + $0x3748] sm:$0xff]
        %v2033 = vld [vmem:[%s200 + $0x3750] sm:$0xff]
        %v2034 = vld [vmem:[%s200 + $0x3758] sm:$0xff]
        %v2035 = vld [vmem:[%s200 + $0x3760] sm:$0xff]
        %v2036 = vld [vmem:[%s200 + $0x3768] sm:$0xff]
        %v2037 = vld [vmem:[%s200 + $0x3770] sm:$0xff]
        %v2038 = vld [vmem:[%s200 + $0x3778] sm:$0xff]
        %v2039 = vld [vmem:[%s200 + $0x3780] sm:$0xff]
        %v2040 = vld [vmem:[%s200 + $0x3788] sm:$0xff]
        %v2041 = vld [vmem:[%s200 + $0x3790] sm:$0xff]
        %v2042 = vld [vmem:[%s200 + $0x3798] sm:$0xff]
        %v2043 = vld [vmem:[%s200 + $0x37a0] sm:$0xff]
        %v2044 = vld [vmem:[%s200 + $0x37a8] sm:$0xff]
        %v2045 = vld [vmem:[%s200 + $0x37b0] sm:$0xff]
        %v2046 = vld [vmem:[%s200 + $0x37b8] sm:$0xff]
        %v2047 = vld [vmem:[%s200 + $0x37c0] sm:$0xff]
        %v2048 = vld [vmem:[%s200 + $0x37c8] sm:$0xff]
        %v2049 = vld [vmem:[%s200 + $0x37d0] sm:$0xff]
        %v2050 = vld [vmem:[%s200 + $0x37d8] sm:$0xff]
        %v2051 = vld [vmem:[%s200 + $0x37e0] sm:$0xff]
        %v2052 = vld [vmem:[%s200 + $0x37e8] sm:$0xff]
        %v2053 = vld [vmem:[%s200 + $0x37f0] sm:$0xff]
        %v2054 = vld [vmem:[%s200 + $0x37f8] sm:$0xff]
        %v2055 = vld [vmem:[%s200 + $0x3800] sm:$0xff]
        %v2056 = vld [vmem:[%s200 + $0x3808] sm:$0xff]
        %v2057 = vld [vmem:[%s200 + $0x3810] sm:$0xff]
        %v2058 = vld [vmem:[%s200 + $0x3818] sm:$0xff]
        %v2059 = vld [vmem:[%s200 + $0x3820] sm:$0xff]
        %v2060 = vld [vmem:[%s200 + $0x3828] sm:$0xff]
        %v2061 = vld [vmem:[%s200 + $0x3830] sm:$0xff]
        %v2062 = vld [vmem:[%s200 + $0x3838] sm:$0xff]
        %v2063 = vld [vmem:[%s200 + $0x3840] sm:$0xff]
        %v2064 = vld [vmem:[%s200 + $0x3848] sm:$0xff]
        %v2065 = vld [vmem:[%s200 + $0x3850] sm:$0xff]
        %v2066 = vld [vmem:[%s200 + $0x3858] sm:$0xff]
        %v2067 = vld [vmem:[%s200 + $0x3860] sm:$0xff]
        %v2068 = vld [vmem:[%s200 + $0x3868] sm:$0xff]
        %v2069 = vld [vmem:[%s200 + $0x3870] sm:$0xff]
        %v2070 = vld [vmem:[%s200 + $0x3878] sm:$0xff]
        %v2071 = vld [vmem:[%s200 + $0x3880] sm:$0xff]
        %v2072 = vld [vmem:[%s200 + $0x3888] sm:$0xff]
        %v2073 = vld [vmem:[%s200 + $0x3890] sm:$0xff]
        %v2074 = vld [vmem:[%s200 + $0x3898] sm:$0xff]
        %v2075 = vld [vmem:[%s200 + $0x38a0] sm:$0xff]
        %v2076 = vld [vmem:[%s200 + $0x38a8] sm:$0xff]
        %v2077 = vld [vmem:[%s200 + $0x38b0] sm:$0xff]
        %v2078 = vld [vmem:[%s200 + $0x38b8] sm:$0xff]
        %v2079 = vld [vmem:[%s200 + $0x38c0] sm:$0xff]
        %v2080 = vld [vmem:[%s200 + $0x38c8] sm:$0xff]
        %v2081 = vld [vmem:[%s200 + $0x38d0] sm:$0xff]
        %v2082 = vld [vmem:[%s200 + $0x38d8] sm:$0xff]
        %v2083 = vld [vmem:[%s200 + $0x38e0] sm:$0xff]
        %v2084 = vld [vmem:[%s200 + $0x38e8] sm:$0xff]
        %v2085 = vld [vmem:[%s200 + $0x38f0] sm:$0xff]
        %v2086 = vld [vmem:[%s200 + $0x38f8] sm:$0xff]
        %v2087 = vld [vmem:[%s200 + $0x3900] sm:$0xff]
        %v2088 = vld [vmem:[%s200 + $0x3908] sm:$0xff]
        %v2089 = vld [vmem:[%s200 + $0x3910] sm:$0xff]
        %v2090 = vld [vmem:[%s200 + $0x3918] sm:$0xff]
        %v2091 = vld [vmem:[%s200 + $0x3920] sm:$0xff]
        %v2092 = vld [vmem:[%s200 + $0x3928] sm:$0xff]
        %v2093 = vld [vmem:[%s200 + $0x3930] sm:$0xff]
        %v2094 = vld [vmem:[%s200 + $0x3938] sm:$0xff]
        %v2095 = vld [vmem:[%s200 + $0x3940] sm:$0xff]
        %v2096 = vld [vmem:[%s200 + $0x3948] sm:$0xff]
        %v2097 = vld [vmem:[%s200 + $0x3950] sm:$0xff]
        %v2098 = vld [vmem:[%s200 + $0x3958] sm:$0xff]
        %v2099 = vld [vmem:[%s200 + $0x3960] sm:$0xff]
        %v2100 = vld [vmem:[%s200 + $0x3968] sm:$0xff]
        %v2101 = vld [vmem:[%s200 + $0x3970] sm:$0xff]
        %v2102 = vld [vmem:[%s200 + $0x3978] sm:$0xff]
        %v2103 = vld [vmem:[%s200 + $0x3980] sm:$0xff]
        %v2104 = vld [vmem:[%s200 + $0x3988] sm:$0xff]
        %v2105 = vld [vmem:[%s200 + $0x3990] sm:$0xff]
        %v2106 = vld [vmem:[%s200 + $0x3998] sm:$0xff]
        %v2107 = vld [vmem:[%s200 + $0x39a0] sm:$0xff]
        %v2108 = vld [vmem:[%s200 + $0x39a8] sm:$0xff]
        %v2109 = vld [vmem:[%s200 + $0x39b0] sm:$0xff]
        %v2110 = vld [vmem:[%s200 + $0x39b8] sm:$0xff]
        %v2111 = vld [vmem:[%s200 + $0x39c0] sm:$0xff]
        %v2112 = vld [vmem:[%s200 + $0x39c8] sm:$0xff]
        %v2113 = vld [vmem:[%s200 + $0x39d0] sm:$0xff]
        %v2114 = vld [vmem:[%s200 + $0x39d8] sm:$0xff]
        %v2115 = vld [vmem:[%s200 + $0x39e0] sm:$0xff]
        %v2116 = vld [vmem:[%s200 + $0x39e8] sm:$0xff]
        %v2117 = vld [vmem:[%s200 + $0x39f0] sm:$0xff]
        %v2118 = vld [vmem:[%s200 + $0x39f8] sm:$0xff]
        %v2119 = vld [vmem:[%s200 + $0x3a00] sm:$0xff]
        %v2120 = vld [vmem:[%s200 + $0x3a08] sm:$0xff]
        %v2121 = vld [vmem:[%s200 + $0x3a10] sm:$0xff]
        %v2122 = vld [vmem:[%s200 + $0x3a18] sm:$0xff]
        %v2123 = vld [vmem:[%s200 + $0x3a20] sm:$0xff]
        %v2124 = vld [vmem:[%s200 + $0x3a28] sm:$0xff]
        %v2125 = vld [vmem:[%s200 + $0x3a30] sm:$0xff]
        %v2126 = vld [vmem:[%s200 + $0x3a38] sm:$0xff]
        %v2127 = vld [vmem:[%s200 + $0x3a40] sm:$0xff]
        %v2128 = vld [vmem:[%s200 + $0x3a48] sm:$0xff]
        %v2129 = vld [vmem:[%s200 + $0x3a50] sm:$0xff]
        %v2130 = vld [vmem:[%s200 + $0x3a58] sm:$0xff]
        %v2131 = vld [vmem:[%s200 + $0x3a60] sm:$0xff]
        %v2132 = vld [vmem:[%s200 + $0x3a68] sm:$0xff]
        %v2133 = vld [vmem:[%s200 + $0x3a70] sm:$0xff]
        %v2134 = vld [vmem:[%s200 + $0x3a78] sm:$0xff]
        %v2135 = vld [vmem:[%s200 + $0x3a80] sm:$0xff]
        %v2136 = vld [vmem:[%s200 + $0x3a88] sm:$0xff]
        %v2137 = vld [vmem:[%s200 + $0x3a90] sm:$0xff]
        %v2138 = vld [vmem:[%s200 + $0x3a98] sm:$0xff]
        %v2139 = vld [vmem:[%s200 + $0x3aa0] sm:$0xff]
        %v2140 = vld [vmem:[%s200 + $0x3aa8] sm:$0xff]
        %v2141 = vld [vmem:[%s200 + $0x3ab0] sm:$0xff]
        %v2142 = vld [vmem:[%s200 + $0x3ab8] sm:$0xff]
        %v2143 = vld [vmem:[%s200 + $0x3ac0] sm:$0xff]
        %v2144 = vld [vmem:[%s200 + $0x3ac8] sm:$0xff]
        %v2145 = vld [vmem:[%s200 + $0x3ad0] sm:$0xff]
        %v2146 = vld [vmem:[%s200 + $0x3ad8] sm:$0xff]
        %v2147 = vld [vmem:[%s200 + $0x3ae0] sm:$0xff]
        %v2148 = vld [vmem:[%s200 + $0x3ae8] sm:$0xff]
        %v2149 = vld [vmem:[%s200 + $0x3af0] sm:$0xff]
        %v2150 = vld [vmem:[%s200 + $0x3af8] sm:$0xff]
        %v2151 = vld [vmem:[%s200 + $0x3b00] sm:$0xff]
        %v2152 = vld [vmem:[%s200 + $0x3b08] sm:$0xff]
        %v2153 = vld [vmem:[%s200 + $0x3b10] sm:$0xff]
        %v2154 = vld [vmem:[%s200 + $0x3b18] sm:$0xff]
        %v2155 = vld [vmem:[%s200 + $0x3b20] sm:$0xff]
        %v2156 = vld [vmem:[%s200 + $0x3b28] sm:$0xff]
        %v2157 = vld [vmem:[%s200 + $0x3b30] sm:$0xff]
        %v2158 = vld [vmem:[%s200 + $0x3b38] sm:$0xff]
        %v2159 = vld [vmem:[%s200 + $0x3b40] sm:$0xff]
        %v2160 = vld [vmem:[%s200 + $0x3b48] sm:$0xff]
        %v2161 = vld [vmem:[%s200 + $0x3b50] sm:$0xff]
        %v2162 = vld [vmem:[%s200 + $0x3b58] sm:$0xff]
        %v2163 = vld [vmem:[%s200 + $0x3b60] sm:$0xff]
        %v2164 = vld [vmem:[%s200 + $0x3b68] sm:$0xff]
        %v2165 = vld [vmem:[%s200 + $0x3b70] sm:$0xff]
        %v2166 = vld [vmem:[%s200 + $0x3b78] sm:$0xff]
        %v2167 = vld [vmem:[%s200 + $0x3b80] sm:$0xff]
        %v2168 = vld [vmem:[%s200 + $0x3b88] sm:$0xff]
        %v2169 = vld [vmem:[%s200 + $0x3b90] sm:$0xff]
        %v2170 = vld [vmem:[%s200 + $0x3b98] sm:$0xff]
        %v2171 = vld [vmem:[%s200 + $0x3ba0] sm:$0xff]
        %v2172 = vld [vmem:[%s200 + $0x3ba8] sm:$0xff]
        %v2173 = vld [vmem:[%s200 + $0x3bb0] sm:$0xff]
        %v2174 = vld [vmem:[%s200 + $0x3bb8] sm:$0xff]
        %v2175 = vld [vmem:[%s200 + $0x3bc0] sm:$0xff]
        %v2176 = vld [vmem:[%s200 + $0x3bc8] sm:$0xff]
        %v2177 = vld [vmem:[%s200 + $0x3bd0] sm:$0xff]
        %v2178 = vld [vmem:[%s200 + $0x3bd8] sm:$0xff]
        %v2179 = vld [vmem:[%s200 + $0x3be0] sm:$0xff]
        %v2180 = vld [vmem:[%s200 + $0x3be8] sm:$0xff]
        %v2181 = vld [vmem:[%s200 + $0x3bf0] sm:$0xff]
        %v2182 = vld [vmem:[%s200 + $0x3bf8] sm:$0xff]
        %v2183 = vld [vmem:[%s200 + $0x3c00] sm:$0xff]
        %v2184 = vld [vmem:[%s200 + $0x3c08] sm:$0xff]
        %v2185 = vld [vmem:[%s200 + $0x3c10] sm:$0xff]
        %v2186 = vld [vmem:[%s200 + $0x3c18] sm:$0xff]
        %v2187 = vld [vmem:[%s200 + $0x3c20] sm:$0xff]
        %v2188 = vld [vmem:[%s200 + $0x3c28] sm:$0xff]
        %v2189 = vld [vmem:[%s200 + $0x3c30] sm:$0xff]
        %v2190 = vld [vmem:[%s200 + $0x3c38] sm:$0xff]
        %v2191 = vld [vmem:[%s200 + $0x3c40] sm:$0xff]
        %v2192 = vld [vmem:[%s200 + $0x3c48] sm:$0xff]
        %v2193 = vld [vmem:[%s200 + $0x3c50] sm:$0xff]
        %v2194 = vld [vmem:[%s200 + $0x3c58] sm:$0xff]
        %v2195 = vld [vmem:[%s200 + $0x3c60] sm:$0xff]
        %v2196 = vld [vmem:[%s200 + $0x3c68] sm:$0xff]
        %v2197 = vld [vmem:[%s200 + $0x3c70] sm:$0xff]
        %v2198 = vld [vmem:[%s200 + $0x3c78] sm:$0xff]
        %v2199 = vld [vmem:[%s200 + $0x3c80] sm:$0xff]
        %v2200 = vld [vmem:[%s200 + $0x3c88] sm:$0xff]
        %v2201 = vld [vmem:[%s200 + $0x3c90] sm:$0xff]
        %v2202 = vld [vmem:[%s200 + $0x3c98] sm:$0xff]
        %v2203 = vld [vmem:[%s200 + $0x3ca0] sm:$0xff]
        %v2204 = vld [vmem:[%s200 + $0x3ca8] sm:$0xff]
        %v2205 = vld [vmem:[%s200 + $0x3cb0] sm:$0xff]
        %v2206 = vld [vmem:[%s200 + $0x3cb8] sm:$0xff]
        %v2207 = vld [vmem:[%s200 + $0x3cc0] sm:$0xff]
        %v2208 = vld [vmem:[%s200 + $0x3cc8] sm:$0xff]
        %v2209 = vld [vmem:[%s200 + $0x3cd0] sm:$0xff]
        %v2210 = vld [vmem:[%s200 + $0x3cd8] sm:$0xff]
        %v2211 = vld [vmem:[%s200 + $0x3ce0] sm:$0xff]
        %v2212 = vld [vmem:[%s200 + $0x3ce8] sm:$0xff]
        %v2213 = vld [vmem:[%s200 + $0x3cf0] sm:$0xff]
        %v2214 = vld [vmem:[%s200 + $0x3cf8] sm:$0xff]
        %v2215 = vld [vmem:[%s200 + $0x3d00] sm:$0xff]
        %v2216 = vld [vmem:[%s200 + $0x3d08] sm:$0xff]
        %v2217 = vld [vmem:[%s200 + $0x3d10] sm:$0xff]
        %v2218 = vld [vmem:[%s200 + $0x3d18] sm:$0xff]
        %v2219 = vld [vmem:[%s200 + $0x3d20] sm:$0xff]
        %v2220 = vld [vmem:[%s200 + $0x3d28] sm:$0xff]
        %v2221 = vld [vmem:[%s200 + $0x3d30] sm:$0xff]
        %v2222 = vld [vmem:[%s200 + $0x3d38] sm:$0xff]
        %v2223 = vld [vmem:[%s200 + $0x3d40] sm:$0xff]
        %v2224 = vld [vmem:[%s200 + $0x3d48] sm:$0xff]
        %v2225 = vld [vmem:[%s200 + $0x3d50] sm:$0xff]
        %v2226 = vld [vmem:[%s200 + $0x3d58] sm:$0xff]
        %v2227 = vld [vmem:[%s200 + $0x3d60] sm:$0xff]
        %v2228 = vld [vmem:[%s200 + $0x3d68] sm:$0xff]
        %v2229 = vld [vmem:[%s200 + $0x3d70] sm:$0xff]
        %v2230 = vld [vmem:[%s200 + $0x3d78] sm:$0xff]
        %v2231 = vld [vmem:[%s200 + $0x3d80] sm:$0xff]
        %v2232 = vld [vmem:[%s200 + $0x3d88] sm:$0xff]
        %v2233 = vld [vmem:[%s200 + $0x3d90] sm:$0xff]
        %v2234 = vld [vmem:[%s200 + $0x3d98] sm:$0xff]
        %v2235 = vld [vmem:[%s200 + $0x3da0] sm:$0xff]
        %v2236 = vld [vmem:[%s200 + $0x3da8] sm:$0xff]
        %v2237 = vld [vmem:[%s200 + $0x3db0] sm:$0xff]
        %v2238 = vld [vmem:[%s200 + $0x3db8] sm:$0xff]
        %v2239 = vld [vmem:[%s200 + $0x3dc0] sm:$0xff]
        %v2240 = vld [vmem:[%s200 + $0x3dc8] sm:$0xff]
        %v2241 = vld [vmem:[%s200 + $0x3dd0] sm:$0xff]
        %v2242 = vld [vmem:[%s200 + $0x3dd8] sm:$0xff]
        %v2243 = vld [vmem:[%s200 + $0x3de0] sm:$0xff]
        %v2244 = vld [vmem:[%s200 + $0x3de8] sm:$0xff]
        %v2245 = vld [vmem:[%s200 + $0x3df0] sm:$0xff]
        %v2246 = vld [vmem:[%s200 + $0x3df8] sm:$0xff]
        %v2247 = vld [vmem:[%s200 + $0x3e00] sm:$0xff]
        %v2248 = vld [vmem:[%s200 + $0x3e08] sm:$0xff]
        %v2249 = vld [vmem:[%s200 + $0x3e10] sm:$0xff]
        %v2250 = vld [vmem:[%s200 + $0x3e18] sm:$0xff]
        %v2251 = vld [vmem:[%s200 + $0x3e20] sm:$0xff]
        %v2252 = vld [vmem:[%s200 + $0x3e28] sm:$0xff]
        %v2253 = vld [vmem:[%s200 + $0x3e30] sm:$0xff]
        %v2254 = vld [vmem:[%s200 + $0x3e38] sm:$0xff]
        %v2255 = vld [vmem:[%s200 + $0x3e40] sm:$0xff]
        %v2256 = vld [vmem:[%s200 + $0x3e48] sm:$0xff]
        %v2257 = vld [vmem:[%s200 + $0x3e50] sm:$0xff]
        %v2258 = vld [vmem:[%s200 + $0x3e58] sm:$0xff]
        %v2259 = vld [vmem:[%s200 + $0x3e60] sm:$0xff]
        %v2260 = vld [vmem:[%s200 + $0x3e68] sm:$0xff]
        %v2261 = vld [vmem:[%s200 + $0x3e70] sm:$0xff]
        %v2262 = vld [vmem:[%s200 + $0x3e78] sm:$0xff]
        %v2263 = vld [vmem:[%s200 + $0x3e80] sm:$0xff]
        %v2264 = vld [vmem:[%s200 + $0x3e88] sm:$0xff]
        %v2265 = vld [vmem:[%s200 + $0x3e90] sm:$0xff]
        %v2266 = vld [vmem:[%s200 + $0x3e98] sm:$0xff]
        %v2267 = vld [vmem:[%s200 + $0x3ea0] sm:$0xff]
        %v2268 = vld [vmem:[%s200 + $0x3ea8] sm:$0xff]
        %v2269 = vld [vmem:[%s200 + $0x3eb0] sm:$0xff]
        %v2270 = vld [vmem:[%s200 + $0x3eb8] sm:$0xff]
        %v2271 = vld [vmem:[%s200 + $0x3ec0] sm:$0xff]
        %v2272 = vld [vmem:[%s200 + $0x3ec8] sm:$0xff]
        %v2273 = vld [vmem:[%s200 + $0x3ed0] sm:$0xff]
        %v2274 = vld [vmem:[%s200 + $0x3ed8] sm:$0xff]
        %v2275 = vld [vmem:[%s200 + $0x3ee0] sm:$0xff]
        %v2276 = vld [vmem:[%s200 + $0x3ee8] sm:$0xff]
        %v2277 = vld [vmem:[%s200 + $0x3ef0] sm:$0xff]
        %v2278 = vld [vmem:[%s200 + $0x3ef8] sm:$0xff]
        %v2279 = vld [vmem:[%s200 + $0x3f00] sm:$0xff]
        %v2280 = vld [vmem:[%s200 + $0x3f08] sm:$0xff]
        %v2281 = vld [vmem:[%s200 + $0x3f10] sm:$0xff]
        %v2282 = vld [vmem:[%s200 + $0x3f18] sm:$0xff]
        %v2283 = vld [vmem:[%s200 + $0x3f20] sm:$0xff]
        %v2284 = vld [vmem:[%s200 + $0x3f28] sm:$0xff]
        %v2285 = vld [vmem:[%s200 + $0x3f30] sm:$0xff]
        %v2286 = vld [vmem:[%s200 + $0x3f38] sm:$0xff]
        %v2287 = vld [vmem:[%s200 + $0x3f40] sm:$0xff]
        %v2288 = vld [vmem:[%s200 + $0x3f48] sm:$0xff]
        %v2289 = vld [vmem:[%s200 + $0x3f50] sm:$0xff]
        %v2290 = vld [vmem:[%s200 + $0x3f58] sm:$0xff]
        %v2291 = vld [vmem:[%s200 + $0x3f60] sm:$0xff]
        %v2292 = vld [vmem:[%s200 + $0x3f68] sm:$0xff]
        %v2293 = vld [vmem:[%s200 + $0x3f70] sm:$0xff]
        %v2294 = vld [vmem:[%s200 + $0x3f78] sm:$0xff]
        %v2295 = vld [vmem:[%s200 + $0x3f80] sm:$0xff]
        %v2296 = vld [vmem:[%s200 + $0x3f88] sm:$0xff]
        %v2297 = vld [vmem:[%s200 + $0x3f90] sm:$0xff]
        %v2298 = vld [vmem:[%s200 + $0x3f98] sm:$0xff]
        %v2299 = vld [vmem:[%s200 + $0x3fa0] sm:$0xff]
        %v2300 = vld [vmem:[%s200 + $0x3fa8] sm:$0xff]
        %v2301 = vld [vmem:[%s200 + $0x3fb0] sm:$0xff]
        %v2302 = vld [vmem:[%s200 + $0x3fb8] sm:$0xff]
        %v2303 = vld [vmem:[%s200 + $0x3fc0] sm:$0xff]
        %v2304 = vld [vmem:[%s200 + $0x3fc8] sm:$0xff]
        %v2305 = vld [vmem:[%s200 + $0x3fd0] sm:$0xff]
        %v2306 = vld [vmem:[%s200 + $0x3fd8] sm:$0xff]
        %v2307 = vld [vmem:[%s200 + $0x3fe0] sm:$0xff]
        %v2308 = vld [vmem:[%s200 + $0x3fe8] sm:$0xff]
        %v2309 = vld [vmem:[%s200 + $0x3ff0] sm:$0xff]
        %v2310 = vld [vmem:[%s200 + $0x3ff8] sm:$0xff]
        %v2311 = vld [vmem:[%s200 + $0x4000] sm:$0xff]
        %v2312 = vld [vmem:[%s200 + $0x4008] sm:$0xff]
        %v2313 = vld [vmem:[%s200 + $0x4010] sm:$0xff]
        %v2314 = vld [vmem:[%s200 + $0x4018] sm:$0xff]
        %v2315 = vld [vmem:[%s200 + $0x4020] sm:$0xff]
        %v2316 = vld [vmem:[%s200 + $0x4028] sm:$0xff]
        %v2317 = vld [vmem:[%s200 + $0x4030] sm:$0xff]
        %v2318 = vld [vmem:[%s200 + $0x4038] sm:$0xff]
        %v2319 = vld [vmem:[%s200 + $0x4040] sm:$0xff]
        %v2320 = vld [vmem:[%s200 + $0x4048] sm:$0xff]
        %v2321 = vld [vmem:[%s200 + $0x4050] sm:$0xff]
        %v2322 = vld [vmem:[%s200 + $0x4058] sm:$0xff]
        %v2323 = vld [vmem:[%s200 + $0x4060] sm:$0xff]
        %v2324 = vld [vmem:[%s200 + $0x4068] sm:$0xff]
        %v2325 = vld [vmem:[%s200 + $0x4070] sm:$0xff]
        %v2326 = vld [vmem:[%s200 + $0x4078] sm:$0xff]
        %v2327 = vld [vmem:[%s200 + $0x4080] sm:$0xff]
        %v2328 = vld [vmem:[%s200 + $0x4088] sm:$0xff]
        %v2329 = vld [vmem:[%s200 + $0x4090] sm:$0xff]
        %v2330 = vld [vmem:[%s200 + $0x4098] sm:$0xff]
        %v2331 = vld [vmem:[%s200 + $0x40a0] sm:$0xff]
        %v2332 = vld [vmem:[%s200 + $0x40a8] sm:$0xff]
        %v2333 = vld [vmem:[%s200 + $0x40b0] sm:$0xff]
        %v2334 = vld [vmem:[%s200 + $0x40b8] sm:$0xff]
        %v2335 = vld [vmem:[%s200 + $0x40c0] sm:$0xff]
        %v2336 = vld [vmem:[%s200 + $0x40c8] sm:$0xff]
        %v2337 = vld [vmem:[%s200 + $0x40d0] sm:$0xff]
        %v2338 = vld [vmem:[%s200 + $0x40d8] sm:$0xff]
        %v2339 = vld [vmem:[%s200 + $0x40e0] sm:$0xff]
        %v2340 = vld [vmem:[%s200 + $0x40e8] sm:$0xff]
        %v2341 = vld [vmem:[%s200 + $0x40f0] sm:$0xff]
        %v2342 = vld [vmem:[%s200 + $0x40f8] sm:$0xff]
        %v2343 = vld [vmem:[%s200 + $0x4100] sm:$0xff]
        %v2344 = vld [vmem:[%s200 + $0x4108] sm:$0xff]
        %v2345 = vld [vmem:[%s200 + $0x4110] sm:$0xff]
        %v2346 = vld [vmem:[%s200 + $0x4118] sm:$0xff]
        %v2347 = vld [vmem:[%s200 + $0x4120] sm:$0xff]
        %v2348 = vld [vmem:[%s200 + $0x4128] sm:$0xff]
        %v2349 = vld [vmem:[%s200 + $0x4130] sm:$0xff]
        %v2350 = vld [vmem:[%s200 + $0x4138] sm:$0xff]
        %v2351 = vld [vmem:[%s200 + $0x4140] sm:$0xff]
        %v2352 = vld [vmem:[%s200 + $0x4148] sm:$0xff]
        %v2353 = vld [vmem:[%s200 + $0x4150] sm:$0xff]
        %v2354 = vld [vmem:[%s200 + $0x4158] sm:$0xff]
        %v2355 = vld [vmem:[%s200 + $0x4160] sm:$0xff]
        %v2356 = vld [vmem:[%s200 + $0x4168] sm:$0xff]
        %v2357 = vld [vmem:[%s200 + $0x4170] sm:$0xff]
        %v2358 = vld [vmem:[%s200 + $0x4178] sm:$0xff]
        %v2359 = vld [vmem:[%s200 + $0x4180] sm:$0xff]
        %v2360 = vld [vmem:[%s200 + $0x4188] sm:$0xff]
        %v2361 = vld [vmem:[%s200 + $0x4190] sm:$0xff]
        %v2362 = vld [vmem:[%s200 + $0x4198] sm:$0xff]
        %v2363 = vld [vmem:[%s200 + $0x41a0] sm:$0xff]
        %v2364 = vld [vmem:[%s200 + $0x41a8] sm:$0xff]
        %v2365 = vld [vmem:[%s200 + $0x41b0] sm:$0xff]
        %v2366 = vld [vmem:[%s200 + $0x41b8] sm:$0xff]
        %v2367 = vld [vmem:[%s200 + $0x41c0] sm:$0xff]
        %v2368 = vld [vmem:[%s200 + $0x41c8] sm:$0xff]
        %v2369 = vld [vmem:[%s200 + $0x41d0] sm:$0xff]
        %v2370 = vld [vmem:[%s200 + $0x41d8] sm:$0xff]
        %v2371 = vld [vmem:[%s200 + $0x41e0] sm:$0xff]
        %v2372 = vld [vmem:[%s200 + $0x41e8] sm:$0xff]
        %v2373 = vld [vmem:[%s200 + $0x41f0] sm:$0xff]
        %v2374 = vld [vmem:[%s200 + $0x41f8] sm:$0xff]
        %v2375 = vld [vmem:[%s200 + $0x4200] sm:$0xff]
        %v2376 = vld [vmem:[%s200 + $0x4208] sm:$0xff]
        %v2377 = vld [vmem:[%s200 + $0x4210] sm:$0xff]
        %v2378 = vld [vmem:[%s200 + $0x4218] sm:$0xff]
        %v2379 = vld [vmem:[%s200 + $0x4220] sm:$0xff]
        %v2380 = vld [vmem:[%s200 + $0x4228] sm:$0xff]
        %v2381 = vld [vmem:[%s200 + $0x4230] sm:$0xff]
        %v2382 = vld [vmem:[%s200 + $0x4238] sm:$0xff]
        %v2383 = vld [vmem:[%s200 + $0x4240] sm:$0xff]
        %v2384 = vld [vmem:[%s200 + $0x4248] sm:$0xff]
        %v2385 = vld [vmem:[%s200 + $0x4250] sm:$0xff]
        %v2386 = vld [vmem:[%s200 + $0x4258] sm:$0xff]
        %v2387 = vld [vmem:[%s200 + $0x4260] sm:$0xff]
        %v2388 = vld [vmem:[%s200 + $0x4268] sm:$0xff]
        %v2389 = vld [vmem:[%s200 + $0x4270] sm:$0xff]
        %v2390 = vld [vmem:[%s200 + $0x4278] sm:$0xff]
        %v2391 = vld [vmem:[%s200 + $0x4280] sm:$0xff]
        %v2392 = vld [vmem:[%s200 + $0x4288] sm:$0xff]
        %v2393 = vld [vmem:[%s200 + $0x4290] sm:$0xff]
        %v2394 = vld [vmem:[%s200 + $0x4298] sm:$0xff]
        %v2395 = vld [vmem:[%s200 + $0x42a0] sm:$0xff]
        %v2396 = vld [vmem:[%s200 + $0x42a8] sm:$0xff]
        %v2397 = vld [vmem:[%s200 + $0x42b0] sm:$0xff]
        %v2398 = vld [vmem:[%s200 + $0x42b8] sm:$0xff]
        %v2399 = vld [vmem:[%s200 + $0x42c0] sm:$0xff]
        %v2400 = vld [vmem:[%s200 + $0x42c8] sm:$0xff]
        %v2401 = vld [vmem:[%s200 + $0x42d0] sm:$0xff]
        %v2402 = vld [vmem:[%s200 + $0x42d8] sm:$0xff]
        %v2403 = vld [vmem:[%s200 + $0x42e0] sm:$0xff]
        %v2404 = vld [vmem:[%s200 + $0x42e8] sm:$0xff]
        %v2405 = vld [vmem:[%s200 + $0x42f0] sm:$0xff]
        %v2406 = vld [vmem:[%s200 + $0x42f8] sm:$0xff]
        %v2407 = vld [vmem:[%s200 + $0x4300] sm:$0xff]
        %v2408 = vld [vmem:[%s200 + $0x4308] sm:$0xff]
        %v2409 = vld [vmem:[%s200 + $0x4310] sm:$0xff]
        %v2410 = vld [vmem:[%s200 + $0x4318] sm:$0xff]
        %v2411 = vld [vmem:[%s200 + $0x4320] sm:$0xff]
        %v2412 = vld [vmem:[%s200 + $0x4328] sm:$0xff]
        %v2413 = vld [vmem:[%s200 + $0x4330] sm:$0xff]
        %v2414 = vld [vmem:[%s200 + $0x4338] sm:$0xff]
        %v2415 = vld [vmem:[%s200 + $0x4340] sm:$0xff]
        %v2416 = vld [vmem:[%s200 + $0x4348] sm:$0xff]
        %v2417 = vld [vmem:[%s200 + $0x4350] sm:$0xff]
        %v2418 = vld [vmem:[%s200 + $0x4358] sm:$0xff]
        %v2419 = vld [vmem:[%s200 + $0x4360] sm:$0xff]
        %v2420 = vld [vmem:[%s200 + $0x4368] sm:$0xff]
        %v2421 = vld [vmem:[%s200 + $0x4370] sm:$0xff]
        %v2422 = vld [vmem:[%s200 + $0x4378] sm:$0xff]
        %v2423 = vld [vmem:[%s200 + $0x4380] sm:$0xff]
        %v2424 = vld [vmem:[%s200 + $0x4388] sm:$0xff]
        %v2425 = vld [vmem:[%s200 + $0x4390] sm:$0xff]
        %v2426 = vld [vmem:[%s200 + $0x4398] sm:$0xff]
        %v2427 = vld [vmem:[%s200 + $0x43a0] sm:$0xff]
        %v2428 = vld [vmem:[%s200 + $0x43a8] sm:$0xff]
        %v2429 = vld [vmem:[%s200 + $0x43b0] sm:$0xff]
        %v2430 = vld [vmem:[%s200 + $0x43b8] sm:$0xff]
        %v2431 = vld [vmem:[%s200 + $0x43c0] sm:$0xff]
        %v2432 = vld [vmem:[%s200 + $0x43c8] sm:$0xff]
        %v2433 = vld [vmem:[%s200 + $0x43d0] sm:$0xff]
        %v2434 = vld [vmem:[%s200 + $0x43d8] sm:$0xff]
        %v2435 = vld [vmem:[%s200 + $0x43e0] sm:$0xff]
        %v2436 = vld [vmem:[%s200 + $0x43e8] sm:$0xff]
        %v2437 = vld [vmem:[%s200 + $0x43f0] sm:$0xff]
        %v2438 = vld [vmem:[%s200 + $0x43f8] sm:$0xff]
        %v2439 = vld [vmem:[%s200 + $0x4400] sm:$0xff]
        %v2440 = vld [vmem:[%s200 + $0x4408] sm:$0xff]
        %v2441 = vld [vmem:[%s200 + $0x4410] sm:$0xff]
        %v2442 = vld [vmem:[%s200 + $0x4418] sm:$0xff]
        %v2443 = vld [vmem:[%s200 + $0x4420] sm:$0xff]
        %v2444 = vld [vmem:[%s200 + $0x4428] sm:$0xff]
        %v2445 = vld [vmem:[%s200 + $0x4430] sm:$0xff]
        %v2446 = vld [vmem:[%s200 + $0x4438] sm:$0xff]
        %v2447 = vld [vmem:[%s200 + $0x4440] sm:$0xff]
        %v2448 = vld [vmem:[%s200 + $0x4448] sm:$0xff]
        %v2449 = vld [vmem:[%s200 + $0x4450] sm:$0xff]
        %v2450 = vld [vmem:[%s200 + $0x4458] sm:$0xff]
        %v2451 = vld [vmem:[%s200 + $0x4460] sm:$0xff]
        %v2452 = vld [vmem:[%s200 + $0x4468] sm:$0xff]
        %v2453 = vld [vmem:[%s200 + $0x4470] sm:$0xff]
        %v2454 = vld [vmem:[%s200 + $0x4478] sm:$0xff]
        %v2455 = vld [vmem:[%s200 + $0x4480] sm:$0xff]
        %v2456 = vld [vmem:[%s200 + $0x4488] sm:$0xff]
        %v2457 = vld [vmem:[%s200 + $0x4490] sm:$0xff]
        %v2458 = vld [vmem:[%s200 + $0x4498] sm:$0xff]
        %v2459 = vld [vmem:[%s200 + $0x44a0] sm:$0xff]
        %v2460 = vld [vmem:[%s200 + $0x44a8] sm:$0xff]
        %v2461 = vld [vmem:[%s200 + $0x44b0] sm:$0xff]
        %v2462 = vld [vmem:[%s200 + $0x44b8] sm:$0xff]
        %v2463 = vld [vmem:[%s200 + $0x44c0] sm:$0xff]
        %v2464 = vld [vmem:[%s200 + $0x44c8] sm:$0xff]
        %v2465 = vld [vmem:[%s200 + $0x44d0] sm:$0xff]
        %v2466 = vld [vmem:[%s200 + $0x44d8] sm:$0xff]
        %v2467 = vld [vmem:[%s200 + $0x44e0] sm:$0xff]
        %v2468 = vld [vmem:[%s200 + $0x44e8] sm:$0xff]
        %v2469 = vld [vmem:[%s200 + $0x44f0] sm:$0xff]
        %v2470 = vld [vmem:[%s200 + $0x44f8] sm:$0xff]
        %v2471 = vld [vmem:[%s200 + $0x4500] sm:$0xff]
        %v2472 = vld [vmem:[%s200 + $0x4508] sm:$0xff]
        %v2473 = vld [vmem:[%s200 + $0x4510] sm:$0xff]
        %v2474 = vld [vmem:[%s200 + $0x4518] sm:$0xff]
        %v2475 = vld [vmem:[%s200 + $0x4520] sm:$0xff]
        %v2476 = vld [vmem:[%s200 + $0x4528] sm:$0xff]
        %v2477 = vld [vmem:[%s200 + $0x4530] sm:$0xff]
        %v2478 = vld [vmem:[%s200 + $0x4538] sm:$0xff]
        %v2479 = vld [vmem:[%s200 + $0x4540] sm:$0xff]
        %v2480 = vld [vmem:[%s200 + $0x4548] sm:$0xff]
        %v2481 = vld [vmem:[%s200 + $0x4550] sm:$0xff]
        %v2482 = vld [vmem:[%s200 + $0x4558] sm:$0xff]
        %v2483 = vld [vmem:[%s200 + $0x4560] sm:$0xff]
        %v2484 = vld [vmem:[%s200 + $0x4568] sm:$0xff]
        %v2485 = vld [vmem:[%s200 + $0x4570] sm:$0xff]
        %v2486 = vld [vmem:[%s200 + $0x4578] sm:$0xff]
        %v2487 = vld [vmem:[%s200 + $0x4580] sm:$0xff]
        %v2488 = vld [vmem:[%s200 + $0x4588] sm:$0xff]
        %v2489 = vld [vmem:[%s200 + $0x4590] sm:$0xff]
        %v2490 = vld [vmem:[%s200 + $0x4598] sm:$0xff]
        %v2491 = vld [vmem:[%s200 + $0x45a0] sm:$0xff]
        %v2492 = vld [vmem:[%s200 + $0x45a8] sm:$0xff]
        %v2493 = vld [vmem:[%s200 + $0x45b0] sm:$0xff]
        %v2494 = vld [vmem:[%s200 + $0x45b8] sm:$0xff]
        %v2495 = vld [vmem:[%s200 + $0x45c0] sm:$0xff]
        %v2496 = vld [vmem:[%s200 + $0x45c8] sm:$0xff]
        %v2497 = vld [vmem:[%s200 + $0x45d0] sm:$0xff]
        %v2498 = vld [vmem:[%s200 + $0x45d8] sm:$0xff]
        %v2499 = vld [vmem:[%s200 + $0x45e0] sm:$0xff]
        %v2500 = vld [vmem:[%s200 + $0x45e8] sm:$0xff]
        %v2501 = vld [vmem:[%s200 + $0x45f0] sm:$0xff]
        %v2502 = vld [vmem:[%s200 + $0x45f8] sm:$0xff]
        %v2503 = vld [vmem:[%s200 + $0x4600] sm:$0xff]
        %v2504 = vld [vmem:[%s200 + $0x4608] sm:$0xff]
        %v2505 = vld [vmem:[%s200 + $0x4610] sm:$0xff]
        %v2506 = vld [vmem:[%s200 + $0x4618] sm:$0xff]
        %v2507 = vld [vmem:[%s200 + $0x4620] sm:$0xff]
        %v2508 = vld [vmem:[%s200 + $0x4628] sm:$0xff]
        %v2509 = vld [vmem:[%s200 + $0x4630] sm:$0xff]
        %v2510 = vld [vmem:[%s200 + $0x4638] sm:$0xff]
        %v2511 = vld [vmem:[%s200 + $0x4640] sm:$0xff]
        %v2512 = vld [vmem:[%s200 + $0x4648] sm:$0xff]
        %v2513 = vld [vmem:[%s200 + $0x4650] sm:$0xff]
        %v2514 = vld [vmem:[%s200 + $0x4658] sm:$0xff]
        %v2515 = vld [vmem:[%s200 + $0x4660] sm:$0xff]
        %v2516 = vld [vmem:[%s200 + $0x4668] sm:$0xff]
        %v2517 = vld [vmem:[%s200 + $0x4670] sm:$0xff]
        %v2518 = vld [vmem:[%s200 + $0x4678] sm:$0xff]
        %v2519 = vld [vmem:[%s200 + $0x4680] sm:$0xff]
        %v2520 = vld [vmem:[%s200 + $0x4688] sm:$0xff]
        %v2521 = vld [vmem:[%s200 + $0x4690] sm:$0xff]
        %v2522 = vld [vmem:[%s200 + $0x4698] sm:$0xff]
        %v2523 = vld [vmem:[%s200 + $0x46a0] sm:$0xff]
        %v2524 = vld [vmem:[%s200 + $0x46a8] sm:$0xff]
        %v2525 = vld [vmem:[%s200 + $0x46b0] sm:$0xff]
        %v2526 = vld [vmem:[%s200 + $0x46b8] sm:$0xff]
        %v2527 = vld [vmem:[%s200 + $0x46c0] sm:$0xff]
        %v2528 = vld [vmem:[%s200 + $0x46c8] sm:$0xff]
        %v2529 = vld [vmem:[%s200 + $0x46d0] sm:$0xff]
        %v2530 = vld [vmem:[%s200 + $0x46d8] sm:$0xff]
        %v2531 = vld [vmem:[%s200 + $0x46e0] sm:$0xff]
        %v2532 = vld [vmem:[%s200 + $0x46e8] sm:$0xff]
        %v2533 = vld [vmem:[%s200 + $0x46f0] sm:$0xff]
        %v2534 = vld [vmem:[%s200 + $0x46f8] sm:$0xff]
        %v2535 = vld [vmem:[%s200 + $0x4700] sm:$0xff]
        %v2536 = vld [vmem:[%s200 + $0x4708] sm:$0xff]
        %v2537 = vld [vmem:[%s200 + $0x4710] sm:$0xff]
        %v2538 = vld [vmem:[%s200 + $0x4718] sm:$0xff]
        %v2539 = vld [vmem:[%s200 + $0x4720] sm:$0xff]
        %v2540 = vld [vmem:[%s200 + $0x4728] sm:$0xff]
        %v2541 = vld [vmem:[%s200 + $0x4730] sm:$0xff]
        %v2542 = vld [vmem:[%s200 + $0x4738] sm:$0xff]
        %v2543 = vld [vmem:[%s200 + $0x4740] sm:$0xff]
        %v2544 = vld [vmem:[%s200 + $0x4748] sm:$0xff]
        %v2545 = vld [vmem:[%s200 + $0x4750] sm:$0xff]
        %v2546 = vld [vmem:[%s200 + $0x4758] sm:$0xff]
        %v2547 = vld [vmem:[%s200 + $0x4760] sm:$0xff]
        %v2548 = vld [vmem:[%s200 + $0x4768] sm:$0xff]
        %v2549 = vld [vmem:[%s200 + $0x4770] sm:$0xff]
        %v2550 = vld [vmem:[%s200 + $0x4778] sm:$0xff]
        %v2551 = vld [vmem:[%s200 + $0x4780] sm:$0xff]
        %v2552 = vld [vmem:[%s200 + $0x4788] sm:$0xff]
        %v2553 = vld [vmem:[%s200 + $0x4790] sm:$0xff]
        %v2554 = vld [vmem:[%s200 + $0x4798] sm:$0xff]
        %v2555 = vld [vmem:[%s200 + $0x47a0] sm:$0xff]
        %v2556 = vld [vmem:[%s200 + $0x47a8] sm:$0xff]
        %v2557 = vld [vmem:[%s200 + $0x47b0] sm:$0xff]
        %v2558 = vld [vmem:[%s200 + $0x47b8] sm:$0xff]
        %v2559 = vld [vmem:[%s200 + $0x47c0] sm:$0xff]
        %v2560 = vld [vmem:[%s200 + $0x47c8] sm:$0xff]
        %v2561 = vld [vmem:[%s200 + $0x47d0] sm:$0xff]
        %v2562 = vld [vmem:[%s200 + $0x47d8] sm:$0xff]
        %v2563 = vld [vmem:[%s200 + $0x47e0] sm:$0xff]
        %v2564 = vld [vmem:[%s200 + $0x47e8] sm:$0xff]
        %v2565 = vld [vmem:[%s200 + $0x47f0] sm:$0xff]
        %v2566 = vld [vmem:[%s200 + $0x47f8] sm:$0xff]
        %v2567 = vld [vmem:[%s200 + $0x4800] sm:$0xff]
        %v2568 = vld [vmem:[%s200 + $0x4808] sm:$0xff]
        %v2569 = vld [vmem:[%s200 + $0x4810] sm:$0xff]
        %v2570 = vld [vmem:[%s200 + $0x4818] sm:$0xff]
        %v2571 = vld [vmem:[%s200 + $0x4820] sm:$0xff]
        %v2572 = vld [vmem:[%s200 + $0x4828] sm:$0xff]
        %v2573 = vld [vmem:[%s200 + $0x4830] sm:$0xff]
        %v2574 = vld [vmem:[%s200 + $0x4838] sm:$0xff]
        %v2575 = vld [vmem:[%s200 + $0x4840] sm:$0xff]
        %v2576 = vld [vmem:[%s200 + $0x4848] sm:$0xff]
        %v2577 = vld [vmem:[%s200 + $0x4850] sm:$0xff]
        %v2578 = vld [vmem:[%s200 + $0x4858] sm:$0xff]
        %v2579 = vld [vmem:[%s200 + $0x4860] sm:$0xff]
        %v2580 = vld [vmem:[%s200 + $0x4868] sm:$0xff]
        %v2581 = vld [vmem:[%s200 + $0x4870] sm:$0xff]
        %v2582 = vld [vmem:[%s200 + $0x4878] sm:$0xff]
        %v2583 = vld [vmem:[%s200 + $0x4880] sm:$0xff]
        %v2584 = vld [vmem:[%s200 + $0x4888] sm:$0xff]
        %v2585 = vld [vmem:[%s200 + $0x4890] sm:$0xff]
        %v2586 = vld [vmem:[%s200 + $0x4898] sm:$0xff]
        %v2587 = vld [vmem:[%s200 + $0x48a0] sm:$0xff]
        %v2588 = vld [vmem:[%s200 + $0x48a8] sm:$0xff]
        %v2589 = vld [vmem:[%s200 + $0x48b0] sm:$0xff]
        %v2590 = vld [vmem:[%s200 + $0x48b8] sm:$0xff]
        %v2591 = vld [vmem:[%s200 + $0x48c0] sm:$0xff]
        %v2592 = vld [vmem:[%s200 + $0x48c8] sm:$0xff]
        %v2593 = vld [vmem:[%s200 + $0x48d0] sm:$0xff]
        %v2594 = vld [vmem:[%s200 + $0x48d8] sm:$0xff]
        %v2595 = vld [vmem:[%s200 + $0x48e0] sm:$0xff]
        %v2596 = vld [vmem:[%s200 + $0x48e8] sm:$0xff]
        %v2597 = vld [vmem:[%s200 + $0x48f0] sm:$0xff]
        %v2598 = vld [vmem:[%s200 + $0x48f8] sm:$0xff]
        %v2599 = vld [vmem:[%s200 + $0x4900] sm:$0xff]
        %v2600 = vld [vmem:[%s200 + $0x4908] sm:$0xff]
        %v2601 = vld [vmem:[%s200 + $0x4910] sm:$0xff]
        %v2602 = vld [vmem:[%s200 + $0x4918] sm:$0xff]
        %v2603 = vld [vmem:[%s200 + $0x4920] sm:$0xff]
        %v2604 = vld [vmem:[%s200 + $0x4928] sm:$0xff]
        %v2605 = vld [vmem:[%s200 + $0x4930] sm:$0xff]
        %v2606 = vld [vmem:[%s200 + $0x4938] sm:$0xff]
        %v2607 = vld [vmem:[%s200 + $0x4940] sm:$0xff]
        %v2608 = vld [vmem:[%s200 + $0x4948] sm:$0xff]
        %v2609 = vld [vmem:[%s200 + $0x4950] sm:$0xff]
        %v2610 = vld [vmem:[%s200 + $0x4958] sm:$0xff]
        %v2611 = vld [vmem:[%s200 + $0x4960] sm:$0xff]
        %v2612 = vld [vmem:[%s200 + $0x4968] sm:$0xff]
        %v2613 = vld [vmem:[%s200 + $0x4970] sm:$0xff]
        %v2614 = vld [vmem:[%s200 + $0x4978] sm:$0xff]
        %v2615 = vld [vmem:[%s200 + $0x4980] sm:$0xff]
        %v2616 = vld [vmem:[%s200 + $0x4988] sm:$0xff]
        %v2617 = vld [vmem:[%s200 + $0x4990] sm:$0xff]
        %v2618 = vld [vmem:[%s200 + $0x4998] sm:$0xff]
        %v2619 = vld [vmem:[%s200 + $0x49a0] sm:$0xff]
        %v2620 = vld [vmem:[%s200 + $0x49a8] sm:$0xff]
        %v2621 = vld [vmem:[%s200 + $0x49b0] sm:$0xff]
        %v2622 = vld [vmem:[%s200 + $0x49b8] sm:$0xff]
        %v2623 = vld [vmem:[%s200 + $0x49c0] sm:$0xff]
        %v2624 = vld [vmem:[%s200 + $0x49c8] sm:$0xff]
        %v2625 = vld [vmem:[%s200 + $0x49d0] sm:$0xff]
        %v2626 = vld [vmem:[%s200 + $0x49d8] sm:$0xff]
        %v2627 = vld [vmem:[%s200 + $0x49e0] sm:$0xff]
        %v2628 = vld [vmem:[%s200 + $0x49e8] sm:$0xff]
        %v2629 = vld [vmem:[%s200 + $0x49f0] sm:$0xff]
        %v2630 = vld [vmem:[%s200 + $0x49f8] sm:$0xff]
        %v2631 = vld [vmem:[%s200 + $0x4a00] sm:$0xff]
        %v2632 = vld [vmem:[%s200 + $0x4a08] sm:$0xff]
        %v2633 = vld [vmem:[%s200 + $0x4a10] sm:$0xff]
        %v2634 = vld [vmem:[%s200 + $0x4a18] sm:$0xff]
        %v2635 = vld [vmem:[%s200 + $0x4a20] sm:$0xff]
        %v2636 = vld [vmem:[%s200 + $0x4a28] sm:$0xff]
        %v2637 = vld [vmem:[%s200 + $0x4a30] sm:$0xff]
        %v2638 = vld [vmem:[%s200 + $0x4a38] sm:$0xff]
        %v2639 = vld [vmem:[%s200 + $0x4a40] sm:$0xff]
        %v2640 = vld [vmem:[%s200 + $0x4a48] sm:$0xff]
        %v2641 = vld [vmem:[%s200 + $0x4a50] sm:$0xff]
        %v2642 = vld [vmem:[%s200 + $0x4a58] sm:$0xff]
        %v2643 = vld [vmem:[%s200 + $0x4a60] sm:$0xff]
        %v2644 = vld [vmem:[%s200 + $0x4a68] sm:$0xff]
        %v2645 = vld [vmem:[%s200 + $0x4a70] sm:$0xff]
        %v2646 = vld [vmem:[%s200 + $0x4a78] sm:$0xff]
        %v2647 = vld [vmem:[%s200 + $0x4a80] sm:$0xff]
        %v2648 = vld [vmem:[%s200 + $0x4a88] sm:$0xff]
        %v2649 = vld [vmem:[%s200 + $0x4a90] sm:$0xff]
        %v2650 = vld [vmem:[%s200 + $0x4a98] sm:$0xff]
        %v2651 = vld [vmem:[%s200 + $0x4aa0] sm:$0xff]
        %v2652 = vld [vmem:[%s200 + $0x4aa8] sm:$0xff]
        %v2653 = vld [vmem:[%s200 + $0x4ab0] sm:$0xff]
        %v2654 = vld [vmem:[%s200 + $0x4ab8] sm:$0xff]
        %v2655 = vld [vmem:[%s200 + $0x4ac0] sm:$0xff]
        %v2656 = vld [vmem:[%s200 + $0x4ac8] sm:$0xff]
        %v2657 = vld [vmem:[%s200 + $0x4ad0] sm:$0xff]
        %v2658 = vld [vmem:[%s200 + $0x4ad8] sm:$0xff]
        %v2659 = vld [vmem:[%s200 + $0x4ae0] sm:$0xff]
        %v2660 = vld [vmem:[%s200 + $0x4ae8] sm:$0xff]
        %v2661 = vld [vmem:[%s200 + $0x4af0] sm:$0xff]
        %v2662 = vld [vmem:[%s200 + $0x4af8] sm:$0xff]
        %v2663 = vld [vmem:[%s200 + $0x4b00] sm:$0xff]
        %v2664 = vld [vmem:[%s200 + $0x4b08] sm:$0xff]
        %v2665 = vld [vmem:[%s200 + $0x4b10] sm:$0xff]
        %v2666 = vld [vmem:[%s200 + $0x4b18] sm:$0xff]
        %v2667 = vld [vmem:[%s200 + $0x4b20] sm:$0xff]
        %v2668 = vld [vmem:[%s200 + $0x4b28] sm:$0xff]
        %v2669 = vld [vmem:[%s200 + $0x4b30] sm:$0xff]
        %v2670 = vld [vmem:[%s200 + $0x4b38] sm:$0xff]
        %v2671 = vld [vmem:[%s200 + $0x4b40] sm:$0xff]
        %v2672 = vld [vmem:[%s200 + $0x4b48] sm:$0xff]
        %v2673 = vld [vmem:[%s200 + $0x4b50] sm:$0xff]
        %v2674 = vld [vmem:[%s200 + $0x4b58] sm:$0xff]
        %v2675 = vld [vmem:[%s200 + $0x4b60] sm:$0xff]
        %v2676 = vld [vmem:[%s200 + $0x4b68] sm:$0xff]
        %v2677 = vld [vmem:[%s200 + $0x4b70] sm:$0xff]
        %v2678 = vld [vmem:[%s200 + $0x4b78] sm:$0xff]
        %v2679 = vld [vmem:[%s200 + $0x4b80] sm:$0xff]
        %v2680 = vld [vmem:[%s200 + $0x4b88] sm:$0xff]
        %v2681 = vld [vmem:[%s200 + $0x4b90] sm:$0xff]
        %v2682 = vld [vmem:[%s200 + $0x4b98] sm:$0xff]
        %v2683 = vld [vmem:[%s200 + $0x4ba0] sm:$0xff]
        %v2684 = vld [vmem:[%s200 + $0x4ba8] sm:$0xff]
        %v2685 = vld [vmem:[%s200 + $0x4bb0] sm:$0xff]
        %v2686 = vld [vmem:[%s200 + $0x4bb8] sm:$0xff]
        %v2687 = vld [vmem:[%s200 + $0x4bc0] sm:$0xff]
        %v2688 = vld [vmem:[%s200 + $0x4bc8] sm:$0xff]
        %v2689 = vld [vmem:[%s200 + $0x4bd0] sm:$0xff]
        %v2690 = vld [vmem:[%s200 + $0x4bd8] sm:$0xff]
        %v2691 = vld [vmem:[%s200 + $0x4be0] sm:$0xff]
        %v2692 = vld [vmem:[%s200 + $0x4be8] sm:$0xff]
        %v2693 = vld [vmem:[%s200 + $0x4bf0] sm:$0xff]
        %v2694 = vld [vmem:[%s200 + $0x4bf8] sm:$0xff]
        %v2695 = vld [vmem:[%s200 + $0x4c00] sm:$0xff]
        %v2696 = vld [vmem:[%s200 + $0x4c08] sm:$0xff]
        %v2697 = vld [vmem:[%s200 + $0x4c10] sm:$0xff]
        %v2698 = vld [vmem:[%s200 + $0x4c18] sm:$0xff]
        %v2699 = vld [vmem:[%s200 + $0x4c20] sm:$0xff]
        %v2700 = vld [vmem:[%s200 + $0x4c28] sm:$0xff]
        %v2701 = vld [vmem:[%s200 + $0x4c30] sm:$0xff]
        %v2702 = vld [vmem:[%s200 + $0x4c38] sm:$0xff]
        %v2703 = vld [vmem:[%s200 + $0x4c40] sm:$0xff]
        %v2704 = vld [vmem:[%s200 + $0x4c48] sm:$0xff]
        %v2705 = vld [vmem:[%s200 + $0x4c50] sm:$0xff]
        %v2706 = vld [vmem:[%s200 + $0x4c58] sm:$0xff]
        %v2707 = vld [vmem:[%s200 + $0x4c60] sm:$0xff]
        %v2708 = vld [vmem:[%s200 + $0x4c68] sm:$0xff]
        %v2709 = vld [vmem:[%s200 + $0x4c70] sm:$0xff]
        %v2710 = vld [vmem:[%s200 + $0x4c78] sm:$0xff]
        %v2711 = vld [vmem:[%s200 + $0x4c80] sm:$0xff]
        %v2712 = vld [vmem:[%s200 + $0x4c88] sm:$0xff]
        %v2713 = vld [vmem:[%s200 + $0x4c90] sm:$0xff]
        %v2714 = vld [vmem:[%s200 + $0x4c98] sm:$0xff]
        %v2715 = vld [vmem:[%s200 + $0x4ca0] sm:$0xff]
        %v2716 = vld [vmem:[%s200 + $0x4ca8] sm:$0xff]
        %v2717 = vld [vmem:[%s200 + $0x4cb0] sm:$0xff]
        %v2718 = vld [vmem:[%s200 + $0x4cb8] sm:$0xff]
        %v2719 = vld [vmem:[%s200 + $0x4cc0] sm:$0xff]
        %v2720 = vld [vmem:[%s200 + $0x4cc8] sm:$0xff]
        %v2721 = vld [vmem:[%s200 + $0x4cd0] sm:$0xff]
        %v2722 = vld [vmem:[%s200 + $0x4cd8] sm:$0xff]
        %v2723 = vld [vmem:[%s200 + $0x4ce0] sm:$0xff]
        %v2724 = vld [vmem:[%s200 + $0x4ce8] sm:$0xff]
        %v2725 = vld [vmem:[%s200 + $0x4cf0] sm:$0xff]
        %v2726 = vld [vmem:[%s200 + $0x4cf8] sm:$0xff]
        %v2727 = vld [vmem:[%s200 + $0x4d00] sm:$0xff]
        %v2728 = vld [vmem:[%s200 + $0x4d08] sm:$0xff]
        %v2729 = vld [vmem:[%s200 + $0x4d10] sm:$0xff]
        %v2730 = vld [vmem:[%s200 + $0x4d18] sm:$0xff]
        %v2731 = vld [vmem:[%s200 + $0x4d20] sm:$0xff]
        %v2732 = vld [vmem:[%s200 + $0x4d28] sm:$0xff]
        %v2733 = vld [vmem:[%s200 + $0x4d30] sm:$0xff]
        %v2734 = vld [vmem:[%s200 + $0x4d38] sm:$0xff]
        %v2735 = vld [vmem:[%s200 + $0x4d40] sm:$0xff]
        %v2736 = vld [vmem:[%s200 + $0x4d48] sm:$0xff]
        %v2737 = vld [vmem:[%s200 + $0x4d50] sm:$0xff]
        %v2738 = vld [vmem:[%s200 + $0x4d58] sm:$0xff]
        %v2739 = vld [vmem:[%s200 + $0x4d60] sm:$0xff]
        %v2740 = vld [vmem:[%s200 + $0x4d68] sm:$0xff]
        %v2741 = vld [vmem:[%s200 + $0x4d70] sm:$0xff]
        %v2742 = vld [vmem:[%s200 + $0x4d78] sm:$0xff]
        %v2743 = vld [vmem:[%s200 + $0x4d80] sm:$0xff]
        %v2744 = vld [vmem:[%s200 + $0x4d88] sm:$0xff]
        %v2745 = vld [vmem:[%s200 + $0x4d90] sm:$0xff]
        %v2746 = vld [vmem:[%s200 + $0x4d98] sm:$0xff]
        %v2747 = vld [vmem:[%s200 + $0x4da0] sm:$0xff]
        %v2748 = vld [vmem:[%s200 + $0x4da8] sm:$0xff]
        %v2749 = vld [vmem:[%s200 + $0x4db0] sm:$0xff]
        %v2750 = vld [vmem:[%s200 + $0x4db8] sm:$0xff]
        %v2751 = vld [vmem:[%s200 + $0x4dc0] sm:$0xff]
        %v2752 = vld [vmem:[%s200 + $0x4dc8] sm:$0xff]
        %v2753 = vld [vmem:[%s200 + $0x4dd0] sm:$0xff]
        %v2754 = vld [vmem:[%s200 + $0x4dd8] sm:$0xff]
        %v2755 = vld [vmem:[%s200 + $0x4de0] sm:$0xff]
        %v2756 = vld [vmem:[%s200 + $0x4de8] sm:$0xff]
        %v2757 = vld [vmem:[%s200 + $0x4df0] sm:$0xff]
        %v2758 = vld [vmem:[%s200 + $0x4df8] sm:$0xff]
        %v2759 = vld [vmem:[%s200 + $0x4e00] sm:$0xff]
        %v2760 = vld [vmem:[%s200 + $0x4e08] sm:$0xff]
        %v2761 = vld [vmem:[%s200 + $0x4e10] sm:$0xff]
        %v2762 = vld [vmem:[%s200 + $0x4e18] sm:$0xff]
        %v2763 = vld [vmem:[%s200 + $0x4e20] sm:$0xff]
        %v2764 = vld [vmem:[%s200 + $0x4e28] sm:$0xff]
        %v2765 = vld [vmem:[%s200 + $0x4e30] sm:$0xff]
        %v2766 = vld [vmem:[%s200 + $0x4e38] sm:$0xff]
        %v2767 = vld [vmem:[%s200 + $0x4e40] sm:$0xff]
        %v2768 = vld [vmem:[%s200 + $0x4e48] sm:$0xff]
        %v2769 = vld [vmem:[%s200 + $0x4e50] sm:$0xff]
        %v2770 = vld [vmem:[%s200 + $0x4e58] sm:$0xff]
        %v2771 = vld [vmem:[%s200 + $0x4e60] sm:$0xff]
        %v2772 = vld [vmem:[%s200 + $0x4e68] sm:$0xff]
        %v2773 = vld [vmem:[%s200 + $0x4e70] sm:$0xff]
        %v2774 = vld [vmem:[%s200 + $0x4e78] sm:$0xff]
        %v2775 = vld [vmem:[%s200 + $0x4e80] sm:$0xff]
        %v2776 = vld [vmem:[%s200 + $0x4e88] sm:$0xff]
        %v2777 = vld [vmem:[%s200 + $0x4e90] sm:$0xff]
        %v2778 = vld [vmem:[%s200 + $0x4e98] sm:$0xff]
        %v2779 = vld [vmem:[%s200 + $0x4ea0] sm:$0xff]
        %v2780 = vld [vmem:[%s200 + $0x4ea8] sm:$0xff]
        %v2781 = vld [vmem:[%s200 + $0x4eb0] sm:$0xff]
        %v2782 = vld [vmem:[%s200 + $0x4eb8] sm:$0xff]
        %v2783 = vld [vmem:[%s200 + $0x4ec0] sm:$0xff]
        %v2784 = vld [vmem:[%s200 + $0x4ec8] sm:$0xff]
        %v2785 = vld [vmem:[%s200 + $0x4ed0] sm:$0xff]
        %v2786 = vld [vmem:[%s200 + $0x4ed8] sm:$0xff]
        %v2787 = vld [vmem:[%s200 + $0x4ee0] sm:$0xff]
        %v2788 = vld [vmem:[%s200 + $0x4ee8] sm:$0xff]
        %v2789 = vld [vmem:[%s200 + $0x4ef0] sm:$0xff]
        %v2790 = vld [vmem:[%s200 + $0x4ef8] sm:$0xff]
        %v2791 = vld [vmem:[%s200 + $0x4f00] sm:$0xff]
        %v2792 = vld [vmem:[%s200 + $0x4f08] sm:$0xff]
        %v2793 = vld [vmem:[%s200 + $0x4f10] sm:$0xff]
        %v2794 = vld [vmem:[%s200 + $0x4f18] sm:$0xff]
        %v2795 = vld [vmem:[%s200 + $0x4f20] sm:$0xff]
        %v2796 = vld [vmem:[%s200 + $0x4f28] sm:$0xff]
        %v2797 = vld [vmem:[%s200 + $0x4f30] sm:$0xff]
        %v2798 = vld [vmem:[%s200 + $0x4f38] sm:$0xff]
        %v2799 = vld [vmem:[%s200 + $0x4f40] sm:$0xff]
        %v2800 = vld [vmem:[%s200 + $0x4f48] sm:$0xff]
        %v2801 = vld [vmem:[%s200 + $0x4f50] sm:$0xff]
        %v2802 = vld [vmem:[%s200 + $0x4f58] sm:$0xff]
        %v2803 = vld [vmem:[%s200 + $0x4f60] sm:$0xff]
        %v2804 = vld [vmem:[%s200 + $0x4f68] sm:$0xff]
        %v2805 = vld [vmem:[%s200 + $0x4f70] sm:$0xff]
        %v2806 = vld [vmem:[%s200 + $0x4f78] sm:$0xff]
        %v2807 = vld [vmem:[%s200 + $0x4f80] sm:$0xff]
        %v2808 = vld [vmem:[%s200 + $0x4f88] sm:$0xff]
        %v2809 = vld [vmem:[%s200 + $0x4f90] sm:$0xff]
        %v2810 = vld [vmem:[%s200 + $0x4f98] sm:$0xff]
        %v2811 = vld [vmem:[%s200 + $0x4fa0] sm:$0xff]
        %v2812 = vld [vmem:[%s200 + $0x4fa8] sm:$0xff]
        %v2813 = vld [vmem:[%s200 + $0x4fb0] sm:$0xff]
        %v2814 = vld [vmem:[%s200 + $0x4fb8] sm:$0xff]
        %v2815 = vld [vmem:[%s200 + $0x4fc0] sm:$0xff]
        %v2816 = vld [vmem:[%s200 + $0x4fc8] sm:$0xff]
        %v2817 = vld [vmem:[%s200 + $0x4fd0] sm:$0xff]
        %v2818 = vld [vmem:[%s200 + $0x4fd8] sm:$0xff]
        %v2819 = vld [vmem:[%s200 + $0x4fe0] sm:$0xff]
        %v2820 = vld [vmem:[%s200 + $0x4fe8] sm:$0xff]
        %v2821 = vld [vmem:[%s200 + $0x4ff0] sm:$0xff]
        %v2822 = vld [vmem:[%s200 + $0x4ff8] sm:$0xff]
        %v2823 = vld [vmem:[%s200 + $0x5000] sm:$0xff]
        %v2824 = vld [vmem:[%s200 + $0x5008] sm:$0xff]
        %v2825 = vld [vmem:[%s200 + $0x5010] sm:$0xff]
        %v2826 = vld [vmem:[%s200 + $0x5018] sm:$0xff]
        %v2827 = vld [vmem:[%s200 + $0x5020] sm:$0xff]
        %v2828 = vld [vmem:[%s200 + $0x5028] sm:$0xff]
        %v2829 = vld [vmem:[%s200 + $0x5030] sm:$0xff]
        %v2830 = vld [vmem:[%s200 + $0x5038] sm:$0xff]
        %v2831 = vld [vmem:[%s200 + $0x5040] sm:$0xff]
        %v2832 = vld [vmem:[%s200 + $0x5048] sm:$0xff]
        %v2833 = vld [vmem:[%s200 + $0x5050] sm:$0xff]
        %v2834 = vld [vmem:[%s200 + $0x5058] sm:$0xff]
        %v2835 = vld [vmem:[%s200 + $0x5060] sm:$0xff]
        %v2836 = vld [vmem:[%s200 + $0x5068] sm:$0xff]
        %v2837 = vld [vmem:[%s200 + $0x5070] sm:$0xff]
        %v2838 = vld [vmem:[%s200 + $0x5078] sm:$0xff]
        %v2839 = vld [vmem:[%s200 + $0x5080] sm:$0xff]
        %v2840 = vld [vmem:[%s200 + $0x5088] sm:$0xff]
        %v2841 = vld [vmem:[%s200 + $0x5090] sm:$0xff]
        %v2842 = vld [vmem:[%s200 + $0x5098] sm:$0xff]
        %v2843 = vld [vmem:[%s200 + $0x50a0] sm:$0xff]
        %v2844 = vld [vmem:[%s200 + $0x50a8] sm:$0xff]
        %v2845 = vld [vmem:[%s200 + $0x50b0] sm:$0xff]
        %v2846 = vld [vmem:[%s200 + $0x50b8] sm:$0xff]
        %v2847 = vld [vmem:[%s200 + $0x50c0] sm:$0xff]
        %v2848 = vld [vmem:[%s200 + $0x50c8] sm:$0xff]
        %v2849 = vld [vmem:[%s200 + $0x50d0] sm:$0xff]
        %v2850 = vld [vmem:[%s200 + $0x50d8] sm:$0xff]
        %v2851 = vld [vmem:[%s200 + $0x50e0] sm:$0xff]
        %v2852 = vld [vmem:[%s200 + $0x50e8] sm:$0xff]
        %v2853 = vld [vmem:[%s200 + $0x50f0] sm:$0xff]
        %v2854 = vld [vmem:[%s200 + $0x50f8] sm:$0xff]
        %v2855 = vld [vmem:[%s200 + $0x5100] sm:$0xff]
        %v2856 = vld [vmem:[%s200 + $0x5108] sm:$0xff]
        %v2857 = vld [vmem:[%s200 + $0x5110] sm:$0xff]
        %v2858 = vld [vmem:[%s200 + $0x5118] sm:$0xff]
        %v2859 = vld [vmem:[%s200 + $0x5120] sm:$0xff]
        %v2860 = vld [vmem:[%s200 + $0x5128] sm:$0xff]
        %v2861 = vld [vmem:[%s200 + $0x5130] sm:$0xff]
        %v2862 = vld [vmem:[%s200 + $0x5138] sm:$0xff]
        %v2863 = vld [vmem:[%s200 + $0x5140] sm:$0xff]
        %v2864 = vld [vmem:[%s200 + $0x5148] sm:$0xff]
        %v2865 = vld [vmem:[%s200 + $0x5150] sm:$0xff]
        %v2866 = vld [vmem:[%s200 + $0x5158] sm:$0xff]
        %v2867 = vld [vmem:[%s200 + $0x5160] sm:$0xff]
        %v2868 = vld [vmem:[%s200 + $0x5168] sm:$0xff]
        %v2869 = vld [vmem:[%s200 + $0x5170] sm:$0xff]
        %v2870 = vld [vmem:[%s200 + $0x5178] sm:$0xff]
        %v2871 = vld [vmem:[%s200 + $0x5180] sm:$0xff]
        %v2872 = vld [vmem:[%s200 + $0x5188] sm:$0xff]
        %v2873 = vld [vmem:[%s200 + $0x5190] sm:$0xff]
        %v2874 = vld [vmem:[%s200 + $0x5198] sm:$0xff]
        %v2875 = vld [vmem:[%s200 + $0x51a0] sm:$0xff]
        %v2876 = vld [vmem:[%s200 + $0x51a8] sm:$0xff]
        %v2877 = vld [vmem:[%s200 + $0x51b0] sm:$0xff]
        %v2878 = vld [vmem:[%s200 + $0x51b8] sm:$0xff]
        %v2879 = vld [vmem:[%s200 + $0x51c0] sm:$0xff]
        %v2880 = vld [vmem:[%s200 + $0x51c8] sm:$0xff]
        %v2881 = vld [vmem:[%s200 + $0x51d0] sm:$0xff]
        %v2882 = vld [vmem:[%s200 + $0x51d8] sm:$0xff]
        %v2883 = vld [vmem:[%s200 + $0x51e0] sm:$0xff]
        %v2884 = vld [vmem:[%s200 + $0x51e8] sm:$0xff]
        %v2885 = vld [vmem:[%s200 + $0x51f0] sm:$0xff]
        %v2886 = vld [vmem:[%s200 + $0x51f8] sm:$0xff]
        %v2887 = vld [vmem:[%s200 + $0x5200] sm:$0xff]
        %v2888 = vld [vmem:[%s200 + $0x5208] sm:$0xff]
        %v2889 = vld [vmem:[%s200 + $0x5210] sm:$0xff]
        %v2890 = vld [vmem:[%s200 + $0x5218] sm:$0xff]
        %v2891 = vld [vmem:[%s200 + $0x5220] sm:$0xff]
        %v2892 = vld [vmem:[%s200 + $0x5228] sm:$0xff]
        %v2893 = vld [vmem:[%s200 + $0x5230] sm:$0xff]
        %v2894 = vld [vmem:[%s200 + $0x5238] sm:$0xff]
        %v2895 = vld [vmem:[%s200 + $0x5240] sm:$0xff]
        %v2896 = vld [vmem:[%s200 + $0x5248] sm:$0xff]
        %v2897 = vld [vmem:[%s200 + $0x5250] sm:$0xff]
        %v2898 = vld [vmem:[%s200 + $0x5258] sm:$0xff]
        %v2899 = vld [vmem:[%s200 + $0x5260] sm:$0xff]
        %v2900 = vld [vmem:[%s200 + $0x5268] sm:$0xff]
        %v2901 = vld [vmem:[%s200 + $0x5270] sm:$0xff]
        %v2902 = vld [vmem:[%s200 + $0x5278] sm:$0xff]
        %v2903 = vld [vmem:[%s200 + $0x5280] sm:$0xff]
        %v2904 = vld [vmem:[%s200 + $0x5288] sm:$0xff]
        %v2905 = vld [vmem:[%s200 + $0x5290] sm:$0xff]
        %v2906 = vld [vmem:[%s200 + $0x5298] sm:$0xff]
        %v2907 = vld [vmem:[%s200 + $0x52a0] sm:$0xff]
        %v2908 = vld [vmem:[%s200 + $0x52a8] sm:$0xff]
        %v2909 = vld [vmem:[%s200 + $0x52b0] sm:$0xff]
        %v2910 = vld [vmem:[%s200 + $0x52b8] sm:$0xff]
        %v2911 = vld [vmem:[%s200 + $0x52c0] sm:$0xff]
        %v2912 = vld [vmem:[%s200 + $0x52c8] sm:$0xff]
        %v2913 = vld [vmem:[%s200 + $0x52d0] sm:$0xff]
        %v2914 = vld [vmem:[%s200 + $0x52d8] sm:$0xff]
        %v2915 = vld [vmem:[%s200 + $0x52e0] sm:$0xff]
        %v2916 = vld [vmem:[%s200 + $0x52e8] sm:$0xff]
        %v2917 = vld [vmem:[%s200 + $0x52f0] sm:$0xff]
        %v2918 = vld [vmem:[%s200 + $0x52f8] sm:$0xff]
        %v2919 = vld [vmem:[%s200 + $0x5300] sm:$0xff]
        %v2920 = vld [vmem:[%s200 + $0x5308] sm:$0xff]
        %v2921 = vld [vmem:[%s200 + $0x5310] sm:$0xff]
        %v2922 = vld [vmem:[%s200 + $0x5318] sm:$0xff]
        %v2923 = vld [vmem:[%s200 + $0x5320] sm:$0xff]
        %v2924 = vld [vmem:[%s200 + $0x5328] sm:$0xff]
        %v2925 = vld [vmem:[%s200 + $0x5330] sm:$0xff]
        %v2926 = vld [vmem:[%s200 + $0x5338] sm:$0xff]
        %v2927 = vld [vmem:[%s200 + $0x5340] sm:$0xff]
        %v2928 = vld [vmem:[%s200 + $0x5348] sm:$0xff]
        %v2929 = vld [vmem:[%s200 + $0x5350] sm:$0xff]
        %v2930 = vld [vmem:[%s200 + $0x5358] sm:$0xff]
        %v2931 = vld [vmem:[%s200 + $0x5360] sm:$0xff]
        %v2932 = vld [vmem:[%s200 + $0x5368] sm:$0xff]
        %v2933 = vld [vmem:[%s200 + $0x5370] sm:$0xff]
        %v2934 = vld [vmem:[%s200 + $0x5378] sm:$0xff]
        %v2935 = vld [vmem:[%s200 + $0x5380] sm:$0xff]
        %v2936 = vld [vmem:[%s200 + $0x5388] sm:$0xff]
        %v2937 = vld [vmem:[%s200 + $0x5390] sm:$0xff]
        %v2938 = vld [vmem:[%s200 + $0x5398] sm:$0xff]
        %v2939 = vld [vmem:[%s200 + $0x53a0] sm:$0xff]
        %v2940 = vld [vmem:[%s200 + $0x53a8] sm:$0xff]
        %v2941 = vld [vmem:[%s200 + $0x53b0] sm:$0xff]
        %v2942 = vld [vmem:[%s200 + $0x53b8] sm:$0xff]
        %v2943 = vld [vmem:[%s200 + $0x53c0] sm:$0xff]
        %v2944 = vld [vmem:[%s200 + $0x53c8] sm:$0xff]
        %v2945 = vld [vmem:[%s200 + $0x53d0] sm:$0xff]
        %v2946 = vld [vmem:[%s200 + $0x53d8] sm:$0xff]
        %v2947 = vld [vmem:[%s200 + $0x53e0] sm:$0xff]
        %v2948 = vld [vmem:[%s200 + $0x53e8] sm:$0xff]
        %v2949 = vld [vmem:[%s200 + $0x53f0] sm:$0xff]
        %v2950 = vld [vmem:[%s200 + $0x53f8] sm:$0xff]
        %v2951 = vld [vmem:[%s200 + $0x5400] sm:$0xff]
        %v2952 = vld [vmem:[%s200 + $0x5408] sm:$0xff]
        %v2953 = vld [vmem:[%s200 + $0x5410] sm:$0xff]
        %v2954 = vld [vmem:[%s200 + $0x5418] sm:$0xff]
        %v2955 = vld [vmem:[%s200 + $0x5420] sm:$0xff]
        %v2956 = vld [vmem:[%s200 + $0x5428] sm:$0xff]
        %v2957 = vld [vmem:[%s200 + $0x5430] sm:$0xff]
        %v2958 = vld [vmem:[%s200 + $0x5438] sm:$0xff]
        %v2959 = vld [vmem:[%s200 + $0x5440] sm:$0xff]
        %v2960 = vld [vmem:[%s200 + $0x5448] sm:$0xff]
        %v2961 = vld [vmem:[%s200 + $0x5450] sm:$0xff]
        %v2962 = vld [vmem:[%s200 + $0x5458] sm:$0xff]
        %v2963 = vld [vmem:[%s200 + $0x5460] sm:$0xff]
        %v2964 = vld [vmem:[%s200 + $0x5468] sm:$0xff]
        %v2965 = vld [vmem:[%s200 + $0x5470] sm:$0xff]
        %v2966 = vld [vmem:[%s200 + $0x5478] sm:$0xff]
        %v2967 = vld [vmem:[%s200 + $0x5480] sm:$0xff]
        %v2968 = vld [vmem:[%s200 + $0x5488] sm:$0xff]
        %v2969 = vld [vmem:[%s200 + $0x5490] sm:$0xff]
        %v2970 = vld [vmem:[%s200 + $0x5498] sm:$0xff]
        %v2971 = vld [vmem:[%s200 + $0x54a0] sm:$0xff]
        %v2972 = vld [vmem:[%s200 + $0x54a8] sm:$0xff]
        %v2973 = vld [vmem:[%s200 + $0x54b0] sm:$0xff]
        %v2974 = vld [vmem:[%s200 + $0x54b8] sm:$0xff]
        %v2975 = vld [vmem:[%s200 + $0x54c0] sm:$0xff]
        %v2976 = vld [vmem:[%s200 + $0x54c8] sm:$0xff]
        %v2977 = vld [vmem:[%s200 + $0x54d0] sm:$0xff]
        %v2978 = vld [vmem:[%s200 + $0x54d8] sm:$0xff]
        %v2979 = vld [vmem:[%s200 + $0x54e0] sm:$0xff]
        %v2980 = vld [vmem:[%s200 + $0x54e8] sm:$0xff]
        %v2981 = vld [vmem:[%s200 + $0x54f0] sm:$0xff]
        %v2982 = vld [vmem:[%s200 + $0x54f8] sm:$0xff]
        %v2983 = vld [vmem:[%s200 + $0x5500] sm:$0xff]
        %v2984 = vld [vmem:[%s200 + $0x5508] sm:$0xff]
        %v2985 = vld [vmem:[%s200 + $0x5510] sm:$0xff]
        %v2986 = vld [vmem:[%s200 + $0x5518] sm:$0xff]
        %v2987 = vld [vmem:[%s200 + $0x5520] sm:$0xff]
        %v2988 = vld [vmem:[%s200 + $0x5528] sm:$0xff]
        %v2989 = vld [vmem:[%s200 + $0x5530] sm:$0xff]
        %v2990 = vld [vmem:[%s200 + $0x5538] sm:$0xff]
        %v2991 = vld [vmem:[%s200 + $0x5540] sm:$0xff]
        %v2992 = vld [vmem:[%s200 + $0x5548] sm:$0xff]
        %v2993 = vld [vmem:[%s200 + $0x5550] sm:$0xff]
        %v2994 = vld [vmem:[%s200 + $0x5558] sm:$0xff]
        %v2995 = vld [vmem:[%s200 + $0x5560] sm:$0xff]
        %v2996 = vld [vmem:[%s200 + $0x5568] sm:$0xff]
        %v2997 = vld [vmem:[%s200 + $0x5570] sm:$0xff]
        %v2998 = vld [vmem:[%s200 + $0x5578] sm:$0xff]
        %v2999 = vld [vmem:[%s200 + $0x5580] sm:$0xff]
        %v3000 = vld [vmem:[%s200 + $0x5588] sm:$0xff]
        %v3001 = vld [vmem:[%s200 + $0x5590] sm:$0xff]
        %v3002 = vld [vmem:[%s200 + $0x5598] sm:$0xff]
        %v3003 = vld [vmem:[%s200 + $0x55a0] sm:$0xff]
        %v3004 = vld [vmem:[%s200 + $0x55a8] sm:$0xff]
        %v3005 = vld [vmem:[%s200 + $0x55b0] sm:$0xff]
        %v3006 = vld [vmem:[%s200 + $0x55b8] sm:$0xff]
        %v3007 = vld [vmem:[%s200 + $0x55c0] sm:$0xff]
        %v3008 = vld [vmem:[%s200 + $0x55c8] sm:$0xff]
        %v3009 = vld [vmem:[%s200 + $0x55d0] sm:$0xff]
        %v3010 = vld [vmem:[%s200 + $0x55d8] sm:$0xff]
        %v3011 = vld [vmem:[%s200 + $0x55e0] sm:$0xff]
        %v3012 = vld [vmem:[%s200 + $0x55e8] sm:$0xff]
        %v3013 = vld [vmem:[%s200 + $0x55f0] sm:$0xff]
        %v3014 = vld [vmem:[%s200 + $0x55f8] sm:$0xff]
        %v3015 = vld [vmem:[%s200 + $0x5600] sm:$0xff]
        %v3016 = vld [vmem:[%s200 + $0x5608] sm:$0xff]
        %v3017 = vld [vmem:[%s200 + $0x5610] sm:$0xff]
        %v3018 = vld [vmem:[%s200 + $0x5618] sm:$0xff]
        %v3019 = vld [vmem:[%s200 + $0x5620] sm:$0xff]
        %v3020 = vld [vmem:[%s200 + $0x5628] sm:$0xff]
        %v3021 = vld [vmem:[%s200 + $0x5630] sm:$0xff]
        %v3022 = vld [vmem:[%s200 + $0x5638] sm:$0xff]
        %v3023 = vld [vmem:[%s200 + $0x5640] sm:$0xff]
        %v3024 = vld [vmem:[%s200 + $0x5648] sm:$0xff]
        %v3025 = vld [vmem:[%s200 + $0x5650] sm:$0xff]
        %v3026 = vld [vmem:[%s200 + $0x5658] sm:$0xff]
        %v3027 = vld [vmem:[%s200 + $0x5660] sm:$0xff]
        %v3028 = vld [vmem:[%s200 + $0x5668] sm:$0xff]
        %v3029 = vld [vmem:[%s200 + $0x5670] sm:$0xff]
        %v3030 = vld [vmem:[%s200 + $0x5678] sm:$0xff]
        %v3031 = vld [vmem:[%s200 + $0x5680] sm:$0xff]
        %v3032 = vld [vmem:[%s200 + $0x5688] sm:$0xff]
        %v3033 = vld [vmem:[%s200 + $0x5690] sm:$0xff]
        %v3034 = vld [vmem:[%s200 + $0x5698] sm:$0xff]
        %v3035 = vld [vmem:[%s200 + $0x56a0] sm:$0xff]
        %v3036 = vld [vmem:[%s200 + $0x56a8] sm:$0xff]
        %v3037 = vld [vmem:[%s200 + $0x56b0] sm:$0xff]
        %v3038 = vld [vmem:[%s200 + $0x56b8] sm:$0xff]
        %v3039 = vld [vmem:[%s200 + $0x56c0] sm:$0xff]
        %v3040 = vld [vmem:[%s200 + $0x56c8] sm:$0xff]
        %v3041 = vld [vmem:[%s200 + $0x56d0] sm:$0xff]
        %v3042 = vld [vmem:[%s200 + $0x56d8] sm:$0xff]
        %v3043 = vld [vmem:[%s200 + $0x56e0] sm:$0xff]
        %v3044 = vld [vmem:[%s200 + $0x56e8] sm:$0xff]
        %v3045 = vld [vmem:[%s200 + $0x56f0] sm:$0xff]
        %v3046 = vld [vmem:[%s200 + $0x56f8] sm:$0xff]
        %v3047 = vld [vmem:[%s200 + $0x5700] sm:$0xff]
        %v3048 = vld [vmem:[%s200 + $0x5708] sm:$0xff]
        %v3049 = vld [vmem:[%s200 + $0x5710] sm:$0xff]
        %v3050 = vld [vmem:[%s200 + $0x5718] sm:$0xff]
        %v3051 = vld [vmem:[%s200 + $0x5720] sm:$0xff]
        %v3052 = vld [vmem:[%s200 + $0x5728] sm:$0xff]
        %v3053 = vld [vmem:[%s200 + $0x5730] sm:$0xff]
        %v3054 = vld [vmem:[%s200 + $0x5738] sm:$0xff]
        %v3055 = vld [vmem:[%s200 + $0x5740] sm:$0xff]
        %v3056 = vld [vmem:[%s200 + $0x5748] sm:$0xff]
        %v3057 = vld [vmem:[%s200 + $0x5750] sm:$0xff]
        %v3058 = vld [vmem:[%s200 + $0x5758] sm:$0xff]
        %v3059 = vld [vmem:[%s200 + $0x5760] sm:$0xff]
        %v3060 = vld [vmem:[%s200 + $0x5768] sm:$0xff]
        %v3061 = vld [vmem:[%s200 + $0x5770] sm:$0xff]
        %v3062 = vld [vmem:[%s200 + $0x5778] sm:$0xff]
        %v3063 = vld [vmem:[%s200 + $0x5780] sm:$0xff]
        %v3064 = vld [vmem:[%s200 + $0x5788] sm:$0xff]
        %v3065 = vld [vmem:[%s200 + $0x5790] sm:$0xff]
        %v3066 = vld [vmem:[%s200 + $0x5798] sm:$0xff]
        %v3067 = vld [vmem:[%s200 + $0x57a0] sm:$0xff]
        %v3068 = vld [vmem:[%s200 + $0x57a8] sm:$0xff]
        %v3069 = vld [vmem:[%s200 + $0x57b0] sm:$0xff]
        %v3070 = vld [vmem:[%s200 + $0x57b8] sm:$0xff]
        %v3071 = vld [vmem:[%s200 + $0x57c0] sm:$0xff]
        %v3072 = vld [vmem:[%s200 + $0x57c8] sm:$0xff]
        %v3073 = vld [vmem:[%s200 + $0x57d0] sm:$0xff]
        %v3074 = vld [vmem:[%s200 + $0x57d8] sm:$0xff]
        %v3075 = vld [vmem:[%s200 + $0x57e0] sm:$0xff]
        %v3076 = vld [vmem:[%s200 + $0x57e8] sm:$0xff]
        %v3077 = vld [vmem:[%s200 + $0x57f0] sm:$0xff]
        %v3078 = vld [vmem:[%s200 + $0x57f8] sm:$0xff]
        %v3079 = vld [vmem:[%s200 + $0x5800] sm:$0xff]
        %v3080 = vld [vmem:[%s200 + $0x5808] sm:$0xff]
        %v3081 = vld [vmem:[%s200 + $0x5810] sm:$0xff]
        %v3082 = vld [vmem:[%s200 + $0x5818] sm:$0xff]
        %v3083 = vld [vmem:[%s200 + $0x5820] sm:$0xff]
        %v3084 = vld [vmem:[%s200 + $0x5828] sm:$0xff]
        %v3085 = vld [vmem:[%s200 + $0x5830] sm:$0xff]
        %v3086 = vld [vmem:[%s200 + $0x5838] sm:$0xff]
        %v3087 = vld [vmem:[%s200 + $0x5840] sm:$0xff]
        %v3088 = vld [vmem:[%s200 + $0x5848] sm:$0xff]
        %v3089 = vld [vmem:[%s200 + $0x5850] sm:$0xff]
        %v3090 = vld [vmem:[%s200 + $0x5858] sm:$0xff]
        %v3091 = vld [vmem:[%s200 + $0x5860] sm:$0xff]
        %v3092 = vld [vmem:[%s200 + $0x5868] sm:$0xff]
        %v3093 = vld [vmem:[%s200 + $0x5870] sm:$0xff]
        %v3094 = vld [vmem:[%s200 + $0x5878] sm:$0xff]
        %v3095 = vld [vmem:[%s200 + $0x5880] sm:$0xff]
        %v3096 = vld [vmem:[%s200 + $0x5888] sm:$0xff]
        %v3097 = vld [vmem:[%s200 + $0x5890] sm:$0xff]
        %v3098 = vld [vmem:[%s200 + $0x5898] sm:$0xff]
        %v3099 = vld [vmem:[%s200 + $0x58a0] sm:$0xff]
        %v3100 = vld [vmem:[%s200 + $0x58a8] sm:$0xff]
        %v3101 = vld [vmem:[%s200 + $0x58b0] sm:$0xff]
        %v3102 = vld [vmem:[%s200 + $0x58b8] sm:$0xff]
        %v3103 = vld [vmem:[%s200 + $0x58c0] sm:$0xff]
        %v3104 = vld [vmem:[%s200 + $0x58c8] sm:$0xff]
        %v3105 = vld [vmem:[%s200 + $0x58d0] sm:$0xff]
        %v3106 = vld [vmem:[%s200 + $0x58d8] sm:$0xff]
        %v3107 = vld [vmem:[%s200 + $0x58e0] sm:$0xff]
        %v3108 = vld [vmem:[%s200 + $0x58e8] sm:$0xff]
        %v3109 = vld [vmem:[%s200 + $0x58f0] sm:$0xff]
        %v3110 = vld [vmem:[%s200 + $0x58f8] sm:$0xff]
        %v3111 = vld [vmem:[%s200 + $0x5900] sm:$0xff]
        %v3112 = vld [vmem:[%s200 + $0x5908] sm:$0xff]
        %v3113 = vld [vmem:[%s200 + $0x5910] sm:$0xff]
        %v3114 = vld [vmem:[%s200 + $0x5918] sm:$0xff]
        %v3115 = vld [vmem:[%s200 + $0x5920] sm:$0xff]
        %v3116 = vld [vmem:[%s200 + $0x5928] sm:$0xff]
        %v3117 = vld [vmem:[%s200 + $0x5930] sm:$0xff]
        %v3118 = vld [vmem:[%s200 + $0x5938] sm:$0xff]
        %v3119 = vld [vmem:[%s200 + $0x5940] sm:$0xff]
        %v3120 = vld [vmem:[%s200 + $0x5948] sm:$0xff]
        %v3121 = vld [vmem:[%s200 + $0x5950] sm:$0xff]
        %v3122 = vld [vmem:[%s200 + $0x5958] sm:$0xff]
        %v3123 = vld [vmem:[%s200 + $0x5960] sm:$0xff]
        %v3124 = vld [vmem:[%s200 + $0x5968] sm:$0xff]
        %v3125 = vld [vmem:[%s200 + $0x5970] sm:$0xff]
        %v3126 = vld [vmem:[%s200 + $0x5978] sm:$0xff]
        %v3127 = vld [vmem:[%s200 + $0x5980] sm:$0xff]
        %v3128 = vld [vmem:[%s200 + $0x5988] sm:$0xff]
        %v3129 = vld [vmem:[%s200 + $0x5990] sm:$0xff]
        %v3130 = vld [vmem:[%s200 + $0x5998] sm:$0xff]
        %v3131 = vld [vmem:[%s200 + $0x59a0] sm:$0xff]
        %v3132 = vld [vmem:[%s200 + $0x59a8] sm:$0xff]
        %v3133 = vld [vmem:[%s200 + $0x59b0] sm:$0xff]
        %v3134 = vld [vmem:[%s200 + $0x59b8] sm:$0xff]
        %v3135 = vld [vmem:[%s200 + $0x59c0] sm:$0xff]
        %v3136 = vld [vmem:[%s200 + $0x59c8] sm:$0xff]
        %v3137 = vld [vmem:[%s200 + $0x59d0] sm:$0xff]
        %v3138 = vld [vmem:[%s200 + $0x59d8] sm:$0xff]
        %v3139 = vld [vmem:[%s200 + $0x59e0] sm:$0xff]
        %v3140 = vld [vmem:[%s200 + $0x59e8] sm:$0xff]
        %v3141 = vld [vmem:[%s200 + $0x59f0] sm:$0xff]
        %v3142 = vld [vmem:[%s200 + $0x59f8] sm:$0xff]
        %v3143 = vld [vmem:[%s200 + $0x5a00] sm:$0xff]
        %v3144 = vld [vmem:[%s200 + $0x5a08] sm:$0xff]
        %v3145 = vld [vmem:[%s200 + $0x5a10] sm:$0xff]
        %v3146 = vld [vmem:[%s200 + $0x5a18] sm:$0xff]
        %v3147 = vld [vmem:[%s200 + $0x5a20] sm:$0xff]
        %v3148 = vld [vmem:[%s200 + $0x5a28] sm:$0xff]
        %v3149 = vld [vmem:[%s200 + $0x5a30] sm:$0xff]
        %v3150 = vld [vmem:[%s200 + $0x5a38] sm:$0xff]
        %v3151 = vld [vmem:[%s200 + $0x5a40] sm:$0xff]
        %v3152 = vld [vmem:[%s200 + $0x5a48] sm:$0xff]
        %v3153 = vld [vmem:[%s200 + $0x5a50] sm:$0xff]
        %v3154 = vld [vmem:[%s200 + $0x5a58] sm:$0xff]
        %v3155 = vld [vmem:[%s200 + $0x5a60] sm:$0xff]
        %v3156 = vld [vmem:[%s200 + $0x5a68] sm:$0xff]
        %v3157 = vld [vmem:[%s200 + $0x5a70] sm:$0xff]
        %v3158 = vld [vmem:[%s200 + $0x5a78] sm:$0xff]
        %v3159 = vld [vmem:[%s200 + $0x5a80] sm:$0xff]
        %v3160 = vld [vmem:[%s200 + $0x5a88] sm:$0xff]
        %v3161 = vld [vmem:[%s200 + $0x5a90] sm:$0xff]
        %v3162 = vld [vmem:[%s200 + $0x5a98] sm:$0xff]
        %v3163 = vld [vmem:[%s200 + $0x5aa0] sm:$0xff]
        %v3164 = vld [vmem:[%s200 + $0x5aa8] sm:$0xff]
        %v3165 = vld [vmem:[%s200 + $0x5ab0] sm:$0xff]
        %v3166 = vld [vmem:[%s200 + $0x5ab8] sm:$0xff]
        %v3167 = vld [vmem:[%s200 + $0x5ac0] sm:$0xff]
        %v3168 = vld [vmem:[%s200 + $0x5ac8] sm:$0xff]
        %v3169 = vld [vmem:[%s200 + $0x5ad0] sm:$0xff]
        %v3170 = vld [vmem:[%s200 + $0x5ad8] sm:$0xff]
        %v3171 = vld [vmem:[%s200 + $0x5ae0] sm:$0xff]
        %v3172 = vld [vmem:[%s200 + $0x5ae8] sm:$0xff]
        %v3173 = vld [vmem:[%s200 + $0x5af0] sm:$0xff]
        %v3174 = vld [vmem:[%s200 + $0x5af8] sm:$0xff]
        %v3175 = vld [vmem:[%s200 + $0x5b00] sm:$0xff]
        %v3176 = vld [vmem:[%s200 + $0x5b08] sm:$0xff]
        %v3177 = vld [vmem:[%s200 + $0x5b10] sm:$0xff]
        %v3178 = vld [vmem:[%s200 + $0x5b18] sm:$0xff]
        %v3179 = vld [vmem:[%s200 + $0x5b20] sm:$0xff]
        %v3180 = vld [vmem:[%s200 + $0x5b28] sm:$0xff]
        %v3181 = vld [vmem:[%s200 + $0x5b30] sm:$0xff]
        %v3182 = vld [vmem:[%s200 + $0x5b38] sm:$0xff]
        %v3183 = vld [vmem:[%s200 + $0x5b40] sm:$0xff]
        %v3184 = vld [vmem:[%s200 + $0x5b48] sm:$0xff]
        %v3185 = vld [vmem:[%s200 + $0x5b50] sm:$0xff]
        %v3186 = vld [vmem:[%s200 + $0x5b58] sm:$0xff]
        %v3187 = vld [vmem:[%s200 + $0x5b60] sm:$0xff]
        %v3188 = vld [vmem:[%s200 + $0x5b68] sm:$0xff]
        %v3189 = vld [vmem:[%s200 + $0x5b70] sm:$0xff]
        %v3190 = vld [vmem:[%s200 + $0x5b78] sm:$0xff]
        %v3191 = vld [vmem:[%s200 + $0x5b80] sm:$0xff]
        %v3192 = vld [vmem:[%s200 + $0x5b88] sm:$0xff]
        %v3193 = vld [vmem:[%s200 + $0x5b90] sm:$0xff]
        %v3194 = vld [vmem:[%s200 + $0x5b98] sm:$0xff]
        %v3195 = vld [vmem:[%s200 + $0x5ba0] sm:$0xff]
        %v3196 = vld [vmem:[%s200 + $0x5ba8] sm:$0xff]
        %v3197 = vld [vmem:[%s200 + $0x5bb0] sm:$0xff]
        %v3198 = vld [vmem:[%s200 + $0x5bb8] sm:$0xff]
        %v3199 = vld [vmem:[%s200 + $0x5bc0] sm:$0xff]
        %v3200 = vld [vmem:[%s200 + $0x5bc8] sm:$0xff]
        %v3201 = vld [vmem:[%s200 + $0x5bd0] sm:$0xff]
        %v3202 = vld [vmem:[%s200 + $0x5bd8] sm:$0xff]
        %v3203 = vld [vmem:[%s200 + $0x5be0] sm:$0xff]
        %v3204 = vld [vmem:[%s200 + $0x5be8] sm:$0xff]
        %v3205 = vld [vmem:[%s200 + $0x5bf0] sm:$0xff]
        %v3206 = vld [vmem:[%s200 + $0x5bf8] sm:$0xff]
        %v3207 = vld [vmem:[%s200 + $0x5c00] sm:$0xff]
        %v3208 = vld [vmem:[%s200 + $0x5c08] sm:$0xff]
        %v3209 = vld [vmem:[%s200 + $0x5c10] sm:$0xff]
        %v3210 = vld [vmem:[%s200 + $0x5c18] sm:$0xff]
        %v3211 = vld [vmem:[%s200 + $0x5c20] sm:$0xff]
        %v3212 = vld [vmem:[%s200 + $0x5c28] sm:$0xff]
        %v3213 = vld [vmem:[%s200 + $0x5c30] sm:$0xff]
        %v3214 = vld [vmem:[%s200 + $0x5c38] sm:$0xff]
        %v3215 = vld [vmem:[%s200 + $0x5c40] sm:$0xff]
        %v3216 = vld [vmem:[%s200 + $0x5c48] sm:$0xff]
        %v3217 = vld [vmem:[%s200 + $0x5c50] sm:$0xff]
        %v3218 = vld [vmem:[%s200 + $0x5c58] sm:$0xff]
        %v3219 = vld [vmem:[%s200 + $0x5c60] sm:$0xff]
        %v3220 = vld [vmem:[%s200 + $0x5c68] sm:$0xff]
        %v3221 = vld [vmem:[%s200 + $0x5c70] sm:$0xff]
        %v3222 = vld [vmem:[%s200 + $0x5c78] sm:$0xff]
        %v3223 = vld [vmem:[%s200 + $0x5c80] sm:$0xff]
        %v3224 = vld [vmem:[%s200 + $0x5c88] sm:$0xff]
        %v3225 = vld [vmem:[%s200 + $0x5c90] sm:$0xff]
        %v3226 = vld [vmem:[%s200 + $0x5c98] sm:$0xff]
        %v3227 = vld [vmem:[%s200 + $0x5ca0] sm:$0xff]
        %v3228 = vld [vmem:[%s200 + $0x5ca8] sm:$0xff]
        %v3229 = vld [vmem:[%s200 + $0x5cb0] sm:$0xff]
        %v3230 = vld [vmem:[%s200 + $0x5cb8] sm:$0xff]
        %v3231 = vld [vmem:[%s200 + $0x5cc0] sm:$0xff]
        %v3232 = vld [vmem:[%s200 + $0x5cc8] sm:$0xff]
        %v3233 = vld [vmem:[%s200 + $0x5cd0] sm:$0xff]
        %v3234 = vld [vmem:[%s200 + $0x5cd8] sm:$0xff]
        %v3235 = vld [vmem:[%s200 + $0x5ce0] sm:$0xff]
        %v3236 = vld [vmem:[%s200 + $0x5ce8] sm:$0xff]
        %v3237 = vld [vmem:[%s200 + $0x5cf0] sm:$0xff]
        %v3238 = vld [vmem:[%s200 + $0x5cf8] sm:$0xff]
        %v3239 = vld [vmem:[%s200 + $0x5d00] sm:$0xff]
        %v3240 = vld [vmem:[%s200 + $0x5d08] sm:$0xff]
        %v3241 = vld [vmem:[%s200 + $0x5d10] sm:$0xff]
        %v3242 = vld [vmem:[%s200 + $0x5d18] sm:$0xff]
        %v3243 = vld [vmem:[%s200 + $0x5d20] sm:$0xff]
        %v3244 = vld [vmem:[%s200 + $0x5d28] sm:$0xff]
        %v3245 = vld [vmem:[%s200 + $0x5d30] sm:$0xff]
        %v3246 = vld [vmem:[%s200 + $0x5d38] sm:$0xff]
        %v3247 = vld [vmem:[%s200 + $0x5d40] sm:$0xff]
        %v3248 = vld [vmem:[%s200 + $0x5d48] sm:$0xff]
        %v3249 = vld [vmem:[%s200 + $0x5d50] sm:$0xff]
        %v3250 = vld [vmem:[%s200 + $0x5d58] sm:$0xff]
        %v3251 = vld [vmem:[%s200 + $0x5d60] sm:$0xff]
        %v3252 = vld [vmem:[%s200 + $0x5d68] sm:$0xff]
        %v3253 = vld [vmem:[%s200 + $0x5d70] sm:$0xff]
        %v3254 = vld [vmem:[%s200 + $0x5d78] sm:$0xff]
        %v3255 = vld [vmem:[%s200 + $0x5d80] sm:$0xff]
        %v3256 = vld [vmem:[%s200 + $0x5d88] sm:$0xff]
        %v3257 = vld [vmem:[%s200 + $0x5d90] sm:$0xff]
        %v3258 = vld [vmem:[%s200 + $0x5d98] sm:$0xff]
        %v3259 = vld [vmem:[%s200 + $0x5da0] sm:$0xff]
        %v3260 = vld [vmem:[%s200 + $0x5da8] sm:$0xff]
        %v3261 = vld [vmem:[%s200 + $0x5db0] sm:$0xff]
        %v3262 = vld [vmem:[%s200 + $0x5db8] sm:$0xff]
        %v3263 = vld [vmem:[%s200 + $0x5dc0] sm:$0xff]
        %v3264 = vld [vmem:[%s200 + $0x5dc8] sm:$0xff]
        %v3265 = vld [vmem:[%s200 + $0x5dd0] sm:$0xff]
        %v3266 = vld [vmem:[%s200 + $0x5dd8] sm:$0xff]
        %v3267 = vld [vmem:[%s200 + $0x5de0] sm:$0xff]
        %v3268 = vld [vmem:[%s200 + $0x5de8] sm:$0xff]
        %v3269 = vld [vmem:[%s200 + $0x5df0] sm:$0xff]
        %v3270 = vld [vmem:[%s200 + $0x5df8] sm:$0xff]
        %v3271 = vld [vmem:[%s200 + $0x5e00] sm:$0xff]
        %v3272 = vld [vmem:[%s200 + $0x5e08] sm:$0xff]
        %v3273 = vld [vmem:[%s200 + $0x5e10] sm:$0xff]
        %v3274 = vld [vmem:[%s200 + $0x5e18] sm:$0xff]
        %v3275 = vld [vmem:[%s200 + $0x5e20] sm:$0xff]
        %v3276 = vld [vmem:[%s200 + $0x5e28] sm:$0xff]
        %v3277 = vld [vmem:[%s200 + $0x5e30] sm:$0xff]
        %v3278 = vld [vmem:[%s200 + $0x5e38] sm:$0xff]
        %v3279 = vld [vmem:[%s200 + $0x5e40] sm:$0xff]
        %v3280 = vld [vmem:[%s200 + $0x5e48] sm:$0xff]
        %v3281 = vld [vmem:[%s200 + $0x5e50] sm:$0xff]
        %v3282 = vld [vmem:[%s200 + $0x5e58] sm:$0xff]
        %v3283 = vld [vmem:[%s200 + $0x5e60] sm:$0xff]
        %v3284 = vld [vmem:[%s200 + $0x5e68] sm:$0xff]
        %v3285 = vld [vmem:[%s200 + $0x5e70] sm:$0xff]
        %v3286 = vld [vmem:[%s200 + $0x5e78] sm:$0xff]
        %v3287 = vld [vmem:[%s200 + $0x5e80] sm:$0xff]
        %v3288 = vld [vmem:[%s200 + $0x5e88] sm:$0xff]
        %v3289 = vld [vmem:[%s200 + $0x5e90] sm:$0xff]
        %v3290 = vld [vmem:[%s200 + $0x5e98] sm:$0xff]
        %v3291 = vld [vmem:[%s200 + $0x5ea0] sm:$0xff]
        %v3292 = vld [vmem:[%s200 + $0x5ea8] sm:$0xff]
        %v3293 = vld [vmem:[%s200 + $0x5eb0] sm:$0xff]
        %v3294 = vld [vmem:[%s200 + $0x5eb8] sm:$0xff]
        %v3295 = vld [vmem:[%s200 + $0x5ec0] sm:$0xff]
        %v3296 = vld [vmem:[%s200 + $0x5ec8] sm:$0xff]
        %v3297 = vld [vmem:[%s200 + $0x5ed0] sm:$0xff]
        %v3298 = vld [vmem:[%s200 + $0x5ed8] sm:$0xff]
        %v3299 = vld [vmem:[%s200 + $0x5ee0] sm:$0xff]
        %v3300 = vld [vmem:[%s200 + $0x5ee8] sm:$0xff]
        %v3301 = vld [vmem:[%s200 + $0x5ef0] sm:$0xff]
        %v3302 = vld [vmem:[%s200 + $0x5ef8] sm:$0xff]
        %v3303 = vld [vmem:[%s200 + $0x5f00] sm:$0xff]
        %v3304 = vld [vmem:[%s200 + $0x5f08] sm:$0xff]
        %v3305 = vld [vmem:[%s200 + $0x5f10] sm:$0xff]
        %v3306 = vld [vmem:[%s200 + $0x5f18] sm:$0xff]
        %v3307 = vld [vmem:[%s200 + $0x5f20] sm:$0xff]
        %v3308 = vld [vmem:[%s200 + $0x5f28] sm:$0xff]
        %v3309 = vld [vmem:[%s200 + $0x5f30] sm:$0xff]
        %v3310 = vld [vmem:[%s200 + $0x5f38] sm:$0xff]
        %v3311 = vld [vmem:[%s200 + $0x5f40] sm:$0xff]
        %v3312 = vld [vmem:[%s200 + $0x5f48] sm:$0xff]
        %v3313 = vld [vmem:[%s200 + $0x5f50] sm:$0xff]
        %v3314 = vld [vmem:[%s200 + $0x5f58] sm:$0xff]
        %v3315 = vld [vmem:[%s200 + $0x5f60] sm:$0xff]
        %v3316 = vld [vmem:[%s200 + $0x5f68] sm:$0xff]
        %v3317 = vld [vmem:[%s200 + $0x5f70] sm:$0xff]
        %v3318 = vld [vmem:[%s200 + $0x5f78] sm:$0xff]
        %v3319 = vld [vmem:[%s200 + $0x5f80] sm:$0xff]
        %v3320 = vld [vmem:[%s200 + $0x5f88] sm:$0xff]
        %v3321 = vld [vmem:[%s200 + $0x5f90] sm:$0xff]
        %v3322 = vld [vmem:[%s200 + $0x5f98] sm:$0xff]
        %v3323 = vld [vmem:[%s200 + $0x5fa0] sm:$0xff]
        %v3324 = vld [vmem:[%s200 + $0x5fa8] sm:$0xff]
        %v3325 = vld [vmem:[%s200 + $0x5fb0] sm:$0xff]
        %v3326 = vld [vmem:[%s200 + $0x5fb8] sm:$0xff]
        %v3327 = vld [vmem:[%s200 + $0x5fc0] sm:$0xff]
        %v3328 = vld [vmem:[%s200 + $0x5fc8] sm:$0xff]
        %v3329 = vld [vmem:[%s200 + $0x5fd0] sm:$0xff]
        %v3330 = vld [vmem:[%s200 + $0x5fd8] sm:$0xff]
        %v3331 = vld [vmem:[%s200 + $0x5fe0] sm:$0xff]
        %v3332 = vld [vmem:[%s200 + $0x5fe8] sm:$0xff]
        %v3333 = vld [vmem:[%s200 + $0x5ff0] sm:$0xff]
        %v3334 = vld [vmem:[%s200 + $0x5ff8] sm:$0xff]
        %v3335 = vld [vmem:[%s200 + $0x6000] sm:$0xff]
        %v3336 = vld [vmem:[%s200 + $0x6008] sm:$0xff]
        %v3337 = vld [vmem:[%s200 + $0x6010] sm:$0xff]
        %v3338 = vld [vmem:[%s200 + $0x6018] sm:$0xff]
        %v3339 = vld [vmem:[%s200 + $0x6020] sm:$0xff]
        %v3340 = vld [vmem:[%s200 + $0x6028] sm:$0xff]
        %v3341 = vld [vmem:[%s200 + $0x6030] sm:$0xff]
        %v3342 = vld [vmem:[%s200 + $0x6038] sm:$0xff]
        %v3343 = vld [vmem:[%s200 + $0x6040] sm:$0xff]
        %v3344 = vld [vmem:[%s200 + $0x6048] sm:$0xff]
        %v3345 = vld [vmem:[%s200 + $0x6050] sm:$0xff]
        %v3346 = vld [vmem:[%s200 + $0x6058] sm:$0xff]
        %v3347 = vld [vmem:[%s200 + $0x6060] sm:$0xff]
        %v3348 = vld [vmem:[%s200 + $0x6068] sm:$0xff]
        %v3349 = vld [vmem:[%s200 + $0x6070] sm:$0xff]
        %v3350 = vld [vmem:[%s200 + $0x6078] sm:$0xff]
        %v3351 = vld [vmem:[%s200 + $0x6080] sm:$0xff]
        %v3352 = vld [vmem:[%s200 + $0x6088] sm:$0xff]
        %v3353 = vld [vmem:[%s200 + $0x6090] sm:$0xff]
        %v3354 = vld [vmem:[%s200 + $0x6098] sm:$0xff]
        %v3355 = vld [vmem:[%s200 + $0x60a0] sm:$0xff]
        %v3356 = vld [vmem:[%s200 + $0x60a8] sm:$0xff]
        %v3357 = vld [vmem:[%s200 + $0x60b0] sm:$0xff]
        %v3358 = vld [vmem:[%s200 + $0x60b8] sm:$0xff]
        %v3359 = vld [vmem:[%s200 + $0x60c0] sm:$0xff]
        %v3360 = vld [vmem:[%s200 + $0x60c8] sm:$0xff]
        %v3361 = vld [vmem:[%s200 + $0x60d0] sm:$0xff]
        %v3362 = vld [vmem:[%s200 + $0x60d8] sm:$0xff]
        %v3363 = vld [vmem:[%s200 + $0x60e0] sm:$0xff]
        %v3364 = vld [vmem:[%s200 + $0x60e8] sm:$0xff]
        %v3365 = vld [vmem:[%s200 + $0x60f0] sm:$0xff]
        %v3366 = vld [vmem:[%s200 + $0x60f8] sm:$0xff]
        %v3367 = vld [vmem:[%s200 + $0x6100] sm:$0xff]
        %v3368 = vld [vmem:[%s200 + $0x6108] sm:$0xff]
        %v3369 = vld [vmem:[%s200 + $0x6110] sm:$0xff]
        %v3370 = vld [vmem:[%s200 + $0x6118] sm:$0xff]
        %v3371 = vld [vmem:[%s200 + $0x6120] sm:$0xff]
        %v3372 = vld [vmem:[%s200 + $0x6128] sm:$0xff]
        %v3373 = vld [vmem:[%s200 + $0x6130] sm:$0xff]
        %v3374 = vld [vmem:[%s200 + $0x6138] sm:$0xff]
        %v3375 = vld [vmem:[%s200 + $0x6140] sm:$0xff]
        %v3376 = vld [vmem:[%s200 + $0x6148] sm:$0xff]
        %v3377 = vld [vmem:[%s200 + $0x6150] sm:$0xff]
        %v3378 = vld [vmem:[%s200 + $0x6158] sm:$0xff]
        %v3379 = vld [vmem:[%s200 + $0x6160] sm:$0xff]
        %v3380 = vld [vmem:[%s200 + $0x6168] sm:$0xff]
        %v3381 = vld [vmem:[%s200 + $0x6170] sm:$0xff]
        %v3382 = vld [vmem:[%s200 + $0x6178] sm:$0xff]
        %v3383 = vld [vmem:[%s200 + $0x6180] sm:$0xff]
        %v3384 = vld [vmem:[%s200 + $0x6188] sm:$0xff]
        %v3385 = vld [vmem:[%s200 + $0x6190] sm:$0xff]
        %v3386 = vld [vmem:[%s200 + $0x6198] sm:$0xff]
        %v3387 = vld [vmem:[%s200 + $0x61a0] sm:$0xff]
        %v3388 = vld [vmem:[%s200 + $0x61a8] sm:$0xff]
        %v3389 = vld [vmem:[%s200 + $0x61b0] sm:$0xff]
        %v3390 = vld [vmem:[%s200 + $0x61b8] sm:$0xff]
        %v3391 = vld [vmem:[%s200 + $0x61c0] sm:$0xff]
        %v3392 = vld [vmem:[%s200 + $0x61c8] sm:$0xff]
        %v3393 = vld [vmem:[%s200 + $0x61d0] sm:$0xff]
        %v3394 = vld [vmem:[%s200 + $0x61d8] sm:$0xff]
        %v3395 = vld [vmem:[%s200 + $0x61e0] sm:$0xff]
        %v3396 = vld [vmem:[%s200 + $0x61e8] sm:$0xff]
        %v3397 = vld [vmem:[%s200 + $0x61f0] sm:$0xff]
        %v3398 = vld [vmem:[%s200 + $0x61f8] sm:$0xff]
        %v3399 = vld [vmem:[%s200 + $0x6200] sm:$0xff]
        %v3400 = vld [vmem:[%s200 + $0x6208] sm:$0xff]
        %v3401 = vld [vmem:[%s200 + $0x6210] sm:$0xff]
        %v3402 = vld [vmem:[%s200 + $0x6218] sm:$0xff]
        %v3403 = vld [vmem:[%s200 + $0x6220] sm:$0xff]
        %v3404 = vld [vmem:[%s200 + $0x6228] sm:$0xff]
        %v3405 = vld [vmem:[%s200 + $0x6230] sm:$0xff]
        %v3406 = vld [vmem:[%s200 + $0x6238] sm:$0xff]
        %v3407 = vld [vmem:[%s200 + $0x6240] sm:$0xff]
        %v3408 = vld [vmem:[%s200 + $0x6248] sm:$0xff]
        %v3409 = vld [vmem:[%s200 + $0x6250] sm:$0xff]
        %v3410 = vld [vmem:[%s200 + $0x6258] sm:$0xff]
        %v3411 = vld [vmem:[%s200 + $0x6260] sm:$0xff]
        %v3412 = vld [vmem:[%s200 + $0x6268] sm:$0xff]
        %v3413 = vld [vmem:[%s200 + $0x6270] sm:$0xff]
        %v3414 = vld [vmem:[%s200 + $0x6278] sm:$0xff]
        %v3415 = vld [vmem:[%s200 + $0x6280] sm:$0xff]
        %v3416 = vld [vmem:[%s200 + $0x6288] sm:$0xff]
        %v3417 = vld [vmem:[%s200 + $0x6290] sm:$0xff]
        %v3418 = vld [vmem:[%s200 + $0x6298] sm:$0xff]
        %v3419 = vld [vmem:[%s200 + $0x62a0] sm:$0xff]
        %v3420 = vld [vmem:[%s200 + $0x62a8] sm:$0xff]
        %v3421 = vld [vmem:[%s200 + $0x62b0] sm:$0xff]
        %v3422 = vld [vmem:[%s200 + $0x62b8] sm:$0xff]
        %v3423 = vld [vmem:[%s200 + $0x62c0] sm:$0xff]
        %v3424 = vld [vmem:[%s200 + $0x62c8] sm:$0xff]
        %v3425 = vld [vmem:[%s200 + $0x62d0] sm:$0xff]
        %v3426 = vld [vmem:[%s200 + $0x62d8] sm:$0xff]
        %v3427 = vld [vmem:[%s200 + $0x62e0] sm:$0xff]
        %v3428 = vld [vmem:[%s200 + $0x62e8] sm:$0xff]
        %v3429 = vld [vmem:[%s200 + $0x62f0] sm:$0xff]
        %v3430 = vld [vmem:[%s200 + $0x62f8] sm:$0xff]
        %v3431 = vld [vmem:[%s200 + $0x6300] sm:$0xff]
        %v3432 = vld [vmem:[%s200 + $0x6308] sm:$0xff]
        %v3433 = vld [vmem:[%s200 + $0x6310] sm:$0xff]
        %v3434 = vld [vmem:[%s200 + $0x6318] sm:$0xff]
        %v3435 = vld [vmem:[%s200 + $0x6320] sm:$0xff]
        %v3436 = vld [vmem:[%s200 + $0x6328] sm:$0xff]
        %v3437 = vld [vmem:[%s200 + $0x6330] sm:$0xff]
        %v3438 = vld [vmem:[%s200 + $0x6338] sm:$0xff]
        %v3439 = vld [vmem:[%s200 + $0x6340] sm:$0xff]
        %v3440 = vld [vmem:[%s200 + $0x6348] sm:$0xff]
        %v3441 = vld [vmem:[%s200 + $0x6350] sm:$0xff]
        %v3442 = vld [vmem:[%s200 + $0x6358] sm:$0xff]
        %v3443 = vld [vmem:[%s200 + $0x6360] sm:$0xff]
        %v3444 = vld [vmem:[%s200 + $0x6368] sm:$0xff]
        %v3445 = vld [vmem:[%s200 + $0x6370] sm:$0xff]
        %v3446 = vld [vmem:[%s200 + $0x6378] sm:$0xff]
        %v3447 = vld [vmem:[%s200 + $0x6380] sm:$0xff]
        %v3448 = vld [vmem:[%s200 + $0x6388] sm:$0xff]
        %v3449 = vld [vmem:[%s200 + $0x6390] sm:$0xff]
        %v3450 = vld [vmem:[%s200 + $0x6398] sm:$0xff]
        %v3451 = vld [vmem:[%s200 + $0x63a0] sm:$0xff]
        %v3452 = vld [vmem:[%s200 + $0x63a8] sm:$0xff]
        %v3453 = vld [vmem:[%s200 + $0x63b0] sm:$0xff]
        %v3454 = vld [vmem:[%s200 + $0x63b8] sm:$0xff]
        %v3455 = vld [vmem:[%s200 + $0x63c0] sm:$0xff]
        %v3456 = vld [vmem:[%s200 + $0x63c8] sm:$0xff]
        %v3457 = vld [vmem:[%s200 + $0x63d0] sm:$0xff]
        %v3458 = vld [vmem:[%s200 + $0x63d8] sm:$0xff]
        %v3459 = vld [vmem:[%s200 + $0x63e0] sm:$0xff]
        %v3460 = vld [vmem:[%s200 + $0x63e8] sm:$0xff]
        %v3461 = vld [vmem:[%s200 + $0x63f0] sm:$0xff]
        %v3462 = vld [vmem:[%s200 + $0x63f8] sm:$0xff]
        %v3463 = vld [vmem:[%s200 + $0x6400] sm:$0xff]
        %v3464 = vld [vmem:[%s200 + $0x6408] sm:$0xff]
        %v3465 = vld [vmem:[%s200 + $0x6410] sm:$0xff]
        %v3466 = vld [vmem:[%s200 + $0x6418] sm:$0xff]
        %v3467 = vld [vmem:[%s200 + $0x6420] sm:$0xff]
        %v3468 = vld [vmem:[%s200 + $0x6428] sm:$0xff]
        %v3469 = vld [vmem:[%s200 + $0x6430] sm:$0xff]
        %v3470 = vld [vmem:[%s200 + $0x6438] sm:$0xff]
        %v3471 = vld [vmem:[%s200 + $0x6440] sm:$0xff]
        %v3472 = vld [vmem:[%s200 + $0x6448] sm:$0xff]
        %v3473 = vld [vmem:[%s200 + $0x6450] sm:$0xff]
        %v3474 = vld [vmem:[%s200 + $0x6458] sm:$0xff]
        %v3475 = vld [vmem:[%s200 + $0x6460] sm:$0xff]
        %v3476 = vld [vmem:[%s200 + $0x6468] sm:$0xff]
        %v3477 = vld [vmem:[%s200 + $0x6470] sm:$0xff]
        %v3478 = vld [vmem:[%s200 + $0x6478] sm:$0xff]
        %v3479 = vld [vmem:[%s200 + $0x6480] sm:$0xff]
        %v3480 = vld [vmem:[%s200 + $0x6488] sm:$0xff]
        %v3481 = vld [vmem:[%s200 + $0x6490] sm:$0xff]
        %v3482 = vld [vmem:[%s200 + $0x6498] sm:$0xff]
        %v3483 = vld [vmem:[%s200 + $0x64a0] sm:$0xff]
        %v3484 = vld [vmem:[%s200 + $0x64a8] sm:$0xff]
        %v3485 = vld [vmem:[%s200 + $0x64b0] sm:$0xff]
        %v3486 = vld [vmem:[%s200 + $0x64b8] sm:$0xff]
        %v3487 = vld [vmem:[%s200 + $0x64c0] sm:$0xff]
        %v3488 = vld [vmem:[%s200 + $0x64c8] sm:$0xff]
        %v3489 = vld [vmem:[%s200 + $0x64d0] sm:$0xff]
        %v3490 = vld [vmem:[%s200 + $0x64d8] sm:$0xff]
        %v3491 = vld [vmem:[%s200 + $0x64e0] sm:$0xff]
        %v3492 = vld [vmem:[%s200 + $0x64e8] sm:$0xff]
        %v3493 = vld [vmem:[%s200 + $0x64f0] sm:$0xff]
        %v3494 = vld [vmem:[%s200 + $0x64f8] sm:$0xff]
        %v3495 = vld [vmem:[%s200 + $0x6500] sm:$0xff]
        %v3496 = vld [vmem:[%s200 + $0x6508] sm:$0xff]
        %v3497 = vld [vmem:[%s200 + $0x6510] sm:$0xff]
        %v3498 = vld [vmem:[%s200 + $0x6518] sm:$0xff]
        %v3499 = vld [vmem:[%s200 + $0x6520] sm:$0xff]
        %v3500 = vld [vmem:[%s200 + $0x6528] sm:$0xff]
        %v3501 = vld [vmem:[%s200 + $0x6530] sm:$0xff]
        %v3502 = vld [vmem:[%s200 + $0x6538] sm:$0xff]
        %v3503 = vld [vmem:[%s200 + $0x6540] sm:$0xff]
        %v3504 = vld [vmem:[%s200 + $0x6548] sm:$0xff]
        %v3505 = vld [vmem:[%s200 + $0x6550] sm:$0xff]
        %v3506 = vld [vmem:[%s200 + $0x6558] sm:$0xff]
        %v3507 = vld [vmem:[%s200 + $0x6560] sm:$0xff]
        %v3508 = vld [vmem:[%s200 + $0x6568] sm:$0xff]
        %v3509 = vld [vmem:[%s200 + $0x6570] sm:$0xff]
        %v3510 = vld [vmem:[%s200 + $0x6578] sm:$0xff]
        %v3511 = vld [vmem:[%s200 + $0x6580] sm:$0xff]
        %v3512 = vld [vmem:[%s200 + $0x6588] sm:$0xff]
        %v3513 = vld [vmem:[%s200 + $0x6590] sm:$0xff]
        %v3514 = vld [vmem:[%s200 + $0x6598] sm:$0xff]
        %v3515 = vld [vmem:[%s200 + $0x65a0] sm:$0xff]
        %v3516 = vld [vmem:[%s200 + $0x65a8] sm:$0xff]
        %v3517 = vld [vmem:[%s200 + $0x65b0] sm:$0xff]
        %v3518 = vld [vmem:[%s200 + $0x65b8] sm:$0xff]
        %v3519 = vld [vmem:[%s200 + $0x65c0] sm:$0xff]
        %v3520 = vld [vmem:[%s200 + $0x65c8] sm:$0xff]
        %v3521 = vld [vmem:[%s200 + $0x65d0] sm:$0xff]
        %v3522 = vld [vmem:[%s200 + $0x65d8] sm:$0xff]
        %v3523 = vld [vmem:[%s200 + $0x65e0] sm:$0xff]
        %v3524 = vld [vmem:[%s200 + $0x65e8] sm:$0xff]
        %v3525 = vld [vmem:[%s200 + $0x65f0] sm:$0xff]
        %v3526 = vld [vmem:[%s200 + $0x65f8] sm:$0xff]
        %v3527 = vld [vmem:[%s200 + $0x6600] sm:$0xff]
        %v3528 = vld [vmem:[%s200 + $0x6608] sm:$0xff]
        %v3529 = vld [vmem:[%s200 + $0x6610] sm:$0xff]
        %v3530 = vld [vmem:[%s200 + $0x6618] sm:$0xff]
        %v3531 = vld [vmem:[%s200 + $0x6620] sm:$0xff]
        %v3532 = vld [vmem:[%s200 + $0x6628] sm:$0xff]
        %v3533 = vld [vmem:[%s200 + $0x6630] sm:$0xff]
        %v3534 = vld [vmem:[%s200 + $0x6638] sm:$0xff]
        %v3535 = vld [vmem:[%s200 + $0x6640] sm:$0xff]
        %v3536 = vld [vmem:[%s200 + $0x6648] sm:$0xff]
        %v3537 = vld [vmem:[%s200 + $0x6650] sm:$0xff]
        %v3538 = vld [vmem:[%s200 + $0x6658] sm:$0xff]
        %v3539 = vld [vmem:[%s200 + $0x6660] sm:$0xff]
        %v3540 = vld [vmem:[%s200 + $0x6668] sm:$0xff]
        %v3541 = vld [vmem:[%s200 + $0x6670] sm:$0xff]
        %v3542 = vld [vmem:[%s200 + $0x6678] sm:$0xff]
        %v3543 = vld [vmem:[%s200 + $0x6680] sm:$0xff]
        %v3544 = vld [vmem:[%s200 + $0x6688] sm:$0xff]
        %v3545 = vld [vmem:[%s200 + $0x6690] sm:$0xff]
        %v3546 = vld [vmem:[%s200 + $0x6698] sm:$0xff]
        %v3547 = vld [vmem:[%s200 + $0x66a0] sm:$0xff]
        %v3548 = vld [vmem:[%s200 + $0x66a8] sm:$0xff]
        %v3549 = vld [vmem:[%s200 + $0x66b0] sm:$0xff]
        %v3550 = vld [vmem:[%s200 + $0x66b8] sm:$0xff]
        %v3551 = vld [vmem:[%s200 + $0x66c0] sm:$0xff]
        %v3552 = vld [vmem:[%s200 + $0x66c8] sm:$0xff]
        %v3553 = vld [vmem:[%s200 + $0x66d0] sm:$0xff]
        %v3554 = vld [vmem:[%s200 + $0x66d8] sm:$0xff]
        %v3555 = vld [vmem:[%s200 + $0x66e0] sm:$0xff]
        %v3556 = vld [vmem:[%s200 + $0x66e8] sm:$0xff]
        %v3557 = vld [vmem:[%s200 + $0x66f0] sm:$0xff]
        %v3558 = vld [vmem:[%s200 + $0x66f8] sm:$0xff]
        %v3559 = vld [vmem:[%s200 + $0x6700] sm:$0xff]
        %v3560 = vld [vmem:[%s200 + $0x6708] sm:$0xff]
        %v3561 = vld [vmem:[%s200 + $0x6710] sm:$0xff]
        %v3562 = vld [vmem:[%s200 + $0x6718] sm:$0xff]
        %v3563 = vld [vmem:[%s200 + $0x6720] sm:$0xff]
        %v3564 = vld [vmem:[%s200 + $0x6728] sm:$0xff]
        %v3565 = vld [vmem:[%s200 + $0x6730] sm:$0xff]
        %v3566 = vld [vmem:[%s200 + $0x6738] sm:$0xff]
        %v3567 = vld [vmem:[%s200 + $0x6740] sm:$0xff]
        %v3568 = vld [vmem:[%s200 + $0x6748] sm:$0xff]
        %v3569 = vld [vmem:[%s200 + $0x6750] sm:$0xff]
        %v3570 = vld [vmem:[%s200 + $0x6758] sm:$0xff]
        %v3571 = vld [vmem:[%s200 + $0x6760] sm:$0xff]
        %v3572 = vld [vmem:[%s200 + $0x6768] sm:$0xff]
        %v3573 = vld [vmem:[%s200 + $0x6770] sm:$0xff]
        %v3574 = vld [vmem:[%s200 + $0x6778] sm:$0xff]
        %v3575 = vld [vmem:[%s200 + $0x6780] sm:$0xff]
        %v3576 = vld [vmem:[%s200 + $0x6788] sm:$0xff]
        %v3577 = vld [vmem:[%s200 + $0x6790] sm:$0xff]
        %v3578 = vld [vmem:[%s200 + $0x6798] sm:$0xff]
        %v3579 = vld [vmem:[%s200 + $0x67a0] sm:$0xff]
        %v3580 = vld [vmem:[%s200 + $0x67a8] sm:$0xff]
        %v3581 = vld [vmem:[%s200 + $0x67b0] sm:$0xff]
        %v3582 = vld [vmem:[%s200 + $0x67b8] sm:$0xff]
        %v3583 = vld [vmem:[%s200 + $0x67c0] sm:$0xff]
        %v3584 = vld [vmem:[%s200 + $0x67c8] sm:$0xff]
        %v3585 = vld [vmem:[%s200 + $0x67d0] sm:$0xff]
        %v3586 = vld [vmem:[%s200 + $0x67d8] sm:$0xff]
        %v3587 = vld [vmem:[%s200 + $0x67e0] sm:$0xff]
        %v3588 = vld [vmem:[%s200 + $0x67e8] sm:$0xff]
        %v3589 = vld [vmem:[%s200 + $0x67f0] sm:$0xff]
        %v3590 = vld [vmem:[%s200 + $0x67f8] sm:$0xff]
        %v3591 = vld [vmem:[%s200 + $0x6800] sm:$0xff]
        %v3592 = vld [vmem:[%s200 + $0x6808] sm:$0xff]
        %v3593 = vld [vmem:[%s200 + $0x6810] sm:$0xff]
        %v3594 = vld [vmem:[%s200 + $0x6818] sm:$0xff]
        %v3595 = vld [vmem:[%s200 + $0x6820] sm:$0xff]
        %v3596 = vld [vmem:[%s200 + $0x6828] sm:$0xff]
        %v3597 = vld [vmem:[%s200 + $0x6830] sm:$0xff]
        %v3598 = vld [vmem:[%s200 + $0x6838] sm:$0xff]
        %v3599 = vld [vmem:[%s200 + $0x6840] sm:$0xff]
        %v3600 = vld [vmem:[%s200 + $0x6848] sm:$0xff]
        %v3601 = vld [vmem:[%s200 + $0x6850] sm:$0xff]
        %v3602 = vld [vmem:[%s200 + $0x6858] sm:$0xff]
        %v3603 = vld [vmem:[%s200 + $0x6860] sm:$0xff]
        %v3604 = vld [vmem:[%s200 + $0x6868] sm:$0xff]
        %v3605 = vld [vmem:[%s200 + $0x6870] sm:$0xff]
        %v3606 = vld [vmem:[%s200 + $0x6878] sm:$0xff]
        %v3607 = vld [vmem:[%s200 + $0x6880] sm:$0xff]
        %v3608 = vld [vmem:[%s200 + $0x6888] sm:$0xff]
        %v3609 = vld [vmem:[%s200 + $0x6890] sm:$0xff]
        %v3610 = vld [vmem:[%s200 + $0x6898] sm:$0xff]
        %v3611 = vld [vmem:[%s200 + $0x68a0] sm:$0xff]
        %v3612 = vld [vmem:[%s200 + $0x68a8] sm:$0xff]
        %v3613 = vld [vmem:[%s200 + $0x68b0] sm:$0xff]
        %v3614 = vld [vmem:[%s200 + $0x68b8] sm:$0xff]
        %v3615 = vld [vmem:[%s200 + $0x68c0] sm:$0xff]
        %v3616 = vld [vmem:[%s200 + $0x68c8] sm:$0xff]
        %v3617 = vld [vmem:[%s200 + $0x68d0] sm:$0xff]
        %v3618 = vld [vmem:[%s200 + $0x68d8] sm:$0xff]
        %v3619 = vld [vmem:[%s200 + $0x68e0] sm:$0xff]
        %v3620 = vld [vmem:[%s200 + $0x68e8] sm:$0xff]
        %v3621 = vld [vmem:[%s200 + $0x68f0] sm:$0xff]
        %v3622 = vld [vmem:[%s200 + $0x68f8] sm:$0xff]
        %v3623 = vld [vmem:[%s200 + $0x6900] sm:$0xff]
        %v3624 = vld [vmem:[%s200 + $0x6908] sm:$0xff]
        %v3625 = vld [vmem:[%s200 + $0x6910] sm:$0xff]
        %v3626 = vld [vmem:[%s200 + $0x6918] sm:$0xff]
        %v3627 = vld [vmem:[%s200 + $0x6920] sm:$0xff]
        %v3628 = vld [vmem:[%s200 + $0x6928] sm:$0xff]
        %v3629 = vld [vmem:[%s200 + $0x6930] sm:$0xff]
        %v3630 = vld [vmem:[%s200 + $0x6938] sm:$0xff]
        %v3631 = vld [vmem:[%s200 + $0x6940] sm:$0xff]
        %v3632 = vld [vmem:[%s200 + $0x6948] sm:$0xff]
        %v3633 = vld [vmem:[%s200 + $0x6950] sm:$0xff]
        %v3634 = vld [vmem:[%s200 + $0x6958] sm:$0xff]
        %v3635 = vld [vmem:[%s200 + $0x6960] sm:$0xff]
        %v3636 = vld [vmem:[%s200 + $0x6968] sm:$0xff]
        %v3637 = vld [vmem:[%s200 + $0x6970] sm:$0xff]
        %v3638 = vld [vmem:[%s200 + $0x6978] sm:$0xff]
        %v3639 = vld [vmem:[%s200 + $0x6980] sm:$0xff]
        %v3640 = vld [vmem:[%s200 + $0x6988] sm:$0xff]
        %v3641 = vld [vmem:[%s200 + $0x6990] sm:$0xff]
        %v3642 = vld [vmem:[%s200 + $0x6998] sm:$0xff]
        %v3643 = vld [vmem:[%s200 + $0x69a0] sm:$0xff]
        %v3644 = vld [vmem:[%s200 + $0x69a8] sm:$0xff]
        %v3645 = vld [vmem:[%s200 + $0x69b0] sm:$0xff]
        %v3646 = vld [vmem:[%s200 + $0x69b8] sm:$0xff]
        %v3647 = vld [vmem:[%s200 + $0x69c0] sm:$0xff]
        %v3648 = vld [vmem:[%s200 + $0x69c8] sm:$0xff]
        %v3649 = vld [vmem:[%s200 + $0x69d0] sm:$0xff]
        %v3650 = vld [vmem:[%s200 + $0x69d8] sm:$0xff]
        %v3651 = vld [vmem:[%s200 + $0x69e0] sm:$0xff]
        %v3652 = vld [vmem:[%s200 + $0x69e8] sm:$0xff]
        %v3653 = vld [vmem:[%s200 + $0x69f0] sm:$0xff]
        %v3654 = vld [vmem:[%s200 + $0x69f8] sm:$0xff]
        %v3655 = vld [vmem:[%s200 + $0x6a00] sm:$0xff]
        %v3656 = vld [vmem:[%s200 + $0x6a08] sm:$0xff]
        %v3657 = vld [vmem:[%s200 + $0x6a10] sm:$0xff]
        %v3658 = vld [vmem:[%s200 + $0x6a18] sm:$0xff]
        %v3659 = vld [vmem:[%s200 + $0x6a20] sm:$0xff]
        %v3660 = vld [vmem:[%s200 + $0x6a28] sm:$0xff]
        %v3661 = vld [vmem:[%s200 + $0x6a30] sm:$0xff]
        %v3662 = vld [vmem:[%s200 + $0x6a38] sm:$0xff]
        %v3663 = vld [vmem:[%s200 + $0x6a40] sm:$0xff]
        %v3664 = vld [vmem:[%s200 + $0x6a48] sm:$0xff]
        %v3665 = vld [vmem:[%s200 + $0x6a50] sm:$0xff]
        %v3666 = vld [vmem:[%s200 + $0x6a58] sm:$0xff]
        %v3667 = vld [vmem:[%s200 + $0x6a60] sm:$0xff]
        %v3668 = vld [vmem:[%s200 + $0x6a68] sm:$0xff]
        %v3669 = vld [vmem:[%s200 + $0x6a70] sm:$0xff]
        %v3670 = vld [vmem:[%s200 + $0x6a78] sm:$0xff]
        %v3671 = vld [vmem:[%s200 + $0x6a80] sm:$0xff]
        %v3672 = vld [vmem:[%s200 + $0x6a88] sm:$0xff]
        %v3673 = vld [vmem:[%s200 + $0x6a90] sm:$0xff]
        %v3674 = vld [vmem:[%s200 + $0x6a98] sm:$0xff]
        %v3675 = vld [vmem:[%s200 + $0x6aa0] sm:$0xff]
        %v3676 = vld [vmem:[%s200 + $0x6aa8] sm:$0xff]
        %v3677 = vld [vmem:[%s200 + $0x6ab0] sm:$0xff]
        %v3678 = vld [vmem:[%s200 + $0x6ab8] sm:$0xff]
        %v3679 = vld [vmem:[%s200 + $0x6ac0] sm:$0xff]
        %v3680 = vld [vmem:[%s200 + $0x6ac8] sm:$0xff]
        %v3681 = vld [vmem:[%s200 + $0x6ad0] sm:$0xff]
        %v3682 = vld [vmem:[%s200 + $0x6ad8] sm:$0xff]
        %v3683 = vld [vmem:[%s200 + $0x6ae0] sm:$0xff]
        %v3684 = vld [vmem:[%s200 + $0x6ae8] sm:$0xff]
        %v3685 = vld [vmem:[%s200 + $0x6af0] sm:$0xff]
        %v3686 = vld [vmem:[%s200 + $0x6af8] sm:$0xff]
        %v3687 = vld [vmem:[%s200 + $0x6b00] sm:$0xff]
        %v3688 = vld [vmem:[%s200 + $0x6b08] sm:$0xff]
        %v3689 = vld [vmem:[%s200 + $0x6b10] sm:$0xff]
        %v3690 = vld [vmem:[%s200 + $0x6b18] sm:$0xff]
        %v3691 = vld [vmem:[%s200 + $0x6b20] sm:$0xff]
        %v3692 = vld [vmem:[%s200 + $0x6b28] sm:$0xff]
        %v3693 = vld [vmem:[%s200 + $0x6b30] sm:$0xff]
        %v3694 = vld [vmem:[%s200 + $0x6b38] sm:$0xff]
        %v3695 = vld [vmem:[%s200 + $0x6b40] sm:$0xff]
        %v3696 = vld [vmem:[%s200 + $0x6b48] sm:$0xff]
        %v3697 = vld [vmem:[%s200 + $0x6b50] sm:$0xff]
        %v3698 = vld [vmem:[%s200 + $0x6b58] sm:$0xff]
        %v3699 = vld [vmem:[%s200 + $0x6b60] sm:$0xff]
        %v3700 = vld [vmem:[%s200 + $0x6b68] sm:$0xff]
        %v3701 = vld [vmem:[%s200 + $0x6b70] sm:$0xff]
        %v3702 = vld [vmem:[%s200 + $0x6b78] sm:$0xff]
        %v3703 = vld [vmem:[%s200 + $0x6b80] sm:$0xff]
        %v3704 = vld [vmem:[%s200 + $0x6b88] sm:$0xff]
        %v3705 = vld [vmem:[%s200 + $0x6b90] sm:$0xff]
        %v3706 = vld [vmem:[%s200 + $0x6b98] sm:$0xff]
        %v3707 = vld [vmem:[%s200 + $0x6ba0] sm:$0xff]
        %v3708 = vld [vmem:[%s200 + $0x6ba8] sm:$0xff]
        %v3709 = vld [vmem:[%s200 + $0x6bb0] sm:$0xff]
        %v3710 = vld [vmem:[%s200 + $0x6bb8] sm:$0xff]
        %v3711 = vld [vmem:[%s200 + $0x6bc0] sm:$0xff]
        %v3712 = vld [vmem:[%s200 + $0x6bc8] sm:$0xff]
        %v3713 = vld [vmem:[%s200 + $0x6bd0] sm:$0xff]
        %v3714 = vld [vmem:[%s200 + $0x6bd8] sm:$0xff]
        %v3715 = vld [vmem:[%s200 + $0x6be0] sm:$0xff]
        %v3716 = vld [vmem:[%s200 + $0x6be8] sm:$0xff]
        %v3717 = vld [vmem:[%s200 + $0x6bf0] sm:$0xff]
        %v3718 = vld [vmem:[%s200 + $0x6bf8] sm:$0xff]
        %v3719 = vld [vmem:[%s200 + $0x6c00] sm:$0xff]
        %v3720 = vld [vmem:[%s200 + $0x6c08] sm:$0xff]
        %v3721 = vld [vmem:[%s200 + $0x6c10] sm:$0xff]
        %v3722 = vld [vmem:[%s200 + $0x6c18] sm:$0xff]
        %v3723 = vld [vmem:[%s200 + $0x6c20] sm:$0xff]
        %v3724 = vld [vmem:[%s200 + $0x6c28] sm:$0xff]
        %v3725 = vld [vmem:[%s200 + $0x6c30] sm:$0xff]
        %v3726 = vld [vmem:[%s200 + $0x6c38] sm:$0xff]
        %v3727 = vld [vmem:[%s200 + $0x6c40] sm:$0xff]
        %v3728 = vld [vmem:[%s200 + $0x6c48] sm:$0xff]
        %v3729 = vld [vmem:[%s200 + $0x6c50] sm:$0xff]
        %v3730 = vld [vmem:[%s200 + $0x6c58] sm:$0xff]
        %v3731 = vld [vmem:[%s200 + $0x6c60] sm:$0xff]
        %v3732 = vld [vmem:[%s200 + $0x6c68] sm:$0xff]
        %v3733 = vld [vmem:[%s200 + $0x6c70] sm:$0xff]
        %v3734 = vld [vmem:[%s200 + $0x6c78] sm:$0xff]
        %v3735 = vld [vmem:[%s200 + $0x6c80] sm:$0xff]
        %v3736 = vld [vmem:[%s200 + $0x6c88] sm:$0xff]
        %v3737 = vld [vmem:[%s200 + $0x6c90] sm:$0xff]
        %v3738 = vld [vmem:[%s200 + $0x6c98] sm:$0xff]
        %v3739 = vld [vmem:[%s200 + $0x6ca0] sm:$0xff]
        %v3740 = vld [vmem:[%s200 + $0x6ca8] sm:$0xff]
        %v3741 = vld [vmem:[%s200 + $0x6cb0] sm:$0xff]
        %v3742 = vld [vmem:[%s200 + $0x6cb8] sm:$0xff]
        %v3743 = vld [vmem:[%s200 + $0x6cc0] sm:$0xff]
        %v3744 = vld [vmem:[%s200 + $0x6cc8] sm:$0xff]
        %v3745 = vld [vmem:[%s200 + $0x6cd0] sm:$0xff]
        %v3746 = vld [vmem:[%s200 + $0x6cd8] sm:$0xff]
        %v3747 = vld [vmem:[%s200 + $0x6ce0] sm:$0xff]
        %v3748 = vld [vmem:[%s200 + $0x6ce8] sm:$0xff]
        %v3749 = vld [vmem:[%s200 + $0x6cf0] sm:$0xff]
        %v3750 = vld [vmem:[%s200 + $0x6cf8] sm:$0xff]
        %v3751 = vld [vmem:[%s200 + $0x6d00] sm:$0xff]
        %v3752 = vld [vmem:[%s200 + $0x6d08] sm:$0xff]
        %v3753 = vld [vmem:[%s200 + $0x6d10] sm:$0xff]
        %v3754 = vld [vmem:[%s200 + $0x6d18] sm:$0xff]
        %v3755 = vld [vmem:[%s200 + $0x6d20] sm:$0xff]
        %v3756 = vld [vmem:[%s200 + $0x6d28] sm:$0xff]
        %v3757 = vld [vmem:[%s200 + $0x6d30] sm:$0xff]
        %v3758 = vld [vmem:[%s200 + $0x6d38] sm:$0xff]
        %v3759 = vld [vmem:[%s200 + $0x6d40] sm:$0xff]
        %v3760 = vld [vmem:[%s200 + $0x6d48] sm:$0xff]
        %v3761 = vld [vmem:[%s200 + $0x6d50] sm:$0xff]
        %v3762 = vld [vmem:[%s200 + $0x6d58] sm:$0xff]
        %v3763 = vld [vmem:[%s200 + $0x6d60] sm:$0xff]
        %v3764 = vld [vmem:[%s200 + $0x6d68] sm:$0xff]
        %v3765 = vld [vmem:[%s200 + $0x6d70] sm:$0xff]
        %v3766 = vld [vmem:[%s200 + $0x6d78] sm:$0xff]
        %v3767 = vld [vmem:[%s200 + $0x6d80] sm:$0xff]
        %v3768 = vld [vmem:[%s200 + $0x6d88] sm:$0xff]
        %v3769 = vld [vmem:[%s200 + $0x6d90] sm:$0xff]
        %v3770 = vld [vmem:[%s200 + $0x6d98] sm:$0xff]
        %v3771 = vld [vmem:[%s200 + $0x6da0] sm:$0xff]
        %v3772 = vld [vmem:[%s200 + $0x6da8] sm:$0xff]
        %v3773 = vld [vmem:[%s200 + $0x6db0] sm:$0xff]
        %v3774 = vld [vmem:[%s200 + $0x6db8] sm:$0xff]
        %v3775 = vld [vmem:[%s200 + $0x6dc0] sm:$0xff]
        %v3776 = vld [vmem:[%s200 + $0x6dc8] sm:$0xff]
        %v3777 = vld [vmem:[%s200 + $0x6dd0] sm:$0xff]
        %v3778 = vld [vmem:[%s200 + $0x6dd8] sm:$0xff]
        %v3779 = vld [vmem:[%s200 + $0x6de0] sm:$0xff]
        %v3780 = vld [vmem:[%s200 + $0x6de8] sm:$0xff]
        %v3781 = vld [vmem:[%s200 + $0x6df0] sm:$0xff]
        %v3782 = vld [vmem:[%s200 + $0x6df8] sm:$0xff]
        %v3783 = vld [vmem:[%s200 + $0x6e00] sm:$0xff]
        %v3784 = vld [vmem:[%s200 + $0x6e08] sm:$0xff]
        %v3785 = vld [vmem:[%s200 + $0x6e10] sm:$0xff]
        %v3786 = vld [vmem:[%s200 + $0x6e18] sm:$0xff]
        %v3787 = vld [vmem:[%s200 + $0x6e20] sm:$0xff]
        %v3788 = vld [vmem:[%s200 + $0x6e28] sm:$0xff]
        %v3789 = vld [vmem:[%s200 + $0x6e30] sm:$0xff]
        %v3790 = vld [vmem:[%s200 + $0x6e38] sm:$0xff]
        %v3791 = vld [vmem:[%s200 + $0x6e40] sm:$0xff]
        %v3792 = vld [vmem:[%s200 + $0x6e48] sm:$0xff]
        %v3793 = vld [vmem:[%s200 + $0x6e50] sm:$0xff]
        %v3794 = vld [vmem:[%s200 + $0x6e58] sm:$0xff]
        %v3795 = vld [vmem:[%s200 + $0x6e60] sm:$0xff]
        %v3796 = vld [vmem:[%s200 + $0x6e68] sm:$0xff]
        %v3797 = vld [vmem:[%s200 + $0x6e70] sm:$0xff]
        %v3798 = vld [vmem:[%s200 + $0x6e78] sm:$0xff]
        %v3799 = vld [vmem:[%s200 + $0x6e80] sm:$0xff]
        %v3800 = vld [vmem:[%s200 + $0x6e88] sm:$0xff]
        %v3801 = vld [vmem:[%s200 + $0x6e90] sm:$0xff]
        %v3802 = vld [vmem:[%s200 + $0x6e98] sm:$0xff]
        %v3803 = vld [vmem:[%s200 + $0x6ea0] sm:$0xff]
        %v3804 = vld [vmem:[%s200 + $0x6ea8] sm:$0xff]
        %v3805 = vld [vmem:[%s200 + $0x6eb0] sm:$0xff]
        %v3806 = vld [vmem:[%s200 + $0x6eb8] sm:$0xff]
        %v3807 = vld [vmem:[%s200 + $0x6ec0] sm:$0xff]
        %v3808 = vld [vmem:[%s200 + $0x6ec8] sm:$0xff]
        %v3809 = vld [vmem:[%s200 + $0x6ed0] sm:$0xff]
        %v3810 = vld [vmem:[%s200 + $0x6ed8] sm:$0xff]
        %v3811 = vld [vmem:[%s200 + $0x6ee0] sm:$0xff]
        %v3812 = vld [vmem:[%s200 + $0x6ee8] sm:$0xff]
        %v3813 = vld [vmem:[%s200 + $0x6ef0] sm:$0xff]
        %v3814 = vld [vmem:[%s200 + $0x6ef8] sm:$0xff]
        %v3815 = vld [vmem:[%s200 + $0x6f00] sm:$0xff]
        %v3816 = vld [vmem:[%s200 + $0x6f08] sm:$0xff]
        %v3817 = vld [vmem:[%s200 + $0x6f10] sm:$0xff]
        %v3818 = vld [vmem:[%s200 + $0x6f18] sm:$0xff]
        %v3819 = vld [vmem:[%s200 + $0x6f20] sm:$0xff]
        %v3820 = vld [vmem:[%s200 + $0x6f28] sm:$0xff]
        %v3821 = vld [vmem:[%s200 + $0x6f30] sm:$0xff]
        %v3822 = vld [vmem:[%s200 + $0x6f38] sm:$0xff]
        %v3823 = vld [vmem:[%s200 + $0x6f40] sm:$0xff]
        %v3824 = vld [vmem:[%s200 + $0x6f48] sm:$0xff]
        %v3825 = vld [vmem:[%s200 + $0x6f50] sm:$0xff]
        %v3826 = vld [vmem:[%s200 + $0x6f58] sm:$0xff]
        %v3827 = vld [vmem:[%s200 + $0x6f60] sm:$0xff]
        %v3828 = vld [vmem:[%s200 + $0x6f68] sm:$0xff]
        %v3829 = vld [vmem:[%s200 + $0x6f70] sm:$0xff]
        %v3830 = vld [vmem:[%s200 + $0x6f78] sm:$0xff]
        %v3831 = vld [vmem:[%s200 + $0x6f80] sm:$0xff]
        %v3832 = vld [vmem:[%s200 + $0x6f88] sm:$0xff]
        %v3833 = vld [vmem:[%s200 + $0x6f90] sm:$0xff]
        %v3834 = vld [vmem:[%s200 + $0x6f98] sm:$0xff]
        %v3835 = vld [vmem:[%s200 + $0x6fa0] sm:$0xff]
        %v3836 = vld [vmem:[%s200 + $0x6fa8] sm:$0xff]
        %v3837 = vld [vmem:[%s200 + $0x6fb0] sm:$0xff]
        %v3838 = vld [vmem:[%s200 + $0x6fb8] sm:$0xff]
        %v3839 = vld [vmem:[%s200 + $0x6fc0] sm:$0xff]
        %v3840 = vld [vmem:[%s200 + $0x6fc8] sm:$0xff]
        %v3841 = vld [vmem:[%s200 + $0x6fd0] sm:$0xff]
        %v3842 = vld [vmem:[%s200 + $0x6fd8] sm:$0xff]
        %v3843 = vld [vmem:[%s200 + $0x6fe0] sm:$0xff]
        %v3844 = vld [vmem:[%s200 + $0x6fe8] sm:$0xff]
        %v3845 = vld [vmem:[%s200 + $0x6ff0] sm:$0xff]
        %v3846 = vld [vmem:[%s200 + $0x6ff8] sm:$0xff]
        %v3847 = vld [vmem:[%s236] sm:$0x3]
        %v3862 = vlaneseq
        %v3863 = vshrl.u32 %v3862, 7
        %v3864 = vsub.s32 0, %v3863
        %v3865 = vrot.slane %v249, %v3864
        %v3866 = vlaneseq
        %v3867 = vshrl.u32 %v3866, 7
        %v3868 = vsub.s32 1, %v3867
        %v3869 = vrot.slane %v249, %v3868
        %v3870 = vlaneseq
        %v3871 = vshrl.u32 %v3870, 7
        %v3872 = vsub.s32 2, %v3871
        %v3873 = vrot.slane %v249, %v3872
        %v3874 = vlaneseq
        %v3875 = vshrl.u32 %v3874, 7
        %v3876 = vsub.s32 3, %v3875
        %v3877 = vrot.slane %v249, %v3876
        %v3878 = vlaneseq
        %v3879 = vshrl.u32 %v3878, 7
        %v3880 = vsub.s32 4, %v3879
        %v3881 = vrot.slane %v249, %v3880
        %v3882 = vlaneseq
        %v3883 = vshrl.u32 %v3882, 7
        %v3884 = vsub.s32 5, %v3883
        %v3885 = vrot.slane %v249, %v3884
        %v3886 = vlaneseq
        %v3887 = vshrl.u32 %v3886, 7
        %v3888 = vsub.s32 6, %v3887
        %v3889 = vrot.slane %v249, %v3888
        %v3890 = vlaneseq
        %v3891 = vshrl.u32 %v3890, 7
        %v3892 = vsub.s32 7, %v3891
        %v3893 = vrot.slane %v249, %v3892
        %v3894 = vlaneseq
        %v3895 = vshrl.u32 %v3894, 7
        %v3896 = vsub.s32 0, %v3895
        %v3897 = vrot.slane %v250, %v3896
        %v3898 = vlaneseq
        %v3899 = vshrl.u32 %v3898, 7
        %v3900 = vsub.s32 1, %v3899
        %v3901 = vrot.slane %v250, %v3900
        %v3902 = vlaneseq
        %v3903 = vshrl.u32 %v3902, 7
        %v3904 = vsub.s32 2, %v3903
        %v3905 = vrot.slane %v250, %v3904
        %v3906 = vlaneseq
        %v3907 = vshrl.u32 %v3906, 7
        %v3908 = vsub.s32 3, %v3907
        %v3909 = vrot.slane %v250, %v3908
        %v3910 = vlaneseq
        %v3911 = vshrl.u32 %v3910, 7
        %v3912 = vsub.s32 4, %v3911
        %v3913 = vrot.slane %v250, %v3912
        %v3914 = vlaneseq
        %v3915 = vshrl.u32 %v3914, 7
        %v3916 = vsub.s32 5, %v3915
        %v3917 = vrot.slane %v250, %v3916
        %v3918 = vlaneseq
        %v3919 = vshrl.u32 %v3918, 7
        %v3920 = vsub.s32 6, %v3919
        %v3921 = vrot.slane %v250, %v3920
        %v3922 = vlaneseq
        %v3923 = vshrl.u32 %v3922, 7
        %v3924 = vsub.s32 7, %v3923
        %v3925 = vrot.slane %v250, %v3924
        %v3926 = vlaneseq
        %v3927 = vshrl.u32 %v3926, 7
        %v3928 = vsub.s32 0, %v3927
        %v3929 = vrot.slane %v251, %v3928
        %v3930 = vlaneseq
        %v3931 = vshrl.u32 %v3930, 7
        %v3932 = vsub.s32 1, %v3931
        %v3933 = vrot.slane %v251, %v3932
        %v3934 = vlaneseq
        %v3935 = vshrl.u32 %v3934, 7
        %v3936 = vsub.s32 2, %v3935
        %v3937 = vrot.slane %v251, %v3936
        %v3938 = vlaneseq
        %v3939 = vshrl.u32 %v3938, 7
        %v3940 = vsub.s32 3, %v3939
        %v3941 = vrot.slane %v251, %v3940
        %v3942 = vlaneseq
        %v3943 = vshrl.u32 %v3942, 7
        %v3944 = vsub.s32 4, %v3943
        %v3945 = vrot.slane %v251, %v3944
        %v3946 = vlaneseq
        %v3947 = vshrl.u32 %v3946, 7
        %v3948 = vsub.s32 5, %v3947
        %v3949 = vrot.slane %v251, %v3948
        %v3950 = vlaneseq
        %v3951 = vshrl.u32 %v3950, 7
        %v3952 = vsub.s32 6, %v3951
        %v3953 = vrot.slane %v251, %v3952
        %v3954 = vlaneseq
        %v3955 = vshrl.u32 %v3954, 7
        %v3956 = vsub.s32 7, %v3955
        %v3957 = vrot.slane %v251, %v3956
        %v3958 = vlaneseq
        %v3959 = vshrl.u32 %v3958, 7
        %v3960 = vsub.s32 0, %v3959
        %v3961 = vrot.slane %v252, %v3960
        %v3962 = vlaneseq
        %v3963 = vshrl.u32 %v3962, 7
        %v3964 = vsub.s32 1, %v3963
        %v3965 = vrot.slane %v252, %v3964
        %v3966 = vlaneseq
        %v3967 = vshrl.u32 %v3966, 7
        %v3968 = vsub.s32 2, %v3967
        %v3969 = vrot.slane %v252, %v3968
        %v3970 = vlaneseq
        %v3971 = vshrl.u32 %v3970, 7
        %v3972 = vsub.s32 3, %v3971
        %v3973 = vrot.slane %v252, %v3972
        %v3974 = vlaneseq
        %v3975 = vshrl.u32 %v3974, 7
        %v3976 = vsub.s32 4, %v3975
        %v3977 = vrot.slane %v252, %v3976
        %v3978 = vlaneseq
        %v3979 = vshrl.u32 %v3978, 7
        %v3980 = vsub.s32 5, %v3979
        %v3981 = vrot.slane %v252, %v3980
        %v3982 = vlaneseq
        %v3983 = vshrl.u32 %v3982, 7
        %v3984 = vsub.s32 6, %v3983
        %v3985 = vrot.slane %v252, %v3984
        %v3986 = vlaneseq
        %v3987 = vshrl.u32 %v3986, 7
        %v3988 = vsub.s32 7, %v3987
        %v3989 = vrot.slane %v252, %v3988
        %v3990 = vlaneseq
        %v3991 = vshrl.u32 %v3990, 7
        %v3992 = vsub.s32 0, %v3991
        %v3993 = vrot.slane %v253, %v3992
        %v3994 = vlaneseq
        %v3995 = vshrl.u32 %v3994, 7
        %v3996 = vsub.s32 1, %v3995
        %v3997 = vrot.slane %v253, %v3996
        %v3998 = vlaneseq
        %v3999 = vshrl.u32 %v3998, 7
        %v4000 = vsub.s32 2, %v3999
        %v4001 = vrot.slane %v253, %v4000
        %v4002 = vlaneseq
        %v4003 = vshrl.u32 %v4002, 7
        %v4004 = vsub.s32 3, %v4003
        %v4005 = vrot.slane %v253, %v4004
        %v4006 = vlaneseq
        %v4007 = vshrl.u32 %v4006, 7
        %v4008 = vsub.s32 4, %v4007
        %v4009 = vrot.slane %v253, %v4008
        %v4010 = vlaneseq
        %v4011 = vshrl.u32 %v4010, 7
        %v4012 = vsub.s32 5, %v4011
        %v4013 = vrot.slane %v253, %v4012
        %v4014 = vlaneseq
        %v4015 = vshrl.u32 %v4014, 7
        %v4016 = vsub.s32 6, %v4015
        %v4017 = vrot.slane %v253, %v4016
        %v4018 = vlaneseq
        %v4019 = vshrl.u32 %v4018, 7
        %v4020 = vsub.s32 7, %v4019
        %v4021 = vrot.slane %v253, %v4020
        %v4022 = vlaneseq
        %v4023 = vshrl.u32 %v4022, 7
        %v4024 = vsub.s32 0, %v4023
        %v4025 = vrot.slane %v254, %v4024
        %v4026 = vlaneseq
        %v4027 = vshrl.u32 %v4026, 7
        %v4028 = vsub.s32 1, %v4027
        %v4029 = vrot.slane %v254, %v4028
        %v4030 = vlaneseq
        %v4031 = vshrl.u32 %v4030, 7
        %v4032 = vsub.s32 2, %v4031
        %v4033 = vrot.slane %v254, %v4032
        %v4034 = vlaneseq
        %v4035 = vshrl.u32 %v4034, 7
        %v4036 = vsub.s32 3, %v4035
        %v4037 = vrot.slane %v254, %v4036
        %v4038 = vlaneseq
        %v4039 = vshrl.u32 %v4038, 7
        %v4040 = vsub.s32 4, %v4039
        %v4041 = vrot.slane %v254, %v4040
        %v4042 = vlaneseq
        %v4043 = vshrl.u32 %v4042, 7
        %v4044 = vsub.s32 5, %v4043
        %v4045 = vrot.slane %v254, %v4044
        %v4046 = vlaneseq
        %v4047 = vshrl.u32 %v4046, 7
        %v4048 = vsub.s32 6, %v4047
        %v4049 = vrot.slane %v254, %v4048
        %v4050 = vlaneseq
        %v4051 = vshrl.u32 %v4050, 7
        %v4052 = vsub.s32 7, %v4051
        %v4053 = vrot.slane %v254, %v4052
        %v4054 = vlaneseq
        %v4055 = vshrl.u32 %v4054, 7
        %v4056 = vsub.s32 0, %v4055
        %v4057 = vrot.slane %v255, %v4056
        %v4058 = vlaneseq
        %v4059 = vshrl.u32 %v4058, 7
        %v4060 = vsub.s32 1, %v4059
        %v4061 = vrot.slane %v255, %v4060
        %v4062 = vlaneseq
        %v4063 = vshrl.u32 %v4062, 7
        %v4064 = vsub.s32 2, %v4063
        %v4065 = vrot.slane %v255, %v4064
        %v4066 = vlaneseq
        %v4067 = vshrl.u32 %v4066, 7
        %v4068 = vsub.s32 3, %v4067
        %v4069 = vrot.slane %v255, %v4068
        %v4070 = vlaneseq
        %v4071 = vshrl.u32 %v4070, 7
        %v4072 = vsub.s32 4, %v4071
        %v4073 = vrot.slane %v255, %v4072
        %v4074 = vlaneseq
        %v4075 = vshrl.u32 %v4074, 7
        %v4076 = vsub.s32 5, %v4075
        %v4077 = vrot.slane %v255, %v4076
        %v4078 = vlaneseq
        %v4079 = vshrl.u32 %v4078, 7
        %v4080 = vsub.s32 6, %v4079
        %v4081 = vrot.slane %v255, %v4080
        %v4082 = vlaneseq
        %v4083 = vshrl.u32 %v4082, 7
        %v4084 = vsub.s32 7, %v4083
        %v4085 = vrot.slane %v255, %v4084
        %v4086 = vlaneseq
        %v4087 = vshrl.u32 %v4086, 7
        %v4088 = vsub.s32 0, %v4087
        %v4089 = vrot.slane %v256, %v4088
        %v4090 = vlaneseq
        %v4091 = vshrl.u32 %v4090, 7
        %v4092 = vsub.s32 1, %v4091
        %v4093 = vrot.slane %v256, %v4092
        %v4094 = vlaneseq
        %v4095 = vshrl.u32 %v4094, 7
        %v4096 = vsub.s32 2, %v4095
        %v4097 = vrot.slane %v256, %v4096
        %v4098 = vlaneseq
        %v4099 = vshrl.u32 %v4098, 7
        %v4100 = vsub.s32 3, %v4099
        %v4101 = vrot.slane %v256, %v4100
        %v4102 = vlaneseq
        %v4103 = vshrl.u32 %v4102, 7
        %v4104 = vsub.s32 4, %v4103
        %v4105 = vrot.slane %v256, %v4104
        %v4106 = vlaneseq
        %v4107 = vshrl.u32 %v4106, 7
        %v4108 = vsub.s32 5, %v4107
        %v4109 = vrot.slane %v256, %v4108
        %v4110 = vlaneseq
        %v4111 = vshrl.u32 %v4110, 7
        %v4112 = vsub.s32 6, %v4111
        %v4113 = vrot.slane %v256, %v4112
        %v4114 = vlaneseq
        %v4115 = vshrl.u32 %v4114, 7
        %v4116 = vsub.s32 7, %v4115
        %v4117 = vrot.slane %v256, %v4116
        %v4118 = vlaneseq
        %v4119 = vshrl.u32 %v4118, 7
        %v4120 = vsub.s32 0, %v4119
        %v4121 = vrot.slane %v257, %v4120
        %v4122 = vlaneseq
        %v4123 = vshrl.u32 %v4122, 7
        %v4124 = vsub.s32 1, %v4123
        %v4125 = vrot.slane %v257, %v4124
        %v4126 = vlaneseq
        %v4127 = vshrl.u32 %v4126, 7
        %v4128 = vsub.s32 2, %v4127
        %v4129 = vrot.slane %v257, %v4128
        %v4130 = vlaneseq
        %v4131 = vshrl.u32 %v4130, 7
        %v4132 = vsub.s32 3, %v4131
        %v4133 = vrot.slane %v257, %v4132
        %v4134 = vlaneseq
        %v4135 = vshrl.u32 %v4134, 7
        %v4136 = vsub.s32 4, %v4135
        %v4137 = vrot.slane %v257, %v4136
        %v4138 = vlaneseq
        %v4139 = vshrl.u32 %v4138, 7
        %v4140 = vsub.s32 5, %v4139
        %v4141 = vrot.slane %v257, %v4140
        %v4142 = vlaneseq
        %v4143 = vshrl.u32 %v4142, 7
        %v4144 = vsub.s32 6, %v4143
        %v4145 = vrot.slane %v257, %v4144
        %v4146 = vlaneseq
        %v4147 = vshrl.u32 %v4146, 7
        %v4148 = vsub.s32 7, %v4147
        %v4149 = vrot.slane %v257, %v4148
        %v4150 = vlaneseq
        %v4151 = vshrl.u32 %v4150, 7
        %v4152 = vsub.s32 0, %v4151
        %v4153 = vrot.slane %v258, %v4152
        %v4154 = vlaneseq
        %v4155 = vshrl.u32 %v4154, 7
        %v4156 = vsub.s32 1, %v4155
        %v4157 = vrot.slane %v258, %v4156
        %v4158 = vlaneseq
        %v4159 = vshrl.u32 %v4158, 7
        %v4160 = vsub.s32 2, %v4159
        %v4161 = vrot.slane %v258, %v4160
        %v4162 = vlaneseq
        %v4163 = vshrl.u32 %v4162, 7
        %v4164 = vsub.s32 3, %v4163
        %v4165 = vrot.slane %v258, %v4164
        %v4166 = vlaneseq
        %v4167 = vshrl.u32 %v4166, 7
        %v4168 = vsub.s32 4, %v4167
        %v4169 = vrot.slane %v258, %v4168
        %v4170 = vlaneseq
        %v4171 = vshrl.u32 %v4170, 7
        %v4172 = vsub.s32 5, %v4171
        %v4173 = vrot.slane %v258, %v4172
        %v4174 = vlaneseq
        %v4175 = vshrl.u32 %v4174, 7
        %v4176 = vsub.s32 6, %v4175
        %v4177 = vrot.slane %v258, %v4176
        %v4178 = vlaneseq
        %v4179 = vshrl.u32 %v4178, 7
        %v4180 = vsub.s32 7, %v4179
        %v4181 = vrot.slane %v258, %v4180
        %v4182 = vlaneseq
        %v4183 = vshrl.u32 %v4182, 7
        %v4184 = vsub.s32 0, %v4183
        %v4185 = vrot.slane %v259, %v4184
        %v4186 = vlaneseq
        %v4187 = vshrl.u32 %v4186, 7
        %v4188 = vsub.s32 1, %v4187
        %v4189 = vrot.slane %v259, %v4188
        %v4190 = vlaneseq
        %v4191 = vshrl.u32 %v4190, 7
        %v4192 = vsub.s32 2, %v4191
        %v4193 = vrot.slane %v259, %v4192
        %v4194 = vlaneseq
        %v4195 = vshrl.u32 %v4194, 7
        %v4196 = vsub.s32 3, %v4195
        %v4197 = vrot.slane %v259, %v4196
        %v4198 = vlaneseq
        %v4199 = vshrl.u32 %v4198, 7
        %v4200 = vsub.s32 4, %v4199
        %v4201 = vrot.slane %v259, %v4200
        %v4202 = vlaneseq
        %v4203 = vshrl.u32 %v4202, 7
        %v4204 = vsub.s32 5, %v4203
        %v4205 = vrot.slane %v259, %v4204
        %v4206 = vlaneseq
        %v4207 = vshrl.u32 %v4206, 7
        %v4208 = vsub.s32 6, %v4207
        %v4209 = vrot.slane %v259, %v4208
        %v4210 = vlaneseq
        %v4211 = vshrl.u32 %v4210, 7
        %v4212 = vsub.s32 7, %v4211
        %v4213 = vrot.slane %v259, %v4212
        %v4214 = vlaneseq
        %v4215 = vshrl.u32 %v4214, 7
        %v4216 = vsub.s32 0, %v4215
        %v4217 = vrot.slane %v260, %v4216
        %v4218 = vlaneseq
        %v4219 = vshrl.u32 %v4218, 7
        %v4220 = vsub.s32 1, %v4219
        %v4221 = vrot.slane %v260, %v4220
        %v4222 = vlaneseq
        %v4223 = vshrl.u32 %v4222, 7
        %v4224 = vsub.s32 2, %v4223
        %v4225 = vrot.slane %v260, %v4224
        %v4226 = vlaneseq
        %v4227 = vshrl.u32 %v4226, 7
        %v4228 = vsub.s32 3, %v4227
        %v4229 = vrot.slane %v260, %v4228
        %v4230 = vlaneseq
        %v4231 = vshrl.u32 %v4230, 7
        %v4232 = vsub.s32 4, %v4231
        %v4233 = vrot.slane %v260, %v4232
        %v4234 = vlaneseq
        %v4235 = vshrl.u32 %v4234, 7
        %v4236 = vsub.s32 5, %v4235
        %v4237 = vrot.slane %v260, %v4236
        %v4238 = vlaneseq
        %v4239 = vshrl.u32 %v4238, 7
        %v4240 = vsub.s32 6, %v4239
        %v4241 = vrot.slane %v260, %v4240
        %v4242 = vlaneseq
        %v4243 = vshrl.u32 %v4242, 7
        %v4244 = vsub.s32 7, %v4243
        %v4245 = vrot.slane %v260, %v4244
        %v4246 = vlaneseq
        %v4247 = vshrl.u32 %v4246, 7
        %v4248 = vsub.s32 0, %v4247
        %v4249 = vrot.slane %v261, %v4248
        %v4250 = vlaneseq
        %v4251 = vshrl.u32 %v4250, 7
        %v4252 = vsub.s32 1, %v4251
        %v4253 = vrot.slane %v261, %v4252
        %v4254 = vlaneseq
        %v4255 = vshrl.u32 %v4254, 7
        %v4256 = vsub.s32 2, %v4255
        %v4257 = vrot.slane %v261, %v4256
        %v4258 = vlaneseq
        %v4259 = vshrl.u32 %v4258, 7
        %v4260 = vsub.s32 3, %v4259
        %v4261 = vrot.slane %v261, %v4260
        %v4262 = vlaneseq
        %v4263 = vshrl.u32 %v4262, 7
        %v4264 = vsub.s32 4, %v4263
        %v4265 = vrot.slane %v261, %v4264
        %v4266 = vlaneseq
        %v4267 = vshrl.u32 %v4266, 7
        %v4268 = vsub.s32 5, %v4267
        %v4269 = vrot.slane %v261, %v4268
        %v4270 = vlaneseq
        %v4271 = vshrl.u32 %v4270, 7
        %v4272 = vsub.s32 6, %v4271
        %v4273 = vrot.slane %v261, %v4272
        %v4274 = vlaneseq
        %v4275 = vshrl.u32 %v4274, 7
        %v4276 = vsub.s32 7, %v4275
        %v4277 = vrot.slane %v261, %v4276
        %v4278 = vlaneseq
        %v4279 = vshrl.u32 %v4278, 7
        %v4280 = vsub.s32 0, %v4279
        %v4281 = vrot.slane %v262, %v4280
        %v4282 = vlaneseq
        %v4283 = vshrl.u32 %v4282, 7
        %v4284 = vsub.s32 1, %v4283
        %v4285 = vrot.slane %v262, %v4284
        %v4286 = vlaneseq
        %v4287 = vshrl.u32 %v4286, 7
        %v4288 = vsub.s32 2, %v4287
        %v4289 = vrot.slane %v262, %v4288
        %v4290 = vlaneseq
        %v4291 = vshrl.u32 %v4290, 7
        %v4292 = vsub.s32 3, %v4291
        %v4293 = vrot.slane %v262, %v4292
        %v4294 = vlaneseq
        %v4295 = vshrl.u32 %v4294, 7
        %v4296 = vsub.s32 4, %v4295
        %v4297 = vrot.slane %v262, %v4296
        %v4298 = vlaneseq
        %v4299 = vshrl.u32 %v4298, 7
        %v4300 = vsub.s32 5, %v4299
        %v4301 = vrot.slane %v262, %v4300
        %v4302 = vlaneseq
        %v4303 = vshrl.u32 %v4302, 7
        %v4304 = vsub.s32 6, %v4303
        %v4305 = vrot.slane %v262, %v4304
        %v4306 = vlaneseq
        %v4307 = vshrl.u32 %v4306, 7
        %v4308 = vsub.s32 7, %v4307
        %v4309 = vrot.slane %v262, %v4308
        %v4423 = vlaneseq
        %v4424 = vshrl.u32 %v4423, 7
        %v4425 = vsub.s32 0, %v4424
        %v4426 = vrot.slane %v3847, %v4425
        %v4427 = vlaneseq
        %v4428 = vshrl.u32 %v4427, 7
        %v4429 = vsub.s32 1, %v4428
        %v4430 = vrot.slane %v3847, %v4429
        %4433 = vmatprep.subr.mxu0 %v264
        %4434 = vmatpush1.xpose.msra.mxu0 %v263
        %4435 = vmatprep.subr.mxu0 %v376
        %4436 = vmatpush1.xpose.msra.mxu0 %v375
        %4437 = vmatprep.subr.mxu0 %v488
        %4438 = vmatpush1.xpose.msra.mxu0 %v487
        %4439 = vmatprep.subr.mxu0 %v600
        %4440 = vmatpush1.xpose.msra.mxu0 %v599
        %4441 = vmatprep.subr.mxu0 %v712
        %4442 = vmatpush1.xpose.msra.mxu0 %v711
        %4443 = vmatprep.subr.mxu0 %v824
        %4444 = vmatpush1.xpose.msra.mxu0 %v823
        %4445 = vmatprep.subr.mxu0 %v936
        %4446 = vmatpush1.xpose.msra.mxu0 %v935
        %4447 = vmatprep.subr.mxu0 %v1048
        %4448 = vmatpush1.xpose.msra.mxu0 %v1047
        %4449 = vmatprep.subr.mxu0 %v1160
        %4450 = vmatpush1.xpose.msra.mxu0 %v1159
        %4451 = vmatprep.subr.mxu0 %v1272
        %4452 = vmatpush1.xpose.msra.mxu0 %v1271
        %4453 = vmatprep.subr.mxu0 %v1384
        %4454 = vmatpush1.xpose.msra.mxu0 %v1383
        %4455 = vmatprep.subr.mxu0 %v1496
        %4456 = vmatpush1.xpose.msra.mxu0 %v1495
        %4457 = vmatprep.subr.mxu0 %v1608
        %4458 = vmatpush1.xpose.msra.mxu0 %v1607
        %4459 = vmatprep.subr.mxu0 %v1720
        %4460 = vmatpush1.xpose.msra.mxu0 %v1719
        %4461 = vmatprep.subr.mxu0 %v1832
        %4462 = vmatpush1.xpose.msra.mxu0 %v1831
        %4463 = vmatprep.subr.mxu0 %v1944
        %4464 = vmatpush1.xpose.msra.mxu0 %v1943
        %4465 = vmatprep.subr.mxu0 %v2056
        %4466 = vmatpush1.xpose.msra.mxu0 %v2055
        %4467 = vmatprep.subr.mxu0 %v2168
        %4468 = vmatpush1.xpose.msra.mxu0 %v2167
        %4469 = vmatprep.subr.mxu0 %v2280
        %4470 = vmatpush1.xpose.msra.mxu0 %v2279
        %4471 = vmatprep.subr.mxu0 %v2392
        %4472 = vmatpush1.xpose.msra.mxu0 %v2391
        %4473 = vmatprep.subr.mxu0 %v2504
        %4474 = vmatpush1.xpose.msra.mxu0 %v2503
        %4475 = vmatprep.subr.mxu0 %v2616
        %4476 = vmatpush1.xpose.msra.mxu0 %v2615
        %4477 = vmatprep.subr.mxu0 %v2728
        %4478 = vmatpush1.xpose.msra.mxu0 %v2727
        %4479 = vmatprep.subr.mxu0 %v2840
        %4480 = vmatpush1.xpose.msra.mxu0 %v2839
        %4481 = vmatprep.subr.mxu0 %v2952
        %4482 = vmatpush1.xpose.msra.mxu0 %v2951
        %4483 = vmatprep.subr.mxu0 %v3064
        %4484 = vmatpush1.xpose.msra.mxu0 %v3063
        %4485 = vmatprep.subr.mxu0 %v3176
        %4486 = vmatpush1.xpose.msra.mxu0 %v3175
        %4487 = vmatprep.subr.mxu0 %v3288
        %4488 = vmatpush1.xpose.msra.mxu0 %v3287
        %4489 = vmatprep.subr.mxu0 %v3400
        %4490 = vmatpush1.xpose.msra.mxu0 %v3399
        %4491 = vmatprep.subr.mxu0 %v3512
        %4492 = vmatpush1.xpose.msra.mxu0 %v3511
        %4493 = vmatprep.subr.mxu0 %v3624
        %4494 = vmatpush1.xpose.msra.mxu0 %v3623
        %4495 = vmatprep.subr.mxu0 %v3736
        %4496 = vmatpush1.xpose.msra.mxu0 %v3735
        %4497 = vmatprep.mubr.f32.mxu0 %v3869
        %4498 = vmatmul.mubr.f32.gmra.mrb[0].mxu0 %v3865
        %v4499 = vpop.f32.mrb[0].mxu0
        %v4500 = vadd.f32 %v4426, %v4499
        %v4501 = vpop.f32.mrb[0].mxu0
        %v4502 = vadd.f32 %v4430, %v4501
        %4503 = vdwg.mxu0
        %4504 = vmatprep.subr.mxu0 %v266
        %4505 = vmatpush1.xpose.msra.mxu0 %v265
        %4506 = vmatprep.subr.mxu0 %v378
        %4507 = vmatpush1.xpose.msra.mxu0 %v377
        %4508 = vmatprep.subr.mxu0 %v490
        %4509 = vmatpush1.xpose.msra.mxu0 %v489
        %4510 = vmatprep.subr.mxu0 %v602
        %4511 = vmatpush1.xpose.msra.mxu0 %v601
        %4512 = vmatprep.subr.mxu0 %v714
        %4513 = vmatpush1.xpose.msra.mxu0 %v713
        %4514 = vmatprep.subr.mxu0 %v826
        %4515 = vmatpush1.xpose.msra.mxu0 %v825
        %4516 = vmatprep.subr.mxu0 %v938
        %4517 = vmatpush1.xpose.msra.mxu0 %v937
        %4518 = vmatprep.subr.mxu0 %v1050
        %4519 = vmatpush1.xpose.msra.mxu0 %v1049
        %4520 = vmatprep.subr.mxu0 %v1162
        %4521 = vmatpush1.xpose.msra.mxu0 %v1161
        %4522 = vmatprep.subr.mxu0 %v1274
        %4523 = vmatpush1.xpose.msra.mxu0 %v1273
        %4524 = vmatprep.subr.mxu0 %v1386
        %4525 = vmatpush1.xpose.msra.mxu0 %v1385
        %4526 = vmatprep.subr.mxu0 %v1498
        %4527 = vmatpush1.xpose.msra.mxu0 %v1497
        %4528 = vmatprep.subr.mxu0 %v1610
        %4529 = vmatpush1.xpose.msra.mxu0 %v1609
        %4530 = vmatprep.subr.mxu0 %v1722
        %4531 = vmatpush1.xpose.msra.mxu0 %v1721
        %4532 = vmatprep.subr.mxu0 %v1834
        %4533 = vmatpush1.xpose.msra.mxu0 %v1833
        %4534 = vmatprep.subr.mxu0 %v1946
        %4535 = vmatpush1.xpose.msra.mxu0 %v1945
        %4536 = vmatprep.subr.mxu0 %v2058
        %4537 = vmatpush1.xpose.msra.mxu0 %v2057
        %4538 = vmatprep.subr.mxu0 %v2170
        %4539 = vmatpush1.xpose.msra.mxu0 %v2169
        %4540 = vmatprep.subr.mxu0 %v2282
        %4541 = vmatpush1.xpose.msra.mxu0 %v2281
        %4542 = vmatprep.subr.mxu0 %v2394
        %4543 = vmatpush1.xpose.msra.mxu0 %v2393
        %4544 = vmatprep.subr.mxu0 %v2506
        %4545 = vmatpush1.xpose.msra.mxu0 %v2505
        %4546 = vmatprep.subr.mxu0 %v2618
        %4547 = vmatpush1.xpose.msra.mxu0 %v2617
        %4548 = vmatprep.subr.mxu0 %v2730
        %4549 = vmatpush1.xpose.msra.mxu0 %v2729
        %4550 = vmatprep.subr.mxu0 %v2842
        %4551 = vmatpush1.xpose.msra.mxu0 %v2841
        %4552 = vmatprep.subr.mxu0 %v2954
        %4553 = vmatpush1.xpose.msra.mxu0 %v2953
        %4554 = vmatprep.subr.mxu0 %v3066
        %4555 = vmatpush1.xpose.msra.mxu0 %v3065
        %4556 = vmatprep.subr.mxu0 %v3178
        %4557 = vmatpush1.xpose.msra.mxu0 %v3177
        %4558 = vmatprep.subr.mxu0 %v3290
        %4559 = vmatpush1.xpose.msra.mxu0 %v3289
        %4560 = vmatprep.subr.mxu0 %v3402
        %4561 = vmatpush1.xpose.msra.mxu0 %v3401
        %4562 = vmatprep.subr.mxu0 %v3514
        %4563 = vmatpush1.xpose.msra.mxu0 %v3513
        %4564 = vmatprep.subr.mxu0 %v3626
        %4565 = vmatpush1.xpose.msra.mxu0 %v3625
        %4566 = vmatprep.subr.mxu0 %v3738
        %4567 = vmatpush1.xpose.msra.mxu0 %v3737
        %4568 = vmatprep.mubr.f32.mxu0 %v3877
        %4569 = vmatmul.mubr.f32.gmra.mrb[0].mxu0 %v3873
        %v4570 = vpop.f32.mrb[0].mxu0
        %v4571 = vadd.f32 %v4500, %v4570
        %v4572 = vpop.f32.mrb[0].mxu0
        %v4573 = vadd.f32 %v4502, %v4572
        %4574 = vdwg.mxu0
        %4575 = vmatprep.subr.mxu0 %v268
        %4576 = vmatpush1.xpose.msra.mxu0 %v267
        %4577 = vmatprep.subr.mxu0 %v380
        %4578 = vmatpush1.xpose.msra.mxu0 %v379
        %4579 = vmatprep.subr.mxu0 %v492
        %4580 = vmatpush1.xpose.msra.mxu0 %v491
        %4581 = vmatprep.subr.mxu0 %v604
        %4582 = vmatpush1.xpose.msra.mxu0 %v603
        %4583 = vmatprep.subr.mxu0 %v716
        %4584 = vmatpush1.xpose.msra.mxu0 %v715
        %4585 = vmatprep.subr.mxu0 %v828
        %4586 = vmatpush1.xpose.msra.mxu0 %v827
        %4587 = vmatprep.subr.mxu0 %v940
        %4588 = vmatpush1.xpose.msra.mxu0 %v939
        %4589 = vmatprep.subr.mxu0 %v1052
        %4590 = vmatpush1.xpose.msra.mxu0 %v1051
        %4591 = vmatprep.subr.mxu0 %v1164
        %4592 = vmatpush1.xpose.msra.mxu0 %v1163
        %4593 = vmatprep.subr.mxu0 %v1276
        %4594 = vmatpush1.xpose.msra.mxu0 %v1275
        %4595 = vmatprep.subr.mxu0 %v1388
        %4596 = vmatpush1.xpose.msra.mxu0 %v1387
        %4597 = vmatprep.subr.mxu0 %v1500
        %4598 = vmatpush1.xpose.msra.mxu0 %v1499
        %4599 = vmatprep.subr.mxu0 %v1612
        %4600 = vmatpush1.xpose.msra.mxu0 %v1611
        %4601 = vmatprep.subr.mxu0 %v1724
        %4602 = vmatpush1.xpose.msra.mxu0 %v1723
        %4603 = vmatprep.subr.mxu0 %v1836
        %4604 = vmatpush1.xpose.msra.mxu0 %v1835
        %4605 = vmatprep.subr.mxu0 %v1948
        %4606 = vmatpush1.xpose.msra.mxu0 %v1947
        %4607 = vmatprep.subr.mxu0 %v2060
        %4608 = vmatpush1.xpose.msra.mxu0 %v2059
        %4609 = vmatprep.subr.mxu0 %v2172
        %4610 = vmatpush1.xpose.msra.mxu0 %v2171
        %4611 = vmatprep.subr.mxu0 %v2284
        %4612 = vmatpush1.xpose.msra.mxu0 %v2283
        %4613 = vmatprep.subr.mxu0 %v2396
        %4614 = vmatpush1.xpose.msra.mxu0 %v2395
        %4615 = vmatprep.subr.mxu0 %v2508
        %4616 = vmatpush1.xpose.msra.mxu0 %v2507
        %4617 = vmatprep.subr.mxu0 %v2620
        %4618 = vmatpush1.xpose.msra.mxu0 %v2619
        %4619 = vmatprep.subr.mxu0 %v2732
        %4620 = vmatpush1.xpose.msra.mxu0 %v2731
        %4621 = vmatprep.subr.mxu0 %v2844
        %4622 = vmatpush1.xpose.msra.mxu0 %v2843
        %4623 = vmatprep.subr.mxu0 %v2956
        %4624 = vmatpush1.xpose.msra.mxu0 %v2955
        %4625 = vmatprep.subr.mxu0 %v3068
        %4626 = vmatpush1.xpose.msra.mxu0 %v3067
        %4627 = vmatprep.subr.mxu0 %v3180
        %4628 = vmatpush1.xpose.msra.mxu0 %v3179
        %4629 = vmatprep.subr.mxu0 %v3292
        %4630 = vmatpush1.xpose.msra.mxu0 %v3291
        %4631 = vmatprep.subr.mxu0 %v3404
        %4632 = vmatpush1.xpose.msra.mxu0 %v3403
        %4633 = vmatprep.subr.mxu0 %v3516
        %4634 = vmatpush1.xpose.msra.mxu0 %v3515
        %4635 = vmatprep.subr.mxu0 %v3628
        %4636 = vmatpush1.xpose.msra.mxu0 %v3627
        %4637 = vmatprep.subr.mxu0 %v3740
        %4638 = vmatpush1.xpose.msra.mxu0 %v3739
        %4639 = vmatprep.mubr.f32.mxu0 %v3885
        %4640 = vmatmul.mubr.f32.gmra.mrb[0].mxu0 %v3881
        %v4641 = vpop.f32.mrb[0].mxu0
        %v4642 = vadd.f32 %v4571, %v4641
        %v4643 = vpop.f32.mrb[0].mxu0
        %v4644 = vadd.f32 %v4573, %v4643
        %4645 = vdwg.mxu0
        %4646 = vmatprep.subr.mxu0 %v270
        %4647 = vmatpush1.xpose.msra.mxu0 %v269
        %4648 = vmatprep.subr.mxu0 %v382
        %4649 = vmatpush1.xpose.msra.mxu0 %v381
        %4650 = vmatprep.subr.mxu0 %v494
        %4651 = vmatpush1.xpose.msra.mxu0 %v493
        %4652 = vmatprep.subr.mxu0 %v606
        %4653 = vmatpush1.xpose.msra.mxu0 %v605
        %4654 = vmatprep.subr.mxu0 %v718
        %4655 = vmatpush1.xpose.msra.mxu0 %v717
        %4656 = vmatprep.subr.mxu0 %v830
        %4657 = vmatpush1.xpose.msra.mxu0 %v829
        %4658 = vmatprep.subr.mxu0 %v942
        %4659 = vmatpush1.xpose.msra.mxu0 %v941
        %4660 = vmatprep.subr.mxu0 %v1054
        %4661 = vmatpush1.xpose.msra.mxu0 %v1053
        %4662 = vmatprep.subr.mxu0 %v1166
        %4663 = vmatpush1.xpose.msra.mxu0 %v1165
        %4664 = vmatprep.subr.mxu0 %v1278
        %4665 = vmatpush1.xpose.msra.mxu0 %v1277
        %4666 = vmatprep.subr.mxu0 %v1390
        %4667 = vmatpush1.xpose.msra.mxu0 %v1389
        %4668 = vmatprep.subr.mxu0 %v1502
        %4669 = vmatpush1.xpose.msra.mxu0 %v1501
        %4670 = vmatprep.subr.mxu0 %v1614
        %4671 = vmatpush1.xpose.msra.mxu0 %v1613
        %4672 = vmatprep.subr.mxu0 %v1726
        %4673 = vmatpush1.xpose.msra.mxu0 %v1725
        %4674 = vmatprep.subr.mxu0 %v1838
        %4675 = vmatpush1.xpose.msra.mxu0 %v1837
        %4676 = vmatprep.subr.mxu0 %v1950
        %4677 = vmatpush1.xpose.msra.mxu0 %v1949
        %4678 = vmatprep.subr.mxu0 %v2062
        %4679 = vmatpush1.xpose.msra.mxu0 %v2061
        %4680 = vmatprep.subr.mxu0 %v2174
        %4681 = vmatpush1.xpose.msra.mxu0 %v2173
        %4682 = vmatprep.subr.mxu0 %v2286
        %4683 = vmatpush1.xpose.msra.mxu0 %v2285
        %4684 = vmatprep.subr.mxu0 %v2398
        %4685 = vmatpush1.xpose.msra.mxu0 %v2397
        %4686 = vmatprep.subr.mxu0 %v2510
        %4687 = vmatpush1.xpose.msra.mxu0 %v2509
        %4688 = vmatprep.subr.mxu0 %v2622
        %4689 = vmatpush1.xpose.msra.mxu0 %v2621
        %4690 = vmatprep.subr.mxu0 %v2734
        %4691 = vmatpush1.xpose.msra.mxu0 %v2733
        %4692 = vmatprep.subr.mxu0 %v2846
        %4693 = vmatpush1.xpose.msra.mxu0 %v2845
        %4694 = vmatprep.subr.mxu0 %v2958
        %4695 = vmatpush1.xpose.msra.mxu0 %v2957
        %4696 = vmatprep.subr.mxu0 %v3070
        %4697 = vmatpush1.xpose.msra.mxu0 %v3069
        %4698 = vmatprep.subr.mxu0 %v3182
        %4699 = vmatpush1.xpose.msra.mxu0 %v3181
        %4700 = vmatprep.subr.mxu0 %v3294
        %4701 = vmatpush1.xpose.msra.mxu0 %v3293
        %4702 = vmatprep.subr.mxu0 %v3406
        %4703 = vmatpush1.xpose.msra.mxu0 %v3405
        %4704 = vmatprep.subr.mxu0 %v3518
        %4705 = vmatpush1.xpose.msra.mxu0 %v3517
        %4706 = vmatprep.subr.mxu0 %v3630
        %4707 = vmatpush1.xpose.msra.mxu0 %v3629
        %4708 = vmatprep.subr.mxu0 %v3742
        %4709 = vmatpush1.xpose.msra.mxu0 %v3741
        %4710 = vmatprep.mubr.f32.mxu0 %v3893
        %4711 = vmatmul.mubr.f32.gmra.mrb[0].mxu0 %v3889
        %v4712 = vpop.f32.mrb[0].mxu0
        %v4713 = vadd.f32 %v4642, %v4712
        %v4714 = vpop.f32.mrb[0].mxu0
        %v4715 = vadd.f32 %v4644, %v4714
        %4716 = vdwg.mxu0
        %4717 = vmatprep.subr.mxu0 %v272
        %4718 = vmatpush1.xpose.msra.mxu0 %v271
        %4719 = vmatprep.subr.mxu0 %v384
        %4720 = vmatpush1.xpose.msra.mxu0 %v383
        %4721 = vmatprep.subr.mxu0 %v496
        %4722 = vmatpush1.xpose.msra.mxu0 %v495
        %4723 = vmatprep.subr.mxu0 %v608
        %4724 = vmatpush1.xpose.msra.mxu0 %v607
        %4725 = vmatprep.subr.mxu0 %v720
        %4726 = vmatpush1.xpose.msra.mxu0 %v719
        %4727 = vmatprep.subr.mxu0 %v832
        %4728 = vmatpush1.xpose.msra.mxu0 %v831
        %4729 = vmatprep.subr.mxu0 %v944
        %4730 = vmatpush1.xpose.msra.mxu0 %v943
        %4731 = vmatprep.subr.mxu0 %v1056
        %4732 = vmatpush1.xpose.msra.mxu0 %v1055
        %4733 = vmatprep.subr.mxu0 %v1168
        %4734 = vmatpush1.xpose.msra.mxu0 %v1167
        %4735 = vmatprep.subr.mxu0 %v1280
        %4736 = vmatpush1.xpose.msra.mxu0 %v1279
        %4737 = vmatprep.subr.mxu0 %v1392
        %4738 = vmatpush1.xpose.msra.mxu0 %v1391
        %4739 = vmatprep.subr.mxu0 %v1504
        %4740 = vmatpush1.xpose.msra.mxu0 %v1503
        %4741 = vmatprep.subr.mxu0 %v1616
        %4742 = vmatpush1.xpose.msra.mxu0 %v1615
        %4743 = vmatprep.subr.mxu0 %v1728
        %4744 = vmatpush1.xpose.msra.mxu0 %v1727
        %4745 = vmatprep.subr.mxu0 %v1840
        %4746 = vmatpush1.xpose.msra.mxu0 %v1839
        %4747 = vmatprep.subr.mxu0 %v1952
        %4748 = vmatpush1.xpose.msra.mxu0 %v1951
        %4749 = vmatprep.subr.mxu0 %v2064
        %4750 = vmatpush1.xpose.msra.mxu0 %v2063
        %4751 = vmatprep.subr.mxu0 %v2176
        %4752 = vmatpush1.xpose.msra.mxu0 %v2175
        %4753 = vmatprep.subr.mxu0 %v2288
        %4754 = vmatpush1.xpose.msra.mxu0 %v2287
        %4755 = vmatprep.subr.mxu0 %v2400
        %4756 = vmatpush1.xpose.msra.mxu0 %v2399
        %4757 = vmatprep.subr.mxu0 %v2512
        %4758 = vmatpush1.xpose.msra.mxu0 %v2511
        %4759 = vmatprep.subr.mxu0 %v2624
        %4760 = vmatpush1.xpose.msra.mxu0 %v2623
        %4761 = vmatprep.subr.mxu0 %v2736
        %4762 = vmatpush1.xpose.msra.mxu0 %v2735
        %4763 = vmatprep.subr.mxu0 %v2848
        %4764 = vmatpush1.xpose.msra.mxu0 %v2847
        %4765 = vmatprep.subr.mxu0 %v2960
        %4766 = vmatpush1.xpose.msra.mxu0 %v2959
        %4767 = vmatprep.subr.mxu0 %v3072
        %4768 = vmatpush1.xpose.msra.mxu0 %v3071
        %4769 = vmatprep.subr.mxu0 %v3184
        %4770 = vmatpush1.xpose.msra.mxu0 %v3183
        %4771 = vmatprep.subr.mxu0 %v3296
        %4772 = vmatpush1.xpose.msra.mxu0 %v3295
        %4773 = vmatprep.subr.mxu0 %v3408
        %4774 = vmatpush1.xpose.msra.mxu0 %v3407
        %4775 = vmatprep.subr.mxu0 %v3520
        %4776 = vmatpush1.xpose.msra.mxu0 %v3519
        %4777 = vmatprep.subr.mxu0 %v3632
        %4778 = vmatpush1.xpose.msra.mxu0 %v3631
        %4779 = vmatprep.subr.mxu0 %v3744
        %4780 = vmatpush1.xpose.msra.mxu0 %v3743
        %4781 = vmatprep.mubr.f32.mxu0 %v3901
        %4782 = vmatmul.mubr.f32.gmra.mrb[0].mxu0 %v3897
        %v4783 = vpop.f32.mrb[0].mxu0
        %v4784 = vadd.f32 %v4713, %v4783
        %v4785 = vpop.f32.mrb[0].mxu0
        %v4786 = vadd.f32 %v4715, %v4785
        %4787 = vdwg.mxu0
        %4788 = vmatprep.subr.mxu0 %v274
        %4789 = vmatpush1.xpose.msra.mxu0 %v273
        %4790 = vmatprep.subr.mxu0 %v386
        %4791 = vmatpush1.xpose.msra.mxu0 %v385
        %4792 = vmatprep.subr.mxu0 %v498
        %4793 = vmatpush1.xpose.msra.mxu0 %v497
        %4794 = vmatprep.subr.mxu0 %v610
        %4795 = vmatpush1.xpose.msra.mxu0 %v609
        %4796 = vmatprep.subr.mxu0 %v722
        %4797 = vmatpush1.xpose.msra.mxu0 %v721
        %4798 = vmatprep.subr.mxu0 %v834
        %4799 = vmatpush1.xpose.msra.mxu0 %v833
        %4800 = vmatprep.subr.mxu0 %v946
        %4801 = vmatpush1.xpose.msra.mxu0 %v945
        %4802 = vmatprep.subr.mxu0 %v1058
        %4803 = vmatpush1.xpose.msra.mxu0 %v1057
        %4804 = vmatprep.subr.mxu0 %v1170
        %4805 = vmatpush1.xpose.msra.mxu0 %v1169
        %4806 = vmatprep.subr.mxu0 %v1282
        %4807 = vmatpush1.xpose.msra.mxu0 %v1281
        %4808 = vmatprep.subr.mxu0 %v1394
        %4809 = vmatpush1.xpose.msra.mxu0 %v1393
        %4810 = vmatprep.subr.mxu0 %v1506
        %4811 = vmatpush1.xpose.msra.mxu0 %v1505
        %4812 = vmatprep.subr.mxu0 %v1618
        %4813 = vmatpush1.xpose.msra.mxu0 %v1617
        %4814 = vmatprep.subr.mxu0 %v1730
        %4815 = vmatpush1.xpose.msra.mxu0 %v1729
        %4816 = vmatprep.subr.mxu0 %v1842
        %4817 = vmatpush1.xpose.msra.mxu0 %v1841
        %4818 = vmatprep.subr.mxu0 %v1954
        %4819 = vmatpush1.xpose.msra.mxu0 %v1953
        %4820 = vmatprep.subr.mxu0 %v2066
        %4821 = vmatpush1.xpose.msra.mxu0 %v2065
        %4822 = vmatprep.subr.mxu0 %v2178
        %4823 = vmatpush1.xpose.msra.mxu0 %v2177
        %4824 = vmatprep.subr.mxu0 %v2290
        %4825 = vmatpush1.xpose.msra.mxu0 %v2289
        %4826 = vmatprep.subr.mxu0 %v2402
        %4827 = vmatpush1.xpose.msra.mxu0 %v2401
        %4828 = vmatprep.subr.mxu0 %v2514
        %4829 = vmatpush1.xpose.msra.mxu0 %v2513
        %4830 = vmatprep.subr.mxu0 %v2626
        %4831 = vmatpush1.xpose.msra.mxu0 %v2625
        %4832 = vmatprep.subr.mxu0 %v2738
        %4833 = vmatpush1.xpose.msra.mxu0 %v2737
        %4834 = vmatprep.subr.mxu0 %v2850
        %4835 = vmatpush1.xpose.msra.mxu0 %v2849
        %4836 = vmatprep.subr.mxu0 %v2962
        %4837 = vmatpush1.xpose.msra.mxu0 %v2961
        %4838 = vmatprep.subr.mxu0 %v3074
        %4839 = vmatpush1.xpose.msra.mxu0 %v3073
        %4840 = vmatprep.subr.mxu0 %v3186
        %4841 = vmatpush1.xpose.msra.mxu0 %v3185
        %4842 = vmatprep.subr.mxu0 %v3298
        %4843 = vmatpush1.xpose.msra.mxu0 %v3297
        %4844 = vmatprep.subr.mxu0 %v3410
        %4845 = vmatpush1.xpose.msra.mxu0 %v3409
        %4846 = vmatprep.subr.mxu0 %v3522
        %4847 = vmatpush1.xpose.msra.mxu0 %v3521
        %4848 = vmatprep.subr.mxu0 %v3634
        %4849 = vmatpush1.xpose.msra.mxu0 %v3633
        %4850 = vmatprep.subr.mxu0 %v3746
        %4851 = vmatpush1.xpose.msra.mxu0 %v3745
        %4852 = vmatprep.mubr.f32.mxu0 %v3909
        %4853 = vmatmul.mubr.f32.gmra.mrb[0].mxu0 %v3905
        %v4854 = vpop.f32.mrb[0].mxu0
        %v4855 = vadd.f32 %v4784, %v4854
        %v4856 = vpop.f32.mrb[0].mxu0
        %v4857 = vadd.f32 %v4786, %v4856
        %4858 = vdwg.mxu0
        %4859 = vmatprep.subr.mxu0 %v276
        %4860 = vmatpush1.xpose.msra.mxu0 %v275
        %4861 = vmatprep.subr.mxu0 %v388
        %4862 = vmatpush1.xpose.msra.mxu0 %v387
        %4863 = vmatprep.subr.mxu0 %v500
        %4864 = vmatpush1.xpose.msra.mxu0 %v499
        %4865 = vmatprep.subr.mxu0 %v612
        %4866 = vmatpush1.xpose.msra.mxu0 %v611
        %4867 = vmatprep.subr.mxu0 %v724
        %4868 = vmatpush1.xpose.msra.mxu0 %v723
        %4869 = vmatprep.subr.mxu0 %v836
        %4870 = vmatpush1.xpose.msra.mxu0 %v835
        %4871 = vmatprep.subr.mxu0 %v948
        %4872 = vmatpush1.xpose.msra.mxu0 %v947
        %4873 = vmatprep.subr.mxu0 %v1060
        %4874 = vmatpush1.xpose.msra.mxu0 %v1059
        %4875 = vmatprep.subr.mxu0 %v1172
        %4876 = vmatpush1.xpose.msra.mxu0 %v1171
        %4877 = vmatprep.subr.mxu0 %v1284
        %4878 = vmatpush1.xpose.msra.mxu0 %v1283
        %4879 = vmatprep.subr.mxu0 %v1396
        %4880 = vmatpush1.xpose.msra.mxu0 %v1395
        %4881 = vmatprep.subr.mxu0 %v1508
        %4882 = vmatpush1.xpose.msra.mxu0 %v1507
        %4883 = vmatprep.subr.mxu0 %v1620
        %4884 = vmatpush1.xpose.msra.mxu0 %v1619
        %4885 = vmatprep.subr.mxu0 %v1732
        %4886 = vmatpush1.xpose.msra.mxu0 %v1731
        %4887 = vmatprep.subr.mxu0 %v1844
        %4888 = vmatpush1.xpose.msra.mxu0 %v1843
        %4889 = vmatprep.subr.mxu0 %v1956
        %4890 = vmatpush1.xpose.msra.mxu0 %v1955
        %4891 = vmatprep.subr.mxu0 %v2068
        %4892 = vmatpush1.xpose.msra.mxu0 %v2067
        %4893 = vmatprep.subr.mxu0 %v2180
        %4894 = vmatpush1.xpose.msra.mxu0 %v2179
        %4895 = vmatprep.subr.mxu0 %v2292
        %4896 = vmatpush1.xpose.msra.mxu0 %v2291
        %4897 = vmatprep.subr.mxu0 %v2404
        %4898 = vmatpush1.xpose.msra.mxu0 %v2403
        %4899 = vmatprep.subr.mxu0 %v2516
        %4900 = vmatpush1.xpose.msra.mxu0 %v2515
        %4901 = vmatprep.subr.mxu0 %v2628
        %4902 = vmatpush1.xpose.msra.mxu0 %v2627
        %4903 = vmatprep.subr.mxu0 %v2740
        %4904 = vmatpush1.xpose.msra.mxu0 %v2739
        %4905 = vmatprep.subr.mxu0 %v2852
        %4906 = vmatpush1.xpose.msra.mxu0 %v2851
        %4907 = vmatprep.subr.mxu0 %v2964
        %4908 = vmatpush1.xpose.msra.mxu0 %v2963
        %4909 = vmatprep.subr.mxu0 %v3076
        %4910 = vmatpush1.xpose.msra.mxu0 %v3075
        %4911 = vmatprep.subr.mxu0 %v3188
        %4912 = vmatpush1.xpose.msra.mxu0 %v3187
        %4913 = vmatprep.subr.mxu0 %v3300
        %4914 = vmatpush1.xpose.msra.mxu0 %v3299
        %4915 = vmatprep.subr.mxu0 %v3412
        %4916 = vmatpush1.xpose.msra.mxu0 %v3411
        %4917 = vmatprep.subr.mxu0 %v3524
        %4918 = vmatpush1.xpose.msra.mxu0 %v3523
        %4919 = vmatprep.subr.mxu0 %v3636
        %4920 = vmatpush1.xpose.msra.mxu0 %v3635
        %4921 = vmatprep.subr.mxu0 %v3748
        %4922 = vmatpush1.xpose.msra.mxu0 %v3747
        %4923 = vmatprep.mubr.f32.mxu0 %v3917
        %4924 = vmatmul.mubr.f32.gmra.mrb[0].mxu0 %v3913
        %v4925 = vpop.f32.mrb[0].mxu0
        %v4926 = vadd.f32 %v4855, %v4925
        %v4927 = vpop.f32.mrb[0].mxu0
        %v4928 = vadd.f32 %v4857, %v4927
        %4929 = vdwg.mxu0
        %4930 = vmatprep.subr.mxu0 %v278
        %4931 = vmatpush1.xpose.msra.mxu0 %v277
        %4932 = vmatprep.subr.mxu0 %v390
        %4933 = vmatpush1.xpose.msra.mxu0 %v389
        %4934 = vmatprep.subr.mxu0 %v502
        %4935 = vmatpush1.xpose.msra.mxu0 %v501
        %4936 = vmatprep.subr.mxu0 %v614
        %4937 = vmatpush1.xpose.msra.mxu0 %v613
        %4938 = vmatprep.subr.mxu0 %v726
        %4939 = vmatpush1.xpose.msra.mxu0 %v725
        %4940 = vmatprep.subr.mxu0 %v838
        %4941 = vmatpush1.xpose.msra.mxu0 %v837
        %4942 = vmatprep.subr.mxu0 %v950
        %4943 = vmatpush1.xpose.msra.mxu0 %v949
        %4944 = vmatprep.subr.mxu0 %v1062
        %4945 = vmatpush1.xpose.msra.mxu0 %v1061
        %4946 = vmatprep.subr.mxu0 %v1174
        %4947 = vmatpush1.xpose.msra.mxu0 %v1173
        %4948 = vmatprep.subr.mxu0 %v1286
        %4949 = vmatpush1.xpose.msra.mxu0 %v1285
        %4950 = vmatprep.subr.mxu0 %v1398
        %4951 = vmatpush1.xpose.msra.mxu0 %v1397
        %4952 = vmatprep.subr.mxu0 %v1510
        %4953 = vmatpush1.xpose.msra.mxu0 %v1509
        %4954 = vmatprep.subr.mxu0 %v1622
        %4955 = vmatpush1.xpose.msra.mxu0 %v1621
        %4956 = vmatprep.subr.mxu0 %v1734
        %4957 = vmatpush1.xpose.msra.mxu0 %v1733
        %4958 = vmatprep.subr.mxu0 %v1846
        %4959 = vmatpush1.xpose.msra.mxu0 %v1845
        %4960 = vmatprep.subr.mxu0 %v1958
        %4961 = vmatpush1.xpose.msra.mxu0 %v1957
        %4962 = vmatprep.subr.mxu0 %v2070
        %4963 = vmatpush1.xpose.msra.mxu0 %v2069
        %4964 = vmatprep.subr.mxu0 %v2182
        %4965 = vmatpush1.xpose.msra.mxu0 %v2181
        %4966 = vmatprep.subr.mxu0 %v2294
        %4967 = vmatpush1.xpose.msra.mxu0 %v2293
        %4968 = vmatprep.subr.mxu0 %v2406
        %4969 = vmatpush1.xpose.msra.mxu0 %v2405
        %4970 = vmatprep.subr.mxu0 %v2518
        %4971 = vmatpush1.xpose.msra.mxu0 %v2517
        %4972 = vmatprep.subr.mxu0 %v2630
        %4973 = vmatpush1.xpose.msra.mxu0 %v2629
        %4974 = vmatprep.subr.mxu0 %v2742
        %4975 = vmatpush1.xpose.msra.mxu0 %v2741
        %4976 = vmatprep.subr.mxu0 %v2854
        %4977 = vmatpush1.xpose.msra.mxu0 %v2853
        %4978 = vmatprep.subr.mxu0 %v2966
        %4979 = vmatpush1.xpose.msra.mxu0 %v2965
        %4980 = vmatprep.subr.mxu0 %v3078
        %4981 = vmatpush1.xpose.msra.mxu0 %v3077
        %4982 = vmatprep.subr.mxu0 %v3190
        %4983 = vmatpush1.xpose.msra.mxu0 %v3189
        %4984 = vmatprep.subr.mxu0 %v3302
        %4985 = vmatpush1.xpose.msra.mxu0 %v3301
        %4986 = vmatprep.subr.mxu0 %v3414
        %4987 = vmatpush1.xpose.msra.mxu0 %v3413
        %4988 = vmatprep.subr.mxu0 %v3526
        %4989 = vmatpush1.xpose.msra.mxu0 %v3525
        %4990 = vmatprep.subr.mxu0 %v3638
        %4991 = vmatpush1.xpose.msra.mxu0 %v3637
        %4992 = vmatprep.subr.mxu0 %v3750
        %4993 = vmatpush1.xpose.msra.mxu0 %v3749
        %4994 = vmatprep.mubr.f32.mxu0 %v3925
        %4995 = vmatmul.mubr.f32.gmra.mrb[0].mxu0 %v3921
        %v4996 = vpop.f32.mrb[0].mxu0
        %v4997 = vadd.f32 %v4926, %v4996
        %v4998 = vpop.f32.mrb[0].mxu0
        %v4999 = vadd.f32 %v4928, %v4998
        %5000 = vdwg.mxu0
        %5001 = vmatprep.subr.mxu0 %v280
        %5002 = vmatpush1.xpose.msra.mxu0 %v279
        %5003 = vmatprep.subr.mxu0 %v392
        %5004 = vmatpush1.xpose.msra.mxu0 %v391
        %5005 = vmatprep.subr.mxu0 %v504
        %5006 = vmatpush1.xpose.msra.mxu0 %v503
        %5007 = vmatprep.subr.mxu0 %v616
        %5008 = vmatpush1.xpose.msra.mxu0 %v615
        %5009 = vmatprep.subr.mxu0 %v728
        %5010 = vmatpush1.xpose.msra.mxu0 %v727
        %5011 = vmatprep.subr.mxu0 %v840
        %5012 = vmatpush1.xpose.msra.mxu0 %v839
        %5013 = vmatprep.subr.mxu0 %v952
        %5014 = vmatpush1.xpose.msra.mxu0 %v951
        %5015 = vmatprep.subr.mxu0 %v1064
        %5016 = vmatpush1.xpose.msra.mxu0 %v1063
        %5017 = vmatprep.subr.mxu0 %v1176
        %5018 = vmatpush1.xpose.msra.mxu0 %v1175
        %5019 = vmatprep.subr.mxu0 %v1288
        %5020 = vmatpush1.xpose.msra.mxu0 %v1287
        %5021 = vmatprep.subr.mxu0 %v1400
        %5022 = vmatpush1.xpose.msra.mxu0 %v1399
        %5023 = vmatprep.subr.mxu0 %v1512
        %5024 = vmatpush1.xpose.msra.mxu0 %v1511
        %5025 = vmatprep.subr.mxu0 %v1624
        %5026 = vmatpush1.xpose.msra.mxu0 %v1623
        %5027 = vmatprep.subr.mxu0 %v1736
        %5028 = vmatpush1.xpose.msra.mxu0 %v1735
        %5029 = vmatprep.subr.mxu0 %v1848
        %5030 = vmatpush1.xpose.msra.mxu0 %v1847
        %5031 = vmatprep.subr.mxu0 %v1960
        %5032 = vmatpush1.xpose.msra.mxu0 %v1959
        %5033 = vmatprep.subr.mxu0 %v2072
        %5034 = vmatpush1.xpose.msra.mxu0 %v2071
        %5035 = vmatprep.subr.mxu0 %v2184
        %5036 = vmatpush1.xpose.msra.mxu0 %v2183
        %5037 = vmatprep.subr.mxu0 %v2296
        %5038 = vmatpush1.xpose.msra.mxu0 %v2295
        %5039 = vmatprep.subr.mxu0 %v2408
        %5040 = vmatpush1.xpose.msra.mxu0 %v2407
        %5041 = vmatprep.subr.mxu0 %v2520
        %5042 = vmatpush1.xpose.msra.mxu0 %v2519
        %5043 = vmatprep.subr.mxu0 %v2632
        %5044 = vmatpush1.xpose.msra.mxu0 %v2631
        %5045 = vmatprep.subr.mxu0 %v2744
        %5046 = vmatpush1.xpose.msra.mxu0 %v2743
        %5047 = vmatprep.subr.mxu0 %v2856
        %5048 = vmatpush1.xpose.msra.mxu0 %v2855
        %5049 = vmatprep.subr.mxu0 %v2968
        %5050 = vmatpush1.xpose.msra.mxu0 %v2967
        %5051 = vmatprep.subr.mxu0 %v3080
        %5052 = vmatpush1.xpose.msra.mxu0 %v3079
        %5053 = vmatprep.subr.mxu0 %v3192
        %5054 = vmatpush1.xpose.msra.mxu0 %v3191
        %5055 = vmatprep.subr.mxu0 %v3304
        %5056 = vmatpush1.xpose.msra.mxu0 %v3303
        %5057 = vmatprep.subr.mxu0 %v3416
        %5058 = vmatpush1.xpose.msra.mxu0 %v3415
        %5059 = vmatprep.subr.mxu0 %v3528
        %5060 = vmatpush1.xpose.msra.mxu0 %v3527
        %5061 = vmatprep.subr.mxu0 %v3640
        %5062 = vmatpush1.xpose.msra.mxu0 %v3639
        %5063 = vmatprep.subr.mxu0 %v3752
        %5064 = vmatpush1.xpose.msra.mxu0 %v3751
        %5065 = vmatprep.mubr.f32.mxu0 %v3933
        %5066 = vmatmul.mubr.f32.gmra.mrb[0].mxu0 %v3929
        %v5067 = vpop.f32.mrb[0].mxu0
        %v5068 = vadd.f32 %v4997, %v5067
        %v5069 = vpop.f32.mrb[0].mxu0
        %v5070 = vadd.f32 %v4999, %v5069
        %5071 = vdwg.mxu0
        %5072 = vmatprep.subr.mxu0 %v282
        %5073 = vmatpush1.xpose.msra.mxu0 %v281
        %5074 = vmatprep.subr.mxu0 %v394
        %5075 = vmatpush1.xpose.msra.mxu0 %v393
        %5076 = vmatprep.subr.mxu0 %v506
        %5077 = vmatpush1.xpose.msra.mxu0 %v505
        %5078 = vmatprep.subr.mxu0 %v618
        %5079 = vmatpush1.xpose.msra.mxu0 %v617
        %5080 = vmatprep.subr.mxu0 %v730
        %5081 = vmatpush1.xpose.msra.mxu0 %v729
        %5082 = vmatprep.subr.mxu0 %v842
        %5083 = vmatpush1.xpose.msra.mxu0 %v841
        %5084 = vmatprep.subr.mxu0 %v954
        %5085 = vmatpush1.xpose.msra.mxu0 %v953
        %5086 = vmatprep.subr.mxu0 %v1066
        %5087 = vmatpush1.xpose.msra.mxu0 %v1065
        %5088 = vmatprep.subr.mxu0 %v1178
        %5089 = vmatpush1.xpose.msra.mxu0 %v1177
        %5090 = vmatprep.subr.mxu0 %v1290
        %5091 = vmatpush1.xpose.msra.mxu0 %v1289
        %5092 = vmatprep.subr.mxu0 %v1402
        %5093 = vmatpush1.xpose.msra.mxu0 %v1401
        %5094 = vmatprep.subr.mxu0 %v1514
        %5095 = vmatpush1.xpose.msra.mxu0 %v1513
        %5096 = vmatprep.subr.mxu0 %v1626
        %5097 = vmatpush1.xpose.msra.mxu0 %v1625
        %5098 = vmatprep.subr.mxu0 %v1738
        %5099 = vmatpush1.xpose.msra.mxu0 %v1737
        %5100 = vmatprep.subr.mxu0 %v1850
        %5101 = vmatpush1.xpose.msra.mxu0 %v1849
        %5102 = vmatprep.subr.mxu0 %v1962
        %5103 = vmatpush1.xpose.msra.mxu0 %v1961
        %5104 = vmatprep.subr.mxu0 %v2074
        %5105 = vmatpush1.xpose.msra.mxu0 %v2073
        %5106 = vmatprep.subr.mxu0 %v2186
        %5107 = vmatpush1.xpose.msra.mxu0 %v2185
        %5108 = vmatprep.subr.mxu0 %v2298
        %5109 = vmatpush1.xpose.msra.mxu0 %v2297
        %5110 = vmatprep.subr.mxu0 %v2410
        %5111 = vmatpush1.xpose.msra.mxu0 %v2409
        %5112 = vmatprep.subr.mxu0 %v2522
        %5113 = vmatpush1.xpose.msra.mxu0 %v2521
        %5114 = vmatprep.subr.mxu0 %v2634
        %5115 = vmatpush1.xpose.msra.mxu0 %v2633
        %5116 = vmatprep.subr.mxu0 %v2746
        %5117 = vmatpush1.xpose.msra.mxu0 %v2745
        %5118 = vmatprep.subr.mxu0 %v2858
        %5119 = vmatpush1.xpose.msra.mxu0 %v2857
        %5120 = vmatprep.subr.mxu0 %v2970
        %5121 = vmatpush1.xpose.msra.mxu0 %v2969
        %5122 = vmatprep.subr.mxu0 %v3082
        %5123 = vmatpush1.xpose.msra.mxu0 %v3081
        %5124 = vmatprep.subr.mxu0 %v3194
        %5125 = vmatpush1.xpose.msra.mxu0 %v3193
        %5126 = vmatprep.subr.mxu0 %v3306
        %5127 = vmatpush1.xpose.msra.mxu0 %v3305
        %5128 = vmatprep.subr.mxu0 %v3418
        %5129 = vmatpush1.xpose.msra.mxu0 %v3417
        %5130 = vmatprep.subr.mxu0 %v3530
        %5131 = vmatpush1.xpose.msra.mxu0 %v3529
        %5132 = vmatprep.subr.mxu0 %v3642
        %5133 = vmatpush1.xpose.msra.mxu0 %v3641
        %5134 = vmatprep.subr.mxu0 %v3754
        %5135 = vmatpush1.xpose.msra.mxu0 %v3753
        %5136 = vmatprep.mubr.f32.mxu0 %v3941
        %5137 = vmatmul.mubr.f32.gmra.mrb[0].mxu0 %v3937
        %v5138 = vpop.f32.mrb[0].mxu0
        %v5139 = vadd.f32 %v5068, %v5138
        %v5140 = vpop.f32.mrb[0].mxu0
        %v5141 = vadd.f32 %v5070, %v5140
        %5142 = vdwg.mxu0
        %5143 = vmatprep.subr.mxu0 %v284
        %5144 = vmatpush1.xpose.msra.mxu0 %v283
        %5145 = vmatprep.subr.mxu0 %v396
        %5146 = vmatpush1.xpose.msra.mxu0 %v395
        %5147 = vmatprep.subr.mxu0 %v508
        %5148 = vmatpush1.xpose.msra.mxu0 %v507
        %5149 = vmatprep.subr.mxu0 %v620
        %5150 = vmatpush1.xpose.msra.mxu0 %v619
        %5151 = vmatprep.subr.mxu0 %v732
        %5152 = vmatpush1.xpose.msra.mxu0 %v731
        %5153 = vmatprep.subr.mxu0 %v844
        %5154 = vmatpush1.xpose.msra.mxu0 %v843
        %5155 = vmatprep.subr.mxu0 %v956
        %5156 = vmatpush1.xpose.msra.mxu0 %v955
        %5157 = vmatprep.subr.mxu0 %v1068
        %5158 = vmatpush1.xpose.msra.mxu0 %v1067
        %5159 = vmatprep.subr.mxu0 %v1180
        %5160 = vmatpush1.xpose.msra.mxu0 %v1179
        %5161 = vmatprep.subr.mxu0 %v1292
        %5162 = vmatpush1.xpose.msra.mxu0 %v1291
        %5163 = vmatprep.subr.mxu0 %v1404
        %5164 = vmatpush1.xpose.msra.mxu0 %v1403
        %5165 = vmatprep.subr.mxu0 %v1516
        %5166 = vmatpush1.xpose.msra.mxu0 %v1515
        %5167 = vmatprep.subr.mxu0 %v1628
        %5168 = vmatpush1.xpose.msra.mxu0 %v1627
        %5169 = vmatprep.subr.mxu0 %v1740
        %5170 = vmatpush1.xpose.msra.mxu0 %v1739
        %5171 = vmatprep.subr.mxu0 %v1852
        %5172 = vmatpush1.xpose.msra.mxu0 %v1851
        %5173 = vmatprep.subr.mxu0 %v1964
        %5174 = vmatpush1.xpose.msra.mxu0 %v1963
        %5175 = vmatprep.subr.mxu0 %v2076
        %5176 = vmatpush1.xpose.msra.mxu0 %v2075
        %5177 = vmatprep.subr.mxu0 %v2188
        %5178 = vmatpush1.xpose.msra.mxu0 %v2187
        %5179 = vmatprep.subr.mxu0 %v2300
        %5180 = vmatpush1.xpose.msra.mxu0 %v2299
        %5181 = vmatprep.subr.mxu0 %v2412
        %5182 = vmatpush1.xpose.msra.mxu0 %v2411
        %5183 = vmatprep.subr.mxu0 %v2524
        %5184 = vmatpush1.xpose.msra.mxu0 %v2523
        %5185 = vmatprep.subr.mxu0 %v2636
        %5186 = vmatpush1.xpose.msra.mxu0 %v2635
        %5187 = vmatprep.subr.mxu0 %v2748
        %5188 = vmatpush1.xpose.msra.mxu0 %v2747
        %5189 = vmatprep.subr.mxu0 %v2860
        %5190 = vmatpush1.xpose.msra.mxu0 %v2859
        %5191 = vmatprep.subr.mxu0 %v2972
        %5192 = vmatpush1.xpose.msra.mxu0 %v2971
        %5193 = vmatprep.subr.mxu0 %v3084
        %5194 = vmatpush1.xpose.msra.mxu0 %v3083
        %5195 = vmatprep.subr.mxu0 %v3196
        %5196 = vmatpush1.xpose.msra.mxu0 %v3195
        %5197 = vmatprep.subr.mxu0 %v3308
        %5198 = vmatpush1.xpose.msra.mxu0 %v3307
        %5199 = vmatprep.subr.mxu0 %v3420
        %5200 = vmatpush1.xpose.msra.mxu0 %v3419
        %5201 = vmatprep.subr.mxu0 %v3532
        %5202 = vmatpush1.xpose.msra.mxu0 %v3531
        %5203 = vmatprep.subr.mxu0 %v3644
        %5204 = vmatpush1.xpose.msra.mxu0 %v3643
        %5205 = vmatprep.subr.mxu0 %v3756
        %5206 = vmatpush1.xpose.msra.mxu0 %v3755
        %5207 = vmatprep.mubr.f32.mxu0 %v3949
        %5208 = vmatmul.mubr.f32.gmra.mrb[0].mxu0 %v3945
        %v5209 = vpop.f32.mrb[0].mxu0
        %v5210 = vadd.f32 %v5139, %v5209
        %v5211 = vpop.f32.mrb[0].mxu0
        %v5212 = vadd.f32 %v5141, %v5211
        %5213 = vdwg.mxu0
        %5214 = vmatprep.subr.mxu0 %v286
        %5215 = vmatpush1.xpose.msra.mxu0 %v285
        %5216 = vmatprep.subr.mxu0 %v398
        %5217 = vmatpush1.xpose.msra.mxu0 %v397
        %5218 = vmatprep.subr.mxu0 %v510
        %5219 = vmatpush1.xpose.msra.mxu0 %v509
        %5220 = vmatprep.subr.mxu0 %v622
        %5221 = vmatpush1.xpose.msra.mxu0 %v621
        %5222 = vmatprep.subr.mxu0 %v734
        %5223 = vmatpush1.xpose.msra.mxu0 %v733
        %5224 = vmatprep.subr.mxu0 %v846
        %5225 = vmatpush1.xpose.msra.mxu0 %v845
        %5226 = vmatprep.subr.mxu0 %v958
        %5227 = vmatpush1.xpose.msra.mxu0 %v957
        %5228 = vmatprep.subr.mxu0 %v1070
        %5229 = vmatpush1.xpose.msra.mxu0 %v1069
        %5230 = vmatprep.subr.mxu0 %v1182
        %5231 = vmatpush1.xpose.msra.mxu0 %v1181
        %5232 = vmatprep.subr.mxu0 %v1294
        %5233 = vmatpush1.xpose.msra.mxu0 %v1293
        %5234 = vmatprep.subr.mxu0 %v1406
        %5235 = vmatpush1.xpose.msra.mxu0 %v1405
        %5236 = vmatprep.subr.mxu0 %v1518
        %5237 = vmatpush1.xpose.msra.mxu0 %v1517
        %5238 = vmatprep.subr.mxu0 %v1630
        %5239 = vmatpush1.xpose.msra.mxu0 %v1629
        %5240 = vmatprep.subr.mxu0 %v1742
        %5241 = vmatpush1.xpose.msra.mxu0 %v1741
        %5242 = vmatprep.subr.mxu0 %v1854
        %5243 = vmatpush1.xpose.msra.mxu0 %v1853
        %5244 = vmatprep.subr.mxu0 %v1966
        %5245 = vmatpush1.xpose.msra.mxu0 %v1965
        %5246 = vmatprep.subr.mxu0 %v2078
        %5247 = vmatpush1.xpose.msra.mxu0 %v2077
        %5248 = vmatprep.subr.mxu0 %v2190
        %5249 = vmatpush1.xpose.msra.mxu0 %v2189
        %5250 = vmatprep.subr.mxu0 %v2302
        %5251 = vmatpush1.xpose.msra.mxu0 %v2301
        %5252 = vmatprep.subr.mxu0 %v2414
        %5253 = vmatpush1.xpose.msra.mxu0 %v2413
        %5254 = vmatprep.subr.mxu0 %v2526
        %5255 = vmatpush1.xpose.msra.mxu0 %v2525
        %5256 = vmatprep.subr.mxu0 %v2638
        %5257 = vmatpush1.xpose.msra.mxu0 %v2637
        %5258 = vmatprep.subr.mxu0 %v2750
        %5259 = vmatpush1.xpose.msra.mxu0 %v2749
        %5260 = vmatprep.subr.mxu0 %v2862
        %5261 = vmatpush1.xpose.msra.mxu0 %v2861
        %5262 = vmatprep.subr.mxu0 %v2974
        %5263 = vmatpush1.xpose.msra.mxu0 %v2973
        %5264 = vmatprep.subr.mxu0 %v3086
        %5265 = vmatpush1.xpose.msra.mxu0 %v3085
        %5266 = vmatprep.subr.mxu0 %v3198
        %5267 = vmatpush1.xpose.msra.mxu0 %v3197
        %5268 = vmatprep.subr.mxu0 %v3310
        %5269 = vmatpush1.xpose.msra.mxu0 %v3309
        %5270 = vmatprep.subr.mxu0 %v3422
        %5271 = vmatpush1.xpose.msra.mxu0 %v3421
        %5272 = vmatprep.subr.mxu0 %v3534
        %5273 = vmatpush1.xpose.msra.mxu0 %v3533
        %5274 = vmatprep.subr.mxu0 %v3646
        %5275 = vmatpush1.xpose.msra.mxu0 %v3645
        %5276 = vmatprep.subr.mxu0 %v3758
        %5277 = vmatpush1.xpose.msra.mxu0 %v3757
        %5278 = vmatprep.mubr.f32.mxu0 %v3957
        %5279 = vmatmul.mubr.f32.gmra.mrb[0].mxu0 %v3953
        %v5280 = vpop.f32.mrb[0].mxu0
        %v5281 = vadd.f32 %v5210, %v5280
        %v5282 = vpop.f32.mrb[0].mxu0
        %v5283 = vadd.f32 %v5212, %v5282
        %5284 = vdwg.mxu0
        %5285 = vmatprep.subr.mxu0 %v288
        %5286 = vmatpush1.xpose.msra.mxu0 %v287
        %5287 = vmatprep.subr.mxu0 %v400
        %5288 = vmatpush1.xpose.msra.mxu0 %v399
        %5289 = vmatprep.subr.mxu0 %v512
        %5290 = vmatpush1.xpose.msra.mxu0 %v511
        %5291 = vmatprep.subr.mxu0 %v624
        %5292 = vmatpush1.xpose.msra.mxu0 %v623
        %5293 = vmatprep.subr.mxu0 %v736
        %5294 = vmatpush1.xpose.msra.mxu0 %v735
        %5295 = vmatprep.subr.mxu0 %v848
        %5296 = vmatpush1.xpose.msra.mxu0 %v847
        %5297 = vmatprep.subr.mxu0 %v960
        %5298 = vmatpush1.xpose.msra.mxu0 %v959
        %5299 = vmatprep.subr.mxu0 %v1072
        %5300 = vmatpush1.xpose.msra.mxu0 %v1071
        %5301 = vmatprep.subr.mxu0 %v1184
        %5302 = vmatpush1.xpose.msra.mxu0 %v1183
        %5303 = vmatprep.subr.mxu0 %v1296
        %5304 = vmatpush1.xpose.msra.mxu0 %v1295
        %5305 = vmatprep.subr.mxu0 %v1408
        %5306 = vmatpush1.xpose.msra.mxu0 %v1407
        %5307 = vmatprep.subr.mxu0 %v1520
        %5308 = vmatpush1.xpose.msra.mxu0 %v1519
        %5309 = vmatprep.subr.mxu0 %v1632
        %5310 = vmatpush1.xpose.msra.mxu0 %v1631
        %5311 = vmatprep.subr.mxu0 %v1744
        %5312 = vmatpush1.xpose.msra.mxu0 %v1743
        %5313 = vmatprep.subr.mxu0 %v1856
        %5314 = vmatpush1.xpose.msra.mxu0 %v1855
        %5315 = vmatprep.subr.mxu0 %v1968
        %5316 = vmatpush1.xpose.msra.mxu0 %v1967
        %5317 = vmatprep.subr.mxu0 %v2080
        %5318 = vmatpush1.xpose.msra.mxu0 %v2079
        %5319 = vmatprep.subr.mxu0 %v2192
        %5320 = vmatpush1.xpose.msra.mxu0 %v2191
        %5321 = vmatprep.subr.mxu0 %v2304
        %5322 = vmatpush1.xpose.msra.mxu0 %v2303
        %5323 = vmatprep.subr.mxu0 %v2416
        %5324 = vmatpush1.xpose.msra.mxu0 %v2415
        %5325 = vmatprep.subr.mxu0 %v2528
        %5326 = vmatpush1.xpose.msra.mxu0 %v2527
        %5327 = vmatprep.subr.mxu0 %v2640
        %5328 = vmatpush1.xpose.msra.mxu0 %v2639
        %5329 = vmatprep.subr.mxu0 %v2752
        %5330 = vmatpush1.xpose.msra.mxu0 %v2751
        %5331 = vmatprep.subr.mxu0 %v2864
        %5332 = vmatpush1.xpose.msra.mxu0 %v2863
        %5333 = vmatprep.subr.mxu0 %v2976
        %5334 = vmatpush1.xpose.msra.mxu0 %v2975
        %5335 = vmatprep.subr.mxu0 %v3088
        %5336 = vmatpush1.xpose.msra.mxu0 %v3087
        %5337 = vmatprep.subr.mxu0 %v3200
        %5338 = vmatpush1.xpose.msra.mxu0 %v3199
        %5339 = vmatprep.subr.mxu0 %v3312
        %5340 = vmatpush1.xpose.msra.mxu0 %v3311
        %5341 = vmatprep.subr.mxu0 %v3424
        %5342 = vmatpush1.xpose.msra.mxu0 %v3423
        %5343 = vmatprep.subr.mxu0 %v3536
        %5344 = vmatpush1.xpose.msra.mxu0 %v3535
        %5345 = vmatprep.subr.mxu0 %v3648
        %5346 = vmatpush1.xpose.msra.mxu0 %v3647
        %5347 = vmatprep.subr.mxu0 %v3760
        %5348 = vmatpush1.xpose.msra.mxu0 %v3759
        %5349 = vmatprep.mubr.f32.mxu0 %v3965
        %5350 = vmatmul.mubr.f32.gmra.mrb[0].mxu0 %v3961
        %v5351 = vpop.f32.mrb[0].mxu0
        %v5352 = vadd.f32 %v5281, %v5351
        %v5353 = vpop.f32.mrb[0].mxu0
        %v5354 = vadd.f32 %v5283, %v5353
        %5355 = vdwg.mxu0
        %5356 = vmatprep.subr.mxu0 %v290
        %5357 = vmatpush1.xpose.msra.mxu0 %v289
        %5358 = vmatprep.subr.mxu0 %v402
        %5359 = vmatpush1.xpose.msra.mxu0 %v401
        %5360 = vmatprep.subr.mxu0 %v514
        %5361 = vmatpush1.xpose.msra.mxu0 %v513
        %5362 = vmatprep.subr.mxu0 %v626
        %5363 = vmatpush1.xpose.msra.mxu0 %v625
        %5364 = vmatprep.subr.mxu0 %v738
        %5365 = vmatpush1.xpose.msra.mxu0 %v737
        %5366 = vmatprep.subr.mxu0 %v850
        %5367 = vmatpush1.xpose.msra.mxu0 %v849
        %5368 = vmatprep.subr.mxu0 %v962
        %5369 = vmatpush1.xpose.msra.mxu0 %v961
        %5370 = vmatprep.subr.mxu0 %v1074
        %5371 = vmatpush1.xpose.msra.mxu0 %v1073
        %5372 = vmatprep.subr.mxu0 %v1186
        %5373 = vmatpush1.xpose.msra.mxu0 %v1185
        %5374 = vmatprep.subr.mxu0 %v1298
        %5375 = vmatpush1.xpose.msra.mxu0 %v1297
        %5376 = vmatprep.subr.mxu0 %v1410
        %5377 = vmatpush1.xpose.msra.mxu0 %v1409
        %5378 = vmatprep.subr.mxu0 %v1522
        %5379 = vmatpush1.xpose.msra.mxu0 %v1521
        %5380 = vmatprep.subr.mxu0 %v1634
        %5381 = vmatpush1.xpose.msra.mxu0 %v1633
        %5382 = vmatprep.subr.mxu0 %v1746
        %5383 = vmatpush1.xpose.msra.mxu0 %v1745
        %5384 = vmatprep.subr.mxu0 %v1858
        %5385 = vmatpush1.xpose.msra.mxu0 %v1857
        %5386 = vmatprep.subr.mxu0 %v1970
        %5387 = vmatpush1.xpose.msra.mxu0 %v1969
        %5388 = vmatprep.subr.mxu0 %v2082
        %5389 = vmatpush1.xpose.msra.mxu0 %v2081
        %5390 = vmatprep.subr.mxu0 %v2194
        %5391 = vmatpush1.xpose.msra.mxu0 %v2193
        %5392 = vmatprep.subr.mxu0 %v2306
        %5393 = vmatpush1.xpose.msra.mxu0 %v2305
        %5394 = vmatprep.subr.mxu0 %v2418
        %5395 = vmatpush1.xpose.msra.mxu0 %v2417
        %5396 = vmatprep.subr.mxu0 %v2530
        %5397 = vmatpush1.xpose.msra.mxu0 %v2529
        %5398 = vmatprep.subr.mxu0 %v2642
        %5399 = vmatpush1.xpose.msra.mxu0 %v2641
        %5400 = vmatprep.subr.mxu0 %v2754
        %5401 = vmatpush1.xpose.msra.mxu0 %v2753
        %5402 = vmatprep.subr.mxu0 %v2866
        %5403 = vmatpush1.xpose.msra.mxu0 %v2865
        %5404 = vmatprep.subr.mxu0 %v2978
        %5405 = vmatpush1.xpose.msra.mxu0 %v2977
        %5406 = vmatprep.subr.mxu0 %v3090
        %5407 = vmatpush1.xpose.msra.mxu0 %v3089
        %5408 = vmatprep.subr.mxu0 %v3202
        %5409 = vmatpush1.xpose.msra.mxu0 %v3201
        %5410 = vmatprep.subr.mxu0 %v3314
        %5411 = vmatpush1.xpose.msra.mxu0 %v3313
        %5412 = vmatprep.subr.mxu0 %v3426
        %5413 = vmatpush1.xpose.msra.mxu0 %v3425
        %5414 = vmatprep.subr.mxu0 %v3538
        %5415 = vmatpush1.xpose.msra.mxu0 %v3537
        %5416 = vmatprep.subr.mxu0 %v3650
        %5417 = vmatpush1.xpose.msra.mxu0 %v3649
        %5418 = vmatprep.subr.mxu0 %v3762
        %5419 = vmatpush1.xpose.msra.mxu0 %v3761
        %5420 = vmatprep.mubr.f32.mxu0 %v3973
        %5421 = vmatmul.mubr.f32.gmra.mrb[0].mxu0 %v3969
        %v5422 = vpop.f32.mrb[0].mxu0
        %v5423 = vadd.f32 %v5352, %v5422
        %v5424 = vpop.f32.mrb[0].mxu0
        %v5425 = vadd.f32 %v5354, %v5424
        %5426 = vdwg.mxu0
        %5427 = vmatprep.subr.mxu0 %v292
        %5428 = vmatpush1.xpose.msra.mxu0 %v291
        %5429 = vmatprep.subr.mxu0 %v404
        %5430 = vmatpush1.xpose.msra.mxu0 %v403
        %5431 = vmatprep.subr.mxu0 %v516
        %5432 = vmatpush1.xpose.msra.mxu0 %v515
        %5433 = vmatprep.subr.mxu0 %v628
        %5434 = vmatpush1.xpose.msra.mxu0 %v627
        %5435 = vmatprep.subr.mxu0 %v740
        %5436 = vmatpush1.xpose.msra.mxu0 %v739
        %5437 = vmatprep.subr.mxu0 %v852
        %5438 = vmatpush1.xpose.msra.mxu0 %v851
        %5439 = vmatprep.subr.mxu0 %v964
        %5440 = vmatpush1.xpose.msra.mxu0 %v963
        %5441 = vmatprep.subr.mxu0 %v1076
        %5442 = vmatpush1.xpose.msra.mxu0 %v1075
        %5443 = vmatprep.subr.mxu0 %v1188
        %5444 = vmatpush1.xpose.msra.mxu0 %v1187
        %5445 = vmatprep.subr.mxu0 %v1300
        %5446 = vmatpush1.xpose.msra.mxu0 %v1299
        %5447 = vmatprep.subr.mxu0 %v1412
        %5448 = vmatpush1.xpose.msra.mxu0 %v1411
        %5449 = vmatprep.subr.mxu0 %v1524
        %5450 = vmatpush1.xpose.msra.mxu0 %v1523
        %5451 = vmatprep.subr.mxu0 %v1636
        %5452 = vmatpush1.xpose.msra.mxu0 %v1635
        %5453 = vmatprep.subr.mxu0 %v1748
        %5454 = vmatpush1.xpose.msra.mxu0 %v1747
        %5455 = vmatprep.subr.mxu0 %v1860
        %5456 = vmatpush1.xpose.msra.mxu0 %v1859
        %5457 = vmatprep.subr.mxu0 %v1972
        %5458 = vmatpush1.xpose.msra.mxu0 %v1971
        %5459 = vmatprep.subr.mxu0 %v2084
        %5460 = vmatpush1.xpose.msra.mxu0 %v2083
        %5461 = vmatprep.subr.mxu0 %v2196
        %5462 = vmatpush1.xpose.msra.mxu0 %v2195
        %5463 = vmatprep.subr.mxu0 %v2308
        %5464 = vmatpush1.xpose.msra.mxu0 %v2307
        %5465 = vmatprep.subr.mxu0 %v2420
        %5466 = vmatpush1.xpose.msra.mxu0 %v2419
        %5467 = vmatprep.subr.mxu0 %v2532
        %5468 = vmatpush1.xpose.msra.mxu0 %v2531
        %5469 = vmatprep.subr.mxu0 %v2644
        %5470 = vmatpush1.xpose.msra.mxu0 %v2643
        %5471 = vmatprep.subr.mxu0 %v2756
        %5472 = vmatpush1.xpose.msra.mxu0 %v2755
        %5473 = vmatprep.subr.mxu0 %v2868
        %5474 = vmatpush1.xpose.msra.mxu0 %v2867
        %5475 = vmatprep.subr.mxu0 %v2980
        %5476 = vmatpush1.xpose.msra.mxu0 %v2979
        %5477 = vmatprep.subr.mxu0 %v3092
        %5478 = vmatpush1.xpose.msra.mxu0 %v3091
        %5479 = vmatprep.subr.mxu0 %v3204
        %5480 = vmatpush1.xpose.msra.mxu0 %v3203
        %5481 = vmatprep.subr.mxu0 %v3316
        %5482 = vmatpush1.xpose.msra.mxu0 %v3315
        %5483 = vmatprep.subr.mxu0 %v3428
        %5484 = vmatpush1.xpose.msra.mxu0 %v3427
        %5485 = vmatprep.subr.mxu0 %v3540
        %5486 = vmatpush1.xpose.msra.mxu0 %v3539
        %5487 = vmatprep.subr.mxu0 %v3652
        %5488 = vmatpush1.xpose.msra.mxu0 %v3651
        %5489 = vmatprep.subr.mxu0 %v3764
        %5490 = vmatpush1.xpose.msra.mxu0 %v3763
        %5491 = vmatprep.mubr.f32.mxu0 %v3981
        %5492 = vmatmul.mubr.f32.gmra.mrb[0].mxu0 %v3977
        %v5493 = vpop.f32.mrb[0].mxu0
        %v5494 = vadd.f32 %v5423, %v5493
        %v5495 = vpop.f32.mrb[0].mxu0
        %v5496 = vadd.f32 %v5425, %v5495
        %5497 = vdwg.mxu0
        %5498 = vmatprep.subr.mxu0 %v294
        %5499 = vmatpush1.xpose.msra.mxu0 %v293
        %5500 = vmatprep.subr.mxu0 %v406
        %5501 = vmatpush1.xpose.msra.mxu0 %v405
        %5502 = vmatprep.subr.mxu0 %v518
        %5503 = vmatpush1.xpose.msra.mxu0 %v517
        %5504 = vmatprep.subr.mxu0 %v630
        %5505 = vmatpush1.xpose.msra.mxu0 %v629
        %5506 = vmatprep.subr.mxu0 %v742
        %5507 = vmatpush1.xpose.msra.mxu0 %v741
        %5508 = vmatprep.subr.mxu0 %v854
        %5509 = vmatpush1.xpose.msra.mxu0 %v853
        %5510 = vmatprep.subr.mxu0 %v966
        %5511 = vmatpush1.xpose.msra.mxu0 %v965
        %5512 = vmatprep.subr.mxu0 %v1078
        %5513 = vmatpush1.xpose.msra.mxu0 %v1077
        %5514 = vmatprep.subr.mxu0 %v1190
        %5515 = vmatpush1.xpose.msra.mxu0 %v1189
        %5516 = vmatprep.subr.mxu0 %v1302
        %5517 = vmatpush1.xpose.msra.mxu0 %v1301
        %5518 = vmatprep.subr.mxu0 %v1414
        %5519 = vmatpush1.xpose.msra.mxu0 %v1413
        %5520 = vmatprep.subr.mxu0 %v1526
        %5521 = vmatpush1.xpose.msra.mxu0 %v1525
        %5522 = vmatprep.subr.mxu0 %v1638
        %5523 = vmatpush1.xpose.msra.mxu0 %v1637
        %5524 = vmatprep.subr.mxu0 %v1750
        %5525 = vmatpush1.xpose.msra.mxu0 %v1749
        %5526 = vmatprep.subr.mxu0 %v1862
        %5527 = vmatpush1.xpose.msra.mxu0 %v1861
        %5528 = vmatprep.subr.mxu0 %v1974
        %5529 = vmatpush1.xpose.msra.mxu0 %v1973
        %5530 = vmatprep.subr.mxu0 %v2086
        %5531 = vmatpush1.xpose.msra.mxu0 %v2085
        %5532 = vmatprep.subr.mxu0 %v2198
        %5533 = vmatpush1.xpose.msra.mxu0 %v2197
        %5534 = vmatprep.subr.mxu0 %v2310
        %5535 = vmatpush1.xpose.msra.mxu0 %v2309
        %5536 = vmatprep.subr.mxu0 %v2422
        %5537 = vmatpush1.xpose.msra.mxu0 %v2421
        %5538 = vmatprep.subr.mxu0 %v2534
        %5539 = vmatpush1.xpose.msra.mxu0 %v2533
        %5540 = vmatprep.subr.mxu0 %v2646
        %5541 = vmatpush1.xpose.msra.mxu0 %v2645
        %5542 = vmatprep.subr.mxu0 %v2758
        %5543 = vmatpush1.xpose.msra.mxu0 %v2757
        %5544 = vmatprep.subr.mxu0 %v2870
        %5545 = vmatpush1.xpose.msra.mxu0 %v2869
        %5546 = vmatprep.subr.mxu0 %v2982
        %5547 = vmatpush1.xpose.msra.mxu0 %v2981
        %5548 = vmatprep.subr.mxu0 %v3094
        %5549 = vmatpush1.xpose.msra.mxu0 %v3093
        %5550 = vmatprep.subr.mxu0 %v3206
        %5551 = vmatpush1.xpose.msra.mxu0 %v3205
        %5552 = vmatprep.subr.mxu0 %v3318
        %5553 = vmatpush1.xpose.msra.mxu0 %v3317
        %5554 = vmatprep.subr.mxu0 %v3430
        %5555 = vmatpush1.xpose.msra.mxu0 %v3429
        %5556 = vmatprep.subr.mxu0 %v3542
        %5557 = vmatpush1.xpose.msra.mxu0 %v3541
        %5558 = vmatprep.subr.mxu0 %v3654
        %5559 = vmatpush1.xpose.msra.mxu0 %v3653
        %5560 = vmatprep.subr.mxu0 %v3766
        %5561 = vmatpush1.xpose.msra.mxu0 %v3765
        %5562 = vmatprep.mubr.f32.mxu0 %v3989
        %5563 = vmatmul.mubr.f32.gmra.mrb[0].mxu0 %v3985
        %v5564 = vpop.f32.mrb[0].mxu0
        %v5565 = vadd.f32 %v5494, %v5564
        %v5566 = vpop.f32.mrb[0].mxu0
        %v5567 = vadd.f32 %v5496, %v5566
        %5568 = vdwg.mxu0
        %5569 = vmatprep.subr.mxu0 %v296
        %5570 = vmatpush1.xpose.msra.mxu0 %v295
        %5571 = vmatprep.subr.mxu0 %v408
        %5572 = vmatpush1.xpose.msra.mxu0 %v407
        %5573 = vmatprep.subr.mxu0 %v520
        %5574 = vmatpush1.xpose.msra.mxu0 %v519
        %5575 = vmatprep.subr.mxu0 %v632
        %5576 = vmatpush1.xpose.msra.mxu0 %v631
        %5577 = vmatprep.subr.mxu0 %v744
        %5578 = vmatpush1.xpose.msra.mxu0 %v743
        %5579 = vmatprep.subr.mxu0 %v856
        %5580 = vmatpush1.xpose.msra.mxu0 %v855
        %5581 = vmatprep.subr.mxu0 %v968
        %5582 = vmatpush1.xpose.msra.mxu0 %v967
        %5583 = vmatprep.subr.mxu0 %v1080
        %5584 = vmatpush1.xpose.msra.mxu0 %v1079
        %5585 = vmatprep.subr.mxu0 %v1192
        %5586 = vmatpush1.xpose.msra.mxu0 %v1191
        %5587 = vmatprep.subr.mxu0 %v1304
        %5588 = vmatpush1.xpose.msra.mxu0 %v1303
        %5589 = vmatprep.subr.mxu0 %v1416
        %5590 = vmatpush1.xpose.msra.mxu0 %v1415
        %5591 = vmatprep.subr.mxu0 %v1528
        %5592 = vmatpush1.xpose.msra.mxu0 %v1527
        %5593 = vmatprep.subr.mxu0 %v1640
        %5594 = vmatpush1.xpose.msra.mxu0 %v1639
        %5595 = vmatprep.subr.mxu0 %v1752
        %5596 = vmatpush1.xpose.msra.mxu0 %v1751
        %5597 = vmatprep.subr.mxu0 %v1864
        %5598 = vmatpush1.xpose.msra.mxu0 %v1863
        %5599 = vmatprep.subr.mxu0 %v1976
        %5600 = vmatpush1.xpose.msra.mxu0 %v1975
        %5601 = vmatprep.subr.mxu0 %v2088
        %5602 = vmatpush1.xpose.msra.mxu0 %v2087
        %5603 = vmatprep.subr.mxu0 %v2200
        %5604 = vmatpush1.xpose.msra.mxu0 %v2199
        %5605 = vmatprep.subr.mxu0 %v2312
        %5606 = vmatpush1.xpose.msra.mxu0 %v2311
        %5607 = vmatprep.subr.mxu0 %v2424
        %5608 = vmatpush1.xpose.msra.mxu0 %v2423
        %5609 = vmatprep.subr.mxu0 %v2536
        %5610 = vmatpush1.xpose.msra.mxu0 %v2535
        %5611 = vmatprep.subr.mxu0 %v2648
        %5612 = vmatpush1.xpose.msra.mxu0 %v2647
        %5613 = vmatprep.subr.mxu0 %v2760
        %5614 = vmatpush1.xpose.msra.mxu0 %v2759
        %5615 = vmatprep.subr.mxu0 %v2872
        %5616 = vmatpush1.xpose.msra.mxu0 %v2871
        %5617 = vmatprep.subr.mxu0 %v2984
        %5618 = vmatpush1.xpose.msra.mxu0 %v2983
        %5619 = vmatprep.subr.mxu0 %v3096
        %5620 = vmatpush1.xpose.msra.mxu0 %v3095
        %5621 = vmatprep.subr.mxu0 %v3208
        %5622 = vmatpush1.xpose.msra.mxu0 %v3207
        %5623 = vmatprep.subr.mxu0 %v3320
        %5624 = vmatpush1.xpose.msra.mxu0 %v3319
        %5625 = vmatprep.subr.mxu0 %v3432
        %5626 = vmatpush1.xpose.msra.mxu0 %v3431
        %5627 = vmatprep.subr.mxu0 %v3544
        %5628 = vmatpush1.xpose.msra.mxu0 %v3543
        %5629 = vmatprep.subr.mxu0 %v3656
        %5630 = vmatpush1.xpose.msra.mxu0 %v3655
        %5631 = vmatprep.subr.mxu0 %v3768
        %5632 = vmatpush1.xpose.msra.mxu0 %v3767
        %5633 = vmatprep.mubr.f32.mxu0 %v3997
        %5634 = vmatmul.mubr.f32.gmra.mrb[0].mxu0 %v3993
        %v5635 = vpop.f32.mrb[0].mxu0
        %v5636 = vadd.f32 %v5565, %v5635
        %v5637 = vpop.f32.mrb[0].mxu0
        %v5638 = vadd.f32 %v5567, %v5637
        %5639 = vdwg.mxu0
        %5640 = vmatprep.subr.mxu0 %v298
        %5641 = vmatpush1.xpose.msra.mxu0 %v297
        %5642 = vmatprep.subr.mxu0 %v410
        %5643 = vmatpush1.xpose.msra.mxu0 %v409
        %5644 = vmatprep.subr.mxu0 %v522
        %5645 = vmatpush1.xpose.msra.mxu0 %v521
        %5646 = vmatprep.subr.mxu0 %v634
        %5647 = vmatpush1.xpose.msra.mxu0 %v633
        %5648 = vmatprep.subr.mxu0 %v746
        %5649 = vmatpush1.xpose.msra.mxu0 %v745
        %5650 = vmatprep.subr.mxu0 %v858
        %5651 = vmatpush1.xpose.msra.mxu0 %v857
        %5652 = vmatprep.subr.mxu0 %v970
        %5653 = vmatpush1.xpose.msra.mxu0 %v969
        %5654 = vmatprep.subr.mxu0 %v1082
        %5655 = vmatpush1.xpose.msra.mxu0 %v1081
        %5656 = vmatprep.subr.mxu0 %v1194
        %5657 = vmatpush1.xpose.msra.mxu0 %v1193
        %5658 = vmatprep.subr.mxu0 %v1306
        %5659 = vmatpush1.xpose.msra.mxu0 %v1305
        %5660 = vmatprep.subr.mxu0 %v1418
        %5661 = vmatpush1.xpose.msra.mxu0 %v1417
        %5662 = vmatprep.subr.mxu0 %v1530
        %5663 = vmatpush1.xpose.msra.mxu0 %v1529
        %5664 = vmatprep.subr.mxu0 %v1642
        %5665 = vmatpush1.xpose.msra.mxu0 %v1641
        %5666 = vmatprep.subr.mxu0 %v1754
        %5667 = vmatpush1.xpose.msra.mxu0 %v1753
        %5668 = vmatprep.subr.mxu0 %v1866
        %5669 = vmatpush1.xpose.msra.mxu0 %v1865
        %5670 = vmatprep.subr.mxu0 %v1978
        %5671 = vmatpush1.xpose.msra.mxu0 %v1977
        %5672 = vmatprep.subr.mxu0 %v2090
        %5673 = vmatpush1.xpose.msra.mxu0 %v2089
        %5674 = vmatprep.subr.mxu0 %v2202
        %5675 = vmatpush1.xpose.msra.mxu0 %v2201
        %5676 = vmatprep.subr.mxu0 %v2314
        %5677 = vmatpush1.xpose.msra.mxu0 %v2313
        %5678 = vmatprep.subr.mxu0 %v2426
        %5679 = vmatpush1.xpose.msra.mxu0 %v2425
        %5680 = vmatprep.subr.mxu0 %v2538
        %5681 = vmatpush1.xpose.msra.mxu0 %v2537
        %5682 = vmatprep.subr.mxu0 %v2650
        %5683 = vmatpush1.xpose.msra.mxu0 %v2649
        %5684 = vmatprep.subr.mxu0 %v2762
        %5685 = vmatpush1.xpose.msra.mxu0 %v2761
        %5686 = vmatprep.subr.mxu0 %v2874
        %5687 = vmatpush1.xpose.msra.mxu0 %v2873
        %5688 = vmatprep.subr.mxu0 %v2986
        %5689 = vmatpush1.xpose.msra.mxu0 %v2985
        %5690 = vmatprep.subr.mxu0 %v3098
        %5691 = vmatpush1.xpose.msra.mxu0 %v3097
        %5692 = vmatprep.subr.mxu0 %v3210
        %5693 = vmatpush1.xpose.msra.mxu0 %v3209
        %5694 = vmatprep.subr.mxu0 %v3322
        %5695 = vmatpush1.xpose.msra.mxu0 %v3321
        %5696 = vmatprep.subr.mxu0 %v3434
        %5697 = vmatpush1.xpose.msra.mxu0 %v3433
        %5698 = vmatprep.subr.mxu0 %v3546
        %5699 = vmatpush1.xpose.msra.mxu0 %v3545
        %5700 = vmatprep.subr.mxu0 %v3658
        %5701 = vmatpush1.xpose.msra.mxu0 %v3657
        %5702 = vmatprep.subr.mxu0 %v3770
        %5703 = vmatpush1.xpose.msra.mxu0 %v3769
        %5704 = vmatprep.mubr.f32.mxu0 %v4005
        %5705 = vmatmul.mubr.f32.gmra.mrb[0].mxu0 %v4001
        %v5706 = vpop.f32.mrb[0].mxu0
        %v5707 = vadd.f32 %v5636, %v5706
        %v5708 = vpop.f32.mrb[0].mxu0
        %v5709 = vadd.f32 %v5638, %v5708
        %5710 = vdwg.mxu0
        %5711 = vmatprep.subr.mxu0 %v300
        %5712 = vmatpush1.xpose.msra.mxu0 %v299
        %5713 = vmatprep.subr.mxu0 %v412
        %5714 = vmatpush1.xpose.msra.mxu0 %v411
        %5715 = vmatprep.subr.mxu0 %v524
        %5716 = vmatpush1.xpose.msra.mxu0 %v523
        %5717 = vmatprep.subr.mxu0 %v636
        %5718 = vmatpush1.xpose.msra.mxu0 %v635
        %5719 = vmatprep.subr.mxu0 %v748
        %5720 = vmatpush1.xpose.msra.mxu0 %v747
        %5721 = vmatprep.subr.mxu0 %v860
        %5722 = vmatpush1.xpose.msra.mxu0 %v859
        %5723 = vmatprep.subr.mxu0 %v972
        %5724 = vmatpush1.xpose.msra.mxu0 %v971
        %5725 = vmatprep.subr.mxu0 %v1084
        %5726 = vmatpush1.xpose.msra.mxu0 %v1083
        %5727 = vmatprep.subr.mxu0 %v1196
        %5728 = vmatpush1.xpose.msra.mxu0 %v1195
        %5729 = vmatprep.subr.mxu0 %v1308
        %5730 = vmatpush1.xpose.msra.mxu0 %v1307
        %5731 = vmatprep.subr.mxu0 %v1420
        %5732 = vmatpush1.xpose.msra.mxu0 %v1419
        %5733 = vmatprep.subr.mxu0 %v1532
        %5734 = vmatpush1.xpose.msra.mxu0 %v1531
        %5735 = vmatprep.subr.mxu0 %v1644
        %5736 = vmatpush1.xpose.msra.mxu0 %v1643
        %5737 = vmatprep.subr.mxu0 %v1756
        %5738 = vmatpush1.xpose.msra.mxu0 %v1755
        %5739 = vmatprep.subr.mxu0 %v1868
        %5740 = vmatpush1.xpose.msra.mxu0 %v1867
        %5741 = vmatprep.subr.mxu0 %v1980
        %5742 = vmatpush1.xpose.msra.mxu0 %v1979
        %5743 = vmatprep.subr.mxu0 %v2092
        %5744 = vmatpush1.xpose.msra.mxu0 %v2091
        %5745 = vmatprep.subr.mxu0 %v2204
        %5746 = vmatpush1.xpose.msra.mxu0 %v2203
        %5747 = vmatprep.subr.mxu0 %v2316
        %5748 = vmatpush1.xpose.msra.mxu0 %v2315
        %5749 = vmatprep.subr.mxu0 %v2428
        %5750 = vmatpush1.xpose.msra.mxu0 %v2427
        %5751 = vmatprep.subr.mxu0 %v2540
        %5752 = vmatpush1.xpose.msra.mxu0 %v2539
        %5753 = vmatprep.subr.mxu0 %v2652
        %5754 = vmatpush1.xpose.msra.mxu0 %v2651
        %5755 = vmatprep.subr.mxu0 %v2764
        %5756 = vmatpush1.xpose.msra.mxu0 %v2763
        %5757 = vmatprep.subr.mxu0 %v2876
        %5758 = vmatpush1.xpose.msra.mxu0 %v2875
        %5759 = vmatprep.subr.mxu0 %v2988
        %5760 = vmatpush1.xpose.msra.mxu0 %v2987
        %5761 = vmatprep.subr.mxu0 %v3100
        %5762 = vmatpush1.xpose.msra.mxu0 %v3099
        %5763 = vmatprep.subr.mxu0 %v3212
        %5764 = vmatpush1.xpose.msra.mxu0 %v3211
        %5765 = vmatprep.subr.mxu0 %v3324
        %5766 = vmatpush1.xpose.msra.mxu0 %v3323
        %5767 = vmatprep.subr.mxu0 %v3436
        %5768 = vmatpush1.xpose.msra.mxu0 %v3435
        %5769 = vmatprep.subr.mxu0 %v3548
        %5770 = vmatpush1.xpose.msra.mxu0 %v3547
        %5771 = vmatprep.subr.mxu0 %v3660
        %5772 = vmatpush1.xpose.msra.mxu0 %v3659
        %5773 = vmatprep.subr.mxu0 %v3772
        %5774 = vmatpush1.xpose.msra.mxu0 %v3771
        %5775 = vmatprep.mubr.f32.mxu0 %v4013
        %5776 = vmatmul.mubr.f32.gmra.mrb[0].mxu0 %v4009
        %v5777 = vpop.f32.mrb[0].mxu0
        %v5778 = vadd.f32 %v5707, %v5777
        %v5779 = vpop.f32.mrb[0].mxu0
        %v5780 = vadd.f32 %v5709, %v5779
        %5781 = vdwg.mxu0
        %5782 = vmatprep.subr.mxu0 %v302
        %5783 = vmatpush1.xpose.msra.mxu0 %v301
        %5784 = vmatprep.subr.mxu0 %v414
        %5785 = vmatpush1.xpose.msra.mxu0 %v413
        %5786 = vmatprep.subr.mxu0 %v526
        %5787 = vmatpush1.xpose.msra.mxu0 %v525
        %5788 = vmatprep.subr.mxu0 %v638
        %5789 = vmatpush1.xpose.msra.mxu0 %v637
        %5790 = vmatprep.subr.mxu0 %v750
        %5791 = vmatpush1.xpose.msra.mxu0 %v749
        %5792 = vmatprep.subr.mxu0 %v862
        %5793 = vmatpush1.xpose.msra.mxu0 %v861
        %5794 = vmatprep.subr.mxu0 %v974
        %5795 = vmatpush1.xpose.msra.mxu0 %v973
        %5796 = vmatprep.subr.mxu0 %v1086
        %5797 = vmatpush1.xpose.msra.mxu0 %v1085
        %5798 = vmatprep.subr.mxu0 %v1198
        %5799 = vmatpush1.xpose.msra.mxu0 %v1197
        %5800 = vmatprep.subr.mxu0 %v1310
        %5801 = vmatpush1.xpose.msra.mxu0 %v1309
        %5802 = vmatprep.subr.mxu0 %v1422
        %5803 = vmatpush1.xpose.msra.mxu0 %v1421
        %5804 = vmatprep.subr.mxu0 %v1534
        %5805 = vmatpush1.xpose.msra.mxu0 %v1533
        %5806 = vmatprep.subr.mxu0 %v1646
        %5807 = vmatpush1.xpose.msra.mxu0 %v1645
        %5808 = vmatprep.subr.mxu0 %v1758
        %5809 = vmatpush1.xpose.msra.mxu0 %v1757
        %5810 = vmatprep.subr.mxu0 %v1870
        %5811 = vmatpush1.xpose.msra.mxu0 %v1869
        %5812 = vmatprep.subr.mxu0 %v1982
        %5813 = vmatpush1.xpose.msra.mxu0 %v1981
        %5814 = vmatprep.subr.mxu0 %v2094
        %5815 = vmatpush1.xpose.msra.mxu0 %v2093
        %5816 = vmatprep.subr.mxu0 %v2206
        %5817 = vmatpush1.xpose.msra.mxu0 %v2205
        %5818 = vmatprep.subr.mxu0 %v2318
        %5819 = vmatpush1.xpose.msra.mxu0 %v2317
        %5820 = vmatprep.subr.mxu0 %v2430
        %5821 = vmatpush1.xpose.msra.mxu0 %v2429
        %5822 = vmatprep.subr.mxu0 %v2542
        %5823 = vmatpush1.xpose.msra.mxu0 %v2541
        %5824 = vmatprep.subr.mxu0 %v2654
        %5825 = vmatpush1.xpose.msra.mxu0 %v2653
        %5826 = vmatprep.subr.mxu0 %v2766
        %5827 = vmatpush1.xpose.msra.mxu0 %v2765
        %5828 = vmatprep.subr.mxu0 %v2878
        %5829 = vmatpush1.xpose.msra.mxu0 %v2877
        %5830 = vmatprep.subr.mxu0 %v2990
        %5831 = vmatpush1.xpose.msra.mxu0 %v2989
        %5832 = vmatprep.subr.mxu0 %v3102
        %5833 = vmatpush1.xpose.msra.mxu0 %v3101
        %5834 = vmatprep.subr.mxu0 %v3214
        %5835 = vmatpush1.xpose.msra.mxu0 %v3213
        %5836 = vmatprep.subr.mxu0 %v3326
        %5837 = vmatpush1.xpose.msra.mxu0 %v3325
        %5838 = vmatprep.subr.mxu0 %v3438
        %5839 = vmatpush1.xpose.msra.mxu0 %v3437
        %5840 = vmatprep.subr.mxu0 %v3550
        %5841 = vmatpush1.xpose.msra.mxu0 %v3549
        %5842 = vmatprep.subr.mxu0 %v3662
        %5843 = vmatpush1.xpose.msra.mxu0 %v3661
        %5844 = vmatprep.subr.mxu0 %v3774
        %5845 = vmatpush1.xpose.msra.mxu0 %v3773
        %5846 = vmatprep.mubr.f32.mxu0 %v4021
        %5847 = vmatmul.mubr.f32.gmra.mrb[0].mxu0 %v4017
        %v5848 = vpop.f32.mrb[0].mxu0
        %v5849 = vadd.f32 %v5778, %v5848
        %v5850 = vpop.f32.mrb[0].mxu0
        %v5851 = vadd.f32 %v5780, %v5850
        %5852 = vdwg.mxu0
        %5853 = vmatprep.subr.mxu0 %v304
        %5854 = vmatpush1.xpose.msra.mxu0 %v303
        %5855 = vmatprep.subr.mxu0 %v416
        %5856 = vmatpush1.xpose.msra.mxu0 %v415
        %5857 = vmatprep.subr.mxu0 %v528
        %5858 = vmatpush1.xpose.msra.mxu0 %v527
        %5859 = vmatprep.subr.mxu0 %v640
        %5860 = vmatpush1.xpose.msra.mxu0 %v639
        %5861 = vmatprep.subr.mxu0 %v752
        %5862 = vmatpush1.xpose.msra.mxu0 %v751
        %5863 = vmatprep.subr.mxu0 %v864
        %5864 = vmatpush1.xpose.msra.mxu0 %v863
        %5865 = vmatprep.subr.mxu0 %v976
        %5866 = vmatpush1.xpose.msra.mxu0 %v975
        %5867 = vmatprep.subr.mxu0 %v1088
        %5868 = vmatpush1.xpose.msra.mxu0 %v1087
        %5869 = vmatprep.subr.mxu0 %v1200
        %5870 = vmatpush1.xpose.msra.mxu0 %v1199
        %5871 = vmatprep.subr.mxu0 %v1312
        %5872 = vmatpush1.xpose.msra.mxu0 %v1311
        %5873 = vmatprep.subr.mxu0 %v1424
        %5874 = vmatpush1.xpose.msra.mxu0 %v1423
        %5875 = vmatprep.subr.mxu0 %v1536
        %5876 = vmatpush1.xpose.msra.mxu0 %v1535
        %5877 = vmatprep.subr.mxu0 %v1648
        %5878 = vmatpush1.xpose.msra.mxu0 %v1647
        %5879 = vmatprep.subr.mxu0 %v1760
        %5880 = vmatpush1.xpose.msra.mxu0 %v1759
        %5881 = vmatprep.subr.mxu0 %v1872
        %5882 = vmatpush1.xpose.msra.mxu0 %v1871
        %5883 = vmatprep.subr.mxu0 %v1984
        %5884 = vmatpush1.xpose.msra.mxu0 %v1983
        %5885 = vmatprep.subr.mxu0 %v2096
        %5886 = vmatpush1.xpose.msra.mxu0 %v2095
        %5887 = vmatprep.subr.mxu0 %v2208
        %5888 = vmatpush1.xpose.msra.mxu0 %v2207
        %5889 = vmatprep.subr.mxu0 %v2320
        %5890 = vmatpush1.xpose.msra.mxu0 %v2319
        %5891 = vmatprep.subr.mxu0 %v2432
        %5892 = vmatpush1.xpose.msra.mxu0 %v2431
        %5893 = vmatprep.subr.mxu0 %v2544
        %5894 = vmatpush1.xpose.msra.mxu0 %v2543
        %5895 = vmatprep.subr.mxu0 %v2656
        %5896 = vmatpush1.xpose.msra.mxu0 %v2655
        %5897 = vmatprep.subr.mxu0 %v2768
        %5898 = vmatpush1.xpose.msra.mxu0 %v2767
        %5899 = vmatprep.subr.mxu0 %v2880
        %5900 = vmatpush1.xpose.msra.mxu0 %v2879
        %5901 = vmatprep.subr.mxu0 %v2992
        %5902 = vmatpush1.xpose.msra.mxu0 %v2991
        %5903 = vmatprep.subr.mxu0 %v3104
        %5904 = vmatpush1.xpose.msra.mxu0 %v3103
        %5905 = vmatprep.subr.mxu0 %v3216
        %5906 = vmatpush1.xpose.msra.mxu0 %v3215
        %5907 = vmatprep.subr.mxu0 %v3328
        %5908 = vmatpush1.xpose.msra.mxu0 %v3327
        %5909 = vmatprep.subr.mxu0 %v3440
        %5910 = vmatpush1.xpose.msra.mxu0 %v3439
        %5911 = vmatprep.subr.mxu0 %v3552
        %5912 = vmatpush1.xpose.msra.mxu0 %v3551
        %5913 = vmatprep.subr.mxu0 %v3664
        %5914 = vmatpush1.xpose.msra.mxu0 %v3663
        %5915 = vmatprep.subr.mxu0 %v3776
        %5916 = vmatpush1.xpose.msra.mxu0 %v3775
        %5917 = vmatprep.mubr.f32.mxu0 %v4029
        %5918 = vmatmul.mubr.f32.gmra.mrb[0].mxu0 %v4025
        %v5919 = vpop.f32.mrb[0].mxu0
        %v5920 = vadd.f32 %v5849, %v5919
        %v5921 = vpop.f32.mrb[0].mxu0
        %v5922 = vadd.f32 %v5851, %v5921
        %5923 = vdwg.mxu0
        %5924 = vmatprep.subr.mxu0 %v306
        %5925 = vmatpush1.xpose.msra.mxu0 %v305
        %5926 = vmatprep.subr.mxu0 %v418
        %5927 = vmatpush1.xpose.msra.mxu0 %v417
        %5928 = vmatprep.subr.mxu0 %v530
        %5929 = vmatpush1.xpose.msra.mxu0 %v529
        %5930 = vmatprep.subr.mxu0 %v642
        %5931 = vmatpush1.xpose.msra.mxu0 %v641
        %5932 = vmatprep.subr.mxu0 %v754
        %5933 = vmatpush1.xpose.msra.mxu0 %v753
        %5934 = vmatprep.subr.mxu0 %v866
        %5935 = vmatpush1.xpose.msra.mxu0 %v865
        %5936 = vmatprep.subr.mxu0 %v978
        %5937 = vmatpush1.xpose.msra.mxu0 %v977
        %5938 = vmatprep.subr.mxu0 %v1090
        %5939 = vmatpush1.xpose.msra.mxu0 %v1089
        %5940 = vmatprep.subr.mxu0 %v1202
        %5941 = vmatpush1.xpose.msra.mxu0 %v1201
        %5942 = vmatprep.subr.mxu0 %v1314
        %5943 = vmatpush1.xpose.msra.mxu0 %v1313
        %5944 = vmatprep.subr.mxu0 %v1426
        %5945 = vmatpush1.xpose.msra.mxu0 %v1425
        %5946 = vmatprep.subr.mxu0 %v1538
        %5947 = vmatpush1.xpose.msra.mxu0 %v1537
        %5948 = vmatprep.subr.mxu0 %v1650
        %5949 = vmatpush1.xpose.msra.mxu0 %v1649
        %5950 = vmatprep.subr.mxu0 %v1762
        %5951 = vmatpush1.xpose.msra.mxu0 %v1761
        %5952 = vmatprep.subr.mxu0 %v1874
        %5953 = vmatpush1.xpose.msra.mxu0 %v1873
        %5954 = vmatprep.subr.mxu0 %v1986
        %5955 = vmatpush1.xpose.msra.mxu0 %v1985
        %5956 = vmatprep.subr.mxu0 %v2098
        %5957 = vmatpush1.xpose.msra.mxu0 %v2097
        %5958 = vmatprep.subr.mxu0 %v2210
        %5959 = vmatpush1.xpose.msra.mxu0 %v2209
        %5960 = vmatprep.subr.mxu0 %v2322
        %5961 = vmatpush1.xpose.msra.mxu0 %v2321
        %5962 = vmatprep.subr.mxu0 %v2434
        %5963 = vmatpush1.xpose.msra.mxu0 %v2433
        %5964 = vmatprep.subr.mxu0 %v2546
        %5965 = vmatpush1.xpose.msra.mxu0 %v2545
        %5966 = vmatprep.subr.mxu0 %v2658
        %5967 = vmatpush1.xpose.msra.mxu0 %v2657
        %5968 = vmatprep.subr.mxu0 %v2770
        %5969 = vmatpush1.xpose.msra.mxu0 %v2769
        %5970 = vmatprep.subr.mxu0 %v2882
        %5971 = vmatpush1.xpose.msra.mxu0 %v2881
        %5972 = vmatprep.subr.mxu0 %v2994
        %5973 = vmatpush1.xpose.msra.mxu0 %v2993
        %5974 = vmatprep.subr.mxu0 %v3106
        %5975 = vmatpush1.xpose.msra.mxu0 %v3105
        %5976 = vmatprep.subr.mxu0 %v3218
        %5977 = vmatpush1.xpose.msra.mxu0 %v3217
        %5978 = vmatprep.subr.mxu0 %v3330
        %5979 = vmatpush1.xpose.msra.mxu0 %v3329
        %5980 = vmatprep.subr.mxu0 %v3442
        %5981 = vmatpush1.xpose.msra.mxu0 %v3441
        %5982 = vmatprep.subr.mxu0 %v3554
        %5983 = vmatpush1.xpose.msra.mxu0 %v3553
        %5984 = vmatprep.subr.mxu0 %v3666
        %5985 = vmatpush1.xpose.msra.mxu0 %v3665
        %5986 = vmatprep.subr.mxu0 %v3778
        %5987 = vmatpush1.xpose.msra.mxu0 %v3777
        %5988 = vmatprep.mubr.f32.mxu0 %v4037
        %5989 = vmatmul.mubr.f32.gmra.mrb[0].mxu0 %v4033
        %v5990 = vpop.f32.mrb[0].mxu0
        %v5991 = vadd.f32 %v5920, %v5990
        %v5992 = vpop.f32.mrb[0].mxu0
        %v5993 = vadd.f32 %v5922, %v5992
        %5994 = vdwg.mxu0
        %5995 = vmatprep.subr.mxu0 %v308
        %5996 = vmatpush1.xpose.msra.mxu0 %v307
        %5997 = vmatprep.subr.mxu0 %v420
        %5998 = vmatpush1.xpose.msra.mxu0 %v419
        %5999 = vmatprep.subr.mxu0 %v532
        %6000 = vmatpush1.xpose.msra.mxu0 %v531
        %6001 = vmatprep.subr.mxu0 %v644
        %6002 = vmatpush1.xpose.msra.mxu0 %v643
        %6003 = vmatprep.subr.mxu0 %v756
        %6004 = vmatpush1.xpose.msra.mxu0 %v755
        %6005 = vmatprep.subr.mxu0 %v868
        %6006 = vmatpush1.xpose.msra.mxu0 %v867
        %6007 = vmatprep.subr.mxu0 %v980
        %6008 = vmatpush1.xpose.msra.mxu0 %v979
        %6009 = vmatprep.subr.mxu0 %v1092
        %6010 = vmatpush1.xpose.msra.mxu0 %v1091
        %6011 = vmatprep.subr.mxu0 %v1204
        %6012 = vmatpush1.xpose.msra.mxu0 %v1203
        %6013 = vmatprep.subr.mxu0 %v1316
        %6014 = vmatpush1.xpose.msra.mxu0 %v1315
        %6015 = vmatprep.subr.mxu0 %v1428
        %6016 = vmatpush1.xpose.msra.mxu0 %v1427
        %6017 = vmatprep.subr.mxu0 %v1540
        %6018 = vmatpush1.xpose.msra.mxu0 %v1539
        %6019 = vmatprep.subr.mxu0 %v1652
        %6020 = vmatpush1.xpose.msra.mxu0 %v1651
        %6021 = vmatprep.subr.mxu0 %v1764
        %6022 = vmatpush1.xpose.msra.mxu0 %v1763
        %6023 = vmatprep.subr.mxu0 %v1876
        %6024 = vmatpush1.xpose.msra.mxu0 %v1875
        %6025 = vmatprep.subr.mxu0 %v1988
        %6026 = vmatpush1.xpose.msra.mxu0 %v1987
        %6027 = vmatprep.subr.mxu0 %v2100
        %6028 = vmatpush1.xpose.msra.mxu0 %v2099
        %6029 = vmatprep.subr.mxu0 %v2212
        %6030 = vmatpush1.xpose.msra.mxu0 %v2211
        %6031 = vmatprep.subr.mxu0 %v2324
        %6032 = vmatpush1.xpose.msra.mxu0 %v2323
        %6033 = vmatprep.subr.mxu0 %v2436
        %6034 = vmatpush1.xpose.msra.mxu0 %v2435
        %6035 = vmatprep.subr.mxu0 %v2548
        %6036 = vmatpush1.xpose.msra.mxu0 %v2547
        %6037 = vmatprep.subr.mxu0 %v2660
        %6038 = vmatpush1.xpose.msra.mxu0 %v2659
        %6039 = vmatprep.subr.mxu0 %v2772
        %6040 = vmatpush1.xpose.msra.mxu0 %v2771
        %6041 = vmatprep.subr.mxu0 %v2884
        %6042 = vmatpush1.xpose.msra.mxu0 %v2883
        %6043 = vmatprep.subr.mxu0 %v2996
        %6044 = vmatpush1.xpose.msra.mxu0 %v2995
        %6045 = vmatprep.subr.mxu0 %v3108
        %6046 = vmatpush1.xpose.msra.mxu0 %v3107
        %6047 = vmatprep.subr.mxu0 %v3220
        %6048 = vmatpush1.xpose.msra.mxu0 %v3219
        %6049 = vmatprep.subr.mxu0 %v3332
        %6050 = vmatpush1.xpose.msra.mxu0 %v3331
        %6051 = vmatprep.subr.mxu0 %v3444
        %6052 = vmatpush1.xpose.msra.mxu0 %v3443
        %6053 = vmatprep.subr.mxu0 %v3556
        %6054 = vmatpush1.xpose.msra.mxu0 %v3555
        %6055 = vmatprep.subr.mxu0 %v3668
        %6056 = vmatpush1.xpose.msra.mxu0 %v3667
        %6057 = vmatprep.subr.mxu0 %v3780
        %6058 = vmatpush1.xpose.msra.mxu0 %v3779
        %6059 = vmatprep.mubr.f32.mxu0 %v4045
        %6060 = vmatmul.mubr.f32.gmra.mrb[0].mxu0 %v4041
        %v6061 = vpop.f32.mrb[0].mxu0
        %v6062 = vadd.f32 %v5991, %v6061
        %v6063 = vpop.f32.mrb[0].mxu0
        %v6064 = vadd.f32 %v5993, %v6063
        %6065 = vdwg.mxu0
        %6066 = vmatprep.subr.mxu0 %v310
        %6067 = vmatpush1.xpose.msra.mxu0 %v309
        %6068 = vmatprep.subr.mxu0 %v422
        %6069 = vmatpush1.xpose.msra.mxu0 %v421
        %6070 = vmatprep.subr.mxu0 %v534
        %6071 = vmatpush1.xpose.msra.mxu0 %v533
        %6072 = vmatprep.subr.mxu0 %v646
        %6073 = vmatpush1.xpose.msra.mxu0 %v645
        %6074 = vmatprep.subr.mxu0 %v758
        %6075 = vmatpush1.xpose.msra.mxu0 %v757
        %6076 = vmatprep.subr.mxu0 %v870
        %6077 = vmatpush1.xpose.msra.mxu0 %v869
        %6078 = vmatprep.subr.mxu0 %v982
        %6079 = vmatpush1.xpose.msra.mxu0 %v981
        %6080 = vmatprep.subr.mxu0 %v1094
        %6081 = vmatpush1.xpose.msra.mxu0 %v1093
        %6082 = vmatprep.subr.mxu0 %v1206
        %6083 = vmatpush1.xpose.msra.mxu0 %v1205
        %6084 = vmatprep.subr.mxu0 %v1318
        %6085 = vmatpush1.xpose.msra.mxu0 %v1317
        %6086 = vmatprep.subr.mxu0 %v1430
        %6087 = vmatpush1.xpose.msra.mxu0 %v1429
        %6088 = vmatprep.subr.mxu0 %v1542
        %6089 = vmatpush1.xpose.msra.mxu0 %v1541
        %6090 = vmatprep.subr.mxu0 %v1654
        %6091 = vmatpush1.xpose.msra.mxu0 %v1653
        %6092 = vmatprep.subr.mxu0 %v1766
        %6093 = vmatpush1.xpose.msra.mxu0 %v1765
        %6094 = vmatprep.subr.mxu0 %v1878
        %6095 = vmatpush1.xpose.msra.mxu0 %v1877
        %6096 = vmatprep.subr.mxu0 %v1990
        %6097 = vmatpush1.xpose.msra.mxu0 %v1989
        %6098 = vmatprep.subr.mxu0 %v2102
        %6099 = vmatpush1.xpose.msra.mxu0 %v2101
        %6100 = vmatprep.subr.mxu0 %v2214
        %6101 = vmatpush1.xpose.msra.mxu0 %v2213
        %6102 = vmatprep.subr.mxu0 %v2326
        %6103 = vmatpush1.xpose.msra.mxu0 %v2325
        %6104 = vmatprep.subr.mxu0 %v2438
        %6105 = vmatpush1.xpose.msra.mxu0 %v2437
        %6106 = vmatprep.subr.mxu0 %v2550
        %6107 = vmatpush1.xpose.msra.mxu0 %v2549
        %6108 = vmatprep.subr.mxu0 %v2662
        %6109 = vmatpush1.xpose.msra.mxu0 %v2661
        %6110 = vmatprep.subr.mxu0 %v2774
        %6111 = vmatpush1.xpose.msra.mxu0 %v2773
        %6112 = vmatprep.subr.mxu0 %v2886
        %6113 = vmatpush1.xpose.msra.mxu0 %v2885
        %6114 = vmatprep.subr.mxu0 %v2998
        %6115 = vmatpush1.xpose.msra.mxu0 %v2997
        %6116 = vmatprep.subr.mxu0 %v3110
        %6117 = vmatpush1.xpose.msra.mxu0 %v3109
        %6118 = vmatprep.subr.mxu0 %v3222
        %6119 = vmatpush1.xpose.msra.mxu0 %v3221
        %6120 = vmatprep.subr.mxu0 %v3334
        %6121 = vmatpush1.xpose.msra.mxu0 %v3333
        %6122 = vmatprep.subr.mxu0 %v3446
        %6123 = vmatpush1.xpose.msra.mxu0 %v3445
        %6124 = vmatprep.subr.mxu0 %v3558
        %6125 = vmatpush1.xpose.msra.mxu0 %v3557
        %6126 = vmatprep.subr.mxu0 %v3670
        %6127 = vmatpush1.xpose.msra.mxu0 %v3669
        %6128 = vmatprep.subr.mxu0 %v3782
        %6129 = vmatpush1.xpose.msra.mxu0 %v3781
        %6130 = vmatprep.mubr.f32.mxu0 %v4053
        %6131 = vmatmul.mubr.f32.gmra.mrb[0].mxu0 %v4049
        %v6132 = vpop.f32.mrb[0].mxu0
        %v6133 = vadd.f32 %v6062, %v6132
        %v6134 = vpop.f32.mrb[0].mxu0
        %v6135 = vadd.f32 %v6064, %v6134
        %6136 = vdwg.mxu0
        %6137 = vmatprep.subr.mxu0 %v312
        %6138 = vmatpush1.xpose.msra.mxu0 %v311
        %6139 = vmatprep.subr.mxu0 %v424
        %6140 = vmatpush1.xpose.msra.mxu0 %v423
        %6141 = vmatprep.subr.mxu0 %v536
        %6142 = vmatpush1.xpose.msra.mxu0 %v535
        %6143 = vmatprep.subr.mxu0 %v648
        %6144 = vmatpush1.xpose.msra.mxu0 %v647
        %6145 = vmatprep.subr.mxu0 %v760
        %6146 = vmatpush1.xpose.msra.mxu0 %v759
        %6147 = vmatprep.subr.mxu0 %v872
        %6148 = vmatpush1.xpose.msra.mxu0 %v871
        %6149 = vmatprep.subr.mxu0 %v984
        %6150 = vmatpush1.xpose.msra.mxu0 %v983
        %6151 = vmatprep.subr.mxu0 %v1096
        %6152 = vmatpush1.xpose.msra.mxu0 %v1095
        %6153 = vmatprep.subr.mxu0 %v1208
        %6154 = vmatpush1.xpose.msra.mxu0 %v1207
        %6155 = vmatprep.subr.mxu0 %v1320
        %6156 = vmatpush1.xpose.msra.mxu0 %v1319
        %6157 = vmatprep.subr.mxu0 %v1432
        %6158 = vmatpush1.xpose.msra.mxu0 %v1431
        %6159 = vmatprep.subr.mxu0 %v1544
        %6160 = vmatpush1.xpose.msra.mxu0 %v1543
        %6161 = vmatprep.subr.mxu0 %v1656
        %6162 = vmatpush1.xpose.msra.mxu0 %v1655
        %6163 = vmatprep.subr.mxu0 %v1768
        %6164 = vmatpush1.xpose.msra.mxu0 %v1767
        %6165 = vmatprep.subr.mxu0 %v1880
        %6166 = vmatpush1.xpose.msra.mxu0 %v1879
        %6167 = vmatprep.subr.mxu0 %v1992
        %6168 = vmatpush1.xpose.msra.mxu0 %v1991
        %6169 = vmatprep.subr.mxu0 %v2104
        %6170 = vmatpush1.xpose.msra.mxu0 %v2103
        %6171 = vmatprep.subr.mxu0 %v2216
        %6172 = vmatpush1.xpose.msra.mxu0 %v2215
        %6173 = vmatprep.subr.mxu0 %v2328
        %6174 = vmatpush1.xpose.msra.mxu0 %v2327
        %6175 = vmatprep.subr.mxu0 %v2440
        %6176 = vmatpush1.xpose.msra.mxu0 %v2439
        %6177 = vmatprep.subr.mxu0 %v2552
        %6178 = vmatpush1.xpose.msra.mxu0 %v2551
        %6179 = vmatprep.subr.mxu0 %v2664
        %6180 = vmatpush1.xpose.msra.mxu0 %v2663
        %6181 = vmatprep.subr.mxu0 %v2776
        %6182 = vmatpush1.xpose.msra.mxu0 %v2775
        %6183 = vmatprep.subr.mxu0 %v2888
        %6184 = vmatpush1.xpose.msra.mxu0 %v2887
        %6185 = vmatprep.subr.mxu0 %v3000
        %6186 = vmatpush1.xpose.msra.mxu0 %v2999
        %6187 = vmatprep.subr.mxu0 %v3112
        %6188 = vmatpush1.xpose.msra.mxu0 %v3111
        %6189 = vmatprep.subr.mxu0 %v3224
        %6190 = vmatpush1.xpose.msra.mxu0 %v3223
        %6191 = vmatprep.subr.mxu0 %v3336
        %6192 = vmatpush1.xpose.msra.mxu0 %v3335
        %6193 = vmatprep.subr.mxu0 %v3448
        %6194 = vmatpush1.xpose.msra.mxu0 %v3447
        %6195 = vmatprep.subr.mxu0 %v3560
        %6196 = vmatpush1.xpose.msra.mxu0 %v3559
        %6197 = vmatprep.subr.mxu0 %v3672
        %6198 = vmatpush1.xpose.msra.mxu0 %v3671
        %6199 = vmatprep.subr.mxu0 %v3784
        %6200 = vmatpush1.xpose.msra.mxu0 %v3783
        %6201 = vmatprep.mubr.f32.mxu0 %v4061
        %6202 = vmatmul.mubr.f32.gmra.mrb[0].mxu0 %v4057
        %v6203 = vpop.f32.mrb[0].mxu0
        %v6204 = vadd.f32 %v6133, %v6203
        %v6205 = vpop.f32.mrb[0].mxu0
        %v6206 = vadd.f32 %v6135, %v6205
        %6207 = vdwg.mxu0
        %6208 = vmatprep.subr.mxu0 %v314
        %6209 = vmatpush1.xpose.msra.mxu0 %v313
        %6210 = vmatprep.subr.mxu0 %v426
        %6211 = vmatpush1.xpose.msra.mxu0 %v425
        %6212 = vmatprep.subr.mxu0 %v538
        %6213 = vmatpush1.xpose.msra.mxu0 %v537
        %6214 = vmatprep.subr.mxu0 %v650
        %6215 = vmatpush1.xpose.msra.mxu0 %v649
        %6216 = vmatprep.subr.mxu0 %v762
        %6217 = vmatpush1.xpose.msra.mxu0 %v761
        %6218 = vmatprep.subr.mxu0 %v874
        %6219 = vmatpush1.xpose.msra.mxu0 %v873
        %6220 = vmatprep.subr.mxu0 %v986
        %6221 = vmatpush1.xpose.msra.mxu0 %v985
        %6222 = vmatprep.subr.mxu0 %v1098
        %6223 = vmatpush1.xpose.msra.mxu0 %v1097
        %6224 = vmatprep.subr.mxu0 %v1210
        %6225 = vmatpush1.xpose.msra.mxu0 %v1209
        %6226 = vmatprep.subr.mxu0 %v1322
        %6227 = vmatpush1.xpose.msra.mxu0 %v1321
        %6228 = vmatprep.subr.mxu0 %v1434
        %6229 = vmatpush1.xpose.msra.mxu0 %v1433
        %6230 = vmatprep.subr.mxu0 %v1546
        %6231 = vmatpush1.xpose.msra.mxu0 %v1545
        %6232 = vmatprep.subr.mxu0 %v1658
        %6233 = vmatpush1.xpose.msra.mxu0 %v1657
        %6234 = vmatprep.subr.mxu0 %v1770
        %6235 = vmatpush1.xpose.msra.mxu0 %v1769
        %6236 = vmatprep.subr.mxu0 %v1882
        %6237 = vmatpush1.xpose.msra.mxu0 %v1881
        %6238 = vmatprep.subr.mxu0 %v1994
        %6239 = vmatpush1.xpose.msra.mxu0 %v1993
        %6240 = vmatprep.subr.mxu0 %v2106
        %6241 = vmatpush1.xpose.msra.mxu0 %v2105
        %6242 = vmatprep.subr.mxu0 %v2218
        %6243 = vmatpush1.xpose.msra.mxu0 %v2217
        %6244 = vmatprep.subr.mxu0 %v2330
        %6245 = vmatpush1.xpose.msra.mxu0 %v2329
        %6246 = vmatprep.subr.mxu0 %v2442
        %6247 = vmatpush1.xpose.msra.mxu0 %v2441
        %6248 = vmatprep.subr.mxu0 %v2554
        %6249 = vmatpush1.xpose.msra.mxu0 %v2553
        %6250 = vmatprep.subr.mxu0 %v2666
        %6251 = vmatpush1.xpose.msra.mxu0 %v2665
        %6252 = vmatprep.subr.mxu0 %v2778
        %6253 = vmatpush1.xpose.msra.mxu0 %v2777
        %6254 = vmatprep.subr.mxu0 %v2890
        %6255 = vmatpush1.xpose.msra.mxu0 %v2889
        %6256 = vmatprep.subr.mxu0 %v3002
        %6257 = vmatpush1.xpose.msra.mxu0 %v3001
        %6258 = vmatprep.subr.mxu0 %v3114
        %6259 = vmatpush1.xpose.msra.mxu0 %v3113
        %6260 = vmatprep.subr.mxu0 %v3226
        %6261 = vmatpush1.xpose.msra.mxu0 %v3225
        %6262 = vmatprep.subr.mxu0 %v3338
        %6263 = vmatpush1.xpose.msra.mxu0 %v3337
        %6264 = vmatprep.subr.mxu0 %v3450
        %6265 = vmatpush1.xpose.msra.mxu0 %v3449
        %6266 = vmatprep.subr.mxu0 %v3562
        %6267 = vmatpush1.xpose.msra.mxu0 %v3561
        %6268 = vmatprep.subr.mxu0 %v3674
        %6269 = vmatpush1.xpose.msra.mxu0 %v3673
        %6270 = vmatprep.subr.mxu0 %v3786
        %6271 = vmatpush1.xpose.msra.mxu0 %v3785
        %6272 = vmatprep.mubr.f32.mxu0 %v4069
        %6273 = vmatmul.mubr.f32.gmra.mrb[0].mxu0 %v4065
        %v6274 = vpop.f32.mrb[0].mxu0
        %v6275 = vadd.f32 %v6204, %v6274
        %v6276 = vpop.f32.mrb[0].mxu0
        %v6277 = vadd.f32 %v6206, %v6276
        %6278 = vdwg.mxu0
        %6279 = vmatprep.subr.mxu0 %v316
        %6280 = vmatpush1.xpose.msra.mxu0 %v315
        %6281 = vmatprep.subr.mxu0 %v428
        %6282 = vmatpush1.xpose.msra.mxu0 %v427
        %6283 = vmatprep.subr.mxu0 %v540
        %6284 = vmatpush1.xpose.msra.mxu0 %v539
        %6285 = vmatprep.subr.mxu0 %v652
        %6286 = vmatpush1.xpose.msra.mxu0 %v651
        %6287 = vmatprep.subr.mxu0 %v764
        %6288 = vmatpush1.xpose.msra.mxu0 %v763
        %6289 = vmatprep.subr.mxu0 %v876
        %6290 = vmatpush1.xpose.msra.mxu0 %v875
        %6291 = vmatprep.subr.mxu0 %v988
        %6292 = vmatpush1.xpose.msra.mxu0 %v987
        %6293 = vmatprep.subr.mxu0 %v1100
        %6294 = vmatpush1.xpose.msra.mxu0 %v1099
        %6295 = vmatprep.subr.mxu0 %v1212
        %6296 = vmatpush1.xpose.msra.mxu0 %v1211
        %6297 = vmatprep.subr.mxu0 %v1324
        %6298 = vmatpush1.xpose.msra.mxu0 %v1323
        %6299 = vmatprep.subr.mxu0 %v1436
        %6300 = vmatpush1.xpose.msra.mxu0 %v1435
        %6301 = vmatprep.subr.mxu0 %v1548
        %6302 = vmatpush1.xpose.msra.mxu0 %v1547
        %6303 = vmatprep.subr.mxu0 %v1660
        %6304 = vmatpush1.xpose.msra.mxu0 %v1659
        %6305 = vmatprep.subr.mxu0 %v1772
        %6306 = vmatpush1.xpose.msra.mxu0 %v1771
        %6307 = vmatprep.subr.mxu0 %v1884
        %6308 = vmatpush1.xpose.msra.mxu0 %v1883
        %6309 = vmatprep.subr.mxu0 %v1996
        %6310 = vmatpush1.xpose.msra.mxu0 %v1995
        %6311 = vmatprep.subr.mxu0 %v2108
        %6312 = vmatpush1.xpose.msra.mxu0 %v2107
        %6313 = vmatprep.subr.mxu0 %v2220
        %6314 = vmatpush1.xpose.msra.mxu0 %v2219
        %6315 = vmatprep.subr.mxu0 %v2332
        %6316 = vmatpush1.xpose.msra.mxu0 %v2331
        %6317 = vmatprep.subr.mxu0 %v2444
        %6318 = vmatpush1.xpose.msra.mxu0 %v2443
        %6319 = vmatprep.subr.mxu0 %v2556
        %6320 = vmatpush1.xpose.msra.mxu0 %v2555
        %6321 = vmatprep.subr.mxu0 %v2668
        %6322 = vmatpush1.xpose.msra.mxu0 %v2667
        %6323 = vmatprep.subr.mxu0 %v2780
        %6324 = vmatpush1.xpose.msra.mxu0 %v2779
        %6325 = vmatprep.subr.mxu0 %v2892
        %6326 = vmatpush1.xpose.msra.mxu0 %v2891
        %6327 = vmatprep.subr.mxu0 %v3004
        %6328 = vmatpush1.xpose.msra.mxu0 %v3003
        %6329 = vmatprep.subr.mxu0 %v3116
        %6330 = vmatpush1.xpose.msra.mxu0 %v3115
        %6331 = vmatprep.subr.mxu0 %v3228
        %6332 = vmatpush1.xpose.msra.mxu0 %v3227
        %6333 = vmatprep.subr.mxu0 %v3340
        %6334 = vmatpush1.xpose.msra.mxu0 %v3339
        %6335 = vmatprep.subr.mxu0 %v3452
        %6336 = vmatpush1.xpose.msra.mxu0 %v3451
        %6337 = vmatprep.subr.mxu0 %v3564
        %6338 = vmatpush1.xpose.msra.mxu0 %v3563
        %6339 = vmatprep.subr.mxu0 %v3676
        %6340 = vmatpush1.xpose.msra.mxu0 %v3675
        %6341 = vmatprep.subr.mxu0 %v3788
        %6342 = vmatpush1.xpose.msra.mxu0 %v3787
        %6343 = vmatprep.mubr.f32.mxu0 %v4077
        %6344 = vmatmul.mubr.f32.gmra.mrb[0].mxu0 %v4073
        %v6345 = vpop.f32.mrb[0].mxu0
        %v6346 = vadd.f32 %v6275, %v6345
        %v6347 = vpop.f32.mrb[0].mxu0
        %v6348 = vadd.f32 %v6277, %v6347
        %6349 = vdwg.mxu0
        %6350 = vmatprep.subr.mxu0 %v318
        %6351 = vmatpush1.xpose.msra.mxu0 %v317
        %6352 = vmatprep.subr.mxu0 %v430
        %6353 = vmatpush1.xpose.msra.mxu0 %v429
        %6354 = vmatprep.subr.mxu0 %v542
        %6355 = vmatpush1.xpose.msra.mxu0 %v541
        %6356 = vmatprep.subr.mxu0 %v654
        %6357 = vmatpush1.xpose.msra.mxu0 %v653
        %6358 = vmatprep.subr.mxu0 %v766
        %6359 = vmatpush1.xpose.msra.mxu0 %v765
        %6360 = vmatprep.subr.mxu0 %v878
        %6361 = vmatpush1.xpose.msra.mxu0 %v877
        %6362 = vmatprep.subr.mxu0 %v990
        %6363 = vmatpush1.xpose.msra.mxu0 %v989
        %6364 = vmatprep.subr.mxu0 %v1102
        %6365 = vmatpush1.xpose.msra.mxu0 %v1101
        %6366 = vmatprep.subr.mxu0 %v1214
        %6367 = vmatpush1.xpose.msra.mxu0 %v1213
        %6368 = vmatprep.subr.mxu0 %v1326
        %6369 = vmatpush1.xpose.msra.mxu0 %v1325
        %6370 = vmatprep.subr.mxu0 %v1438
        %6371 = vmatpush1.xpose.msra.mxu0 %v1437
        %6372 = vmatprep.subr.mxu0 %v1550
        %6373 = vmatpush1.xpose.msra.mxu0 %v1549
        %6374 = vmatprep.subr.mxu0 %v1662
        %6375 = vmatpush1.xpose.msra.mxu0 %v1661
        %6376 = vmatprep.subr.mxu0 %v1774
        %6377 = vmatpush1.xpose.msra.mxu0 %v1773
        %6378 = vmatprep.subr.mxu0 %v1886
        %6379 = vmatpush1.xpose.msra.mxu0 %v1885
        %6380 = vmatprep.subr.mxu0 %v1998
        %6381 = vmatpush1.xpose.msra.mxu0 %v1997
        %6382 = vmatprep.subr.mxu0 %v2110
        %6383 = vmatpush1.xpose.msra.mxu0 %v2109
        %6384 = vmatprep.subr.mxu0 %v2222
        %6385 = vmatpush1.xpose.msra.mxu0 %v2221
        %6386 = vmatprep.subr.mxu0 %v2334
        %6387 = vmatpush1.xpose.msra.mxu0 %v2333
        %6388 = vmatprep.subr.mxu0 %v2446
        %6389 = vmatpush1.xpose.msra.mxu0 %v2445
        %6390 = vmatprep.subr.mxu0 %v2558
        %6391 = vmatpush1.xpose.msra.mxu0 %v2557
        %6392 = vmatprep.subr.mxu0 %v2670
        %6393 = vmatpush1.xpose.msra.mxu0 %v2669
        %6394 = vmatprep.subr.mxu0 %v2782
        %6395 = vmatpush1.xpose.msra.mxu0 %v2781
        %6396 = vmatprep.subr.mxu0 %v2894
        %6397 = vmatpush1.xpose.msra.mxu0 %v2893
        %6398 = vmatprep.subr.mxu0 %v3006
        %6399 = vmatpush1.xpose.msra.mxu0 %v3005
        %6400 = vmatprep.subr.mxu0 %v3118
        %6401 = vmatpush1.xpose.msra.mxu0 %v3117
        %6402 = vmatprep.subr.mxu0 %v3230
        %6403 = vmatpush1.xpose.msra.mxu0 %v3229
        %6404 = vmatprep.subr.mxu0 %v3342
        %6405 = vmatpush1.xpose.msra.mxu0 %v3341
        %6406 = vmatprep.subr.mxu0 %v3454
        %6407 = vmatpush1.xpose.msra.mxu0 %v3453
        %6408 = vmatprep.subr.mxu0 %v3566
        %6409 = vmatpush1.xpose.msra.mxu0 %v3565
        %6410 = vmatprep.subr.mxu0 %v3678
        %6411 = vmatpush1.xpose.msra.mxu0 %v3677
        %6412 = vmatprep.subr.mxu0 %v3790
        %6413 = vmatpush1.xpose.msra.mxu0 %v3789
        %6414 = vmatprep.mubr.f32.mxu0 %v4085
        %6415 = vmatmul.mubr.f32.gmra.mrb[0].mxu0 %v4081
        %v6416 = vpop.f32.mrb[0].mxu0
        %v6417 = vadd.f32 %v6346, %v6416
        %v6418 = vpop.f32.mrb[0].mxu0
        %v6419 = vadd.f32 %v6348, %v6418
        %6420 = vdwg.mxu0
        %6421 = vmatprep.subr.mxu0 %v320
        %6422 = vmatpush1.xpose.msra.mxu0 %v319
        %6423 = vmatprep.subr.mxu0 %v432
        %6424 = vmatpush1.xpose.msra.mxu0 %v431
        %6425 = vmatprep.subr.mxu0 %v544
        %6426 = vmatpush1.xpose.msra.mxu0 %v543
        %6427 = vmatprep.subr.mxu0 %v656
        %6428 = vmatpush1.xpose.msra.mxu0 %v655
        %6429 = vmatprep.subr.mxu0 %v768
        %6430 = vmatpush1.xpose.msra.mxu0 %v767
        %6431 = vmatprep.subr.mxu0 %v880
        %6432 = vmatpush1.xpose.msra.mxu0 %v879
        %6433 = vmatprep.subr.mxu0 %v992
        %6434 = vmatpush1.xpose.msra.mxu0 %v991
        %6435 = vmatprep.subr.mxu0 %v1104
        %6436 = vmatpush1.xpose.msra.mxu0 %v1103
        %6437 = vmatprep.subr.mxu0 %v1216
        %6438 = vmatpush1.xpose.msra.mxu0 %v1215
        %6439 = vmatprep.subr.mxu0 %v1328
        %6440 = vmatpush1.xpose.msra.mxu0 %v1327
        %6441 = vmatprep.subr.mxu0 %v1440
        %6442 = vmatpush1.xpose.msra.mxu0 %v1439
        %6443 = vmatprep.subr.mxu0 %v1552
        %6444 = vmatpush1.xpose.msra.mxu0 %v1551
        %6445 = vmatprep.subr.mxu0 %v1664
        %6446 = vmatpush1.xpose.msra.mxu0 %v1663
        %6447 = vmatprep.subr.mxu0 %v1776
        %6448 = vmatpush1.xpose.msra.mxu0 %v1775
        %6449 = vmatprep.subr.mxu0 %v1888
        %6450 = vmatpush1.xpose.msra.mxu0 %v1887
        %6451 = vmatprep.subr.mxu0 %v2000
        %6452 = vmatpush1.xpose.msra.mxu0 %v1999
        %6453 = vmatprep.subr.mxu0 %v2112
        %6454 = vmatpush1.xpose.msra.mxu0 %v2111
        %6455 = vmatprep.subr.mxu0 %v2224
        %6456 = vmatpush1.xpose.msra.mxu0 %v2223
        %6457 = vmatprep.subr.mxu0 %v2336
        %6458 = vmatpush1.xpose.msra.mxu0 %v2335
        %6459 = vmatprep.subr.mxu0 %v2448
        %6460 = vmatpush1.xpose.msra.mxu0 %v2447
        %6461 = vmatprep.subr.mxu0 %v2560
        %6462 = vmatpush1.xpose.msra.mxu0 %v2559
        %6463 = vmatprep.subr.mxu0 %v2672
        %6464 = vmatpush1.xpose.msra.mxu0 %v2671
        %6465 = vmatprep.subr.mxu0 %v2784
        %6466 = vmatpush1.xpose.msra.mxu0 %v2783
        %6467 = vmatprep.subr.mxu0 %v2896
        %6468 = vmatpush1.xpose.msra.mxu0 %v2895
        %6469 = vmatprep.subr.mxu0 %v3008
        %6470 = vmatpush1.xpose.msra.mxu0 %v3007
        %6471 = vmatprep.subr.mxu0 %v3120
        %6472 = vmatpush1.xpose.msra.mxu0 %v3119
        %6473 = vmatprep.subr.mxu0 %v3232
        %6474 = vmatpush1.xpose.msra.mxu0 %v3231
        %6475 = vmatprep.subr.mxu0 %v3344
        %6476 = vmatpush1.xpose.msra.mxu0 %v3343
        %6477 = vmatprep.subr.mxu0 %v3456
        %6478 = vmatpush1.xpose.msra.mxu0 %v3455
        %6479 = vmatprep.subr.mxu0 %v3568
        %6480 = vmatpush1.xpose.msra.mxu0 %v3567
        %6481 = vmatprep.subr.mxu0 %v3680
        %6482 = vmatpush1.xpose.msra.mxu0 %v3679
        %6483 = vmatprep.subr.mxu0 %v3792
        %6484 = vmatpush1.xpose.msra.mxu0 %v3791
        %6485 = vmatprep.mubr.f32.mxu0 %v4093
        %6486 = vmatmul.mubr.f32.gmra.mrb[0].mxu0 %v4089
        %v6487 = vpop.f32.mrb[0].mxu0
        %v6488 = vadd.f32 %v6417, %v6487
        %v6489 = vpop.f32.mrb[0].mxu0
        %v6490 = vadd.f32 %v6419, %v6489
        %6491 = vdwg.mxu0
        %6492 = vmatprep.subr.mxu0 %v322
        %6493 = vmatpush1.xpose.msra.mxu0 %v321
        %6494 = vmatprep.subr.mxu0 %v434
        %6495 = vmatpush1.xpose.msra.mxu0 %v433
        %6496 = vmatprep.subr.mxu0 %v546
        %6497 = vmatpush1.xpose.msra.mxu0 %v545
        %6498 = vmatprep.subr.mxu0 %v658
        %6499 = vmatpush1.xpose.msra.mxu0 %v657
        %6500 = vmatprep.subr.mxu0 %v770
        %6501 = vmatpush1.xpose.msra.mxu0 %v769
        %6502 = vmatprep.subr.mxu0 %v882
        %6503 = vmatpush1.xpose.msra.mxu0 %v881
        %6504 = vmatprep.subr.mxu0 %v994
        %6505 = vmatpush1.xpose.msra.mxu0 %v993
        %6506 = vmatprep.subr.mxu0 %v1106
        %6507 = vmatpush1.xpose.msra.mxu0 %v1105
        %6508 = vmatprep.subr.mxu0 %v1218
        %6509 = vmatpush1.xpose.msra.mxu0 %v1217
        %6510 = vmatprep.subr.mxu0 %v1330
        %6511 = vmatpush1.xpose.msra.mxu0 %v1329
        %6512 = vmatprep.subr.mxu0 %v1442
        %6513 = vmatpush1.xpose.msra.mxu0 %v1441
        %6514 = vmatprep.subr.mxu0 %v1554
        %6515 = vmatpush1.xpose.msra.mxu0 %v1553
        %6516 = vmatprep.subr.mxu0 %v1666
        %6517 = vmatpush1.xpose.msra.mxu0 %v1665
        %6518 = vmatprep.subr.mxu0 %v1778
        %6519 = vmatpush1.xpose.msra.mxu0 %v1777
        %6520 = vmatprep.subr.mxu0 %v1890
        %6521 = vmatpush1.xpose.msra.mxu0 %v1889
        %6522 = vmatprep.subr.mxu0 %v2002
        %6523 = vmatpush1.xpose.msra.mxu0 %v2001
        %6524 = vmatprep.subr.mxu0 %v2114
        %6525 = vmatpush1.xpose.msra.mxu0 %v2113
        %6526 = vmatprep.subr.mxu0 %v2226
        %6527 = vmatpush1.xpose.msra.mxu0 %v2225
        %6528 = vmatprep.subr.mxu0 %v2338
        %6529 = vmatpush1.xpose.msra.mxu0 %v2337
        %6530 = vmatprep.subr.mxu0 %v2450
        %6531 = vmatpush1.xpose.msra.mxu0 %v2449
        %6532 = vmatprep.subr.mxu0 %v2562
        %6533 = vmatpush1.xpose.msra.mxu0 %v2561
        %6534 = vmatprep.subr.mxu0 %v2674
        %6535 = vmatpush1.xpose.msra.mxu0 %v2673
        %6536 = vmatprep.subr.mxu0 %v2786
        %6537 = vmatpush1.xpose.msra.mxu0 %v2785
        %6538 = vmatprep.subr.mxu0 %v2898
        %6539 = vmatpush1.xpose.msra.mxu0 %v2897
        %6540 = vmatprep.subr.mxu0 %v3010
        %6541 = vmatpush1.xpose.msra.mxu0 %v3009
        %6542 = vmatprep.subr.mxu0 %v3122
        %6543 = vmatpush1.xpose.msra.mxu0 %v3121
        %6544 = vmatprep.subr.mxu0 %v3234
        %6545 = vmatpush1.xpose.msra.mxu0 %v3233
        %6546 = vmatprep.subr.mxu0 %v3346
        %6547 = vmatpush1.xpose.msra.mxu0 %v3345
        %6548 = vmatprep.subr.mxu0 %v3458
        %6549 = vmatpush1.xpose.msra.mxu0 %v3457
        %6550 = vmatprep.subr.mxu0 %v3570
        %6551 = vmatpush1.xpose.msra.mxu0 %v3569
        %6552 = vmatprep.subr.mxu0 %v3682
        %6553 = vmatpush1.xpose.msra.mxu0 %v3681
        %6554 = vmatprep.subr.mxu0 %v3794
        %6555 = vmatpush1.xpose.msra.mxu0 %v3793
        %6556 = vmatprep.mubr.f32.mxu0 %v4101
        %6557 = vmatmul.mubr.f32.gmra.mrb[0].mxu0 %v4097
        %v6558 = vpop.f32.mrb[0].mxu0
        %v6559 = vadd.f32 %v6488, %v6558
        %v6560 = vpop.f32.mrb[0].mxu0
        %v6561 = vadd.f32 %v6490, %v6560
        %6562 = vdwg.mxu0
        %6563 = vmatprep.subr.mxu0 %v324
        %6564 = vmatpush1.xpose.msra.mxu0 %v323
        %6565 = vmatprep.subr.mxu0 %v436
        %6566 = vmatpush1.xpose.msra.mxu0 %v435
        %6567 = vmatprep.subr.mxu0 %v548
        %6568 = vmatpush1.xpose.msra.mxu0 %v547
        %6569 = vmatprep.subr.mxu0 %v660
        %6570 = vmatpush1.xpose.msra.mxu0 %v659
        %6571 = vmatprep.subr.mxu0 %v772
        %6572 = vmatpush1.xpose.msra.mxu0 %v771
        %6573 = vmatprep.subr.mxu0 %v884
        %6574 = vmatpush1.xpose.msra.mxu0 %v883
        %6575 = vmatprep.subr.mxu0 %v996
        %6576 = vmatpush1.xpose.msra.mxu0 %v995
        %6577 = vmatprep.subr.mxu0 %v1108
        %6578 = vmatpush1.xpose.msra.mxu0 %v1107
        %6579 = vmatprep.subr.mxu0 %v1220
        %6580 = vmatpush1.xpose.msra.mxu0 %v1219
        %6581 = vmatprep.subr.mxu0 %v1332
        %6582 = vmatpush1.xpose.msra.mxu0 %v1331
        %6583 = vmatprep.subr.mxu0 %v1444
        %6584 = vmatpush1.xpose.msra.mxu0 %v1443
        %6585 = vmatprep.subr.mxu0 %v1556
        %6586 = vmatpush1.xpose.msra.mxu0 %v1555
        %6587 = vmatprep.subr.mxu0 %v1668
        %6588 = vmatpush1.xpose.msra.mxu0 %v1667
        %6589 = vmatprep.subr.mxu0 %v1780
        %6590 = vmatpush1.xpose.msra.mxu0 %v1779
        %6591 = vmatprep.subr.mxu0 %v1892
        %6592 = vmatpush1.xpose.msra.mxu0 %v1891
        %6593 = vmatprep.subr.mxu0 %v2004
        %6594 = vmatpush1.xpose.msra.mxu0 %v2003
        %6595 = vmatprep.subr.mxu0 %v2116
        %6596 = vmatpush1.xpose.msra.mxu0 %v2115
        %6597 = vmatprep.subr.mxu0 %v2228
        %6598 = vmatpush1.xpose.msra.mxu0 %v2227
        %6599 = vmatprep.subr.mxu0 %v2340
        %6600 = vmatpush1.xpose.msra.mxu0 %v2339
        %6601 = vmatprep.subr.mxu0 %v2452
        %6602 = vmatpush1.xpose.msra.mxu0 %v2451
        %6603 = vmatprep.subr.mxu0 %v2564
        %6604 = vmatpush1.xpose.msra.mxu0 %v2563
        %6605 = vmatprep.subr.mxu0 %v2676
        %6606 = vmatpush1.xpose.msra.mxu0 %v2675
        %6607 = vmatprep.subr.mxu0 %v2788
        %6608 = vmatpush1.xpose.msra.mxu0 %v2787
        %6609 = vmatprep.subr.mxu0 %v2900
        %6610 = vmatpush1.xpose.msra.mxu0 %v2899
        %6611 = vmatprep.subr.mxu0 %v3012
        %6612 = vmatpush1.xpose.msra.mxu0 %v3011
        %6613 = vmatprep.subr.mxu0 %v3124
        %6614 = vmatpush1.xpose.msra.mxu0 %v3123
        %6615 = vmatprep.subr.mxu0 %v3236
        %6616 = vmatpush1.xpose.msra.mxu0 %v3235
        %6617 = vmatprep.subr.mxu0 %v3348
        %6618 = vmatpush1.xpose.msra.mxu0 %v3347
        %6619 = vmatprep.subr.mxu0 %v3460
        %6620 = vmatpush1.xpose.msra.mxu0 %v3459
        %6621 = vmatprep.subr.mxu0 %v3572
        %6622 = vmatpush1.xpose.msra.mxu0 %v3571
        %6623 = vmatprep.subr.mxu0 %v3684
        %6624 = vmatpush1.xpose.msra.mxu0 %v3683
        %6625 = vmatprep.subr.mxu0 %v3796
        %6626 = vmatpush1.xpose.msra.mxu0 %v3795
        %6627 = vmatprep.mubr.f32.mxu0 %v4109
        %6628 = vmatmul.mubr.f32.gmra.mrb[0].mxu0 %v4105
        %v6629 = vpop.f32.mrb[0].mxu0
        %v6630 = vadd.f32 %v6559, %v6629
        %v6631 = vpop.f32.mrb[0].mxu0
        %v6632 = vadd.f32 %v6561, %v6631
        %6633 = vdwg.mxu0
        %6634 = vmatprep.subr.mxu0 %v326
        %6635 = vmatpush1.xpose.msra.mxu0 %v325
        %6636 = vmatprep.subr.mxu0 %v438
        %6637 = vmatpush1.xpose.msra.mxu0 %v437
        %6638 = vmatprep.subr.mxu0 %v550
        %6639 = vmatpush1.xpose.msra.mxu0 %v549
        %6640 = vmatprep.subr.mxu0 %v662
        %6641 = vmatpush1.xpose.msra.mxu0 %v661
        %6642 = vmatprep.subr.mxu0 %v774
        %6643 = vmatpush1.xpose.msra.mxu0 %v773
        %6644 = vmatprep.subr.mxu0 %v886
        %6645 = vmatpush1.xpose.msra.mxu0 %v885
        %6646 = vmatprep.subr.mxu0 %v998
        %6647 = vmatpush1.xpose.msra.mxu0 %v997
        %6648 = vmatprep.subr.mxu0 %v1110
        %6649 = vmatpush1.xpose.msra.mxu0 %v1109
        %6650 = vmatprep.subr.mxu0 %v1222
        %6651 = vmatpush1.xpose.msra.mxu0 %v1221
        %6652 = vmatprep.subr.mxu0 %v1334
        %6653 = vmatpush1.xpose.msra.mxu0 %v1333
        %6654 = vmatprep.subr.mxu0 %v1446
        %6655 = vmatpush1.xpose.msra.mxu0 %v1445
        %6656 = vmatprep.subr.mxu0 %v1558
        %6657 = vmatpush1.xpose.msra.mxu0 %v1557
        %6658 = vmatprep.subr.mxu0 %v1670
        %6659 = vmatpush1.xpose.msra.mxu0 %v1669
        %6660 = vmatprep.subr.mxu0 %v1782
        %6661 = vmatpush1.xpose.msra.mxu0 %v1781
        %6662 = vmatprep.subr.mxu0 %v1894
        %6663 = vmatpush1.xpose.msra.mxu0 %v1893
        %6664 = vmatprep.subr.mxu0 %v2006
        %6665 = vmatpush1.xpose.msra.mxu0 %v2005
        %6666 = vmatprep.subr.mxu0 %v2118
        %6667 = vmatpush1.xpose.msra.mxu0 %v2117
        %6668 = vmatprep.subr.mxu0 %v2230
        %6669 = vmatpush1.xpose.msra.mxu0 %v2229
        %6670 = vmatprep.subr.mxu0 %v2342
        %6671 = vmatpush1.xpose.msra.mxu0 %v2341
        %6672 = vmatprep.subr.mxu0 %v2454
        %6673 = vmatpush1.xpose.msra.mxu0 %v2453
        %6674 = vmatprep.subr.mxu0 %v2566
        %6675 = vmatpush1.xpose.msra.mxu0 %v2565
        %6676 = vmatprep.subr.mxu0 %v2678
        %6677 = vmatpush1.xpose.msra.mxu0 %v2677
        %6678 = vmatprep.subr.mxu0 %v2790
        %6679 = vmatpush1.xpose.msra.mxu0 %v2789
        %6680 = vmatprep.subr.mxu0 %v2902
        %6681 = vmatpush1.xpose.msra.mxu0 %v2901
        %6682 = vmatprep.subr.mxu0 %v3014
        %6683 = vmatpush1.xpose.msra.mxu0 %v3013
        %6684 = vmatprep.subr.mxu0 %v3126
        %6685 = vmatpush1.xpose.msra.mxu0 %v3125
        %6686 = vmatprep.subr.mxu0 %v3238
        %6687 = vmatpush1.xpose.msra.mxu0 %v3237
        %6688 = vmatprep.subr.mxu0 %v3350
        %6689 = vmatpush1.xpose.msra.mxu0 %v3349
        %6690 = vmatprep.subr.mxu0 %v3462
        %6691 = vmatpush1.xpose.msra.mxu0 %v3461
        %6692 = vmatprep.subr.mxu0 %v3574
        %6693 = vmatpush1.xpose.msra.mxu0 %v3573
        %6694 = vmatprep.subr.mxu0 %v3686
        %6695 = vmatpush1.xpose.msra.mxu0 %v3685
        %6696 = vmatprep.subr.mxu0 %v3798
        %6697 = vmatpush1.xpose.msra.mxu0 %v3797
        %6698 = vmatprep.mubr.f32.mxu0 %v4117
        %6699 = vmatmul.mubr.f32.gmra.mrb[0].mxu0 %v4113
        %v6700 = vpop.f32.mrb[0].mxu0
        %v6701 = vadd.f32 %v6630, %v6700
        %v6702 = vpop.f32.mrb[0].mxu0
        %v6703 = vadd.f32 %v6632, %v6702
        %6704 = vdwg.mxu0
        %6705 = vmatprep.subr.mxu0 %v328
        %6706 = vmatpush1.xpose.msra.mxu0 %v327
        %6707 = vmatprep.subr.mxu0 %v440
        %6708 = vmatpush1.xpose.msra.mxu0 %v439
        %6709 = vmatprep.subr.mxu0 %v552
        %6710 = vmatpush1.xpose.msra.mxu0 %v551
        %6711 = vmatprep.subr.mxu0 %v664
        %6712 = vmatpush1.xpose.msra.mxu0 %v663
        %6713 = vmatprep.subr.mxu0 %v776
        %6714 = vmatpush1.xpose.msra.mxu0 %v775
        %6715 = vmatprep.subr.mxu0 %v888
        %6716 = vmatpush1.xpose.msra.mxu0 %v887
        %6717 = vmatprep.subr.mxu0 %v1000
        %6718 = vmatpush1.xpose.msra.mxu0 %v999
        %6719 = vmatprep.subr.mxu0 %v1112
        %6720 = vmatpush1.xpose.msra.mxu0 %v1111
        %6721 = vmatprep.subr.mxu0 %v1224
        %6722 = vmatpush1.xpose.msra.mxu0 %v1223
        %6723 = vmatprep.subr.mxu0 %v1336
        %6724 = vmatpush1.xpose.msra.mxu0 %v1335
        %6725 = vmatprep.subr.mxu0 %v1448
        %6726 = vmatpush1.xpose.msra.mxu0 %v1447
        %6727 = vmatprep.subr.mxu0 %v1560
        %6728 = vmatpush1.xpose.msra.mxu0 %v1559
        %6729 = vmatprep.subr.mxu0 %v1672
        %6730 = vmatpush1.xpose.msra.mxu0 %v1671
        %6731 = vmatprep.subr.mxu0 %v1784
        %6732 = vmatpush1.xpose.msra.mxu0 %v1783
        %6733 = vmatprep.subr.mxu0 %v1896
        %6734 = vmatpush1.xpose.msra.mxu0 %v1895
        %6735 = vmatprep.subr.mxu0 %v2008
        %6736 = vmatpush1.xpose.msra.mxu0 %v2007
        %6737 = vmatprep.subr.mxu0 %v2120
        %6738 = vmatpush1.xpose.msra.mxu0 %v2119
        %6739 = vmatprep.subr.mxu0 %v2232
        %6740 = vmatpush1.xpose.msra.mxu0 %v2231
        %6741 = vmatprep.subr.mxu0 %v2344
        %6742 = vmatpush1.xpose.msra.mxu0 %v2343
        %6743 = vmatprep.subr.mxu0 %v2456
        %6744 = vmatpush1.xpose.msra.mxu0 %v2455
        %6745 = vmatprep.subr.mxu0 %v2568
        %6746 = vmatpush1.xpose.msra.mxu0 %v2567
        %6747 = vmatprep.subr.mxu0 %v2680
        %6748 = vmatpush1.xpose.msra.mxu0 %v2679
        %6749 = vmatprep.subr.mxu0 %v2792
        %6750 = vmatpush1.xpose.msra.mxu0 %v2791
        %6751 = vmatprep.subr.mxu0 %v2904
        %6752 = vmatpush1.xpose.msra.mxu0 %v2903
        %6753 = vmatprep.subr.mxu0 %v3016
        %6754 = vmatpush1.xpose.msra.mxu0 %v3015
        %6755 = vmatprep.subr.mxu0 %v3128
        %6756 = vmatpush1.xpose.msra.mxu0 %v3127
        %6757 = vmatprep.subr.mxu0 %v3240
        %6758 = vmatpush1.xpose.msra.mxu0 %v3239
        %6759 = vmatprep.subr.mxu0 %v3352
        %6760 = vmatpush1.xpose.msra.mxu0 %v3351
        %6761 = vmatprep.subr.mxu0 %v3464
        %6762 = vmatpush1.xpose.msra.mxu0 %v3463
        %6763 = vmatprep.subr.mxu0 %v3576
        %6764 = vmatpush1.xpose.msra.mxu0 %v3575
        %6765 = vmatprep.subr.mxu0 %v3688
        %6766 = vmatpush1.xpose.msra.mxu0 %v3687
        %6767 = vmatprep.subr.mxu0 %v3800
        %6768 = vmatpush1.xpose.msra.mxu0 %v3799
        %6769 = vmatprep.mubr.f32.mxu0 %v4125
        %6770 = vmatmul.mubr.f32.gmra.mrb[0].mxu0 %v4121
        %v6771 = vpop.f32.mrb[0].mxu0
        %v6772 = vadd.f32 %v6701, %v6771
        %v6773 = vpop.f32.mrb[0].mxu0
        %v6774 = vadd.f32 %v6703, %v6773
        %6775 = vdwg.mxu0
        %6776 = vmatprep.subr.mxu0 %v330
        %6777 = vmatpush1.xpose.msra.mxu0 %v329
        %6778 = vmatprep.subr.mxu0 %v442
        %6779 = vmatpush1.xpose.msra.mxu0 %v441
        %6780 = vmatprep.subr.mxu0 %v554
        %6781 = vmatpush1.xpose.msra.mxu0 %v553
        %6782 = vmatprep.subr.mxu0 %v666
        %6783 = vmatpush1.xpose.msra.mxu0 %v665
        %6784 = vmatprep.subr.mxu0 %v778
        %6785 = vmatpush1.xpose.msra.mxu0 %v777
        %6786 = vmatprep.subr.mxu0 %v890
        %6787 = vmatpush1.xpose.msra.mxu0 %v889
        %6788 = vmatprep.subr.mxu0 %v1002
        %6789 = vmatpush1.xpose.msra.mxu0 %v1001
        %6790 = vmatprep.subr.mxu0 %v1114
        %6791 = vmatpush1.xpose.msra.mxu0 %v1113
        %6792 = vmatprep.subr.mxu0 %v1226
        %6793 = vmatpush1.xpose.msra.mxu0 %v1225
        %6794 = vmatprep.subr.mxu0 %v1338
        %6795 = vmatpush1.xpose.msra.mxu0 %v1337
        %6796 = vmatprep.subr.mxu0 %v1450
        %6797 = vmatpush1.xpose.msra.mxu0 %v1449
        %6798 = vmatprep.subr.mxu0 %v1562
        %6799 = vmatpush1.xpose.msra.mxu0 %v1561
        %6800 = vmatprep.subr.mxu0 %v1674
        %6801 = vmatpush1.xpose.msra.mxu0 %v1673
        %6802 = vmatprep.subr.mxu0 %v1786
        %6803 = vmatpush1.xpose.msra.mxu0 %v1785
        %6804 = vmatprep.subr.mxu0 %v1898
        %6805 = vmatpush1.xpose.msra.mxu0 %v1897
        %6806 = vmatprep.subr.mxu0 %v2010
        %6807 = vmatpush1.xpose.msra.mxu0 %v2009
        %6808 = vmatprep.subr.mxu0 %v2122
        %6809 = vmatpush1.xpose.msra.mxu0 %v2121
        %6810 = vmatprep.subr.mxu0 %v2234
        %6811 = vmatpush1.xpose.msra.mxu0 %v2233
        %6812 = vmatprep.subr.mxu0 %v2346
        %6813 = vmatpush1.xpose.msra.mxu0 %v2345
        %6814 = vmatprep.subr.mxu0 %v2458
        %6815 = vmatpush1.xpose.msra.mxu0 %v2457
        %6816 = vmatprep.subr.mxu0 %v2570
        %6817 = vmatpush1.xpose.msra.mxu0 %v2569
        %6818 = vmatprep.subr.mxu0 %v2682
        %6819 = vmatpush1.xpose.msra.mxu0 %v2681
        %6820 = vmatprep.subr.mxu0 %v2794
        %6821 = vmatpush1.xpose.msra.mxu0 %v2793
        %6822 = vmatprep.subr.mxu0 %v2906
        %6823 = vmatpush1.xpose.msra.mxu0 %v2905
        %6824 = vmatprep.subr.mxu0 %v3018
        %6825 = vmatpush1.xpose.msra.mxu0 %v3017
        %6826 = vmatprep.subr.mxu0 %v3130
        %6827 = vmatpush1.xpose.msra.mxu0 %v3129
        %6828 = vmatprep.subr.mxu0 %v3242
        %6829 = vmatpush1.xpose.msra.mxu0 %v3241
        %6830 = vmatprep.subr.mxu0 %v3354
        %6831 = vmatpush1.xpose.msra.mxu0 %v3353
        %6832 = vmatprep.subr.mxu0 %v3466
        %6833 = vmatpush1.xpose.msra.mxu0 %v3465
        %6834 = vmatprep.subr.mxu0 %v3578
        %6835 = vmatpush1.xpose.msra.mxu0 %v3577
        %6836 = vmatprep.subr.mxu0 %v3690
        %6837 = vmatpush1.xpose.msra.mxu0 %v3689
        %6838 = vmatprep.subr.mxu0 %v3802
        %6839 = vmatpush1.xpose.msra.mxu0 %v3801
        %6840 = vmatprep.mubr.f32.mxu0 %v4133
        %6841 = vmatmul.mubr.f32.gmra.mrb[0].mxu0 %v4129
        %v6842 = vpop.f32.mrb[0].mxu0
        %v6843 = vadd.f32 %v6772, %v6842
        %v6844 = vpop.f32.mrb[0].mxu0
        %v6845 = vadd.f32 %v6774, %v6844
        %6846 = vdwg.mxu0
        %6847 = vmatprep.subr.mxu0 %v332
        %6848 = vmatpush1.xpose.msra.mxu0 %v331
        %6849 = vmatprep.subr.mxu0 %v444
        %6850 = vmatpush1.xpose.msra.mxu0 %v443
        %6851 = vmatprep.subr.mxu0 %v556
        %6852 = vmatpush1.xpose.msra.mxu0 %v555
        %6853 = vmatprep.subr.mxu0 %v668
        %6854 = vmatpush1.xpose.msra.mxu0 %v667
        %6855 = vmatprep.subr.mxu0 %v780
        %6856 = vmatpush1.xpose.msra.mxu0 %v779
        %6857 = vmatprep.subr.mxu0 %v892
        %6858 = vmatpush1.xpose.msra.mxu0 %v891
        %6859 = vmatprep.subr.mxu0 %v1004
        %6860 = vmatpush1.xpose.msra.mxu0 %v1003
        %6861 = vmatprep.subr.mxu0 %v1116
        %6862 = vmatpush1.xpose.msra.mxu0 %v1115
        %6863 = vmatprep.subr.mxu0 %v1228
        %6864 = vmatpush1.xpose.msra.mxu0 %v1227
        %6865 = vmatprep.subr.mxu0 %v1340
        %6866 = vmatpush1.xpose.msra.mxu0 %v1339
        %6867 = vmatprep.subr.mxu0 %v1452
        %6868 = vmatpush1.xpose.msra.mxu0 %v1451
        %6869 = vmatprep.subr.mxu0 %v1564
        %6870 = vmatpush1.xpose.msra.mxu0 %v1563
        %6871 = vmatprep.subr.mxu0 %v1676
        %6872 = vmatpush1.xpose.msra.mxu0 %v1675
        %6873 = vmatprep.subr.mxu0 %v1788
        %6874 = vmatpush1.xpose.msra.mxu0 %v1787
        %6875 = vmatprep.subr.mxu0 %v1900
        %6876 = vmatpush1.xpose.msra.mxu0 %v1899
        %6877 = vmatprep.subr.mxu0 %v2012
        %6878 = vmatpush1.xpose.msra.mxu0 %v2011
        %6879 = vmatprep.subr.mxu0 %v2124
        %6880 = vmatpush1.xpose.msra.mxu0 %v2123
        %6881 = vmatprep.subr.mxu0 %v2236
        %6882 = vmatpush1.xpose.msra.mxu0 %v2235
        %6883 = vmatprep.subr.mxu0 %v2348
        %6884 = vmatpush1.xpose.msra.mxu0 %v2347
        %6885 = vmatprep.subr.mxu0 %v2460
        %6886 = vmatpush1.xpose.msra.mxu0 %v2459
        %6887 = vmatprep.subr.mxu0 %v2572
        %6888 = vmatpush1.xpose.msra.mxu0 %v2571
        %6889 = vmatprep.subr.mxu0 %v2684
        %6890 = vmatpush1.xpose.msra.mxu0 %v2683
        %6891 = vmatprep.subr.mxu0 %v2796
        %6892 = vmatpush1.xpose.msra.mxu0 %v2795
        %6893 = vmatprep.subr.mxu0 %v2908
        %6894 = vmatpush1.xpose.msra.mxu0 %v2907
        %6895 = vmatprep.subr.mxu0 %v3020
        %6896 = vmatpush1.xpose.msra.mxu0 %v3019
        %6897 = vmatprep.subr.mxu0 %v3132
        %6898 = vmatpush1.xpose.msra.mxu0 %v3131
        %6899 = vmatprep.subr.mxu0 %v3244
        %6900 = vmatpush1.xpose.msra.mxu0 %v3243
        %6901 = vmatprep.subr.mxu0 %v3356
        %6902 = vmatpush1.xpose.msra.mxu0 %v3355
        %6903 = vmatprep.subr.mxu0 %v3468
        %6904 = vmatpush1.xpose.msra.mxu0 %v3467
        %6905 = vmatprep.subr.mxu0 %v3580
        %6906 = vmatpush1.xpose.msra.mxu0 %v3579
        %6907 = vmatprep.subr.mxu0 %v3692
        %6908 = vmatpush1.xpose.msra.mxu0 %v3691
        %6909 = vmatprep.subr.mxu0 %v3804
        %6910 = vmatpush1.xpose.msra.mxu0 %v3803
        %6911 = vmatprep.mubr.f32.mxu0 %v4141
        %6912 = vmatmul.mubr.f32.gmra.mrb[0].mxu0 %v4137
        %v6913 = vpop.f32.mrb[0].mxu0
        %v6914 = vadd.f32 %v6843, %v6913
        %v6915 = vpop.f32.mrb[0].mxu0
        %v6916 = vadd.f32 %v6845, %v6915
        %6917 = vdwg.mxu0
        %6918 = vmatprep.subr.mxu0 %v334
        %6919 = vmatpush1.xpose.msra.mxu0 %v333
        %6920 = vmatprep.subr.mxu0 %v446
        %6921 = vmatpush1.xpose.msra.mxu0 %v445
        %6922 = vmatprep.subr.mxu0 %v558
        %6923 = vmatpush1.xpose.msra.mxu0 %v557
        %6924 = vmatprep.subr.mxu0 %v670
        %6925 = vmatpush1.xpose.msra.mxu0 %v669
        %6926 = vmatprep.subr.mxu0 %v782
        %6927 = vmatpush1.xpose.msra.mxu0 %v781
        %6928 = vmatprep.subr.mxu0 %v894
        %6929 = vmatpush1.xpose.msra.mxu0 %v893
        %6930 = vmatprep.subr.mxu0 %v1006
        %6931 = vmatpush1.xpose.msra.mxu0 %v1005
        %6932 = vmatprep.subr.mxu0 %v1118
        %6933 = vmatpush1.xpose.msra.mxu0 %v1117
        %6934 = vmatprep.subr.mxu0 %v1230
        %6935 = vmatpush1.xpose.msra.mxu0 %v1229
        %6936 = vmatprep.subr.mxu0 %v1342
        %6937 = vmatpush1.xpose.msra.mxu0 %v1341
        %6938 = vmatprep.subr.mxu0 %v1454
        %6939 = vmatpush1.xpose.msra.mxu0 %v1453
        %6940 = vmatprep.subr.mxu0 %v1566
        %6941 = vmatpush1.xpose.msra.mxu0 %v1565
        %6942 = vmatprep.subr.mxu0 %v1678
        %6943 = vmatpush1.xpose.msra.mxu0 %v1677
        %6944 = vmatprep.subr.mxu0 %v1790
        %6945 = vmatpush1.xpose.msra.mxu0 %v1789
        %6946 = vmatprep.subr.mxu0 %v1902
        %6947 = vmatpush1.xpose.msra.mxu0 %v1901
        %6948 = vmatprep.subr.mxu0 %v2014
        %6949 = vmatpush1.xpose.msra.mxu0 %v2013
        %6950 = vmatprep.subr.mxu0 %v2126
        %6951 = vmatpush1.xpose.msra.mxu0 %v2125
        %6952 = vmatprep.subr.mxu0 %v2238
        %6953 = vmatpush1.xpose.msra.mxu0 %v2237
        %6954 = vmatprep.subr.mxu0 %v2350
        %6955 = vmatpush1.xpose.msra.mxu0 %v2349
        %6956 = vmatprep.subr.mxu0 %v2462
        %6957 = vmatpush1.xpose.msra.mxu0 %v2461
        %6958 = vmatprep.subr.mxu0 %v2574
        %6959 = vmatpush1.xpose.msra.mxu0 %v2573
        %6960 = vmatprep.subr.mxu0 %v2686
        %6961 = vmatpush1.xpose.msra.mxu0 %v2685
        %6962 = vmatprep.subr.mxu0 %v2798
        %6963 = vmatpush1.xpose.msra.mxu0 %v2797
        %6964 = vmatprep.subr.mxu0 %v2910
        %6965 = vmatpush1.xpose.msra.mxu0 %v2909
        %6966 = vmatprep.subr.mxu0 %v3022
        %6967 = vmatpush1.xpose.msra.mxu0 %v3021
        %6968 = vmatprep.subr.mxu0 %v3134
        %6969 = vmatpush1.xpose.msra.mxu0 %v3133
        %6970 = vmatprep.subr.mxu0 %v3246
        %6971 = vmatpush1.xpose.msra.mxu0 %v3245
        %6972 = vmatprep.subr.mxu0 %v3358
        %6973 = vmatpush1.xpose.msra.mxu0 %v3357
        %6974 = vmatprep.subr.mxu0 %v3470
        %6975 = vmatpush1.xpose.msra.mxu0 %v3469
        %6976 = vmatprep.subr.mxu0 %v3582
        %6977 = vmatpush1.xpose.msra.mxu0 %v3581
        %6978 = vmatprep.subr.mxu0 %v3694
        %6979 = vmatpush1.xpose.msra.mxu0 %v3693
        %6980 = vmatprep.subr.mxu0 %v3806
        %6981 = vmatpush1.xpose.msra.mxu0 %v3805
        %6982 = vmatprep.mubr.f32.mxu0 %v4149
        %6983 = vmatmul.mubr.f32.gmra.mrb[0].mxu0 %v4145
        %v6984 = vpop.f32.mrb[0].mxu0
        %v6985 = vadd.f32 %v6914, %v6984
        %v6986 = vpop.f32.mrb[0].mxu0
        %v6987 = vadd.f32 %v6916, %v6986
        %6988 = vdwg.mxu0
        %6989 = vmatprep.subr.mxu0 %v336
        %6990 = vmatpush1.xpose.msra.mxu0 %v335
        %6991 = vmatprep.subr.mxu0 %v448
        %6992 = vmatpush1.xpose.msra.mxu0 %v447
        %6993 = vmatprep.subr.mxu0 %v560
        %6994 = vmatpush1.xpose.msra.mxu0 %v559
        %6995 = vmatprep.subr.mxu0 %v672
        %6996 = vmatpush1.xpose.msra.mxu0 %v671
        %6997 = vmatprep.subr.mxu0 %v784
        %6998 = vmatpush1.xpose.msra.mxu0 %v783
        %6999 = vmatprep.subr.mxu0 %v896
        %7000 = vmatpush1.xpose.msra.mxu0 %v895
        %7001 = vmatprep.subr.mxu0 %v1008
        %7002 = vmatpush1.xpose.msra.mxu0 %v1007
        %7003 = vmatprep.subr.mxu0 %v1120
        %7004 = vmatpush1.xpose.msra.mxu0 %v1119
        %7005 = vmatprep.subr.mxu0 %v1232
        %7006 = vmatpush1.xpose.msra.mxu0 %v1231
        %7007 = vmatprep.subr.mxu0 %v1344
        %7008 = vmatpush1.xpose.msra.mxu0 %v1343
        %7009 = vmatprep.subr.mxu0 %v1456
        %7010 = vmatpush1.xpose.msra.mxu0 %v1455
        %7011 = vmatprep.subr.mxu0 %v1568
        %7012 = vmatpush1.xpose.msra.mxu0 %v1567
        %7013 = vmatprep.subr.mxu0 %v1680
        %7014 = vmatpush1.xpose.msra.mxu0 %v1679
        %7015 = vmatprep.subr.mxu0 %v1792
        %7016 = vmatpush1.xpose.msra.mxu0 %v1791
        %7017 = vmatprep.subr.mxu0 %v1904
        %7018 = vmatpush1.xpose.msra.mxu0 %v1903
        %7019 = vmatprep.subr.mxu0 %v2016
        %7020 = vmatpush1.xpose.msra.mxu0 %v2015
        %7021 = vmatprep.subr.mxu0 %v2128
        %7022 = vmatpush1.xpose.msra.mxu0 %v2127
        %7023 = vmatprep.subr.mxu0 %v2240
        %7024 = vmatpush1.xpose.msra.mxu0 %v2239
        %7025 = vmatprep.subr.mxu0 %v2352
        %7026 = vmatpush1.xpose.msra.mxu0 %v2351
        %7027 = vmatprep.subr.mxu0 %v2464
        %7028 = vmatpush1.xpose.msra.mxu0 %v2463
        %7029 = vmatprep.subr.mxu0 %v2576
        %7030 = vmatpush1.xpose.msra.mxu0 %v2575
        %7031 = vmatprep.subr.mxu0 %v2688
        %7032 = vmatpush1.xpose.msra.mxu0 %v2687
        %7033 = vmatprep.subr.mxu0 %v2800
        %7034 = vmatpush1.xpose.msra.mxu0 %v2799
        %7035 = vmatprep.subr.mxu0 %v2912
        %7036 = vmatpush1.xpose.msra.mxu0 %v2911
        %7037 = vmatprep.subr.mxu0 %v3024
        %7038 = vmatpush1.xpose.msra.mxu0 %v3023
        %7039 = vmatprep.subr.mxu0 %v3136
        %7040 = vmatpush1.xpose.msra.mxu0 %v3135
        %7041 = vmatprep.subr.mxu0 %v3248
        %7042 = vmatpush1.xpose.msra.mxu0 %v3247
        %7043 = vmatprep.subr.mxu0 %v3360
        %7044 = vmatpush1.xpose.msra.mxu0 %v3359
        %7045 = vmatprep.subr.mxu0 %v3472
        %7046 = vmatpush1.xpose.msra.mxu0 %v3471
        %7047 = vmatprep.subr.mxu0 %v3584
        %7048 = vmatpush1.xpose.msra.mxu0 %v3583
        %7049 = vmatprep.subr.mxu0 %v3696
        %7050 = vmatpush1.xpose.msra.mxu0 %v3695
        %7051 = vmatprep.subr.mxu0 %v3808
        %7052 = vmatpush1.xpose.msra.mxu0 %v3807
        %7053 = vmatprep.mubr.f32.mxu0 %v4157
        %7054 = vmatmul.mubr.f32.gmra.mrb[0].mxu0 %v4153
        %v7055 = vpop.f32.mrb[0].mxu0
        %v7056 = vadd.f32 %v6985, %v7055
        %v7057 = vpop.f32.mrb[0].mxu0
        %v7058 = vadd.f32 %v6987, %v7057
        %7059 = vdwg.mxu0
        %7060 = vmatprep.subr.mxu0 %v338
        %7061 = vmatpush1.xpose.msra.mxu0 %v337
        %7062 = vmatprep.subr.mxu0 %v450
        %7063 = vmatpush1.xpose.msra.mxu0 %v449
        %7064 = vmatprep.subr.mxu0 %v562
        %7065 = vmatpush1.xpose.msra.mxu0 %v561
        %7066 = vmatprep.subr.mxu0 %v674
        %7067 = vmatpush1.xpose.msra.mxu0 %v673
        %7068 = vmatprep.subr.mxu0 %v786
        %7069 = vmatpush1.xpose.msra.mxu0 %v785
        %7070 = vmatprep.subr.mxu0 %v898
        %7071 = vmatpush1.xpose.msra.mxu0 %v897
        %7072 = vmatprep.subr.mxu0 %v1010
        %7073 = vmatpush1.xpose.msra.mxu0 %v1009
        %7074 = vmatprep.subr.mxu0 %v1122
        %7075 = vmatpush1.xpose.msra.mxu0 %v1121
        %7076 = vmatprep.subr.mxu0 %v1234
        %7077 = vmatpush1.xpose.msra.mxu0 %v1233
        %7078 = vmatprep.subr.mxu0 %v1346
        %7079 = vmatpush1.xpose.msra.mxu0 %v1345
        %7080 = vmatprep.subr.mxu0 %v1458
        %7081 = vmatpush1.xpose.msra.mxu0 %v1457
        %7082 = vmatprep.subr.mxu0 %v1570
        %7083 = vmatpush1.xpose.msra.mxu0 %v1569
        %7084 = vmatprep.subr.mxu0 %v1682
        %7085 = vmatpush1.xpose.msra.mxu0 %v1681
        %7086 = vmatprep.subr.mxu0 %v1794
        %7087 = vmatpush1.xpose.msra.mxu0 %v1793
        %7088 = vmatprep.subr.mxu0 %v1906
        %7089 = vmatpush1.xpose.msra.mxu0 %v1905
        %7090 = vmatprep.subr.mxu0 %v2018
        %7091 = vmatpush1.xpose.msra.mxu0 %v2017
        %7092 = vmatprep.subr.mxu0 %v2130
        %7093 = vmatpush1.xpose.msra.mxu0 %v2129
        %7094 = vmatprep.subr.mxu0 %v2242
        %7095 = vmatpush1.xpose.msra.mxu0 %v2241
        %7096 = vmatprep.subr.mxu0 %v2354
        %7097 = vmatpush1.xpose.msra.mxu0 %v2353
        %7098 = vmatprep.subr.mxu0 %v2466
        %7099 = vmatpush1.xpose.msra.mxu0 %v2465
        %7100 = vmatprep.subr.mxu0 %v2578
        %7101 = vmatpush1.xpose.msra.mxu0 %v2577
        %7102 = vmatprep.subr.mxu0 %v2690
        %7103 = vmatpush1.xpose.msra.mxu0 %v2689
        %7104 = vmatprep.subr.mxu0 %v2802
        %7105 = vmatpush1.xpose.msra.mxu0 %v2801
        %7106 = vmatprep.subr.mxu0 %v2914
        %7107 = vmatpush1.xpose.msra.mxu0 %v2913
        %7108 = vmatprep.subr.mxu0 %v3026
        %7109 = vmatpush1.xpose.msra.mxu0 %v3025
        %7110 = vmatprep.subr.mxu0 %v3138
        %7111 = vmatpush1.xpose.msra.mxu0 %v3137
        %7112 = vmatprep.subr.mxu0 %v3250
        %7113 = vmatpush1.xpose.msra.mxu0 %v3249
        %7114 = vmatprep.subr.mxu0 %v3362
        %7115 = vmatpush1.xpose.msra.mxu0 %v3361
        %7116 = vmatprep.subr.mxu0 %v3474
        %7117 = vmatpush1.xpose.msra.mxu0 %v3473
        %7118 = vmatprep.subr.mxu0 %v3586
        %7119 = vmatpush1.xpose.msra.mxu0 %v3585
        %7120 = vmatprep.subr.mxu0 %v3698
        %7121 = vmatpush1.xpose.msra.mxu0 %v3697
        %7122 = vmatprep.subr.mxu0 %v3810
        %7123 = vmatpush1.xpose.msra.mxu0 %v3809
        %7124 = vmatprep.mubr.f32.mxu0 %v4165
        %7125 = vmatmul.mubr.f32.gmra.mrb[0].mxu0 %v4161
        %v7126 = vpop.f32.mrb[0].mxu0
        %v7127 = vadd.f32 %v7056, %v7126
        %v7128 = vpop.f32.mrb[0].mxu0
        %v7129 = vadd.f32 %v7058, %v7128
        %7130 = vdwg.mxu0
        %7131 = vmatprep.subr.mxu0 %v340
        %7132 = vmatpush1.xpose.msra.mxu0 %v339
        %7133 = vmatprep.subr.mxu0 %v452
        %7134 = vmatpush1.xpose.msra.mxu0 %v451
        %7135 = vmatprep.subr.mxu0 %v564
        %7136 = vmatpush1.xpose.msra.mxu0 %v563
        %7137 = vmatprep.subr.mxu0 %v676
        %7138 = vmatpush1.xpose.msra.mxu0 %v675
        %7139 = vmatprep.subr.mxu0 %v788
        %7140 = vmatpush1.xpose.msra.mxu0 %v787
        %7141 = vmatprep.subr.mxu0 %v900
        %7142 = vmatpush1.xpose.msra.mxu0 %v899
        %7143 = vmatprep.subr.mxu0 %v1012
        %7144 = vmatpush1.xpose.msra.mxu0 %v1011
        %7145 = vmatprep.subr.mxu0 %v1124
        %7146 = vmatpush1.xpose.msra.mxu0 %v1123
        %7147 = vmatprep.subr.mxu0 %v1236
        %7148 = vmatpush1.xpose.msra.mxu0 %v1235
        %7149 = vmatprep.subr.mxu0 %v1348
        %7150 = vmatpush1.xpose.msra.mxu0 %v1347
        %7151 = vmatprep.subr.mxu0 %v1460
        %7152 = vmatpush1.xpose.msra.mxu0 %v1459
        %7153 = vmatprep.subr.mxu0 %v1572
        %7154 = vmatpush1.xpose.msra.mxu0 %v1571
        %7155 = vmatprep.subr.mxu0 %v1684
        %7156 = vmatpush1.xpose.msra.mxu0 %v1683
        %7157 = vmatprep.subr.mxu0 %v1796
        %7158 = vmatpush1.xpose.msra.mxu0 %v1795
        %7159 = vmatprep.subr.mxu0 %v1908
        %7160 = vmatpush1.xpose.msra.mxu0 %v1907
        %7161 = vmatprep.subr.mxu0 %v2020
        %7162 = vmatpush1.xpose.msra.mxu0 %v2019
        %7163 = vmatprep.subr.mxu0 %v2132
        %7164 = vmatpush1.xpose.msra.mxu0 %v2131
        %7165 = vmatprep.subr.mxu0 %v2244
        %7166 = vmatpush1.xpose.msra.mxu0 %v2243
        %7167 = vmatprep.subr.mxu0 %v2356
        %7168 = vmatpush1.xpose.msra.mxu0 %v2355
        %7169 = vmatprep.subr.mxu0 %v2468
        %7170 = vmatpush1.xpose.msra.mxu0 %v2467
        %7171 = vmatprep.subr.mxu0 %v2580
        %7172 = vmatpush1.xpose.msra.mxu0 %v2579
        %7173 = vmatprep.subr.mxu0 %v2692
        %7174 = vmatpush1.xpose.msra.mxu0 %v2691
        %7175 = vmatprep.subr.mxu0 %v2804
        %7176 = vmatpush1.xpose.msra.mxu0 %v2803
        %7177 = vmatprep.subr.mxu0 %v2916
        %7178 = vmatpush1.xpose.msra.mxu0 %v2915
        %7179 = vmatprep.subr.mxu0 %v3028
        %7180 = vmatpush1.xpose.msra.mxu0 %v3027
        %7181 = vmatprep.subr.mxu0 %v3140
        %7182 = vmatpush1.xpose.msra.mxu0 %v3139
        %7183 = vmatprep.subr.mxu0 %v3252
        %7184 = vmatpush1.xpose.msra.mxu0 %v3251
        %7185 = vmatprep.subr.mxu0 %v3364
        %7186 = vmatpush1.xpose.msra.mxu0 %v3363
        %7187 = vmatprep.subr.mxu0 %v3476
        %7188 = vmatpush1.xpose.msra.mxu0 %v3475
        %7189 = vmatprep.subr.mxu0 %v3588
        %7190 = vmatpush1.xpose.msra.mxu0 %v3587
        %7191 = vmatprep.subr.mxu0 %v3700
        %7192 = vmatpush1.xpose.msra.mxu0 %v3699
        %7193 = vmatprep.subr.mxu0 %v3812
        %7194 = vmatpush1.xpose.msra.mxu0 %v3811
        %7195 = vmatprep.mubr.f32.mxu0 %v4173
        %7196 = vmatmul.mubr.f32.gmra.mrb[0].mxu0 %v4169
        %v7197 = vpop.f32.mrb[0].mxu0
        %v7198 = vadd.f32 %v7127, %v7197
        %v7199 = vpop.f32.mrb[0].mxu0
        %v7200 = vadd.f32 %v7129, %v7199
        %7201 = vdwg.mxu0
        %7202 = vmatprep.subr.mxu0 %v342
        %7203 = vmatpush1.xpose.msra.mxu0 %v341
        %7204 = vmatprep.subr.mxu0 %v454
        %7205 = vmatpush1.xpose.msra.mxu0 %v453
        %7206 = vmatprep.subr.mxu0 %v566
        %7207 = vmatpush1.xpose.msra.mxu0 %v565
        %7208 = vmatprep.subr.mxu0 %v678
        %7209 = vmatpush1.xpose.msra.mxu0 %v677
        %7210 = vmatprep.subr.mxu0 %v790
        %7211 = vmatpush1.xpose.msra.mxu0 %v789
        %7212 = vmatprep.subr.mxu0 %v902
        %7213 = vmatpush1.xpose.msra.mxu0 %v901
        %7214 = vmatprep.subr.mxu0 %v1014
        %7215 = vmatpush1.xpose.msra.mxu0 %v1013
        %7216 = vmatprep.subr.mxu0 %v1126
        %7217 = vmatpush1.xpose.msra.mxu0 %v1125
        %7218 = vmatprep.subr.mxu0 %v1238
        %7219 = vmatpush1.xpose.msra.mxu0 %v1237
        %7220 = vmatprep.subr.mxu0 %v1350
        %7221 = vmatpush1.xpose.msra.mxu0 %v1349
        %7222 = vmatprep.subr.mxu0 %v1462
        %7223 = vmatpush1.xpose.msra.mxu0 %v1461
        %7224 = vmatprep.subr.mxu0 %v1574
        %7225 = vmatpush1.xpose.msra.mxu0 %v1573
        %7226 = vmatprep.subr.mxu0 %v1686
        %7227 = vmatpush1.xpose.msra.mxu0 %v1685
        %7228 = vmatprep.subr.mxu0 %v1798
        %7229 = vmatpush1.xpose.msra.mxu0 %v1797
        %7230 = vmatprep.subr.mxu0 %v1910
        %7231 = vmatpush1.xpose.msra.mxu0 %v1909
        %7232 = vmatprep.subr.mxu0 %v2022
        %7233 = vmatpush1.xpose.msra.mxu0 %v2021
        %7234 = vmatprep.subr.mxu0 %v2134
        %7235 = vmatpush1.xpose.msra.mxu0 %v2133
        %7236 = vmatprep.subr.mxu0 %v2246
        %7237 = vmatpush1.xpose.msra.mxu0 %v2245
        %7238 = vmatprep.subr.mxu0 %v2358
        %7239 = vmatpush1.xpose.msra.mxu0 %v2357
        %7240 = vmatprep.subr.mxu0 %v2470
        %7241 = vmatpush1.xpose.msra.mxu0 %v2469
        %7242 = vmatprep.subr.mxu0 %v2582
        %7243 = vmatpush1.xpose.msra.mxu0 %v2581
        %7244 = vmatprep.subr.mxu0 %v2694
        %7245 = vmatpush1.xpose.msra.mxu0 %v2693
        %7246 = vmatprep.subr.mxu0 %v2806
        %7247 = vmatpush1.xpose.msra.mxu0 %v2805
        %7248 = vmatprep.subr.mxu0 %v2918
        %7249 = vmatpush1.xpose.msra.mxu0 %v2917
        %7250 = vmatprep.subr.mxu0 %v3030
        %7251 = vmatpush1.xpose.msra.mxu0 %v3029
        %7252 = vmatprep.subr.mxu0 %v3142
        %7253 = vmatpush1.xpose.msra.mxu0 %v3141
        %7254 = vmatprep.subr.mxu0 %v3254
        %7255 = vmatpush1.xpose.msra.mxu0 %v3253
        %7256 = vmatprep.subr.mxu0 %v3366
        %7257 = vmatpush1.xpose.msra.mxu0 %v3365
        %7258 = vmatprep.subr.mxu0 %v3478
        %7259 = vmatpush1.xpose.msra.mxu0 %v3477
        %7260 = vmatprep.subr.mxu0 %v3590
        %7261 = vmatpush1.xpose.msra.mxu0 %v3589
        %7262 = vmatprep.subr.mxu0 %v3702
        %7263 = vmatpush1.xpose.msra.mxu0 %v3701
        %7264 = vmatprep.subr.mxu0 %v3814
        %7265 = vmatpush1.xpose.msra.mxu0 %v3813
        %7266 = vmatprep.mubr.f32.mxu0 %v4181
        %7267 = vmatmul.mubr.f32.gmra.mrb[0].mxu0 %v4177
        %v7268 = vpop.f32.mrb[0].mxu0
        %v7269 = vadd.f32 %v7198, %v7268
        %v7270 = vpop.f32.mrb[0].mxu0
        %v7271 = vadd.f32 %v7200, %v7270
        %7272 = vdwg.mxu0
        %7273 = vmatprep.subr.mxu0 %v344
        %7274 = vmatpush1.xpose.msra.mxu0 %v343
        %7275 = vmatprep.subr.mxu0 %v456
        %7276 = vmatpush1.xpose.msra.mxu0 %v455
        %7277 = vmatprep.subr.mxu0 %v568
        %7278 = vmatpush1.xpose.msra.mxu0 %v567
        %7279 = vmatprep.subr.mxu0 %v680
        %7280 = vmatpush1.xpose.msra.mxu0 %v679
        %7281 = vmatprep.subr.mxu0 %v792
        %7282 = vmatpush1.xpose.msra.mxu0 %v791
        %7283 = vmatprep.subr.mxu0 %v904
        %7284 = vmatpush1.xpose.msra.mxu0 %v903
        %7285 = vmatprep.subr.mxu0 %v1016
        %7286 = vmatpush1.xpose.msra.mxu0 %v1015
        %7287 = vmatprep.subr.mxu0 %v1128
        %7288 = vmatpush1.xpose.msra.mxu0 %v1127
        %7289 = vmatprep.subr.mxu0 %v1240
        %7290 = vmatpush1.xpose.msra.mxu0 %v1239
        %7291 = vmatprep.subr.mxu0 %v1352
        %7292 = vmatpush1.xpose.msra.mxu0 %v1351
        %7293 = vmatprep.subr.mxu0 %v1464
        %7294 = vmatpush1.xpose.msra.mxu0 %v1463
        %7295 = vmatprep.subr.mxu0 %v1576
        %7296 = vmatpush1.xpose.msra.mxu0 %v1575
        %7297 = vmatprep.subr.mxu0 %v1688
        %7298 = vmatpush1.xpose.msra.mxu0 %v1687
        %7299 = vmatprep.subr.mxu0 %v1800
        %7300 = vmatpush1.xpose.msra.mxu0 %v1799
        %7301 = vmatprep.subr.mxu0 %v1912
        %7302 = vmatpush1.xpose.msra.mxu0 %v1911
        %7303 = vmatprep.subr.mxu0 %v2024
        %7304 = vmatpush1.xpose.msra.mxu0 %v2023
        %7305 = vmatprep.subr.mxu0 %v2136
        %7306 = vmatpush1.xpose.msra.mxu0 %v2135
        %7307 = vmatprep.subr.mxu0 %v2248
        %7308 = vmatpush1.xpose.msra.mxu0 %v2247
        %7309 = vmatprep.subr.mxu0 %v2360
        %7310 = vmatpush1.xpose.msra.mxu0 %v2359
        %7311 = vmatprep.subr.mxu0 %v2472
        %7312 = vmatpush1.xpose.msra.mxu0 %v2471
        %7313 = vmatprep.subr.mxu0 %v2584
        %7314 = vmatpush1.xpose.msra.mxu0 %v2583
        %7315 = vmatprep.subr.mxu0 %v2696
        %7316 = vmatpush1.xpose.msra.mxu0 %v2695
        %7317 = vmatprep.subr.mxu0 %v2808
        %7318 = vmatpush1.xpose.msra.mxu0 %v2807
        %7319 = vmatprep.subr.mxu0 %v2920
        %7320 = vmatpush1.xpose.msra.mxu0 %v2919
        %7321 = vmatprep.subr.mxu0 %v3032
        %7322 = vmatpush1.xpose.msra.mxu0 %v3031
        %7323 = vmatprep.subr.mxu0 %v3144
        %7324 = vmatpush1.xpose.msra.mxu0 %v3143
        %7325 = vmatprep.subr.mxu0 %v3256
        %7326 = vmatpush1.xpose.msra.mxu0 %v3255
        %7327 = vmatprep.subr.mxu0 %v3368
        %7328 = vmatpush1.xpose.msra.mxu0 %v3367
        %7329 = vmatprep.subr.mxu0 %v3480
        %7330 = vmatpush1.xpose.msra.mxu0 %v3479
        %7331 = vmatprep.subr.mxu0 %v3592
        %7332 = vmatpush1.xpose.msra.mxu0 %v3591
        %7333 = vmatprep.subr.mxu0 %v3704
        %7334 = vmatpush1.xpose.msra.mxu0 %v3703
        %7335 = vmatprep.subr.mxu0 %v3816
        %7336 = vmatpush1.xpose.msra.mxu0 %v3815
        %7337 = vmatprep.mubr.f32.mxu0 %v4189
        %7338 = vmatmul.mubr.f32.gmra.mrb[0].mxu0 %v4185
        %v7339 = vpop.f32.mrb[0].mxu0
        %v7340 = vadd.f32 %v7269, %v7339
        %v7341 = vpop.f32.mrb[0].mxu0
        %v7342 = vadd.f32 %v7271, %v7341
        %7343 = vdwg.mxu0
        %7344 = vmatprep.subr.mxu0 %v346
        %7345 = vmatpush1.xpose.msra.mxu0 %v345
        %7346 = vmatprep.subr.mxu0 %v458
        %7347 = vmatpush1.xpose.msra.mxu0 %v457
        %7348 = vmatprep.subr.mxu0 %v570
        %7349 = vmatpush1.xpose.msra.mxu0 %v569
        %7350 = vmatprep.subr.mxu0 %v682
        %7351 = vmatpush1.xpose.msra.mxu0 %v681
        %7352 = vmatprep.subr.mxu0 %v794
        %7353 = vmatpush1.xpose.msra.mxu0 %v793
        %7354 = vmatprep.subr.mxu0 %v906
        %7355 = vmatpush1.xpose.msra.mxu0 %v905
        %7356 = vmatprep.subr.mxu0 %v1018
        %7357 = vmatpush1.xpose.msra.mxu0 %v1017
        %7358 = vmatprep.subr.mxu0 %v1130
        %7359 = vmatpush1.xpose.msra.mxu0 %v1129
        %7360 = vmatprep.subr.mxu0 %v1242
        %7361 = vmatpush1.xpose.msra.mxu0 %v1241
        %7362 = vmatprep.subr.mxu0 %v1354
        %7363 = vmatpush1.xpose.msra.mxu0 %v1353
        %7364 = vmatprep.subr.mxu0 %v1466
        %7365 = vmatpush1.xpose.msra.mxu0 %v1465
        %7366 = vmatprep.subr.mxu0 %v1578
        %7367 = vmatpush1.xpose.msra.mxu0 %v1577
        %7368 = vmatprep.subr.mxu0 %v1690
        %7369 = vmatpush1.xpose.msra.mxu0 %v1689
        %7370 = vmatprep.subr.mxu0 %v1802
        %7371 = vmatpush1.xpose.msra.mxu0 %v1801
        %7372 = vmatprep.subr.mxu0 %v1914
        %7373 = vmatpush1.xpose.msra.mxu0 %v1913
        %7374 = vmatprep.subr.mxu0 %v2026
        %7375 = vmatpush1.xpose.msra.mxu0 %v2025
        %7376 = vmatprep.subr.mxu0 %v2138
        %7377 = vmatpush1.xpose.msra.mxu0 %v2137
        %7378 = vmatprep.subr.mxu0 %v2250
        %7379 = vmatpush1.xpose.msra.mxu0 %v2249
        %7380 = vmatprep.subr.mxu0 %v2362
        %7381 = vmatpush1.xpose.msra.mxu0 %v2361
        %7382 = vmatprep.subr.mxu0 %v2474
        %7383 = vmatpush1.xpose.msra.mxu0 %v2473
        %7384 = vmatprep.subr.mxu0 %v2586
        %7385 = vmatpush1.xpose.msra.mxu0 %v2585
        %7386 = vmatprep.subr.mxu0 %v2698
        %7387 = vmatpush1.xpose.msra.mxu0 %v2697
        %7388 = vmatprep.subr.mxu0 %v2810
        %7389 = vmatpush1.xpose.msra.mxu0 %v2809
        %7390 = vmatprep.subr.mxu0 %v2922
        %7391 = vmatpush1.xpose.msra.mxu0 %v2921
        %7392 = vmatprep.subr.mxu0 %v3034
        %7393 = vmatpush1.xpose.msra.mxu0 %v3033
        %7394 = vmatprep.subr.mxu0 %v3146
        %7395 = vmatpush1.xpose.msra.mxu0 %v3145
        %7396 = vmatprep.subr.mxu0 %v3258
        %7397 = vmatpush1.xpose.msra.mxu0 %v3257
        %7398 = vmatprep.subr.mxu0 %v3370
        %7399 = vmatpush1.xpose.msra.mxu0 %v3369
        %7400 = vmatprep.subr.mxu0 %v3482
        %7401 = vmatpush1.xpose.msra.mxu0 %v3481
        %7402 = vmatprep.subr.mxu0 %v3594
        %7403 = vmatpush1.xpose.msra.mxu0 %v3593
        %7404 = vmatprep.subr.mxu0 %v3706
        %7405 = vmatpush1.xpose.msra.mxu0 %v3705
        %7406 = vmatprep.subr.mxu0 %v3818
        %7407 = vmatpush1.xpose.msra.mxu0 %v3817
        %7408 = vmatprep.mubr.f32.mxu0 %v4197
        %7409 = vmatmul.mubr.f32.gmra.mrb[0].mxu0 %v4193
        %v7410 = vpop.f32.mrb[0].mxu0
        %v7411 = vadd.f32 %v7340, %v7410
        %v7412 = vpop.f32.mrb[0].mxu0
        %v7413 = vadd.f32 %v7342, %v7412
        %7414 = vdwg.mxu0
        %7415 = vmatprep.subr.mxu0 %v348
        %7416 = vmatpush1.xpose.msra.mxu0 %v347
        %7417 = vmatprep.subr.mxu0 %v460
        %7418 = vmatpush1.xpose.msra.mxu0 %v459
        %7419 = vmatprep.subr.mxu0 %v572
        %7420 = vmatpush1.xpose.msra.mxu0 %v571
        %7421 = vmatprep.subr.mxu0 %v684
        %7422 = vmatpush1.xpose.msra.mxu0 %v683
        %7423 = vmatprep.subr.mxu0 %v796
        %7424 = vmatpush1.xpose.msra.mxu0 %v795
        %7425 = vmatprep.subr.mxu0 %v908
        %7426 = vmatpush1.xpose.msra.mxu0 %v907
        %7427 = vmatprep.subr.mxu0 %v1020
        %7428 = vmatpush1.xpose.msra.mxu0 %v1019
        %7429 = vmatprep.subr.mxu0 %v1132
        %7430 = vmatpush1.xpose.msra.mxu0 %v1131
        %7431 = vmatprep.subr.mxu0 %v1244
        %7432 = vmatpush1.xpose.msra.mxu0 %v1243
        %7433 = vmatprep.subr.mxu0 %v1356
        %7434 = vmatpush1.xpose.msra.mxu0 %v1355
        %7435 = vmatprep.subr.mxu0 %v1468
        %7436 = vmatpush1.xpose.msra.mxu0 %v1467
        %7437 = vmatprep.subr.mxu0 %v1580
        %7438 = vmatpush1.xpose.msra.mxu0 %v1579
        %7439 = vmatprep.subr.mxu0 %v1692
        %7440 = vmatpush1.xpose.msra.mxu0 %v1691
        %7441 = vmatprep.subr.mxu0 %v1804
        %7442 = vmatpush1.xpose.msra.mxu0 %v1803
        %7443 = vmatprep.subr.mxu0 %v1916
        %7444 = vmatpush1.xpose.msra.mxu0 %v1915
        %7445 = vmatprep.subr.mxu0 %v2028
        %7446 = vmatpush1.xpose.msra.mxu0 %v2027
        %7447 = vmatprep.subr.mxu0 %v2140
        %7448 = vmatpush1.xpose.msra.mxu0 %v2139
        %7449 = vmatprep.subr.mxu0 %v2252
        %7450 = vmatpush1.xpose.msra.mxu0 %v2251
        %7451 = vmatprep.subr.mxu0 %v2364
        %7452 = vmatpush1.xpose.msra.mxu0 %v2363
        %7453 = vmatprep.subr.mxu0 %v2476
        %7454 = vmatpush1.xpose.msra.mxu0 %v2475
        %7455 = vmatprep.subr.mxu0 %v2588
        %7456 = vmatpush1.xpose.msra.mxu0 %v2587
        %7457 = vmatprep.subr.mxu0 %v2700
        %7458 = vmatpush1.xpose.msra.mxu0 %v2699
        %7459 = vmatprep.subr.mxu0 %v2812
        %7460 = vmatpush1.xpose.msra.mxu0 %v2811
        %7461 = vmatprep.subr.mxu0 %v2924
        %7462 = vmatpush1.xpose.msra.mxu0 %v2923
        %7463 = vmatprep.subr.mxu0 %v3036
        %7464 = vmatpush1.xpose.msra.mxu0 %v3035
        %7465 = vmatprep.subr.mxu0 %v3148
        %7466 = vmatpush1.xpose.msra.mxu0 %v3147
        %7467 = vmatprep.subr.mxu0 %v3260
        %7468 = vmatpush1.xpose.msra.mxu0 %v3259
        %7469 = vmatprep.subr.mxu0 %v3372
        %7470 = vmatpush1.xpose.msra.mxu0 %v3371
        %7471 = vmatprep.subr.mxu0 %v3484
        %7472 = vmatpush1.xpose.msra.mxu0 %v3483
        %7473 = vmatprep.subr.mxu0 %v3596
        %7474 = vmatpush1.xpose.msra.mxu0 %v3595
        %7475 = vmatprep.subr.mxu0 %v3708
        %7476 = vmatpush1.xpose.msra.mxu0 %v3707
        %7477 = vmatprep.subr.mxu0 %v3820
        %7478 = vmatpush1.xpose.msra.mxu0 %v3819
        %7479 = vmatprep.mubr.f32.mxu0 %v4205
        %7480 = vmatmul.mubr.f32.gmra.mrb[0].mxu0 %v4201
        %v7481 = vpop.f32.mrb[0].mxu0
        %v7482 = vadd.f32 %v7411, %v7481
        %v7483 = vpop.f32.mrb[0].mxu0
        %v7484 = vadd.f32 %v7413, %v7483
        %7485 = vdwg.mxu0
        %7486 = vmatprep.subr.mxu0 %v350
        %7487 = vmatpush1.xpose.msra.mxu0 %v349
        %7488 = vmatprep.subr.mxu0 %v462
        %7489 = vmatpush1.xpose.msra.mxu0 %v461
        %7490 = vmatprep.subr.mxu0 %v574
        %7491 = vmatpush1.xpose.msra.mxu0 %v573
        %7492 = vmatprep.subr.mxu0 %v686
        %7493 = vmatpush1.xpose.msra.mxu0 %v685
        %7494 = vmatprep.subr.mxu0 %v798
        %7495 = vmatpush1.xpose.msra.mxu0 %v797
        %7496 = vmatprep.subr.mxu0 %v910
        %7497 = vmatpush1.xpose.msra.mxu0 %v909
        %7498 = vmatprep.subr.mxu0 %v1022
        %7499 = vmatpush1.xpose.msra.mxu0 %v1021
        %7500 = vmatprep.subr.mxu0 %v1134
        %7501 = vmatpush1.xpose.msra.mxu0 %v1133
        %7502 = vmatprep.subr.mxu0 %v1246
        %7503 = vmatpush1.xpose.msra.mxu0 %v1245
        %7504 = vmatprep.subr.mxu0 %v1358
        %7505 = vmatpush1.xpose.msra.mxu0 %v1357
        %7506 = vmatprep.subr.mxu0 %v1470
        %7507 = vmatpush1.xpose.msra.mxu0 %v1469
        %7508 = vmatprep.subr.mxu0 %v1582
        %7509 = vmatpush1.xpose.msra.mxu0 %v1581
        %7510 = vmatprep.subr.mxu0 %v1694
        %7511 = vmatpush1.xpose.msra.mxu0 %v1693
        %7512 = vmatprep.subr.mxu0 %v1806
        %7513 = vmatpush1.xpose.msra.mxu0 %v1805
        %7514 = vmatprep.subr.mxu0 %v1918
        %7515 = vmatpush1.xpose.msra.mxu0 %v1917
        %7516 = vmatprep.subr.mxu0 %v2030
        %7517 = vmatpush1.xpose.msra.mxu0 %v2029
        %7518 = vmatprep.subr.mxu0 %v2142
        %7519 = vmatpush1.xpose.msra.mxu0 %v2141
        %7520 = vmatprep.subr.mxu0 %v2254
        %7521 = vmatpush1.xpose.msra.mxu0 %v2253
        %7522 = vmatprep.subr.mxu0 %v2366
        %7523 = vmatpush1.xpose.msra.mxu0 %v2365
        %7524 = vmatprep.subr.mxu0 %v2478
        %7525 = vmatpush1.xpose.msra.mxu0 %v2477
        %7526 = vmatprep.subr.mxu0 %v2590
        %7527 = vmatpush1.xpose.msra.mxu0 %v2589
        %7528 = vmatprep.subr.mxu0 %v2702
        %7529 = vmatpush1.xpose.msra.mxu0 %v2701
        %7530 = vmatprep.subr.mxu0 %v2814
        %7531 = vmatpush1.xpose.msra.mxu0 %v2813
        %7532 = vmatprep.subr.mxu0 %v2926
        %7533 = vmatpush1.xpose.msra.mxu0 %v2925
        %7534 = vmatprep.subr.mxu0 %v3038
        %7535 = vmatpush1.xpose.msra.mxu0 %v3037
        %7536 = vmatprep.subr.mxu0 %v3150
        %7537 = vmatpush1.xpose.msra.mxu0 %v3149
        %7538 = vmatprep.subr.mxu0 %v3262
        %7539 = vmatpush1.xpose.msra.mxu0 %v3261
        %7540 = vmatprep.subr.mxu0 %v3374
        %7541 = vmatpush1.xpose.msra.mxu0 %v3373
        %7542 = vmatprep.subr.mxu0 %v3486
        %7543 = vmatpush1.xpose.msra.mxu0 %v3485
        %7544 = vmatprep.subr.mxu0 %v3598
        %7545 = vmatpush1.xpose.msra.mxu0 %v3597
        %7546 = vmatprep.subr.mxu0 %v3710
        %7547 = vmatpush1.xpose.msra.mxu0 %v3709
        %7548 = vmatprep.subr.mxu0 %v3822
        %7549 = vmatpush1.xpose.msra.mxu0 %v3821
        %7550 = vmatprep.mubr.f32.mxu0 %v4213
        %7551 = vmatmul.mubr.f32.gmra.mrb[0].mxu0 %v4209
        %v7552 = vpop.f32.mrb[0].mxu0
        %v7553 = vadd.f32 %v7482, %v7552
        %v7554 = vpop.f32.mrb[0].mxu0
        %v7555 = vadd.f32 %v7484, %v7554
        %7556 = vdwg.mxu0
        %7557 = vmatprep.subr.mxu0 %v352
        %7558 = vmatpush1.xpose.msra.mxu0 %v351
        %7559 = vmatprep.subr.mxu0 %v464
        %7560 = vmatpush1.xpose.msra.mxu0 %v463
        %7561 = vmatprep.subr.mxu0 %v576
        %7562 = vmatpush1.xpose.msra.mxu0 %v575
        %7563 = vmatprep.subr.mxu0 %v688
        %7564 = vmatpush1.xpose.msra.mxu0 %v687
        %7565 = vmatprep.subr.mxu0 %v800
        %7566 = vmatpush1.xpose.msra.mxu0 %v799
        %7567 = vmatprep.subr.mxu0 %v912
        %7568 = vmatpush1.xpose.msra.mxu0 %v911
        %7569 = vmatprep.subr.mxu0 %v1024
        %7570 = vmatpush1.xpose.msra.mxu0 %v1023
        %7571 = vmatprep.subr.mxu0 %v1136
        %7572 = vmatpush1.xpose.msra.mxu0 %v1135
        %7573 = vmatprep.subr.mxu0 %v1248
        %7574 = vmatpush1.xpose.msra.mxu0 %v1247
        %7575 = vmatprep.subr.mxu0 %v1360
        %7576 = vmatpush1.xpose.msra.mxu0 %v1359
        %7577 = vmatprep.subr.mxu0 %v1472
        %7578 = vmatpush1.xpose.msra.mxu0 %v1471
        %7579 = vmatprep.subr.mxu0 %v1584
        %7580 = vmatpush1.xpose.msra.mxu0 %v1583
        %7581 = vmatprep.subr.mxu0 %v1696
        %7582 = vmatpush1.xpose.msra.mxu0 %v1695
        %7583 = vmatprep.subr.mxu0 %v1808
        %7584 = vmatpush1.xpose.msra.mxu0 %v1807
        %7585 = vmatprep.subr.mxu0 %v1920
        %7586 = vmatpush1.xpose.msra.mxu0 %v1919
        %7587 = vmatprep.subr.mxu0 %v2032
        %7588 = vmatpush1.xpose.msra.mxu0 %v2031
        %7589 = vmatprep.subr.mxu0 %v2144
        %7590 = vmatpush1.xpose.msra.mxu0 %v2143
        %7591 = vmatprep.subr.mxu0 %v2256
        %7592 = vmatpush1.xpose.msra.mxu0 %v2255
        %7593 = vmatprep.subr.mxu0 %v2368
        %7594 = vmatpush1.xpose.msra.mxu0 %v2367
        %7595 = vmatprep.subr.mxu0 %v2480
        %7596 = vmatpush1.xpose.msra.mxu0 %v2479
        %7597 = vmatprep.subr.mxu0 %v2592
        %7598 = vmatpush1.xpose.msra.mxu0 %v2591
        %7599 = vmatprep.subr.mxu0 %v2704
        %7600 = vmatpush1.xpose.msra.mxu0 %v2703
        %7601 = vmatprep.subr.mxu0 %v2816
        %7602 = vmatpush1.xpose.msra.mxu0 %v2815
        %7603 = vmatprep.subr.mxu0 %v2928
        %7604 = vmatpush1.xpose.msra.mxu0 %v2927
        %7605 = vmatprep.subr.mxu0 %v3040
        %7606 = vmatpush1.xpose.msra.mxu0 %v3039
        %7607 = vmatprep.subr.mxu0 %v3152
        %7608 = vmatpush1.xpose.msra.mxu0 %v3151
        %7609 = vmatprep.subr.mxu0 %v3264
        %7610 = vmatpush1.xpose.msra.mxu0 %v3263
        %7611 = vmatprep.subr.mxu0 %v3376
        %7612 = vmatpush1.xpose.msra.mxu0 %v3375
        %7613 = vmatprep.subr.mxu0 %v3488
        %7614 = vmatpush1.xpose.msra.mxu0 %v3487
        %7615 = vmatprep.subr.mxu0 %v3600
        %7616 = vmatpush1.xpose.msra.mxu0 %v3599
        %7617 = vmatprep.subr.mxu0 %v3712
        %7618 = vmatpush1.xpose.msra.mxu0 %v3711
        %7619 = vmatprep.subr.mxu0 %v3824
        %7620 = vmatpush1.xpose.msra.mxu0 %v3823
        %7621 = vmatprep.mubr.f32.mxu0 %v4221
        %7622 = vmatmul.mubr.f32.gmra.mrb[0].mxu0 %v4217
        %v7623 = vpop.f32.mrb[0].mxu0
        %v7624 = vadd.f32 %v7553, %v7623
        %v7625 = vpop.f32.mrb[0].mxu0
        %v7626 = vadd.f32 %v7555, %v7625
        %7627 = vdwg.mxu0
        %7628 = vmatprep.subr.mxu0 %v354
        %7629 = vmatpush1.xpose.msra.mxu0 %v353
        %7630 = vmatprep.subr.mxu0 %v466
        %7631 = vmatpush1.xpose.msra.mxu0 %v465
        %7632 = vmatprep.subr.mxu0 %v578
        %7633 = vmatpush1.xpose.msra.mxu0 %v577
        %7634 = vmatprep.subr.mxu0 %v690
        %7635 = vmatpush1.xpose.msra.mxu0 %v689
        %7636 = vmatprep.subr.mxu0 %v802
        %7637 = vmatpush1.xpose.msra.mxu0 %v801
        %7638 = vmatprep.subr.mxu0 %v914
        %7639 = vmatpush1.xpose.msra.mxu0 %v913
        %7640 = vmatprep.subr.mxu0 %v1026
        %7641 = vmatpush1.xpose.msra.mxu0 %v1025
        %7642 = vmatprep.subr.mxu0 %v1138
        %7643 = vmatpush1.xpose.msra.mxu0 %v1137
        %7644 = vmatprep.subr.mxu0 %v1250
        %7645 = vmatpush1.xpose.msra.mxu0 %v1249
        %7646 = vmatprep.subr.mxu0 %v1362
        %7647 = vmatpush1.xpose.msra.mxu0 %v1361
        %7648 = vmatprep.subr.mxu0 %v1474
        %7649 = vmatpush1.xpose.msra.mxu0 %v1473
        %7650 = vmatprep.subr.mxu0 %v1586
        %7651 = vmatpush1.xpose.msra.mxu0 %v1585
        %7652 = vmatprep.subr.mxu0 %v1698
        %7653 = vmatpush1.xpose.msra.mxu0 %v1697
        %7654 = vmatprep.subr.mxu0 %v1810
        %7655 = vmatpush1.xpose.msra.mxu0 %v1809
        %7656 = vmatprep.subr.mxu0 %v1922
        %7657 = vmatpush1.xpose.msra.mxu0 %v1921
        %7658 = vmatprep.subr.mxu0 %v2034
        %7659 = vmatpush1.xpose.msra.mxu0 %v2033
        %7660 = vmatprep.subr.mxu0 %v2146
        %7661 = vmatpush1.xpose.msra.mxu0 %v2145
        %7662 = vmatprep.subr.mxu0 %v2258
        %7663 = vmatpush1.xpose.msra.mxu0 %v2257
        %7664 = vmatprep.subr.mxu0 %v2370
        %7665 = vmatpush1.xpose.msra.mxu0 %v2369
        %7666 = vmatprep.subr.mxu0 %v2482
        %7667 = vmatpush1.xpose.msra.mxu0 %v2481
        %7668 = vmatprep.subr.mxu0 %v2594
        %7669 = vmatpush1.xpose.msra.mxu0 %v2593
        %7670 = vmatprep.subr.mxu0 %v2706
        %7671 = vmatpush1.xpose.msra.mxu0 %v2705
        %7672 = vmatprep.subr.mxu0 %v2818
        %7673 = vmatpush1.xpose.msra.mxu0 %v2817
        %7674 = vmatprep.subr.mxu0 %v2930
        %7675 = vmatpush1.xpose.msra.mxu0 %v2929
        %7676 = vmatprep.subr.mxu0 %v3042
        %7677 = vmatpush1.xpose.msra.mxu0 %v3041
        %7678 = vmatprep.subr.mxu0 %v3154
        %7679 = vmatpush1.xpose.msra.mxu0 %v3153
        %7680 = vmatprep.subr.mxu0 %v3266
        %7681 = vmatpush1.xpose.msra.mxu0 %v3265
        %7682 = vmatprep.subr.mxu0 %v3378
        %7683 = vmatpush1.xpose.msra.mxu0 %v3377
        %7684 = vmatprep.subr.mxu0 %v3490
        %7685 = vmatpush1.xpose.msra.mxu0 %v3489
        %7686 = vmatprep.subr.mxu0 %v3602
        %7687 = vmatpush1.xpose.msra.mxu0 %v3601
        %7688 = vmatprep.subr.mxu0 %v3714
        %7689 = vmatpush1.xpose.msra.mxu0 %v3713
        %7690 = vmatprep.subr.mxu0 %v3826
        %7691 = vmatpush1.xpose.msra.mxu0 %v3825
        %7692 = vmatprep.mubr.f32.mxu0 %v4229
        %7693 = vmatmul.mubr.f32.gmra.mrb[0].mxu0 %v4225
        %v7694 = vpop.f32.mrb[0].mxu0
        %v7695 = vadd.f32 %v7624, %v7694
        %v7696 = vpop.f32.mrb[0].mxu0
        %v7697 = vadd.f32 %v7626, %v7696
        %7698 = vdwg.mxu0
        %7699 = vmatprep.subr.mxu0 %v356
        %7700 = vmatpush1.xpose.msra.mxu0 %v355
        %7701 = vmatprep.subr.mxu0 %v468
        %7702 = vmatpush1.xpose.msra.mxu0 %v467
        %7703 = vmatprep.subr.mxu0 %v580
        %7704 = vmatpush1.xpose.msra.mxu0 %v579
        %7705 = vmatprep.subr.mxu0 %v692
        %7706 = vmatpush1.xpose.msra.mxu0 %v691
        %7707 = vmatprep.subr.mxu0 %v804
        %7708 = vmatpush1.xpose.msra.mxu0 %v803
        %7709 = vmatprep.subr.mxu0 %v916
        %7710 = vmatpush1.xpose.msra.mxu0 %v915
        %7711 = vmatprep.subr.mxu0 %v1028
        %7712 = vmatpush1.xpose.msra.mxu0 %v1027
        %7713 = vmatprep.subr.mxu0 %v1140
        %7714 = vmatpush1.xpose.msra.mxu0 %v1139
        %7715 = vmatprep.subr.mxu0 %v1252
        %7716 = vmatpush1.xpose.msra.mxu0 %v1251
        %7717 = vmatprep.subr.mxu0 %v1364
        %7718 = vmatpush1.xpose.msra.mxu0 %v1363
        %7719 = vmatprep.subr.mxu0 %v1476
        %7720 = vmatpush1.xpose.msra.mxu0 %v1475
        %7721 = vmatprep.subr.mxu0 %v1588
        %7722 = vmatpush1.xpose.msra.mxu0 %v1587
        %7723 = vmatprep.subr.mxu0 %v1700
        %7724 = vmatpush1.xpose.msra.mxu0 %v1699
        %7725 = vmatprep.subr.mxu0 %v1812
        %7726 = vmatpush1.xpose.msra.mxu0 %v1811
        %7727 = vmatprep.subr.mxu0 %v1924
        %7728 = vmatpush1.xpose.msra.mxu0 %v1923
        %7729 = vmatprep.subr.mxu0 %v2036
        %7730 = vmatpush1.xpose.msra.mxu0 %v2035
        %7731 = vmatprep.subr.mxu0 %v2148
        %7732 = vmatpush1.xpose.msra.mxu0 %v2147
        %7733 = vmatprep.subr.mxu0 %v2260
        %7734 = vmatpush1.xpose.msra.mxu0 %v2259
        %7735 = vmatprep.subr.mxu0 %v2372
        %7736 = vmatpush1.xpose.msra.mxu0 %v2371
        %7737 = vmatprep.subr.mxu0 %v2484
        %7738 = vmatpush1.xpose.msra.mxu0 %v2483
        %7739 = vmatprep.subr.mxu0 %v2596
        %7740 = vmatpush1.xpose.msra.mxu0 %v2595
        %7741 = vmatprep.subr.mxu0 %v2708
        %7742 = vmatpush1.xpose.msra.mxu0 %v2707
        %7743 = vmatprep.subr.mxu0 %v2820
        %7744 = vmatpush1.xpose.msra.mxu0 %v2819
        %7745 = vmatprep.subr.mxu0 %v2932
        %7746 = vmatpush1.xpose.msra.mxu0 %v2931
        %7747 = vmatprep.subr.mxu0 %v3044
        %7748 = vmatpush1.xpose.msra.mxu0 %v3043
        %7749 = vmatprep.subr.mxu0 %v3156
        %7750 = vmatpush1.xpose.msra.mxu0 %v3155
        %7751 = vmatprep.subr.mxu0 %v3268
        %7752 = vmatpush1.xpose.msra.mxu0 %v3267
        %7753 = vmatprep.subr.mxu0 %v3380
        %7754 = vmatpush1.xpose.msra.mxu0 %v3379
        %7755 = vmatprep.subr.mxu0 %v3492
        %7756 = vmatpush1.xpose.msra.mxu0 %v3491
        %7757 = vmatprep.subr.mxu0 %v3604
        %7758 = vmatpush1.xpose.msra.mxu0 %v3603
        %7759 = vmatprep.subr.mxu0 %v3716
        %7760 = vmatpush1.xpose.msra.mxu0 %v3715
        %7761 = vmatprep.subr.mxu0 %v3828
        %7762 = vmatpush1.xpose.msra.mxu0 %v3827
        %7763 = vmatprep.mubr.f32.mxu0 %v4237
        %7764 = vmatmul.mubr.f32.gmra.mrb[0].mxu0 %v4233
        %v7765 = vpop.f32.mrb[0].mxu0
        %v7766 = vadd.f32 %v7695, %v7765
        %v7767 = vpop.f32.mrb[0].mxu0
        %v7768 = vadd.f32 %v7697, %v7767
        %7769 = vdwg.mxu0
        %7770 = vmatprep.subr.mxu0 %v358
        %7771 = vmatpush1.xpose.msra.mxu0 %v357
        %7772 = vmatprep.subr.mxu0 %v470
        %7773 = vmatpush1.xpose.msra.mxu0 %v469
        %7774 = vmatprep.subr.mxu0 %v582
        %7775 = vmatpush1.xpose.msra.mxu0 %v581
        %7776 = vmatprep.subr.mxu0 %v694
        %7777 = vmatpush1.xpose.msra.mxu0 %v693
        %7778 = vmatprep.subr.mxu0 %v806
        %7779 = vmatpush1.xpose.msra.mxu0 %v805
        %7780 = vmatprep.subr.mxu0 %v918
        %7781 = vmatpush1.xpose.msra.mxu0 %v917
        %7782 = vmatprep.subr.mxu0 %v1030
        %7783 = vmatpush1.xpose.msra.mxu0 %v1029
        %7784 = vmatprep.subr.mxu0 %v1142
        %7785 = vmatpush1.xpose.msra.mxu0 %v1141
        %7786 = vmatprep.subr.mxu0 %v1254
        %7787 = vmatpush1.xpose.msra.mxu0 %v1253
        %7788 = vmatprep.subr.mxu0 %v1366
        %7789 = vmatpush1.xpose.msra.mxu0 %v1365
        %7790 = vmatprep.subr.mxu0 %v1478
        %7791 = vmatpush1.xpose.msra.mxu0 %v1477
        %7792 = vmatprep.subr.mxu0 %v1590
        %7793 = vmatpush1.xpose.msra.mxu0 %v1589
        %7794 = vmatprep.subr.mxu0 %v1702
        %7795 = vmatpush1.xpose.msra.mxu0 %v1701
        %7796 = vmatprep.subr.mxu0 %v1814
        %7797 = vmatpush1.xpose.msra.mxu0 %v1813
        %7798 = vmatprep.subr.mxu0 %v1926
        %7799 = vmatpush1.xpose.msra.mxu0 %v1925
        %7800 = vmatprep.subr.mxu0 %v2038
        %7801 = vmatpush1.xpose.msra.mxu0 %v2037
        %7802 = vmatprep.subr.mxu0 %v2150
        %7803 = vmatpush1.xpose.msra.mxu0 %v2149
        %7804 = vmatprep.subr.mxu0 %v2262
        %7805 = vmatpush1.xpose.msra.mxu0 %v2261
        %7806 = vmatprep.subr.mxu0 %v2374
        %7807 = vmatpush1.xpose.msra.mxu0 %v2373
        %7808 = vmatprep.subr.mxu0 %v2486
        %7809 = vmatpush1.xpose.msra.mxu0 %v2485
        %7810 = vmatprep.subr.mxu0 %v2598
        %7811 = vmatpush1.xpose.msra.mxu0 %v2597
        %7812 = vmatprep.subr.mxu0 %v2710
        %7813 = vmatpush1.xpose.msra.mxu0 %v2709
        %7814 = vmatprep.subr.mxu0 %v2822
        %7815 = vmatpush1.xpose.msra.mxu0 %v2821
        %7816 = vmatprep.subr.mxu0 %v2934
        %7817 = vmatpush1.xpose.msra.mxu0 %v2933
        %7818 = vmatprep.subr.mxu0 %v3046
        %7819 = vmatpush1.xpose.msra.mxu0 %v3045
        %7820 = vmatprep.subr.mxu0 %v3158
        %7821 = vmatpush1.xpose.msra.mxu0 %v3157
        %7822 = vmatprep.subr.mxu0 %v3270
        %7823 = vmatpush1.xpose.msra.mxu0 %v3269
        %7824 = vmatprep.subr.mxu0 %v3382
        %7825 = vmatpush1.xpose.msra.mxu0 %v3381
        %7826 = vmatprep.subr.mxu0 %v3494
        %7827 = vmatpush1.xpose.msra.mxu0 %v3493
        %7828 = vmatprep.subr.mxu0 %v3606
        %7829 = vmatpush1.xpose.msra.mxu0 %v3605
        %7830 = vmatprep.subr.mxu0 %v3718
        %7831 = vmatpush1.xpose.msra.mxu0 %v3717
        %7832 = vmatprep.subr.mxu0 %v3830
        %7833 = vmatpush1.xpose.msra.mxu0 %v3829
        %7834 = vmatprep.mubr.f32.mxu0 %v4245
        %7835 = vmatmul.mubr.f32.gmra.mrb[0].mxu0 %v4241
        %v7836 = vpop.f32.mrb[0].mxu0
        %v7837 = vadd.f32 %v7766, %v7836
        %v7838 = vpop.f32.mrb[0].mxu0
        %v7839 = vadd.f32 %v7768, %v7838
        %7840 = vdwg.mxu0
        %7841 = vmatprep.subr.mxu0 %v360
        %7842 = vmatpush1.xpose.msra.mxu0 %v359
        %7843 = vmatprep.subr.mxu0 %v472
        %7844 = vmatpush1.xpose.msra.mxu0 %v471
        %7845 = vmatprep.subr.mxu0 %v584
        %7846 = vmatpush1.xpose.msra.mxu0 %v583
        %7847 = vmatprep.subr.mxu0 %v696
        %7848 = vmatpush1.xpose.msra.mxu0 %v695
        %7849 = vmatprep.subr.mxu0 %v808
        %7850 = vmatpush1.xpose.msra.mxu0 %v807
        %7851 = vmatprep.subr.mxu0 %v920
        %7852 = vmatpush1.xpose.msra.mxu0 %v919
        %7853 = vmatprep.subr.mxu0 %v1032
        %7854 = vmatpush1.xpose.msra.mxu0 %v1031
        %7855 = vmatprep.subr.mxu0 %v1144
        %7856 = vmatpush1.xpose.msra.mxu0 %v1143
        %7857 = vmatprep.subr.mxu0 %v1256
        %7858 = vmatpush1.xpose.msra.mxu0 %v1255
        %7859 = vmatprep.subr.mxu0 %v1368
        %7860 = vmatpush1.xpose.msra.mxu0 %v1367
        %7861 = vmatprep.subr.mxu0 %v1480
        %7862 = vmatpush1.xpose.msra.mxu0 %v1479
        %7863 = vmatprep.subr.mxu0 %v1592
        %7864 = vmatpush1.xpose.msra.mxu0 %v1591
        %7865 = vmatprep.subr.mxu0 %v1704
        %7866 = vmatpush1.xpose.msra.mxu0 %v1703
        %7867 = vmatprep.subr.mxu0 %v1816
        %7868 = vmatpush1.xpose.msra.mxu0 %v1815
        %7869 = vmatprep.subr.mxu0 %v1928
        %7870 = vmatpush1.xpose.msra.mxu0 %v1927
        %7871 = vmatprep.subr.mxu0 %v2040
        %7872 = vmatpush1.xpose.msra.mxu0 %v2039
        %7873 = vmatprep.subr.mxu0 %v2152
        %7874 = vmatpush1.xpose.msra.mxu0 %v2151
        %7875 = vmatprep.subr.mxu0 %v2264
        %7876 = vmatpush1.xpose.msra.mxu0 %v2263
        %7877 = vmatprep.subr.mxu0 %v2376
        %7878 = vmatpush1.xpose.msra.mxu0 %v2375
        %7879 = vmatprep.subr.mxu0 %v2488
        %7880 = vmatpush1.xpose.msra.mxu0 %v2487
        %7881 = vmatprep.subr.mxu0 %v2600
        %7882 = vmatpush1.xpose.msra.mxu0 %v2599
        %7883 = vmatprep.subr.mxu0 %v2712
        %7884 = vmatpush1.xpose.msra.mxu0 %v2711
        %7885 = vmatprep.subr.mxu0 %v2824
        %7886 = vmatpush1.xpose.msra.mxu0 %v2823
        %7887 = vmatprep.subr.mxu0 %v2936
        %7888 = vmatpush1.xpose.msra.mxu0 %v2935
        %7889 = vmatprep.subr.mxu0 %v3048
        %7890 = vmatpush1.xpose.msra.mxu0 %v3047
        %7891 = vmatprep.subr.mxu0 %v3160
        %7892 = vmatpush1.xpose.msra.mxu0 %v3159
        %7893 = vmatprep.subr.mxu0 %v3272
        %7894 = vmatpush1.xpose.msra.mxu0 %v3271
        %7895 = vmatprep.subr.mxu0 %v3384
        %7896 = vmatpush1.xpose.msra.mxu0 %v3383
        %7897 = vmatprep.subr.mxu0 %v3496
        %7898 = vmatpush1.xpose.msra.mxu0 %v3495
        %7899 = vmatprep.subr.mxu0 %v3608
        %7900 = vmatpush1.xpose.msra.mxu0 %v3607
        %7901 = vmatprep.subr.mxu0 %v3720
        %7902 = vmatpush1.xpose.msra.mxu0 %v3719
        %7903 = vmatprep.subr.mxu0 %v3832
        %7904 = vmatpush1.xpose.msra.mxu0 %v3831
        %7905 = vmatprep.mubr.f32.mxu0 %v4253
        %7906 = vmatmul.mubr.f32.gmra.mrb[0].mxu0 %v4249
        %v7907 = vpop.f32.mrb[0].mxu0
        %v7908 = vadd.f32 %v7837, %v7907
        %v7909 = vpop.f32.mrb[0].mxu0
        %v7910 = vadd.f32 %v7839, %v7909
        %7911 = vdwg.mxu0
        %7912 = vmatprep.subr.mxu0 %v362
        %7913 = vmatpush1.xpose.msra.mxu0 %v361
        %7914 = vmatprep.subr.mxu0 %v474
        %7915 = vmatpush1.xpose.msra.mxu0 %v473
        %7916 = vmatprep.subr.mxu0 %v586
        %7917 = vmatpush1.xpose.msra.mxu0 %v585
        %7918 = vmatprep.subr.mxu0 %v698
        %7919 = vmatpush1.xpose.msra.mxu0 %v697
        %7920 = vmatprep.subr.mxu0 %v810
        %7921 = vmatpush1.xpose.msra.mxu0 %v809
        %7922 = vmatprep.subr.mxu0 %v922
        %7923 = vmatpush1.xpose.msra.mxu0 %v921
        %7924 = vmatprep.subr.mxu0 %v1034
        %7925 = vmatpush1.xpose.msra.mxu0 %v1033
        %7926 = vmatprep.subr.mxu0 %v1146
        %7927 = vmatpush1.xpose.msra.mxu0 %v1145
        %7928 = vmatprep.subr.mxu0 %v1258
        %7929 = vmatpush1.xpose.msra.mxu0 %v1257
        %7930 = vmatprep.subr.mxu0 %v1370
        %7931 = vmatpush1.xpose.msra.mxu0 %v1369
        %7932 = vmatprep.subr.mxu0 %v1482
        %7933 = vmatpush1.xpose.msra.mxu0 %v1481
        %7934 = vmatprep.subr.mxu0 %v1594
        %7935 = vmatpush1.xpose.msra.mxu0 %v1593
        %7936 = vmatprep.subr.mxu0 %v1706
        %7937 = vmatpush1.xpose.msra.mxu0 %v1705
        %7938 = vmatprep.subr.mxu0 %v1818
        %7939 = vmatpush1.xpose.msra.mxu0 %v1817
        %7940 = vmatprep.subr.mxu0 %v1930
        %7941 = vmatpush1.xpose.msra.mxu0 %v1929
        %7942 = vmatprep.subr.mxu0 %v2042
        %7943 = vmatpush1.xpose.msra.mxu0 %v2041
        %7944 = vmatprep.subr.mxu0 %v2154
        %7945 = vmatpush1.xpose.msra.mxu0 %v2153
        %7946 = vmatprep.subr.mxu0 %v2266
        %7947 = vmatpush1.xpose.msra.mxu0 %v2265
        %7948 = vmatprep.subr.mxu0 %v2378
        %7949 = vmatpush1.xpose.msra.mxu0 %v2377
        %7950 = vmatprep.subr.mxu0 %v2490
        %7951 = vmatpush1.xpose.msra.mxu0 %v2489
        %7952 = vmatprep.subr.mxu0 %v2602
        %7953 = vmatpush1.xpose.msra.mxu0 %v2601
        %7954 = vmatprep.subr.mxu0 %v2714
        %7955 = vmatpush1.xpose.msra.mxu0 %v2713
        %7956 = vmatprep.subr.mxu0 %v2826
        %7957 = vmatpush1.xpose.msra.mxu0 %v2825
        %7958 = vmatprep.subr.mxu0 %v2938
        %7959 = vmatpush1.xpose.msra.mxu0 %v2937
        %7960 = vmatprep.subr.mxu0 %v3050
        %7961 = vmatpush1.xpose.msra.mxu0 %v3049
        %7962 = vmatprep.subr.mxu0 %v3162
        %7963 = vmatpush1.xpose.msra.mxu0 %v3161
        %7964 = vmatprep.subr.mxu0 %v3274
        %7965 = vmatpush1.xpose.msra.mxu0 %v3273
        %7966 = vmatprep.subr.mxu0 %v3386
        %7967 = vmatpush1.xpose.msra.mxu0 %v3385
        %7968 = vmatprep.subr.mxu0 %v3498
        %7969 = vmatpush1.xpose.msra.mxu0 %v3497
        %7970 = vmatprep.subr.mxu0 %v3610
        %7971 = vmatpush1.xpose.msra.mxu0 %v3609
        %7972 = vmatprep.subr.mxu0 %v3722
        %7973 = vmatpush1.xpose.msra.mxu0 %v3721
        %7974 = vmatprep.subr.mxu0 %v3834
        %7975 = vmatpush1.xpose.msra.mxu0 %v3833
        %7976 = vmatprep.mubr.f32.mxu0 %v4261
        %7977 = vmatmul.mubr.f32.gmra.mrb[0].mxu0 %v4257
        %v7978 = vpop.f32.mrb[0].mxu0
        %v7979 = vadd.f32 %v7908, %v7978
        %v7980 = vpop.f32.mrb[0].mxu0
        %v7981 = vadd.f32 %v7910, %v7980
        %7982 = vdwg.mxu0
        %7983 = vmatprep.subr.mxu0 %v364
        %7984 = vmatpush1.xpose.msra.mxu0 %v363
        %7985 = vmatprep.subr.mxu0 %v476
        %7986 = vmatpush1.xpose.msra.mxu0 %v475
        %7987 = vmatprep.subr.mxu0 %v588
        %7988 = vmatpush1.xpose.msra.mxu0 %v587
        %7989 = vmatprep.subr.mxu0 %v700
        %7990 = vmatpush1.xpose.msra.mxu0 %v699
        %7991 = vmatprep.subr.mxu0 %v812
        %7992 = vmatpush1.xpose.msra.mxu0 %v811
        %7993 = vmatprep.subr.mxu0 %v924
        %7994 = vmatpush1.xpose.msra.mxu0 %v923
        %7995 = vmatprep.subr.mxu0 %v1036
        %7996 = vmatpush1.xpose.msra.mxu0 %v1035
        %7997 = vmatprep.subr.mxu0 %v1148
        %7998 = vmatpush1.xpose.msra.mxu0 %v1147
        %7999 = vmatprep.subr.mxu0 %v1260
        %8000 = vmatpush1.xpose.msra.mxu0 %v1259
        %8001 = vmatprep.subr.mxu0 %v1372
        %8002 = vmatpush1.xpose.msra.mxu0 %v1371
        %8003 = vmatprep.subr.mxu0 %v1484
        %8004 = vmatpush1.xpose.msra.mxu0 %v1483
        %8005 = vmatprep.subr.mxu0 %v1596
        %8006 = vmatpush1.xpose.msra.mxu0 %v1595
        %8007 = vmatprep.subr.mxu0 %v1708
        %8008 = vmatpush1.xpose.msra.mxu0 %v1707
        %8009 = vmatprep.subr.mxu0 %v1820
        %8010 = vmatpush1.xpose.msra.mxu0 %v1819
        %8011 = vmatprep.subr.mxu0 %v1932
        %8012 = vmatpush1.xpose.msra.mxu0 %v1931
        %8013 = vmatprep.subr.mxu0 %v2044
        %8014 = vmatpush1.xpose.msra.mxu0 %v2043
        %8015 = vmatprep.subr.mxu0 %v2156
        %8016 = vmatpush1.xpose.msra.mxu0 %v2155
        %8017 = vmatprep.subr.mxu0 %v2268
        %8018 = vmatpush1.xpose.msra.mxu0 %v2267
        %8019 = vmatprep.subr.mxu0 %v2380
        %8020 = vmatpush1.xpose.msra.mxu0 %v2379
        %8021 = vmatprep.subr.mxu0 %v2492
        %8022 = vmatpush1.xpose.msra.mxu0 %v2491
        %8023 = vmatprep.subr.mxu0 %v2604
        %8024 = vmatpush1.xpose.msra.mxu0 %v2603
        %8025 = vmatprep.subr.mxu0 %v2716
        %8026 = vmatpush1.xpose.msra.mxu0 %v2715
        %8027 = vmatprep.subr.mxu0 %v2828
        %8028 = vmatpush1.xpose.msra.mxu0 %v2827
        %8029 = vmatprep.subr.mxu0 %v2940
        %8030 = vmatpush1.xpose.msra.mxu0 %v2939
        %8031 = vmatprep.subr.mxu0 %v3052
        %8032 = vmatpush1.xpose.msra.mxu0 %v3051
        %8033 = vmatprep.subr.mxu0 %v3164
        %8034 = vmatpush1.xpose.msra.mxu0 %v3163
        %8035 = vmatprep.subr.mxu0 %v3276
        %8036 = vmatpush1.xpose.msra.mxu0 %v3275
        %8037 = vmatprep.subr.mxu0 %v3388
        %8038 = vmatpush1.xpose.msra.mxu0 %v3387
        %8039 = vmatprep.subr.mxu0 %v3500
        %8040 = vmatpush1.xpose.msra.mxu0 %v3499
        %8041 = vmatprep.subr.mxu0 %v3612
        %8042 = vmatpush1.xpose.msra.mxu0 %v3611
        %8043 = vmatprep.subr.mxu0 %v3724
        %8044 = vmatpush1.xpose.msra.mxu0 %v3723
        %8045 = vmatprep.subr.mxu0 %v3836
        %8046 = vmatpush1.xpose.msra.mxu0 %v3835
        %8047 = vmatprep.mubr.f32.mxu0 %v4269
        %8048 = vmatmul.mubr.f32.gmra.mrb[0].mxu0 %v4265
        %v8049 = vpop.f32.mrb[0].mxu0
        %v8050 = vadd.f32 %v7979, %v8049
        %v8051 = vpop.f32.mrb[0].mxu0
        %v8052 = vadd.f32 %v7981, %v8051
        %8053 = vdwg.mxu0
        %8054 = vmatprep.subr.mxu0 %v366
        %8055 = vmatpush1.xpose.msra.mxu0 %v365
        %8056 = vmatprep.subr.mxu0 %v478
        %8057 = vmatpush1.xpose.msra.mxu0 %v477
        %8058 = vmatprep.subr.mxu0 %v590
        %8059 = vmatpush1.xpose.msra.mxu0 %v589
        %8060 = vmatprep.subr.mxu0 %v702
        %8061 = vmatpush1.xpose.msra.mxu0 %v701
        %8062 = vmatprep.subr.mxu0 %v814
        %8063 = vmatpush1.xpose.msra.mxu0 %v813
        %8064 = vmatprep.subr.mxu0 %v926
        %8065 = vmatpush1.xpose.msra.mxu0 %v925
        %8066 = vmatprep.subr.mxu0 %v1038
        %8067 = vmatpush1.xpose.msra.mxu0 %v1037
        %8068 = vmatprep.subr.mxu0 %v1150
        %8069 = vmatpush1.xpose.msra.mxu0 %v1149
        %8070 = vmatprep.subr.mxu0 %v1262
        %8071 = vmatpush1.xpose.msra.mxu0 %v1261
        %8072 = vmatprep.subr.mxu0 %v1374
        %8073 = vmatpush1.xpose.msra.mxu0 %v1373
        %8074 = vmatprep.subr.mxu0 %v1486
        %8075 = vmatpush1.xpose.msra.mxu0 %v1485
        %8076 = vmatprep.subr.mxu0 %v1598
        %8077 = vmatpush1.xpose.msra.mxu0 %v1597
        %8078 = vmatprep.subr.mxu0 %v1710
        %8079 = vmatpush1.xpose.msra.mxu0 %v1709
        %8080 = vmatprep.subr.mxu0 %v1822
        %8081 = vmatpush1.xpose.msra.mxu0 %v1821
        %8082 = vmatprep.subr.mxu0 %v1934
        %8083 = vmatpush1.xpose.msra.mxu0 %v1933
        %8084 = vmatprep.subr.mxu0 %v2046
        %8085 = vmatpush1.xpose.msra.mxu0 %v2045
        %8086 = vmatprep.subr.mxu0 %v2158
        %8087 = vmatpush1.xpose.msra.mxu0 %v2157
        %8088 = vmatprep.subr.mxu0 %v2270
        %8089 = vmatpush1.xpose.msra.mxu0 %v2269
        %8090 = vmatprep.subr.mxu0 %v2382
        %8091 = vmatpush1.xpose.msra.mxu0 %v2381
        %8092 = vmatprep.subr.mxu0 %v2494
        %8093 = vmatpush1.xpose.msra.mxu0 %v2493
        %8094 = vmatprep.subr.mxu0 %v2606
        %8095 = vmatpush1.xpose.msra.mxu0 %v2605
        %8096 = vmatprep.subr.mxu0 %v2718
        %8097 = vmatpush1.xpose.msra.mxu0 %v2717
        %8098 = vmatprep.subr.mxu0 %v2830
        %8099 = vmatpush1.xpose.msra.mxu0 %v2829
        %8100 = vmatprep.subr.mxu0 %v2942
        %8101 = vmatpush1.xpose.msra.mxu0 %v2941
        %8102 = vmatprep.subr.mxu0 %v3054
        %8103 = vmatpush1.xpose.msra.mxu0 %v3053
        %8104 = vmatprep.subr.mxu0 %v3166
        %8105 = vmatpush1.xpose.msra.mxu0 %v3165
        %8106 = vmatprep.subr.mxu0 %v3278
        %8107 = vmatpush1.xpose.msra.mxu0 %v3277
        %8108 = vmatprep.subr.mxu0 %v3390
        %8109 = vmatpush1.xpose.msra.mxu0 %v3389
        %8110 = vmatprep.subr.mxu0 %v3502
        %8111 = vmatpush1.xpose.msra.mxu0 %v3501
        %8112 = vmatprep.subr.mxu0 %v3614
        %8113 = vmatpush1.xpose.msra.mxu0 %v3613
        %8114 = vmatprep.subr.mxu0 %v3726
        %8115 = vmatpush1.xpose.msra.mxu0 %v3725
        %8116 = vmatprep.subr.mxu0 %v3838
        %8117 = vmatpush1.xpose.msra.mxu0 %v3837
        %8118 = vmatprep.mubr.f32.mxu0 %v4277
        %8119 = vmatmul.mubr.f32.gmra.mrb[0].mxu0 %v4273
        %v8120 = vpop.f32.mrb[0].mxu0
        %v8121 = vadd.f32 %v8050, %v8120
        %v8122 = vpop.f32.mrb[0].mxu0
        %v8123 = vadd.f32 %v8052, %v8122
        %8124 = vdwg.mxu0
        %8125 = vmatprep.subr.mxu0 %v368
        %8126 = vmatpush1.xpose.msra.mxu0 %v367
        %8127 = vmatprep.subr.mxu0 %v480
        %8128 = vmatpush1.xpose.msra.mxu0 %v479
        %8129 = vmatprep.subr.mxu0 %v592
        %8130 = vmatpush1.xpose.msra.mxu0 %v591
        %8131 = vmatprep.subr.mxu0 %v704
        %8132 = vmatpush1.xpose.msra.mxu0 %v703
        %8133 = vmatprep.subr.mxu0 %v816
        %8134 = vmatpush1.xpose.msra.mxu0 %v815
        %8135 = vmatprep.subr.mxu0 %v928
        %8136 = vmatpush1.xpose.msra.mxu0 %v927
        %8137 = vmatprep.subr.mxu0 %v1040
        %8138 = vmatpush1.xpose.msra.mxu0 %v1039
        %8139 = vmatprep.subr.mxu0 %v1152
        %8140 = vmatpush1.xpose.msra.mxu0 %v1151
        %8141 = vmatprep.subr.mxu0 %v1264
        %8142 = vmatpush1.xpose.msra.mxu0 %v1263
        %8143 = vmatprep.subr.mxu0 %v1376
        %8144 = vmatpush1.xpose.msra.mxu0 %v1375
        %8145 = vmatprep.subr.mxu0 %v1488
        %8146 = vmatpush1.xpose.msra.mxu0 %v1487
        %8147 = vmatprep.subr.mxu0 %v1600
        %8148 = vmatpush1.xpose.msra.mxu0 %v1599
        %8149 = vmatprep.subr.mxu0 %v1712
        %8150 = vmatpush1.xpose.msra.mxu0 %v1711
        %8151 = vmatprep.subr.mxu0 %v1824
        %8152 = vmatpush1.xpose.msra.mxu0 %v1823
        %8153 = vmatprep.subr.mxu0 %v1936
        %8154 = vmatpush1.xpose.msra.mxu0 %v1935
        %8155 = vmatprep.subr.mxu0 %v2048
        %8156 = vmatpush1.xpose.msra.mxu0 %v2047
        %8157 = vmatprep.subr.mxu0 %v2160
        %8158 = vmatpush1.xpose.msra.mxu0 %v2159
        %8159 = vmatprep.subr.mxu0 %v2272
        %8160 = vmatpush1.xpose.msra.mxu0 %v2271
        %8161 = vmatprep.subr.mxu0 %v2384
        %8162 = vmatpush1.xpose.msra.mxu0 %v2383
        %8163 = vmatprep.subr.mxu0 %v2496
        %8164 = vmatpush1.xpose.msra.mxu0 %v2495
        %8165 = vmatprep.subr.mxu0 %v2608
        %8166 = vmatpush1.xpose.msra.mxu0 %v2607
        %8167 = vmatprep.subr.mxu0 %v2720
        %8168 = vmatpush1.xpose.msra.mxu0 %v2719
        %8169 = vmatprep.subr.mxu0 %v2832
        %8170 = vmatpush1.xpose.msra.mxu0 %v2831
        %8171 = vmatprep.subr.mxu0 %v2944
        %8172 = vmatpush1.xpose.msra.mxu0 %v2943
        %8173 = vmatprep.subr.mxu0 %v3056
        %8174 = vmatpush1.xpose.msra.mxu0 %v3055
        %8175 = vmatprep.subr.mxu0 %v3168
        %8176 = vmatpush1.xpose.msra.mxu0 %v3167
        %8177 = vmatprep.subr.mxu0 %v3280
        %8178 = vmatpush1.xpose.msra.mxu0 %v3279
        %8179 = vmatprep.subr.mxu0 %v3392
        %8180 = vmatpush1.xpose.msra.mxu0 %v3391
        %8181 = vmatprep.subr.mxu0 %v3504
        %8182 = vmatpush1.xpose.msra.mxu0 %v3503
        %8183 = vmatprep.subr.mxu0 %v3616
        %8184 = vmatpush1.xpose.msra.mxu0 %v3615
        %8185 = vmatprep.subr.mxu0 %v3728
        %8186 = vmatpush1.xpose.msra.mxu0 %v3727
        %8187 = vmatprep.subr.mxu0 %v3840
        %8188 = vmatpush1.xpose.msra.mxu0 %v3839
        %8189 = vmatprep.mubr.f32.mxu0 %v4285
        %8190 = vmatmul.mubr.f32.gmra.mrb[0].mxu0 %v4281
        %v8191 = vpop.f32.mrb[0].mxu0
        %v8192 = vadd.f32 %v8121, %v8191
        %v8193 = vpop.f32.mrb[0].mxu0
        %v8194 = vadd.f32 %v8123, %v8193
        %8195 = vdwg.mxu0
        %8196 = vmatprep.subr.mxu0 %v370
        %8197 = vmatpush1.xpose.msra.mxu0 %v369
        %8198 = vmatprep.subr.mxu0 %v482
        %8199 = vmatpush1.xpose.msra.mxu0 %v481
        %8200 = vmatprep.subr.mxu0 %v594
        %8201 = vmatpush1.xpose.msra.mxu0 %v593
        %8202 = vmatprep.subr.mxu0 %v706
        %8203 = vmatpush1.xpose.msra.mxu0 %v705
        %8204 = vmatprep.subr.mxu0 %v818
        %8205 = vmatpush1.xpose.msra.mxu0 %v817
        %8206 = vmatprep.subr.mxu0 %v930
        %8207 = vmatpush1.xpose.msra.mxu0 %v929
        %8208 = vmatprep.subr.mxu0 %v1042
        %8209 = vmatpush1.xpose.msra.mxu0 %v1041
        %8210 = vmatprep.subr.mxu0 %v1154
        %8211 = vmatpush1.xpose.msra.mxu0 %v1153
        %8212 = vmatprep.subr.mxu0 %v1266
        %8213 = vmatpush1.xpose.msra.mxu0 %v1265
        %8214 = vmatprep.subr.mxu0 %v1378
        %8215 = vmatpush1.xpose.msra.mxu0 %v1377
        %8216 = vmatprep.subr.mxu0 %v1490
        %8217 = vmatpush1.xpose.msra.mxu0 %v1489
        %8218 = vmatprep.subr.mxu0 %v1602
        %8219 = vmatpush1.xpose.msra.mxu0 %v1601
        %8220 = vmatprep.subr.mxu0 %v1714
        %8221 = vmatpush1.xpose.msra.mxu0 %v1713
        %8222 = vmatprep.subr.mxu0 %v1826
        %8223 = vmatpush1.xpose.msra.mxu0 %v1825
        %8224 = vmatprep.subr.mxu0 %v1938
        %8225 = vmatpush1.xpose.msra.mxu0 %v1937
        %8226 = vmatprep.subr.mxu0 %v2050
        %8227 = vmatpush1.xpose.msra.mxu0 %v2049
        %8228 = vmatprep.subr.mxu0 %v2162
        %8229 = vmatpush1.xpose.msra.mxu0 %v2161
        %8230 = vmatprep.subr.mxu0 %v2274
        %8231 = vmatpush1.xpose.msra.mxu0 %v2273
        %8232 = vmatprep.subr.mxu0 %v2386
        %8233 = vmatpush1.xpose.msra.mxu0 %v2385
        %8234 = vmatprep.subr.mxu0 %v2498
        %8235 = vmatpush1.xpose.msra.mxu0 %v2497
        %8236 = vmatprep.subr.mxu0 %v2610
        %8237 = vmatpush1.xpose.msra.mxu0 %v2609
        %8238 = vmatprep.subr.mxu0 %v2722
        %8239 = vmatpush1.xpose.msra.mxu0 %v2721
        %8240 = vmatprep.subr.mxu0 %v2834
        %8241 = vmatpush1.xpose.msra.mxu0 %v2833
        %8242 = vmatprep.subr.mxu0 %v2946
        %8243 = vmatpush1.xpose.msra.mxu0 %v2945
        %8244 = vmatprep.subr.mxu0 %v3058
        %8245 = vmatpush1.xpose.msra.mxu0 %v3057
        %8246 = vmatprep.subr.mxu0 %v3170
        %8247 = vmatpush1.xpose.msra.mxu0 %v3169
        %8248 = vmatprep.subr.mxu0 %v3282
        %8249 = vmatpush1.xpose.msra.mxu0 %v3281
        %8250 = vmatprep.subr.mxu0 %v3394
        %8251 = vmatpush1.xpose.msra.mxu0 %v3393
        %8252 = vmatprep.subr.mxu0 %v3506
        %8253 = vmatpush1.xpose.msra.mxu0 %v3505
        %8254 = vmatprep.subr.mxu0 %v3618
        %8255 = vmatpush1.xpose.msra.mxu0 %v3617
        %8256 = vmatprep.subr.mxu0 %v3730
        %8257 = vmatpush1.xpose.msra.mxu0 %v3729
        %8258 = vmatprep.subr.mxu0 %v3842
        %8259 = vmatpush1.xpose.msra.mxu0 %v3841
        %8260 = vmatprep.mubr.f32.mxu0 %v4293
        %8261 = vmatmul.mubr.f32.gmra.mrb[0].mxu0 %v4289
        %v8262 = vpop.f32.mrb[0].mxu0
        %v8263 = vadd.f32 %v8192, %v8262
        %v8264 = vpop.f32.mrb[0].mxu0
        %v8265 = vadd.f32 %v8194, %v8264
        %8266 = vdwg.mxu0
        %8267 = vmatprep.subr.mxu0 %v372
        %8268 = vmatpush1.xpose.msra.mxu0 %v371
        %8269 = vmatprep.subr.mxu0 %v484
        %8270 = vmatpush1.xpose.msra.mxu0 %v483
        %8271 = vmatprep.subr.mxu0 %v596
        %8272 = vmatpush1.xpose.msra.mxu0 %v595
        %8273 = vmatprep.subr.mxu0 %v708
        %8274 = vmatpush1.xpose.msra.mxu0 %v707
        %8275 = vmatprep.subr.mxu0 %v820
        %8276 = vmatpush1.xpose.msra.mxu0 %v819
        %8277 = vmatprep.subr.mxu0 %v932
        %8278 = vmatpush1.xpose.msra.mxu0 %v931
        %8279 = vmatprep.subr.mxu0 %v1044
        %8280 = vmatpush1.xpose.msra.mxu0 %v1043
        %8281 = vmatprep.subr.mxu0 %v1156
        %8282 = vmatpush1.xpose.msra.mxu0 %v1155
        %8283 = vmatprep.subr.mxu0 %v1268
        %8284 = vmatpush1.xpose.msra.mxu0 %v1267
        %8285 = vmatprep.subr.mxu0 %v1380
        %8286 = vmatpush1.xpose.msra.mxu0 %v1379
        %8287 = vmatprep.subr.mxu0 %v1492
        %8288 = vmatpush1.xpose.msra.mxu0 %v1491
        %8289 = vmatprep.subr.mxu0 %v1604
        %8290 = vmatpush1.xpose.msra.mxu0 %v1603
        %8291 = vmatprep.subr.mxu0 %v1716
        %8292 = vmatpush1.xpose.msra.mxu0 %v1715
        %8293 = vmatprep.subr.mxu0 %v1828
        %8294 = vmatpush1.xpose.msra.mxu0 %v1827
        %8295 = vmatprep.subr.mxu0 %v1940
        %8296 = vmatpush1.xpose.msra.mxu0 %v1939
        %8297 = vmatprep.subr.mxu0 %v2052
        %8298 = vmatpush1.xpose.msra.mxu0 %v2051
        %8299 = vmatprep.subr.mxu0 %v2164
        %8300 = vmatpush1.xpose.msra.mxu0 %v2163
        %8301 = vmatprep.subr.mxu0 %v2276
        %8302 = vmatpush1.xpose.msra.mxu0 %v2275
        %8303 = vmatprep.subr.mxu0 %v2388
        %8304 = vmatpush1.xpose.msra.mxu0 %v2387
        %8305 = vmatprep.subr.mxu0 %v2500
        %8306 = vmatpush1.xpose.msra.mxu0 %v2499
        %8307 = vmatprep.subr.mxu0 %v2612
        %8308 = vmatpush1.xpose.msra.mxu0 %v2611
        %8309 = vmatprep.subr.mxu0 %v2724
        %8310 = vmatpush1.xpose.msra.mxu0 %v2723
        %8311 = vmatprep.subr.mxu0 %v2836
        %8312 = vmatpush1.xpose.msra.mxu0 %v2835
        %8313 = vmatprep.subr.mxu0 %v2948
        %8314 = vmatpush1.xpose.msra.mxu0 %v2947
        %8315 = vmatprep.subr.mxu0 %v3060
        %8316 = vmatpush1.xpose.msra.mxu0 %v3059
        %8317 = vmatprep.subr.mxu0 %v3172
        %8318 = vmatpush1.xpose.msra.mxu0 %v3171
        %8319 = vmatprep.subr.mxu0 %v3284
        %8320 = vmatpush1.xpose.msra.mxu0 %v3283
        %8321 = vmatprep.subr.mxu0 %v3396
        %8322 = vmatpush1.xpose.msra.mxu0 %v3395
        %8323 = vmatprep.subr.mxu0 %v3508
        %8324 = vmatpush1.xpose.msra.mxu0 %v3507
        %8325 = vmatprep.subr.mxu0 %v3620
        %8326 = vmatpush1.xpose.msra.mxu0 %v3619
        %8327 = vmatprep.subr.mxu0 %v3732
        %8328 = vmatpush1.xpose.msra.mxu0 %v3731
        %8329 = vmatprep.subr.mxu0 %v3844
        %8330 = vmatpush1.xpose.msra.mxu0 %v3843
        %8331 = vmatprep.mubr.f32.mxu0 %v4301
        %8332 = vmatmul.mubr.f32.gmra.mrb[0].mxu0 %v4297
        %v8333 = vpop.f32.mrb[0].mxu0
        %v8334 = vadd.f32 %v8263, %v8333
        %v8335 = vpop.f32.mrb[0].mxu0
        %v8336 = vadd.f32 %v8265, %v8335
        %8337 = vdwg.mxu0
        %8338 = vmatprep.subr.mxu0 %v374
        %8339 = vmatpush1.xpose.msra.mxu0 %v373
        %8340 = vmatprep.subr.mxu0 %v486
        %8341 = vmatpush1.xpose.msra.mxu0 %v485
        %8342 = vmatprep.subr.mxu0 %v598
        %8343 = vmatpush1.xpose.msra.mxu0 %v597
        %8344 = vmatprep.subr.mxu0 %v710
        %8345 = vmatpush1.xpose.msra.mxu0 %v709
        %8346 = vmatprep.subr.mxu0 %v822
        %8347 = vmatpush1.xpose.msra.mxu0 %v821
        %8348 = vmatprep.subr.mxu0 %v934
        %8349 = vmatpush1.xpose.msra.mxu0 %v933
        %8350 = vmatprep.subr.mxu0 %v1046
        %8351 = vmatpush1.xpose.msra.mxu0 %v1045
        %8352 = vmatprep.subr.mxu0 %v1158
        %8353 = vmatpush1.xpose.msra.mxu0 %v1157
        %8354 = vmatprep.subr.mxu0 %v1270
        %8355 = vmatpush1.xpose.msra.mxu0 %v1269
        %8356 = vmatprep.subr.mxu0 %v1382
        %8357 = vmatpush1.xpose.msra.mxu0 %v1381
        %8358 = vmatprep.subr.mxu0 %v1494
        %8359 = vmatpush1.xpose.msra.mxu0 %v1493
        %8360 = vmatprep.subr.mxu0 %v1606
        %8361 = vmatpush1.xpose.msra.mxu0 %v1605
        %8362 = vmatprep.subr.mxu0 %v1718
        %8363 = vmatpush1.xpose.msra.mxu0 %v1717
        %8364 = vmatprep.subr.mxu0 %v1830
        %8365 = vmatpush1.xpose.msra.mxu0 %v1829
        %8366 = vmatprep.subr.mxu0 %v1942
        %8367 = vmatpush1.xpose.msra.mxu0 %v1941
        %8368 = vmatprep.subr.mxu0 %v2054
        %8369 = vmatpush1.xpose.msra.mxu0 %v2053
        %8370 = vmatprep.subr.mxu0 %v2166
        %8371 = vmatpush1.xpose.msra.mxu0 %v2165
        %8372 = vmatprep.subr.mxu0 %v2278
        %8373 = vmatpush1.xpose.msra.mxu0 %v2277
        %8374 = vmatprep.subr.mxu0 %v2390
        %8375 = vmatpush1.xpose.msra.mxu0 %v2389
        %8376 = vmatprep.subr.mxu0 %v2502
        %8377 = vmatpush1.xpose.msra.mxu0 %v2501
        %8378 = vmatprep.subr.mxu0 %v2614
        %8379 = vmatpush1.xpose.msra.mxu0 %v2613
        %8380 = vmatprep.subr.mxu0 %v2726
        %8381 = vmatpush1.xpose.msra.mxu0 %v2725
        %8382 = vmatprep.subr.mxu0 %v2838
        %8383 = vmatpush1.xpose.msra.mxu0 %v2837
        %8384 = vmatprep.subr.mxu0 %v2950
        %8385 = vmatpush1.xpose.msra.mxu0 %v2949
        %8386 = vmatprep.subr.mxu0 %v3062
        %8387 = vmatpush1.xpose.msra.mxu0 %v3061
        %8388 = vmatprep.subr.mxu0 %v3174
        %8389 = vmatpush1.xpose.msra.mxu0 %v3173
        %8390 = vmatprep.subr.mxu0 %v3286
        %8391 = vmatpush1.xpose.msra.mxu0 %v3285
        %8392 = vmatprep.subr.mxu0 %v3398
        %8393 = vmatpush1.xpose.msra.mxu0 %v3397
        %8394 = vmatprep.subr.mxu0 %v3510
        %8395 = vmatpush1.xpose.msra.mxu0 %v3509
        %8396 = vmatprep.subr.mxu0 %v3622
        %8397 = vmatpush1.xpose.msra.mxu0 %v3621
        %8398 = vmatprep.subr.mxu0 %v3734
        %8399 = vmatpush1.xpose.msra.mxu0 %v3733
        %8400 = vmatprep.subr.mxu0 %v3846
        %8401 = vmatpush1.xpose.msra.mxu0 %v3845
        %8402 = vmatprep.mubr.f32.mxu0 %v4309
        %8403 = vmatmul.mubr.f32.gmra.mrb[0].mxu0 %v4305
        %v8404 = vpop.f32.mrb[0].mxu0
        %v8405 = vadd.f32 %v8334, %v8404
        %v8406 = vpop.f32.mrb[0].mxu0
        %v8407 = vadd.f32 %v8336, %v8406
        %8408 = vdwg.mxu0
        %v8409 = vmul.f32 %v8405, %v8405
        %v8410 = vmul.f32 %v8407, %v8407
        %v8411 = vld [vmem:[#allocation2] sm:$0x1]
        %v8412 = vadd.f32 %v8411, %v8409
        %8413 = vst [vmem:[#allocation2] sm:$0x1] %v8412
        %v8414 = vld [vmem:[#allocation2 + $0x1] sm:$0x1]
        %v8415 = vadd.f32 %v8414, %v8410
        %8416 = vst [vmem:[#allocation2 + $0x1] sm:$0x1] %v8415
        %p8417 = scmp.eq.s32.totalorder %s22, 27
        // Predicated region
        $region41: #{linear_mse_loss.1} parent=31 // pred_check
          %p8418 = pneg %p8417
        $region42: #{linear_mse_loss.1} parent=31 // pred_check_branch
          %8420 = sbr.rel (%p8418) target = $region44
        $region43: #{linear_mse_loss.1} parent=31 // pred_region
          %v8421 = vld [vmem:[#allocation2] sm:$0xff]
          %8422 = vst [vmem:[%s243] sm:$0xff] %v8421
        $region44: #{linear_mse_loss.1} parent=31 // pred_fallthru
          _
        %p8423 = scmp.lt.s32.totalorder %s21, 1
        %s8424 = scalar_select %p8423, %s21, 1
        %s8425 = smul.addr %s8424, 8
        %s8426 = scalar_lea.vmem %s3, %s8425
        // Predicated region
        $region45: #{linear_mse_loss.1} parent=31 // pred_check
          %p8427 = pneg %p128
        $region46: #{linear_mse_loss.1} parent=31 // pred_check_branch
          %8429 = sbr.rel (%p8427) target = $region48
        $region47: #{linear_mse_loss.1} parent=31 // pred_region
          _
        $region48: #{linear_mse_loss.1} parent=31 // pred_fallthru
          _
      $region32: #{linear_mse_loss.1} parent=5 // pred_fallthru
        _
      %p8430 = scmp.le.s32.totalorder 2, %s12
      // Predicated region
      $region49: #{linear_mse_loss.1} parent=5 // pred_check
        %p8431 = pneg %p8430
      $region50: #{linear_mse_loss.1} parent=5 // pred_check_branch
        %8433 = sbr.rel (%p8431) target = $region52
      $region51: #{linear_mse_loss.1} parent=5 // pred_region
        %s8434 = ssub.s32 %s12, 2
        // Predicated region
        $region53: #{linear_mse_loss.1} parent=51 // pred_check
          %p8435 = pneg %p134
        $region54: #{linear_mse_loss.1} parent=51 // pred_check_branch
          %8437 = sbr.rel (%p8435) target = $region56
        $region55: #{linear_mse_loss.1} parent=51 // pred_region
          %p8438 = scmp.lt.s32.totalorder %s23, 1
          %s8439 = scalar_select %p8438, %s23, 1
          %s8440 = smul.addr %s8439, 8
          %s8441 = scalar_lea.vmem %s3, %s8440
        $region56: #{linear_mse_loss.1} parent=51 // pred_fallthru
          _
      $region52: #{linear_mse_loss.1} parent=5 // pred_fallthru
        _
    $region6: #{linear_mse_loss.1} parent=1 // loop_footer
      %s16 = sadd.s32 1, %s12
    $region7: #{linear_mse_loss.1} parent=1 // loop_footer_branch
      %11 = sbr.rel target = $region3
    $region8: #{linear_mse_loss.1} parent=1 // loop_exit
      _
    %8442 = vsyncpa [#allocation4], 1
    %s8443 = scalar_lea.sflag [#allocation4], 1
    %8444 = vsyncpa %s8443, 1

</llo_original>
